<compile_context>
chip_gen: v5e
topology: v5e:2x2
jax: 0.10.0
libtpu: 0.0.40
codegen_flags: <defaults>
</compile_context>

<pallas_src>
import functools

import jax
import jax.numpy as jnp
from jax.experimental import pallas as pl
from jax.experimental.pallas import tpu as pltpu


# ---------------------------------------------------------------------------
# Kernel
# ---------------------------------------------------------------------------
def seq2seq_kernel(enc_in_ref, acc_ref,
                   w_enc_in_ref, we0_hh_ref, we1_stack_ref,
                   w_da_ref, wd0_stack_ref, wd1_stack_ref,
                   w_out_ref, biases_ref, b_out_ref,
                   out_ref,
                   enc_scr, dec_scr, hd1_scr,
                   *, B, T_in, T_pred):
    G = we0_hh_ref.shape[1]          # 4H
    H = G // 4
    out_dim = out_ref.shape[1]
    f32 = jnp.float32
    wdt = we0_hh_ref.dtype           # dtype of the large recurrent weights (f32 or bf16)

    # ---- Hoisted prologue: input-dependent layer-0 gate pre-activations --------------
    # (encoder_input_fc / decoder_input_fc already folded into these weights)
    enc_scr[...] = (jnp.dot(enc_in_ref[...], w_enc_in_ref[...],
                            preferred_element_type=f32)
                    + biases_ref[0:1, :])                       # b_e0
    dec_scr[...] = (jnp.dot(acc_ref[...], w_da_ref[...],
                            preferred_element_type=f32)
                    + biases_ref[2:3, :])                       # b_d0

    # ---- Hoisted bias broadcasts (JAX does not CSE broadcast_in_dim in unrolled loops)
    be1_b = jnp.broadcast_to(biases_ref[1:2, :], (B, G))
    b_fb_b = jnp.broadcast_to(biases_ref[3:4, :], (B, G))
    bd1_b = jnp.broadcast_to(biases_ref[4:5, :], (B, G))

    def cell(gates, c):
        # H is a multiple of 128 -> every gate slice is lane-aligned; PyTorch order i,f,g,o.
        i = jax.nn.sigmoid(gates[:, 0 * H:1 * H])
        f = jax.nn.sigmoid(gates[:, 1 * H:2 * H])
        g = jnp.tanh(gates[:, 2 * H:3 * H])
        o = jax.nn.sigmoid(gates[:, 3 * H:4 * H])
        c_new = f * c + i * g
        return o * jnp.tanh(c_new), c_new

    zero = jnp.zeros((B, H), f32)
    h0, c0, h1, c1 = zero, zero, zero, zero

    # ---------------- Encoder: only h-dependent dots remain on the serial chain --------
    for t in range(T_in):                                   # static -> unrolled
        g0 = (enc_scr[t * B:(t + 1) * B, :]
              + jnp.dot(h0.astype(wdt), we0_hh_ref[...], preferred_element_type=f32))
        h0, c0 = cell(g0, c0)
        # Fused layer-1: one (B,2H)@(2H,4H) push instead of two (B,H)@(H,4H).
        h01 = jnp.concatenate([h0, h1], axis=1).astype(wdt)
        g1 = jnp.dot(h01, we1_stack_ref[...], preferred_element_type=f32) + be1_b
        h1, c1 = cell(g1, c1)

    # ---------------- Decoder: autoregressive rollout ----------------------------------
    hd0, cd0, hd1, cd1 = h0, c0, h1, c1
    for t in range(T_pred):                                 # static -> unrolled
        if t == 0:
            # decoder_input == zeros at t == 0: no feedback term, no b_fb.
            g0 = (dec_scr[0:B, :]
                  + jnp.dot(hd0.astype(wdt), wd0_stack_ref[0:H, :],
                            preferred_element_type=f32))
        else:
            # Feedback folded into layer-0: one fused push covers hd0@wd0_hh + hd1@w_fb.
            h_fb = jnp.concatenate([hd0, hd1], axis=1).astype(wdt)
            g0 = (dec_scr[t * B:(t + 1) * B, :] + b_fb_b
                  + jnp.dot(h_fb, wd0_stack_ref[...], preferred_element_type=f32))
        hd0, cd0 = cell(g0, cd0)
        h01 = jnp.concatenate([hd0, hd1], axis=1).astype(wdt)
        g1 = jnp.dot(h01, wd1_stack_ref[...], preferred_element_type=f32) + bd1_b
        hd1, cd1 = cell(g1, cd1)
        # Park hd1 (lane-dense H=128 store); output projection happens once, after the loop.
        hd1_scr[t * B:(t + 1) * B, :] = hd1

    # ---------------- Output projection: single batched matmul + single store ----------
    proj = jnp.dot(hd1_scr[...].astype(wdt), w_out_ref[...], preferred_element_type=f32)
    out_ref[...] = (proj + jnp.broadcast_to(b_out_ref[...], (T_pred * B, out_dim))
                    ).astype(out_ref.dtype)


# ---------------------------------------------------------------------------
# One-time (model-load) parameter preparation: algebraic folds + stacking + casting.
# Kept OUT of the per-call jitted path per the performance review.
# ---------------------------------------------------------------------------
def prepare_params(params, weights_dtype=jnp.float32):
    f32 = jnp.float32

    # Exact linear folds of the three Linear layers into the layer-0 LSTM ih paths.
    w_enc_in = params["w_enc_fc"] @ params["we0_ih"]                      # (14, 4H)
    b_e0 = params["b_enc_fc"] @ params["we0_ih"] + params["be0"]          # (1, 4H)
    w_da = params["w_dec_a"] @ params["wd0_ih"]                           # (3, 4H)
    b_d0 = params["b_dec"] @ params["wd0_ih"] + params["bd0"]             # (1, 4H)
    w_dp = params["w_dec_p"] @ params["wd0_ih"]                           # (8, 4H)
    w_fb = params["w_out"] @ w_dp                                         # (H, 4H)
    b_fb = params["b_out"] @ w_dp                                         # (1, 4H)

    # K-concat stacked recurrent weights (one fused matmul per layer per step).
    we1_stack = jnp.concatenate([params["we1_ih"], params["we1_hh"]], axis=0)   # (2H,4H)
    wd0_stack = jnp.concatenate([params["wd0_hh"], w_fb], axis=0)               # (2H,4H)
    wd1_stack = jnp.concatenate([params["wd1_ih"], params["wd1_hh"]], axis=0)   # (2H,4H)

    # All 4H-wide biases travel as one slab: rows = [b_e0, be1, b_d0, b_fb, bd1].
    biases = jnp.concatenate([b_e0, params["be1"], b_d0, b_fb, params["bd1"]],
                             axis=0)                                            # (5, 4H)

    return dict(
        w_enc_in=w_enc_in.astype(f32),
        w_da=w_da.astype(f32),
        we0_hh=params["we0_hh"].astype(weights_dtype),
        we1_stack=we1_stack.astype(weights_dtype),
        wd0_stack=wd0_stack.astype(weights_dtype),
        wd1_stack=wd1_stack.astype(weights_dtype),
        w_out=params["w_out"].astype(weights_dtype),
        biases=biases.astype(f32),
        b_out=params["b_out"].astype(f32),
    )


# ---------------------------------------------------------------------------
# Per-call wrapper: layout plumbing + pallas_call (jitted: one dispatch)
# ---------------------------------------------------------------------------
@jax.jit
def seq2seq_forward(past_pressure, past_speed, future_acc, kp):
    """past_pressure (B,T_in,8), past_speed (B,T_in,6), future_acc (B,T_pred,3)
       -> (B, T_pred, output_dim)."""
    B, T_in, _ = past_pressure.shape
    T_pred = future_acc.shape[1]
    H = kp["we0_hh"].shape[0]
    G = 4 * H
    out_dim = kp["w_out"].shape[1]
    f32 = jnp.float32

    # Time-major flatten so per-step kernel slices are contiguous rows.
    enc_in = jnp.concatenate([past_pressure, past_speed], axis=-1)
    enc_inT = jnp.transpose(enc_in, (1, 0, 2)).reshape(T_in * B, -1).astype(f32)
    accT = jnp.transpose(future_acc, (1, 0, 2)).reshape(T_pred * B, -1).astype(f32)

    kernel = functools.partial(seq2seq_kernel, B=B, T_in=T_in, T_pred=T_pred)
    args = (enc_inT, accT,
            kp["w_enc_in"], kp["we0_hh"], kp["we1_stack"],
            kp["w_da"], kp["wd0_stack"], kp["wd1_stack"],
            kp["w_out"], kp["biases"], kp["b_out"])

    vmem = pl.BlockSpec(memory_space=pltpu.MemorySpace.VMEM)
    out_flat = pl.pallas_call(
        kernel,
        out_shape=jax.ShapeDtypeStruct((T_pred * B, out_dim), f32),
        in_specs=[vmem] * len(args),
        out_specs=vmem,
        scratch_shapes=[pltpu.VMEM((T_in * B, G), f32),     # encoder layer-0 preacts
                        pltpu.VMEM((T_pred * B, G), f32),   # decoder layer-0 preacts
                        pltpu.VMEM((T_pred * B, H), f32)],  # hd1 slab for batched proj
    )(*args)

    # (T_pred*B, out) -> (B, T_pred, out); tiny, fused into the same jit.
    return jnp.transpose(out_flat.reshape(T_pred, B, out_dim), (1, 0, 2))


# ---------------------------------------------------------------------------
# Deterministic parameter construction (shapes per the PyTorch __init__; (in, out)
# layout, LSTM biases stored as the combined b_ih + b_hh)
# ---------------------------------------------------------------------------
def init_params(key, input_dim=14, condition_dim=3, output_dim=8, hidden=128):
    ks = iter(jax.random.split(key, 24))

    def w(shape, scale):
        return scale * jax.random.normal(next(ks), shape, jnp.float32)

    p = {}
    p["w_enc_fc"] = w((input_dim, hidden), 0.1)
    p["b_enc_fc"] = w((1, hidden), 0.05)
    for name in ("e0", "e1", "d0", "d1"):
        p[f"w{name}_ih"] = w((hidden, 4 * hidden), 0.08)
        p[f"w{name}_hh"] = w((hidden, 4 * hidden), 0.08)
        p[f"b{name}"] = w((1, 4 * hidden), 0.05)
    p["w_dec_p"] = w((output_dim, hidden), 0.1)
    p["w_dec_a"] = w((condition_dim, hidden), 0.1)
    p["b_dec"] = w((1, hidden), 0.05)
    p["w_out"] = w((hidden, output_dim), 0.1)
    p["b_out"] = w((1, output_dim), 0.05)
    return p


# ---------------------------------------------------------------------------
# Pure-JAX reference (unfolded, mirrors the PyTorch forward) for correctness check
# ---------------------------------------------------------------------------
def reference_forward(past_pressure, past_speed, future_acc, params):
    H = params["we0_hh"].shape[0]

    def lstm_step(x, h, c, w_ih, w_hh, b):
        g = x @ w_ih + h @ w_hh + b
        i = jax.nn.sigmoid(g[:, :H])
        f = jax.nn.sigmoid(g[:, H:2 * H])
        gg = jnp.tanh(g[:, 2 * H:3 * H])
        o = jax.nn.sigmoid(g[:, 3 * H:])
        c_new = f * c + i * gg
        return o * jnp.tanh(c_new), c_new

    enc_in = jnp.concatenate([past_pressure, past_speed], axis=-1)
    B, T_in, _ = enc_in.shape
    T_pred = future_acc.shape[1]
    h0 = c0 = h1 = c1 = jnp.zeros((B, H), jnp.float32)
    for t in range(T_in):
        xf = enc_in[:, t, :] @ params["w_enc_fc"] + params["b_enc_fc"]
        h0, c0 = lstm_step(xf, h0, c0, params["we0_ih"], params["we0_hh"], params["be0"])
        h1, c1 = lstm_step(h0, h1, c1, params["we1_ih"], params["we1_hh"], params["be1"])
    out_dim = params["w_out"].shape[1]
    dec_in = jnp.zeros((B, out_dim), jnp.float32)
    hd0, cd0, hd1, cd1 = h0, c0, h1, c1
    preds = []
    for t in range(T_pred):
        xf = (dec_in @ params["w_dec_p"] + future_acc[:, t, :] @ params["w_dec_a"]
              + params["b_dec"])
        hd0, cd0 = lstm_step(xf, hd0, cd0, params["wd0_ih"], params["wd0_hh"], params["bd0"])
        hd1, cd1 = lstm_step(hd0, hd1, cd1, params["wd1_ih"], params["wd1_hh"], params["bd1"])
        pred = hd1 @ params["w_out"] + params["b_out"]
        preds.append(pred)
        dec_in = pred
    return jnp.stack(preds, axis=1)


# ---------------------------------------------------------------------------
if __name__ == "__main__":
    B, T_in, T_pred = 8, 8, 5          # B=8 fills the 8 sublanes of each vreg
    hidden = 128                       # module default; gate slices are 128-lane aligned
    key = jax.random.PRNGKey(0)
    k_p, k_s, k_a, k_w = jax.random.split(key, 4)

    past_pressure = jax.random.normal(k_p, (B, T_in, 8), jnp.float32)
    past_speed = jax.random.normal(k_s, (B, T_in, 6), jnp.float32)
    future_acc = jax.random.normal(k_a, (B, T_pred, 3), jnp.float32)
    params = init_params(k_w, hidden=hidden)

    ref = reference_forward(past_pressure, past_speed, future_acc, params)

    # ---- f32 weight path: exact parity with the unfolded f32 reference ----
    kp_f32 = prepare_params(params, weights_dtype=jnp.float32)   # one-time, model-load
    preds = jax.block_until_ready(
        seq2seq_forward(past_pressure, past_speed, future_acc, kp_f32))
    assert preds.shape == (B, T_pred, 8), preds.shape
    max_err = float(jnp.max(jnp.abs(preds - ref)))
    assert jnp.allclose(preds, ref, rtol=1e-4, atol=1e-4), max_err

    # ---- bf16 weight path (perf): same kernel, big weights in bf16, f32 accumulation ----
    kp_bf16 = prepare_params(params, weights_dtype=jnp.bfloat16)
    preds_bf16 = jax.block_until_ready(
        seq2seq_forward(past_pressure, past_speed, future_acc, kp_bf16))
    max_err_bf16 = float(jnp.max(jnp.abs(preds_bf16 - ref)))
    assert jnp.allclose(preds_bf16, ref, rtol=5e-2, atol=5e-2), max_err_bf16

    print("KERNEL_OK")
</pallas_src>

<mosaic_0001>
module attributes {stable_mosaic.version = 11 : i64} {
  func.func @seq2seq_kernel(%arg0: memref<64x14xf32, #tpu.memory_space<vmem>>, %arg1: memref<40x3xf32, #tpu.memory_space<vmem>>, %arg2: memref<14x512xf32, #tpu.memory_space<vmem>>, %arg3: memref<128x512xf32, #tpu.memory_space<vmem>>, %arg4: memref<256x512xf32, #tpu.memory_space<vmem>>, %arg5: memref<3x512xf32, #tpu.memory_space<vmem>>, %arg6: memref<256x512xf32, #tpu.memory_space<vmem>>, %arg7: memref<256x512xf32, #tpu.memory_space<vmem>>, %arg8: memref<128x8xf32, #tpu.memory_space<vmem>>, %arg9: memref<5x512xf32, #tpu.memory_space<vmem>>, %arg10: memref<1x8xf32, #tpu.memory_space<vmem>>, %arg11: memref<40x8xf32, #tpu.memory_space<vmem>>, %arg12: memref<64x512xf32, #tpu.memory_space<vmem>>, %arg13: memref<40x512xf32, #tpu.memory_space<vmem>>, %arg14: memref<40x128xf32, #tpu.memory_space<vmem>>) attributes {dimension_semantics = [], scalar_prefetch = 0 : i64, scratch_operands = 3 : i64, tpu.core_type = #tpu.core_type<tc>} {
    %c0 = arith.constant 0 : index
    %c0_0 = arith.constant 0 : index
    %0 = vector.load %arg0[%c0, %c0_0] : memref<64x14xf32, #tpu.memory_space<vmem>>, vector<64x14xf32>
    %c0_1 = arith.constant 0 : index
    %c0_2 = arith.constant 0 : index
    %1 = vector.load %arg2[%c0_1, %c0_2] : memref<14x512xf32, #tpu.memory_space<vmem>>, vector<14x512xf32>
    %cst = arith.constant dense<0.000000e+00> : vector<64x512xf32>
    %2 = tpu.matmul %0, %1, %cst {dimension_numbers = #tpu.dot_dimension_numbers<[1], [0], [0], [1], [0, 0, 1, 1], [], []>} : vector<64x14xf32>, vector<14x512xf32>, vector<64x512xf32> -> vector<64x512xf32>
    %c0_3 = arith.constant 0 : index
    %c0_4 = arith.constant 0 : index
    %3 = vector.load %arg9[%c0_3, %c0_4] : memref<5x512xf32, #tpu.memory_space<vmem>>, vector<1x512xf32>
    %4 = vector.broadcast %3 : vector<1x512xf32> to vector<64x512xf32>
    %5 = arith.addf %2, %4 : vector<64x512xf32>
    %c0_5 = arith.constant 0 : index
    %c0_6 = arith.constant 0 : index
    %6 = vector.load %arg12[%c0_5, %c0_6] : memref<64x512xf32, #tpu.memory_space<vmem>>, vector<64x512xf32>
    tpu.vector_store %arg12[%c0_5, %c0_6], %5 {strides = array<i32>} : memref<64x512xf32, #tpu.memory_space<vmem>>, vector<64x512xf32>,
    %c0_7 = arith.constant 0 : index
    %c0_8 = arith.constant 0 : index
    %7 = vector.load %arg1[%c0_7, %c0_8] : memref<40x3xf32, #tpu.memory_space<vmem>>, vector<40x3xf32>
    %c0_9 = arith.constant 0 : index
    %c0_10 = arith.constant 0 : index
    %8 = vector.load %arg5[%c0_9, %c0_10] : memref<3x512xf32, #tpu.memory_space<vmem>>, vector<3x512xf32>
    %cst_11 = arith.constant dense<0.000000e+00> : vector<40x512xf32>
    %9 = tpu.matmul %7, %8, %cst_11 {dimension_numbers = #tpu.dot_dimension_numbers<[1], [0], [0], [1], [0, 0, 1, 1], [], []>} : vector<40x3xf32>, vector<3x512xf32>, vector<40x512xf32> -> vector<40x512xf32>
    %c2 = arith.constant 2 : index
    %c0_12 = arith.constant 0 : index
    %10 = vector.load %arg9[%c2, %c0_12] : memref<5x512xf32, #tpu.memory_space<vmem>>, vector<1x512xf32>
    %11 = vector.broadcast %10 : vector<1x512xf32> to vector<40x512xf32>
    %12 = arith.addf %9, %11 : vector<40x512xf32>
    %c0_13 = arith.constant 0 : index
    %c0_14 = arith.constant 0 : index
    %13 = vector.load %arg13[%c0_13, %c0_14] : memref<40x512xf32, #tpu.memory_space<vmem>>, vector<40x512xf32>
    tpu.vector_store %arg13[%c0_13, %c0_14], %12 {strides = array<i32>} : memref<40x512xf32, #tpu.memory_space<vmem>>, vector<40x512xf32>,
    %c1 = arith.constant 1 : index
    %c0_15 = arith.constant 0 : index
    %14 = vector.load %arg9[%c1, %c0_15] : memref<5x512xf32, #tpu.memory_space<vmem>>, vector<1x512xf32>
    %15 = vector.shape_cast %14 : vector<1x512xf32> to vector<1x512xf32>
    %16 = vector.broadcast %15 : vector<1x512xf32> to vector<8x512xf32>
    %c3 = arith.constant 3 : index
    %c0_16 = arith.constant 0 : index
    %17 = vector.load %arg9[%c3, %c0_16] : memref<5x512xf32, #tpu.memory_space<vmem>>, vector<1x512xf32>
    %18 = vector.shape_cast %17 : vector<1x512xf32> to vector<1x512xf32>
    %19 = vector.broadcast %18 : vector<1x512xf32> to vector<8x512xf32>
    %c4 = arith.constant 4 : index
    %c0_17 = arith.constant 0 : index
    %20 = vector.load %arg9[%c4, %c0_17] : memref<5x512xf32, #tpu.memory_space<vmem>>, vector<1x512xf32>
    %21 = vector.shape_cast %20 : vector<1x512xf32> to vector<1x512xf32>
    %22 = vector.broadcast %21 : vector<1x512xf32> to vector<8x512xf32>
    %cst_18 = arith.constant 0.000000e+00 : f32
    %23 = vector.broadcast %cst_18 : f32 to vector<8x128xf32>
    %c0_19 = arith.constant 0 : index
    %c0_20 = arith.constant 0 : index
    %24 = vector.load %arg12[%c0_19, %c0_20] : memref<64x512xf32, #tpu.memory_space<vmem>>, vector<8x512xf32>
    %c0_21 = arith.constant 0 : index
    %c0_22 = arith.constant 0 : index
    %25 = vector.load %arg3[%c0_21, %c0_22] : memref<128x512xf32, #tpu.memory_space<vmem>>, vector<128x512xf32>
    %cst_23 = arith.constant dense<0.000000e+00> : vector<8x512xf32>
    %26 = tpu.matmul %23, %25, %cst_23 {dimension_numbers = #tpu.dot_dimension_numbers<[1], [0], [0], [1], [0, 0, 1, 1], [], []>} : vector<8x128xf32>, vector<128x512xf32>, vector<8x512xf32> -> vector<8x512xf32>
    %27 = arith.addf %24, %26 : vector<8x512xf32>
    %28 = vector.extract_strided_slice %27 {offsets = [0, 0], sizes = [8, 128], strides = [1, 1]} : vector<8x512xf32> to vector<8x128xf32>
    %29 = arith.negf %28 : vector<8x128xf32>
    %30 = math.exp %29 : vector<8x128xf32>
    %cst_24 = arith.constant 1.000000e+00 : f32
    %31 = vector.broadcast %cst_24 : f32 to vector<8x128xf32>
    %32 = arith.addf %31, %30 : vector<8x128xf32>
    %33 = arith.divf %31, %32 : vector<8x128xf32>
    %34 = vector.extract_strided_slice %27 {offsets = [0, 128], sizes = [8, 128], strides = [1, 1]} : vector<8x512xf32> to vector<8x128xf32>
    %35 = arith.negf %34 : vector<8x128xf32>
    %36 = math.exp %35 : vector<8x128xf32>
    %cst_25 = arith.constant 1.000000e+00 : f32
    %37 = vector.broadcast %cst_25 : f32 to vector<8x128xf32>
    %38 = arith.addf %37, %36 : vector<8x128xf32>
    %39 = arith.divf %37, %38 : vector<8x128xf32>
    %40 = vector.extract_strided_slice %27 {offsets = [0, 256], sizes = [8, 128], strides = [1, 1]} : vector<8x512xf32> to vector<8x128xf32>
    %41 = math.tanh %40 : vector<8x128xf32>
    %42 = vector.extract_strided_slice %27 {offsets = [0, 384], sizes = [8, 128], strides = [1, 1]} : vector<8x512xf32> to vector<8x128xf32>
    %43 = arith.negf %42 : vector<8x128xf32>
    %44 = math.exp %43 : vector<8x128xf32>
    %cst_26 = arith.constant 1.000000e+00 : f32
    %45 = vector.broadcast %cst_26 : f32 to vector<8x128xf32>
    %46 = arith.addf %45, %44 : vector<8x128xf32>
    %47 = arith.divf %45, %46 : vector<8x128xf32>
    %48 = arith.mulf %39, %23 : vector<8x128xf32>
    %49 = arith.mulf %33, %41 : vector<8x128xf32>
    %50 = arith.addf %48, %49 : vector<8x128xf32>
    %51 = math.tanh %50 : vector<8x128xf32>
    %52 = arith.mulf %47, %51 : vector<8x128xf32>
    %53 = tpu.concatenate %52, %23 in 1 : vector<8x128xf32>, vector<8x128xf32> -> vector<8x256xf32>
    %c0_27 = arith.constant 0 : index
    %c0_28 = arith.constant 0 : index
    %54 = vector.load %arg4[%c0_27, %c0_28] : memref<256x512xf32, #tpu.memory_space<vmem>>, vector<256x512xf32>
    %cst_29 = arith.constant dense<0.000000e+00> : vector<8x512xf32>
    %55 = tpu.matmul %53, %54, %cst_29 {dimension_numbers = #tpu.dot_dimension_numbers<[1], [0], [0], [1], [0, 0, 1, 1], [], []>} : vector<8x256xf32>, vector<256x512xf32>, vector<8x512xf32> -> vector<8x512xf32>
    %56 = arith.addf %55, %16 : vector<8x512xf32>
    %57 = vector.extract_strided_slice %56 {offsets = [0, 0], sizes = [8, 128], strides = [1, 1]} : vector<8x512xf32> to vector<8x128xf32>
    %58 = arith.negf %57 : vector<8x128xf32>
    %59 = math.exp %58 : vector<8x128xf32>
    %cst_30 = arith.constant 1.000000e+00 : f32
    %60 = vector.broadcast %cst_30 : f32 to vector<8x128xf32>
    %61 = arith.addf %60, %59 : vector<8x128xf32>
    %62 = arith.divf %60, %61 : vector<8x128xf32>
    %63 = vector.extract_strided_slice %56 {offsets = [0, 128], sizes = [8, 128], strides = [1, 1]} : vector<8x512xf32> to vector<8x128xf32>
    %64 = arith.negf %63 : vector<8x128xf32>
    %65 = math.exp %64 : vector<8x128xf32>
    %cst_31 = arith.constant 1.000000e+00 : f32
    %66 = vector.broadcast %cst_31 : f32 to vector<8x128xf32>
    %67 = arith.addf %66, %65 : vector<8x128xf32>
    %68 = arith.divf %66, %67 : vector<8x128xf32>
    %69 = vector.extract_strided_slice %56 {offsets = [0, 256], sizes = [8, 128], strides = [1, 1]} : vector<8x512xf32> to vector<8x128xf32>
    %70 = math.tanh %69 : vector<8x128xf32>
    %71 = vector.extract_strided_slice %56 {offsets = [0, 384], sizes = [8, 128], strides = [1, 1]} : vector<8x512xf32> to vector<8x128xf32>
    %72 = arith.negf %71 : vector<8x128xf32>
    %73 = math.exp %72 : vector<8x128xf32>
    %cst_32 = arith.constant 1.000000e+00 : f32
    %74 = vector.broadcast %cst_32 : f32 to vector<8x128xf32>
    %75 = arith.addf %74, %73 : vector<8x128xf32>
    %76 = arith.divf %74, %75 : vector<8x128xf32>
    %77 = arith.mulf %68, %23 : vector<8x128xf32>
    %78 = arith.mulf %62, %70 : vector<8x128xf32>
    %79 = arith.addf %77, %78 : vector<8x128xf32>
    %80 = math.tanh %79 : vector<8x128xf32>
    %81 = arith.mulf %76, %80 : vector<8x128xf32>
    %c8 = arith.constant 8 : index
    %c0_33 = arith.constant 0 : index
    %82 = vector.load %arg12[%c8, %c0_33] : memref<64x512xf32, #tpu.memory_space<vmem>>, vector<8x512xf32>
    %c0_34 = arith.constant 0 : index
    %c0_35 = arith.constant 0 : index
    %83 = vector.load %arg3[%c0_34, %c0_35] : memref<128x512xf32, #tpu.memory_space<vmem>>, vector<128x512xf32>
    %cst_36 = arith.constant dense<0.000000e+00> : vector<8x512xf32>
    %84 = tpu.matmul %52, %83, %cst_36 {dimension_numbers = #tpu.dot_dimension_numbers<[1], [0], [0], [1], [0, 0, 1, 1], [], []>} : vector<8x128xf32>, vector<128x512xf32>, vector<8x512xf32> -> vector<8x512xf32>
    %85 = arith.addf %82, %84 : vector<8x512xf32>
    %86 = vector.extract_strided_slice %85 {offsets = [0, 0], sizes = [8, 128], strides = [1, 1]} : vector<8x512xf32> to vector<8x128xf32>
    %87 = arith.negf %86 : vector<8x128xf32>
    %88 = math.exp %87 : vector<8x128xf32>
    %cst_37 = arith.constant 1.000000e+00 : f32
    %89 = vector.broadcast %cst_37 : f32 to vector<8x128xf32>
    %90 = arith.addf %89, %88 : vector<8x128xf32>
    %91 = arith.divf %89, %90 : vector<8x128xf32>
    %92 = vector.extract_strided_slice %85 {offsets = [0, 128], sizes = [8, 128], strides = [1, 1]} : vector<8x512xf32> to vector<8x128xf32>
    %93 = arith.negf %92 : vector<8x128xf32>
    %94 = math.exp %93 : vector<8x128xf32>
    %cst_38 = arith.constant 1.000000e+00 : f32
    %95 = vector.broadcast %cst_38 : f32 to vector<8x128xf32>
    %96 = arith.addf %95, %94 : vector<8x128xf32>
    %97 = arith.divf %95, %96 : vector<8x128xf32>
    %98 = vector.extract_strided_slice %85 {offsets = [0, 256], sizes = [8, 128], strides = [1, 1]} : vector<8x512xf32> to vector<8x128xf32>
    %99 = math.tanh %98 : vector<8x128xf32>
    %100 = vector.extract_strided_slice %85 {offsets = [0, 384], sizes = [8, 128], strides = [1, 1]} : vector<8x512xf32> to vector<8x128xf32>
    %101 = arith.negf %100 : vector<8x128xf32>
    %102 = math.exp %101 : vector<8x128xf32>
    %cst_39 = arith.constant 1.000000e+00 : f32
    %103 = vector.broadcast %cst_39 : f32 to vector<8x128xf32>
    %104 = arith.addf %103, %102 : vector<8x128xf32>
    %105 = arith.divf %103, %104 : vector<8x128xf32>
    %106 = arith.mulf %97, %50 : vector<8x128xf32>
    %107 = arith.mulf %91, %99 : vector<8x128xf32>
    %108 = arith.addf %106, %107 : vector<8x128xf32>
    %109 = math.tanh %108 : vector<8x128xf32>
    %110 = arith.mulf %105, %109 : vector<8x128xf32>
    %111 = tpu.concatenate %110, %81 in 1 : vector<8x128xf32>, vector<8x128xf32> -> vector<8x256xf32>
    %c0_40 = arith.constant 0 : index
    %c0_41 = arith.constant 0 : index
    %112 = vector.load %arg4[%c0_40, %c0_41] : memref<256x512xf32, #tpu.memory_space<vmem>>, vector<256x512xf32>
    %cst_42 = arith.constant dense<0.000000e+00> : vector<8x512xf32>
    %113 = tpu.matmul %111, %112, %cst_42 {dimension_numbers = #tpu.dot_dimension_numbers<[1], [0], [0], [1], [0, 0, 1, 1], [], []>} : vector<8x256xf32>, vector<256x512xf32>, vector<8x512xf32> -> vector<8x512xf32>
    %114 = arith.addf %113, %16 : vector<8x512xf32>
    %115 = vector.extract_strided_slice %114 {offsets = [0, 0], sizes = [8, 128], strides = [1, 1]} : vector<8x512xf32> to vector<8x128xf32>
    %116 = arith.negf %115 : vector<8x128xf32>
    %117 = math.exp %116 : vector<8x128xf32>
    %cst_43 = arith.constant 1.000000e+00 : f32
    %118 = vector.broadcast %cst_43 : f32 to vector<8x128xf32>
    %119 = arith.addf %118, %117 : vector<8x128xf32>
    %120 = arith.divf %118, %119 : vector<8x128xf32>
    %121 = vector.extract_strided_slice %114 {offsets = [0, 128], sizes = [8, 128], strides = [1, 1]} : vector<8x512xf32> to vector<8x128xf32>
    %122 = arith.negf %121 : vector<8x128xf32>
    %123 = math.exp %122 : vector<8x128xf32>
    %cst_44 = arith.constant 1.000000e+00 : f32
    %124 = vector.broadcast %cst_44 : f32 to vector<8x128xf32>
    %125 = arith.addf %124, %123 : vector<8x128xf32>
    %126 = arith.divf %124, %125 : vector<8x128xf32>
    %127 = vector.extract_strided_slice %114 {offsets = [0, 256], sizes = [8, 128], strides = [1, 1]} : vector<8x512xf32> to vector<8x128xf32>
    %128 = math.tanh %127 : vector<8x128xf32>
    %129 = vector.extract_strided_slice %114 {offsets = [0, 384], sizes = [8, 128], strides = [1, 1]} : vector<8x512xf32> to vector<8x128xf32>
    %130 = arith.negf %129 : vector<8x128xf32>
    %131 = math.exp %130 : vector<8x128xf32>
    %cst_45 = arith.constant 1.000000e+00 : f32
    %132 = vector.broadcast %cst_45 : f32 to vector<8x128xf32>
    %133 = arith.addf %132, %131 : vector<8x128xf32>
    %134 = arith.divf %132, %133 : vector<8x128xf32>
    %135 = arith.mulf %126, %79 : vector<8x128xf32>
    %136 = arith.mulf %120, %128 : vector<8x128xf32>
    %137 = arith.addf %135, %136 : vector<8x128xf32>
    %138 = math.tanh %137 : vector<8x128xf32>
    %139 = arith.mulf %134, %138 : vector<8x128xf32>
    %c16 = arith.constant 16 : index
    %c0_46 = arith.constant 0 : index
    %140 = vector.load %arg12[%c16, %c0_46] : memref<64x512xf32, #tpu.memory_space<vmem>>, vector<8x512xf32>
    %c0_47 = arith.constant 0 : index
    %c0_48 = arith.constant 0 : index
    %141 = vector.load %arg3[%c0_47, %c0_48] : memref<128x512xf32, #tpu.memory_space<vmem>>, vector<128x512xf32>
    %cst_49 = arith.constant dense<0.000000e+00> : vector<8x512xf32>
    %142 = tpu.matmul %110, %141, %cst_49 {dimension_numbers = #tpu.dot_dimension_numbers<[1], [0], [0], [1], [0, 0, 1, 1], [], []>} : vector<8x128xf32>, vector<128x512xf32>, vector<8x512xf32> -> vector<8x512xf32>
    %143 = arith.addf %140, %142 : vector<8x512xf32>
    %144 = vector.extract_strided_slice %143 {offsets = [0, 0], sizes = [8, 128], strides = [1, 1]} : vector<8x512xf32> to vector<8x128xf32>
    %145 = arith.negf %144 : vector<8x128xf32>
    %146 = math.exp %145 : vector<8x128xf32>
    %cst_50 = arith.constant 1.000000e+00 : f32
    %147 = vector.broadcast %cst_50 : f32 to vector<8x128xf32>
    %148 = arith.addf %147, %146 : vector<8x128xf32>
    %149 = arith.divf %147, %148 : vector<8x128xf32>
    %150 = vector.extract_strided_slice %143 {offsets = [0, 128], sizes = [8, 128], strides = [1, 1]} : vector<8x512xf32> to vector<8x128xf32>
    %151 = arith.negf %150 : vector<8x128xf32>
    %152 = math.exp %151 : vector<8x128xf32>
    %cst_51 = arith.constant 1.000000e+00 : f32
    %153 = vector.broadcast %cst_51 : f32 to vector<8x128xf32>
    %154 = arith.addf %153, %152 : vector<8x128xf32>
    %155 = arith.divf %153, %154 : vector<8x128xf32>
    %156 = vector.extract_strided_slice %143 {offsets = [0, 256], sizes = [8, 128], strides = [1, 1]} : vector<8x512xf32> to vector<8x128xf32>
    %157 = math.tanh %156 : vector<8x128xf32>
    %158 = vector.extract_strided_slice %143 {offsets = [0, 384], sizes = [8, 128], strides = [1, 1]} : vector<8x512xf32> to vector<8x128xf32>
    %159 = arith.negf %158 : vector<8x128xf32>
    %160 = math.exp %159 : vector<8x128xf32>
    %cst_52 = arith.constant 1.000000e+00 : f32
    %161 = vector.broadcast %cst_52 : f32 to vector<8x128xf32>
    %162 = arith.addf %161, %160 : vector<8x128xf32>
    %163 = arith.divf %161, %162 : vector<8x128xf32>
    %164 = arith.mulf %155, %108 : vector<8x128xf32>
    %165 = arith.mulf %149, %157 : vector<8x128xf32>
    %166 = arith.addf %164, %165 : vector<8x128xf32>
    %167 = math.tanh %166 : vector<8x128xf32>
    %168 = arith.mulf %163, %167 : vector<8x128xf32>
    %169 = tpu.concatenate %168, %139 in 1 : vector<8x128xf32>, vector<8x128xf32> -> vector<8x256xf32>
    %c0_53 = arith.constant 0 : index
    %c0_54 = arith.constant 0 : index
    %170 = vector.load %arg4[%c0_53, %c0_54] : memref<256x512xf32, #tpu.memory_space<vmem>>, vector<256x512xf32>
    %cst_55 = arith.constant dense<0.000000e+00> : vector<8x512xf32>
    %171 = tpu.matmul %169, %170, %cst_55 {dimension_numbers = #tpu.dot_dimension_numbers<[1], [0], [0], [1], [0, 0, 1, 1], [], []>} : vector<8x256xf32>, vector<256x512xf32>, vector<8x512xf32> -> vector<8x512xf32>
    %172 = arith.addf %171, %16 : vector<8x512xf32>
    %173 = vector.extract_strided_slice %172 {offsets = [0, 0], sizes = [8, 128], strides = [1, 1]} : vector<8x512xf32> to vector<8x128xf32>
    %174 = arith.negf %173 : vector<8x128xf32>
    %175 = math.exp %174 : vector<8x128xf32>
    %cst_56 = arith.constant 1.000000e+00 : f32
    %176 = vector.broadcast %cst_56 : f32 to vector<8x128xf32>
    %177 = arith.addf %176, %175 : vector<8x128xf32>
    %178 = arith.divf %176, %177 : vector<8x128xf32>
    %179 = vector.extract_strided_slice %172 {offsets = [0, 128], sizes = [8, 128], strides = [1, 1]} : vector<8x512xf32> to vector<8x128xf32>
    %180 = arith.negf %179 : vector<8x128xf32>
    %181 = math.exp %180 : vector<8x128xf32>
    %cst_57 = arith.constant 1.000000e+00 : f32
    %182 = vector.broadcast %cst_57 : f32 to vector<8x128xf32>
    %183 = arith.addf %182, %181 : vector<8x128xf32>
    %184 = arith.divf %182, %183 : vector<8x128xf32>
    %185 = vector.extract_strided_slice %172 {offsets = [0, 256], sizes = [8, 128], strides = [1, 1]} : vector<8x512xf32> to vector<8x128xf32>
    %186 = math.tanh %185 : vector<8x128xf32>
    %187 = vector.extract_strided_slice %172 {offsets = [0, 384], sizes = [8, 128], strides = [1, 1]} : vector<8x512xf32> to vector<8x128xf32>
    %188 = arith.negf %187 : vector<8x128xf32>
    %189 = math.exp %188 : vector<8x128xf32>
    %cst_58 = arith.constant 1.000000e+00 : f32
    %190 = vector.broadcast %cst_58 : f32 to vector<8x128xf32>
    %191 = arith.addf %190, %189 : vector<8x128xf32>
    %192 = arith.divf %190, %191 : vector<8x128xf32>
    %193 = arith.mulf %184, %137 : vector<8x128xf32>
    %194 = arith.mulf %178, %186 : vector<8x128xf32>
    %195 = arith.addf %193, %194 : vector<8x128xf32>
    %196 = math.tanh %195 : vector<8x128xf32>
    %197 = arith.mulf %192, %196 : vector<8x128xf32>
    %c24 = arith.constant 24 : index
    %c0_59 = arith.constant 0 : index
    %198 = vector.load %arg12[%c24, %c0_59] : memref<64x512xf32, #tpu.memory_space<vmem>>, vector<8x512xf32>
    %c0_60 = arith.constant 0 : index
    %c0_61 = arith.constant 0 : index
    %199 = vector.load %arg3[%c0_60, %c0_61] : memref<128x512xf32, #tpu.memory_space<vmem>>, vector<128x512xf32>
    %cst_62 = arith.constant dense<0.000000e+00> : vector<8x512xf32>
    %200 = tpu.matmul %168, %199, %cst_62 {dimension_numbers = #tpu.dot_dimension_numbers<[1], [0], [0], [1], [0, 0, 1, 1], [], []>} : vector<8x128xf32>, vector<128x512xf32>, vector<8x512xf32> -> vector<8x512xf32>
    %201 = arith.addf %198, %200 : vector<8x512xf32>
    %202 = vector.extract_strided_slice %201 {offsets = [0, 0], sizes = [8, 128], strides = [1, 1]} : vector<8x512xf32> to vector<8x128xf32>
    %203 = arith.negf %202 : vector<8x128xf32>
    %204 = math.exp %203 : vector<8x128xf32>
    %cst_63 = arith.constant 1.000000e+00 : f32
    %205 = vector.broadcast %cst_63 : f32 to vector<8x128xf32>
    %206 = arith.addf %205, %204 : vector<8x128xf32>
    %207 = arith.divf %205, %206 : vector<8x128xf32>
    %208 = vector.extract_strided_slice %201 {offsets = [0, 128], sizes = [8, 128], strides = [1, 1]} : vector<8x512xf32> to vector<8x128xf32>
    %209 = arith.negf %208 : vector<8x128xf32>
    %210 = math.exp %209 : vector<8x128xf32>
    %cst_64 = arith.constant 1.000000e+00 : f32
    %211 = vector.broadcast %cst_64 : f32 to vector<8x128xf32>
    %212 = arith.addf %211, %210 : vector<8x128xf32>
    %213 = arith.divf %211, %212 : vector<8x128xf32>
    %214 = vector.extract_strided_slice %201 {offsets = [0, 256], sizes = [8, 128], strides = [1, 1]} : vector<8x512xf32> to vector<8x128xf32>
    %215 = math.tanh %214 : vector<8x128xf32>
    %216 = vector.extract_strided_slice %201 {offsets = [0, 384], sizes = [8, 128], strides = [1, 1]} : vector<8x512xf32> to vector<8x128xf32>
    %217 = arith.negf %216 : vector<8x128xf32>
    %218 = math.exp %217 : vector<8x128xf32>
    %cst_65 = arith.constant 1.000000e+00 : f32
    %219 = vector.broadcast %cst_65 : f32 to vector<8x128xf32>
    %220 = arith.addf %219, %218 : vector<8x128xf32>
    %221 = arith.divf %219, %220 : vector<8x128xf32>
    %222 = arith.mulf %213, %166 : vector<8x128xf32>
    %223 = arith.mulf %207, %215 : vector<8x128xf32>
    %224 = arith.addf %222, %223 : vector<8x128xf32>
    %225 = math.tanh %224 : vector<8x128xf32>
    %226 = arith.mulf %221, %225 : vector<8x128xf32>
    %227 = tpu.concatenate %226, %197 in 1 : vector<8x128xf32>, vector<8x128xf32> -> vector<8x256xf32>
    %c0_66 = arith.constant 0 : index
    %c0_67 = arith.constant 0 : index
    %228 = vector.load %arg4[%c0_66, %c0_67] : memref<256x512xf32, #tpu.memory_space<vmem>>, vector<256x512xf32>
    %cst_68 = arith.constant dense<0.000000e+00> : vector<8x512xf32>
    %229 = tpu.matmul %227, %228, %cst_68 {dimension_numbers = #tpu.dot_dimension_numbers<[1], [0], [0], [1], [0, 0, 1, 1], [], []>} : vector<8x256xf32>, vector<256x512xf32>, vector<8x512xf32> -> vector<8x512xf32>
    %230 = arith.addf %229, %16 : vector<8x512xf32>
    %231 = vector.extract_strided_slice %230 {offsets = [0, 0], sizes = [8, 128], strides = [1, 1]} : vector<8x512xf32> to vector<8x128xf32>
    %232 = arith.negf %231 : vector<8x128xf32>
    %233 = math.exp %232 : vector<8x128xf32>
    %cst_69 = arith.constant 1.000000e+00 : f32
    %234 = vector.broadcast %cst_69 : f32 to vector<8x128xf32>
    %235 = arith.addf %234, %233 : vector<8x128xf32>
    %236 = arith.divf %234, %235 : vector<8x128xf32>
    %237 = vector.extract_strided_slice %230 {offsets = [0, 128], sizes = [8, 128], strides = [1, 1]} : vector<8x512xf32> to vector<8x128xf32>
    %238 = arith.negf %237 : vector<8x128xf32>
    %239 = math.exp %238 : vector<8x128xf32>
    %cst_70 = arith.constant 1.000000e+00 : f32
    %240 = vector.broadcast %cst_70 : f32 to vector<8x128xf32>
    %241 = arith.addf %240, %239 : vector<8x128xf32>
    %242 = arith.divf %240, %241 : vector<8x128xf32>
    %243 = vector.extract_strided_slice %230 {offsets = [0, 256], sizes = [8, 128], strides = [1, 1]} : vector<8x512xf32> to vector<8x128xf32>
    %244 = math.tanh %243 : vector<8x128xf32>
    %245 = vector.extract_strided_slice %230 {offsets = [0, 384], sizes = [8, 128], strides = [1, 1]} : vector<8x512xf32> to vector<8x128xf32>
    %246 = arith.negf %245 : vector<8x128xf32>
    %247 = math.exp %246 : vector<8x128xf32>
    %cst_71 = arith.constant 1.000000e+00 : f32
    %248 = vector.broadcast %cst_71 : f32 to vector<8x128xf32>
    %249 = arith.addf %248, %247 : vector<8x128xf32>
    %250 = arith.divf %248, %249 : vector<8x128xf32>
    %251 = arith.mulf %242, %195 : vector<8x128xf32>
    %252 = arith.mulf %236, %244 : vector<8x128xf32>
    %253 = arith.addf %251, %252 : vector<8x128xf32>
    %254 = math.tanh %253 : vector<8x128xf32>
    %255 = arith.mulf %250, %254 : vector<8x128xf32>
    %c32 = arith.constant 32 : index
    %c0_72 = arith.constant 0 : index
    %256 = vector.load %arg12[%c32, %c0_72] : memref<64x512xf32, #tpu.memory_space<vmem>>, vector<8x512xf32>
    %c0_73 = arith.constant 0 : index
    %c0_74 = arith.constant 0 : index
    %257 = vector.load %arg3[%c0_73, %c0_74] : memref<128x512xf32, #tpu.memory_space<vmem>>, vector<128x512xf32>
    %cst_75 = arith.constant dense<0.000000e+00> : vector<8x512xf32>
    %258 = tpu.matmul %226, %257, %cst_75 {dimension_numbers = #tpu.dot_dimension_numbers<[1], [0], [0], [1], [0, 0, 1, 1], [], []>} : vector<8x128xf32>, vector<128x512xf32>, vector<8x512xf32> -> vector<8x512xf32>
    %259 = arith.addf %256, %258 : vector<8x512xf32>
    %260 = vector.extract_strided_slice %259 {offsets = [0, 0], sizes = [8, 128], strides = [1, 1]} : vector<8x512xf32> to vector<8x128xf32>
    %261 = arith.negf %260 : vector<8x128xf32>
    %262 = math.exp %261 : vector<8x128xf32>
    %cst_76 = arith.constant 1.000000e+00 : f32
    %263 = vector.broadcast %cst_76 : f32 to vector<8x128xf32>
    %264 = arith.addf %263, %262 : vector<8x128xf32>
    %265 = arith.divf %263, %264 : vector<8x128xf32>
    %266 = vector.extract_strided_slice %259 {offsets = [0, 128], sizes = [8, 128], strides = [1, 1]} : vector<8x512xf32> to vector<8x128xf32>
    %267 = arith.negf %266 : vector<8x128xf32>
    %268 = math.exp %267 : vector<8x128xf32>
    %cst_77 = arith.constant 1.000000e+00 : f32
    %269 = vector.broadcast %cst_77 : f32 to vector<8x128xf32>
    %270 = arith.addf %269, %268 : vector<8x128xf32>
    %271 = arith.divf %269, %270 : vector<8x128xf32>
    %272 = vector.extract_strided_slice %259 {offsets = [0, 256], sizes = [8, 128], strides = [1, 1]} : vector<8x512xf32> to vector<8x128xf32>
    %273 = math.tanh %272 : vector<8x128xf32>
    %274 = vector.extract_strided_slice %259 {offsets = [0, 384], sizes = [8, 128], strides = [1, 1]} : vector<8x512xf32> to vector<8x128xf32>
    %275 = arith.negf %274 : vector<8x128xf32>
    %276 = math.exp %275 : vector<8x128xf32>
    %cst_78 = arith.constant 1.000000e+00 : f32
    %277 = vector.broadcast %cst_78 : f32 to vector<8x128xf32>
    %278 = arith.addf %277, %276 : vector<8x128xf32>
    %279 = arith.divf %277, %278 : vector<8x128xf32>
    %280 = arith.mulf %271, %224 : vector<8x128xf32>
    %281 = arith.mulf %265, %273 : vector<8x128xf32>
    %282 = arith.addf %280, %281 : vector<8x128xf32>
    %283 = math.tanh %282 : vector<8x128xf32>
    %284 = arith.mulf %279, %283 : vector<8x128xf32>
    %285 = tpu.concatenate %284, %255 in 1 : vector<8x128xf32>, vector<8x128xf32> -> vector<8x256xf32>
    %c0_79 = arith.constant 0 : index
    %c0_80 = arith.constant 0 : index
    %286 = vector.load %arg4[%c0_79, %c0_80] : memref<256x512xf32, #tpu.memory_space<vmem>>, vector<256x512xf32>
    %cst_81 = arith.constant dense<0.000000e+00> : vector<8x512xf32>
    %287 = tpu.matmul %285, %286, %cst_81 {dimension_numbers = #tpu.dot_dimension_numbers<[1], [0], [0], [1], [0, 0, 1, 1], [], []>} : vector<8x256xf32>, vector<256x512xf32>, vector<8x512xf32> -> vector<8x512xf32>
    %288 = arith.addf %287, %16 : vector<8x512xf32>
    %289 = vector.extract_strided_slice %288 {offsets = [0, 0], sizes = [8, 128], strides = [1, 1]} : vector<8x512xf32> to vector<8x128xf32>
    %290 = arith.negf %289 : vector<8x128xf32>
    %291 = math.exp %290 : vector<8x128xf32>
    %cst_82 = arith.constant 1.000000e+00 : f32
    %292 = vector.broadcast %cst_82 : f32 to vector<8x128xf32>
    %293 = arith.addf %292, %291 : vector<8x128xf32>
    %294 = arith.divf %292, %293 : vector<8x128xf32>
    %295 = vector.extract_strided_slice %288 {offsets = [0, 128], sizes = [8, 128], strides = [1, 1]} : vector<8x512xf32> to vector<8x128xf32>
    %296 = arith.negf %295 : vector<8x128xf32>
    %297 = math.exp %296 : vector<8x128xf32>
    %cst_83 = arith.constant 1.000000e+00 : f32
    %298 = vector.broadcast %cst_83 : f32 to vector<8x128xf32>
    %299 = arith.addf %298, %297 : vector<8x128xf32>
    %300 = arith.divf %298, %299 : vector<8x128xf32>
    %301 = vector.extract_strided_slice %288 {offsets = [0, 256], sizes = [8, 128], strides = [1, 1]} : vector<8x512xf32> to vector<8x128xf32>
    %302 = math.tanh %301 : vector<8x128xf32>
    %303 = vector.extract_strided_slice %288 {offsets = [0, 384], sizes = [8, 128], strides = [1, 1]} : vector<8x512xf32> to vector<8x128xf32>
    %304 = arith.negf %303 : vector<8x128xf32>
    %305 = math.exp %304 : vector<8x128xf32>
    %cst_84 = arith.constant 1.000000e+00 : f32
    %306 = vector.broadcast %cst_84 : f32 to vector<8x128xf32>
    %307 = arith.addf %306, %305 : vector<8x128xf32>
    %308 = arith.divf %306, %307 : vector<8x128xf32>
    %309 = arith.mulf %300, %253 : vector<8x128xf32>
    %310 = arith.mulf %294, %302 : vector<8x128xf32>
    %311 = arith.addf %309, %310 : vector<8x128xf32>
    %312 = math.tanh %311 : vector<8x128xf32>
    %313 = arith.mulf %308, %312 : vector<8x128xf32>
    %c40 = arith.constant 40 : index
    %c0_85 = arith.constant 0 : index
    %314 = vector.load %arg12[%c40, %c0_85] : memref<64x512xf32, #tpu.memory_space<vmem>>, vector<8x512xf32>
    %c0_86 = arith.constant 0 : index
    %c0_87 = arith.constant 0 : index
    %315 = vector.load %arg3[%c0_86, %c0_87] : memref<128x512xf32, #tpu.memory_space<vmem>>, vector<128x512xf32>
    %cst_88 = arith.constant dense<0.000000e+00> : vector<8x512xf32>
    %316 = tpu.matmul %284, %315, %cst_88 {dimension_numbers = #tpu.dot_dimension_numbers<[1], [0], [0], [1], [0, 0, 1, 1], [], []>} : vector<8x128xf32>, vector<128x512xf32>, vector<8x512xf32> -> vector<8x512xf32>
    %317 = arith.addf %314, %316 : vector<8x512xf32>
    %318 = vector.extract_strided_slice %317 {offsets = [0, 0], sizes = [8, 128], strides = [1, 1]} : vector<8x512xf32> to vector<8x128xf32>
    %319 = arith.negf %318 : vector<8x128xf32>
    %320 = math.exp %319 : vector<8x128xf32>
    %cst_89 = arith.constant 1.000000e+00 : f32
    %321 = vector.broadcast %cst_89 : f32 to vector<8x128xf32>
    %322 = arith.addf %321, %320 : vector<8x128xf32>
    %323 = arith.divf %321, %322 : vector<8x128xf32>
    %324 = vector.extract_strided_slice %317 {offsets = [0, 128], sizes = [8, 128], strides = [1, 1]} : vector<8x512xf32> to vector<8x128xf32>
    %325 = arith.negf %324 : vector<8x128xf32>
    %326 = math.exp %325 : vector<8x128xf32>
    %cst_90 = arith.constant 1.000000e+00 : f32
    %327 = vector.broadcast %cst_90 : f32 to vector<8x128xf32>
    %328 = arith.addf %327, %326 : vector<8x128xf32>
    %329 = arith.divf %327, %328 : vector<8x128xf32>
    %330 = vector.extract_strided_slice %317 {offsets = [0, 256], sizes = [8, 128], strides = [1, 1]} : vector<8x512xf32> to vector<8x128xf32>
    %331 = math.tanh %330 : vector<8x128xf32>
    %332 = vector.extract_strided_slice %317 {offsets = [0, 384], sizes = [8, 128], strides = [1, 1]} : vector<8x512xf32> to vector<8x128xf32>
    %333 = arith.negf %332 : vector<8x128xf32>
    %334 = math.exp %333 : vector<8x128xf32>
    %cst_91 = arith.constant 1.000000e+00 : f32
    %335 = vector.broadcast %cst_91 : f32 to vector<8x128xf32>
    %336 = arith.addf %335, %334 : vector<8x128xf32>
    %337 = arith.divf %335, %336 : vector<8x128xf32>
    %338 = arith.mulf %329, %282 : vector<8x128xf32>
    %339 = arith.mulf %323, %331 : vector<8x128xf32>
    %340 = arith.addf %338, %339 : vector<8x128xf32>
    %341 = math.tanh %340 : vector<8x128xf32>
    %342 = arith.mulf %337, %341 : vector<8x128xf32>
    %343 = tpu.concatenate %342, %313 in 1 : vector<8x128xf32>, vector<8x128xf32> -> vector<8x256xf32>
    %c0_92 = arith.constant 0 : index
    %c0_93 = arith.constant 0 : index
    %344 = vector.load %arg4[%c0_92, %c0_93] : memref<256x512xf32, #tpu.memory_space<vmem>>, vector<256x512xf32>
    %cst_94 = arith.constant dense<0.000000e+00> : vector<8x512xf32>
    %345 = tpu.matmul %343, %344, %cst_94 {dimension_numbers = #tpu.dot_dimension_numbers<[1], [0], [0], [1], [0, 0, 1, 1], [], []>} : vector<8x256xf32>, vector<256x512xf32>, vector<8x512xf32> -> vector<8x512xf32>
    %346 = arith.addf %345, %16 : vector<8x512xf32>
    %347 = vector.extract_strided_slice %346 {offsets = [0, 0], sizes = [8, 128], strides = [1, 1]} : vector<8x512xf32> to vector<8x128xf32>
    %348 = arith.negf %347 : vector<8x128xf32>
    %349 = math.exp %348 : vector<8x128xf32>
    %cst_95 = arith.constant 1.000000e+00 : f32
    %350 = vector.broadcast %cst_95 : f32 to vector<8x128xf32>
    %351 = arith.addf %350, %349 : vector<8x128xf32>
    %352 = arith.divf %350, %351 : vector<8x128xf32>
    %353 = vector.extract_strided_slice %346 {offsets = [0, 128], sizes = [8, 128], strides = [1, 1]} : vector<8x512xf32> to vector<8x128xf32>
    %354 = arith.negf %353 : vector<8x128xf32>
    %355 = math.exp %354 : vector<8x128xf32>
    %cst_96 = arith.constant 1.000000e+00 : f32
    %356 = vector.broadcast %cst_96 : f32 to vector<8x128xf32>
    %357 = arith.addf %356, %355 : vector<8x128xf32>
    %358 = arith.divf %356, %357 : vector<8x128xf32>
    %359 = vector.extract_strided_slice %346 {offsets = [0, 256], sizes = [8, 128], strides = [1, 1]} : vector<8x512xf32> to vector<8x128xf32>
    %360 = math.tanh %359 : vector<8x128xf32>
    %361 = vector.extract_strided_slice %346 {offsets = [0, 384], sizes = [8, 128], strides = [1, 1]} : vector<8x512xf32> to vector<8x128xf32>
    %362 = arith.negf %361 : vector<8x128xf32>
    %363 = math.exp %362 : vector<8x128xf32>
    %cst_97 = arith.constant 1.000000e+00 : f32
    %364 = vector.broadcast %cst_97 : f32 to vector<8x128xf32>
    %365 = arith.addf %364, %363 : vector<8x128xf32>
    %366 = arith.divf %364, %365 : vector<8x128xf32>
    %367 = arith.mulf %358, %311 : vector<8x128xf32>
    %368 = arith.mulf %352, %360 : vector<8x128xf32>
    %369 = arith.addf %367, %368 : vector<8x128xf32>
    %370 = math.tanh %369 : vector<8x128xf32>
    %371 = arith.mulf %366, %370 : vector<8x128xf32>
    %c48 = arith.constant 48 : index
    %c0_98 = arith.constant 0 : index
    %372 = vector.load %arg12[%c48, %c0_98] : memref<64x512xf32, #tpu.memory_space<vmem>>, vector<8x512xf32>
    %c0_99 = arith.constant 0 : index
    %c0_100 = arith.constant 0 : index
    %373 = vector.load %arg3[%c0_99, %c0_100] : memref<128x512xf32, #tpu.memory_space<vmem>>, vector<128x512xf32>
    %cst_101 = arith.constant dense<0.000000e+00> : vector<8x512xf32>
    %374 = tpu.matmul %342, %373, %cst_101 {dimension_numbers = #tpu.dot_dimension_numbers<[1], [0], [0], [1], [0, 0, 1, 1], [], []>} : vector<8x128xf32>, vector<128x512xf32>, vector<8x512xf32> -> vector<8x512xf32>
    %375 = arith.addf %372, %374 : vector<8x512xf32>
    %376 = vector.extract_strided_slice %375 {offsets = [0, 0], sizes = [8, 128], strides = [1, 1]} : vector<8x512xf32> to vector<8x128xf32>
    %377 = arith.negf %376 : vector<8x128xf32>
    %378 = math.exp %377 : vector<8x128xf32>
    %cst_102 = arith.constant 1.000000e+00 : f32
    %379 = vector.broadcast %cst_102 : f32 to vector<8x128xf32>
    %380 = arith.addf %379, %378 : vector<8x128xf32>
    %381 = arith.divf %379, %380 : vector<8x128xf32>
    %382 = vector.extract_strided_slice %375 {offsets = [0, 128], sizes = [8, 128], strides = [1, 1]} : vector<8x512xf32> to vector<8x128xf32>
    %383 = arith.negf %382 : vector<8x128xf32>
    %384 = math.exp %383 : vector<8x128xf32>
    %cst_103 = arith.constant 1.000000e+00 : f32
    %385 = vector.broadcast %cst_103 : f32 to vector<8x128xf32>
    %386 = arith.addf %385, %384 : vector<8x128xf32>
    %387 = arith.divf %385, %386 : vector<8x128xf32>
    %388 = vector.extract_strided_slice %375 {offsets = [0, 256], sizes = [8, 128], strides = [1, 1]} : vector<8x512xf32> to vector<8x128xf32>
    %389 = math.tanh %388 : vector<8x128xf32>
    %390 = vector.extract_strided_slice %375 {offsets = [0, 384], sizes = [8, 128], strides = [1, 1]} : vector<8x512xf32> to vector<8x128xf32>
    %391 = arith.negf %390 : vector<8x128xf32>
    %392 = math.exp %391 : vector<8x128xf32>
    %cst_104 = arith.constant 1.000000e+00 : f32
    %393 = vector.broadcast %cst_104 : f32 to vector<8x128xf32>
    %394 = arith.addf %393, %392 : vector<8x128xf32>
    %395 = arith.divf %393, %394 : vector<8x128xf32>
    %396 = arith.mulf %387, %340 : vector<8x128xf32>
    %397 = arith.mulf %381, %389 : vector<8x128xf32>
    %398 = arith.addf %396, %397 : vector<8x128xf32>
    %399 = math.tanh %398 : vector<8x128xf32>
    %400 = arith.mulf %395, %399 : vector<8x128xf32>
    %401 = tpu.concatenate %400, %371 in 1 : vector<8x128xf32>, vector<8x128xf32> -> vector<8x256xf32>
    %c0_105 = arith.constant 0 : index
    %c0_106 = arith.constant 0 : index
    %402 = vector.load %arg4[%c0_105, %c0_106] : memref<256x512xf32, #tpu.memory_space<vmem>>, vector<256x512xf32>
    %cst_107 = arith.constant dense<0.000000e+00> : vector<8x512xf32>
    %403 = tpu.matmul %401, %402, %cst_107 {dimension_numbers = #tpu.dot_dimension_numbers<[1], [0], [0], [1], [0, 0, 1, 1], [], []>} : vector<8x256xf32>, vector<256x512xf32>, vector<8x512xf32> -> vector<8x512xf32>
    %404 = arith.addf %403, %16 : vector<8x512xf32>
    %405 = vector.extract_strided_slice %404 {offsets = [0, 0], sizes = [8, 128], strides = [1, 1]} : vector<8x512xf32> to vector<8x128xf32>
    %406 = arith.negf %405 : vector<8x128xf32>
    %407 = math.exp %406 : vector<8x128xf32>
    %cst_108 = arith.constant 1.000000e+00 : f32
    %408 = vector.broadcast %cst_108 : f32 to vector<8x128xf32>
    %409 = arith.addf %408, %407 : vector<8x128xf32>
    %410 = arith.divf %408, %409 : vector<8x128xf32>
    %411 = vector.extract_strided_slice %404 {offsets = [0, 128], sizes = [8, 128], strides = [1, 1]} : vector<8x512xf32> to vector<8x128xf32>
    %412 = arith.negf %411 : vector<8x128xf32>
    %413 = math.exp %412 : vector<8x128xf32>
    %cst_109 = arith.constant 1.000000e+00 : f32
    %414 = vector.broadcast %cst_109 : f32 to vector<8x128xf32>
    %415 = arith.addf %414, %413 : vector<8x128xf32>
    %416 = arith.divf %414, %415 : vector<8x128xf32>
    %417 = vector.extract_strided_slice %404 {offsets = [0, 256], sizes = [8, 128], strides = [1, 1]} : vector<8x512xf32> to vector<8x128xf32>
    %418 = math.tanh %417 : vector<8x128xf32>
    %419 = vector.extract_strided_slice %404 {offsets = [0, 384], sizes = [8, 128], strides = [1, 1]} : vector<8x512xf32> to vector<8x128xf32>
    %420 = arith.negf %419 : vector<8x128xf32>
    %421 = math.exp %420 : vector<8x128xf32>
    %cst_110 = arith.constant 1.000000e+00 : f32
    %422 = vector.broadcast %cst_110 : f32 to vector<8x128xf32>
    %423 = arith.addf %422, %421 : vector<8x128xf32>
    %424 = arith.divf %422, %423 : vector<8x128xf32>
    %425 = arith.mulf %416, %369 : vector<8x128xf32>
    %426 = arith.mulf %410, %418 : vector<8x128xf32>
    %427 = arith.addf %425, %426 : vector<8x128xf32>
    %428 = math.tanh %427 : vector<8x128xf32>
    %429 = arith.mulf %424, %428 : vector<8x128xf32>
    %c56 = arith.constant 56 : index
    %c0_111 = arith.constant 0 : index
    %430 = vector.load %arg12[%c56, %c0_111] : memref<64x512xf32, #tpu.memory_space<vmem>>, vector<8x512xf32>
    %c0_112 = arith.constant 0 : index
    %c0_113 = arith.constant 0 : index
    %431 = vector.load %arg3[%c0_112, %c0_113] : memref<128x512xf32, #tpu.memory_space<vmem>>, vector<128x512xf32>
    %cst_114 = arith.constant dense<0.000000e+00> : vector<8x512xf32>
    %432 = tpu.matmul %400, %431, %cst_114 {dimension_numbers = #tpu.dot_dimension_numbers<[1], [0], [0], [1], [0, 0, 1, 1], [], []>} : vector<8x128xf32>, vector<128x512xf32>, vector<8x512xf32> -> vector<8x512xf32>
    %433 = arith.addf %430, %432 : vector<8x512xf32>
    %434 = vector.extract_strided_slice %433 {offsets = [0, 0], sizes = [8, 128], strides = [1, 1]} : vector<8x512xf32> to vector<8x128xf32>
    %435 = arith.negf %434 : vector<8x128xf32>
    %436 = math.exp %435 : vector<8x128xf32>
    %cst_115 = arith.constant 1.000000e+00 : f32
    %437 = vector.broadcast %cst_115 : f32 to vector<8x128xf32>
    %438 = arith.addf %437, %436 : vector<8x128xf32>
    %439 = arith.divf %437, %438 : vector<8x128xf32>
    %440 = vector.extract_strided_slice %433 {offsets = [0, 128], sizes = [8, 128], strides = [1, 1]} : vector<8x512xf32> to vector<8x128xf32>
    %441 = arith.negf %440 : vector<8x128xf32>
    %442 = math.exp %441 : vector<8x128xf32>
    %cst_116 = arith.constant 1.000000e+00 : f32
    %443 = vector.broadcast %cst_116 : f32 to vector<8x128xf32>
    %444 = arith.addf %443, %442 : vector<8x128xf32>
    %445 = arith.divf %443, %444 : vector<8x128xf32>
    %446 = vector.extract_strided_slice %433 {offsets = [0, 256], sizes = [8, 128], strides = [1, 1]} : vector<8x512xf32> to vector<8x128xf32>
    %447 = math.tanh %446 : vector<8x128xf32>
    %448 = vector.extract_strided_slice %433 {offsets = [0, 384], sizes = [8, 128], strides = [1, 1]} : vector<8x512xf32> to vector<8x128xf32>
    %449 = arith.negf %448 : vector<8x128xf32>
    %450 = math.exp %449 : vector<8x128xf32>
    %cst_117 = arith.constant 1.000000e+00 : f32
    %451 = vector.broadcast %cst_117 : f32 to vector<8x128xf32>
    %452 = arith.addf %451, %450 : vector<8x128xf32>
    %453 = arith.divf %451, %452 : vector<8x128xf32>
    %454 = arith.mulf %445, %398 : vector<8x128xf32>
    %455 = arith.mulf %439, %447 : vector<8x128xf32>
    %456 = arith.addf %454, %455 : vector<8x128xf32>
    %457 = math.tanh %456 : vector<8x128xf32>
    %458 = arith.mulf %453, %457 : vector<8x128xf32>
    %459 = tpu.concatenate %458, %429 in 1 : vector<8x128xf32>, vector<8x128xf32> -> vector<8x256xf32>
    %c0_118 = arith.constant 0 : index
    %c0_119 = arith.constant 0 : index
    %460 = vector.load %arg4[%c0_118, %c0_119] : memref<256x512xf32, #tpu.memory_space<vmem>>, vector<256x512xf32>
    %cst_120 = arith.constant dense<0.000000e+00> : vector<8x512xf32>
    %461 = tpu.matmul %459, %460, %cst_120 {dimension_numbers = #tpu.dot_dimension_numbers<[1], [0], [0], [1], [0, 0, 1, 1], [], []>} : vector<8x256xf32>, vector<256x512xf32>, vector<8x512xf32> -> vector<8x512xf32>
    %462 = arith.addf %461, %16 : vector<8x512xf32>
    %463 = vector.extract_strided_slice %462 {offsets = [0, 0], sizes = [8, 128], strides = [1, 1]} : vector<8x512xf32> to vector<8x128xf32>
    %464 = arith.negf %463 : vector<8x128xf32>
    %465 = math.exp %464 : vector<8x128xf32>
    %cst_121 = arith.constant 1.000000e+00 : f32
    %466 = vector.broadcast %cst_121 : f32 to vector<8x128xf32>
    %467 = arith.addf %466, %465 : vector<8x128xf32>
    %468 = arith.divf %466, %467 : vector<8x128xf32>
    %469 = vector.extract_strided_slice %462 {offsets = [0, 128], sizes = [8, 128], strides = [1, 1]} : vector<8x512xf32> to vector<8x128xf32>
    %470 = arith.negf %469 : vector<8x128xf32>
    %471 = math.exp %470 : vector<8x128xf32>
    %cst_122 = arith.constant 1.000000e+00 : f32
    %472 = vector.broadcast %cst_122 : f32 to vector<8x128xf32>
    %473 = arith.addf %472, %471 : vector<8x128xf32>
    %474 = arith.divf %472, %473 : vector<8x128xf32>
    %475 = vector.extract_strided_slice %462 {offsets = [0, 256], sizes = [8, 128], strides = [1, 1]} : vector<8x512xf32> to vector<8x128xf32>
    %476 = math.tanh %475 : vector<8x128xf32>
    %477 = vector.extract_strided_slice %462 {offsets = [0, 384], sizes = [8, 128], strides = [1, 1]} : vector<8x512xf32> to vector<8x128xf32>
    %478 = arith.negf %477 : vector<8x128xf32>
    %479 = math.exp %478 : vector<8x128xf32>
    %cst_123 = arith.constant 1.000000e+00 : f32
    %480 = vector.broadcast %cst_123 : f32 to vector<8x128xf32>
    %481 = arith.addf %480, %479 : vector<8x128xf32>
    %482 = arith.divf %480, %481 : vector<8x128xf32>
    %483 = arith.mulf %474, %427 : vector<8x128xf32>
    %484 = arith.mulf %468, %476 : vector<8x128xf32>
    %485 = arith.addf %483, %484 : vector<8x128xf32>
    %486 = math.tanh %485 : vector<8x128xf32>
    %487 = arith.mulf %482, %486 : vector<8x128xf32>
    %c0_124 = arith.constant 0 : index
    %c0_125 = arith.constant 0 : index
    %488 = vector.load %arg13[%c0_124, %c0_125] : memref<40x512xf32, #tpu.memory_space<vmem>>, vector<8x512xf32>
    %c0_126 = arith.constant 0 : index
    %c0_127 = arith.constant 0 : index
    %489 = vector.load %arg6[%c0_126, %c0_127] : memref<256x512xf32, #tpu.memory_space<vmem>>, vector<128x512xf32>
    %cst_128 = arith.constant dense<0.000000e+00> : vector<8x512xf32>
    %490 = tpu.matmul %458, %489, %cst_128 {dimension_numbers = #tpu.dot_dimension_numbers<[1], [0], [0], [1], [0, 0, 1, 1], [], []>} : vector<8x128xf32>, vector<128x512xf32>, vector<8x512xf32> -> vector<8x512xf32>
    %491 = arith.addf %488, %490 : vector<8x512xf32>
    %492 = vector.extract_strided_slice %491 {offsets = [0, 0], sizes = [8, 128], strides = [1, 1]} : vector<8x512xf32> to vector<8x128xf32>
    %493 = arith.negf %492 : vector<8x128xf32>
    %494 = math.exp %493 : vector<8x128xf32>
    %cst_129 = arith.constant 1.000000e+00 : f32
    %495 = vector.broadcast %cst_129 : f32 to vector<8x128xf32>
    %496 = arith.addf %495, %494 : vector<8x128xf32>
    %497 = arith.divf %495, %496 : vector<8x128xf32>
    %498 = vector.extract_strided_slice %491 {offsets = [0, 128], sizes = [8, 128], strides = [1, 1]} : vector<8x512xf32> to vector<8x128xf32>
    %499 = arith.negf %498 : vector<8x128xf32>
    %500 = math.exp %499 : vector<8x128xf32>
    %cst_130 = arith.constant 1.000000e+00 : f32
    %501 = vector.broadcast %cst_130 : f32 to vector<8x128xf32>
    %502 = arith.addf %501, %500 : vector<8x128xf32>
    %503 = arith.divf %501, %502 : vector<8x128xf32>
    %504 = vector.extract_strided_slice %491 {offsets = [0, 256], sizes = [8, 128], strides = [1, 1]} : vector<8x512xf32> to vector<8x128xf32>
    %505 = math.tanh %504 : vector<8x128xf32>
    %506 = vector.extract_strided_slice %491 {offsets = [0, 384], sizes = [8, 128], strides = [1, 1]} : vector<8x512xf32> to vector<8x128xf32>
    %507 = arith.negf %506 : vector<8x128xf32>
    %508 = math.exp %507 : vector<8x128xf32>
    %cst_131 = arith.constant 1.000000e+00 : f32
    %509 = vector.broadcast %cst_131 : f32 to vector<8x128xf32>
    %510 = arith.addf %509, %508 : vector<8x128xf32>
    %511 = arith.divf %509, %510 : vector<8x128xf32>
    %512 = arith.mulf %503, %456 : vector<8x128xf32>
    %513 = arith.mulf %497, %505 : vector<8x128xf32>
    %514 = arith.addf %512, %513 : vector<8x128xf32>
    %515 = math.tanh %514 : vector<8x128xf32>
    %516 = arith.mulf %511, %515 : vector<8x128xf32>
    %517 = tpu.concatenate %516, %487 in 1 : vector<8x128xf32>, vector<8x128xf32> -> vector<8x256xf32>
    %c0_132 = arith.constant 0 : index
    %c0_133 = arith.constant 0 : index
    %518 = vector.load %arg7[%c0_132, %c0_133] : memref<256x512xf32, #tpu.memory_space<vmem>>, vector<256x512xf32>
    %cst_134 = arith.constant dense<0.000000e+00> : vector<8x512xf32>
    %519 = tpu.matmul %517, %518, %cst_134 {dimension_numbers = #tpu.dot_dimension_numbers<[1], [0], [0], [1], [0, 0, 1, 1], [], []>} : vector<8x256xf32>, vector<256x512xf32>, vector<8x512xf32> -> vector<8x512xf32>
    %520 = arith.addf %519, %22 : vector<8x512xf32>
    %521 = vector.extract_strided_slice %520 {offsets = [0, 0], sizes = [8, 128], strides = [1, 1]} : vector<8x512xf32> to vector<8x128xf32>
    %522 = arith.negf %521 : vector<8x128xf32>
    %523 = math.exp %522 : vector<8x128xf32>
    %cst_135 = arith.constant 1.000000e+00 : f32
    %524 = vector.broadcast %cst_135 : f32 to vector<8x128xf32>
    %525 = arith.addf %524, %523 : vector<8x128xf32>
    %526 = arith.divf %524, %525 : vector<8x128xf32>
    %527 = vector.extract_strided_slice %520 {offsets = [0, 128], sizes = [8, 128], strides = [1, 1]} : vector<8x512xf32> to vector<8x128xf32>
    %528 = arith.negf %527 : vector<8x128xf32>
    %529 = math.exp %528 : vector<8x128xf32>
    %cst_136 = arith.constant 1.000000e+00 : f32
    %530 = vector.broadcast %cst_136 : f32 to vector<8x128xf32>
    %531 = arith.addf %530, %529 : vector<8x128xf32>
    %532 = arith.divf %530, %531 : vector<8x128xf32>
    %533 = vector.extract_strided_slice %520 {offsets = [0, 256], sizes = [8, 128], strides = [1, 1]} : vector<8x512xf32> to vector<8x128xf32>
    %534 = math.tanh %533 : vector<8x128xf32>
    %535 = vector.extract_strided_slice %520 {offsets = [0, 384], sizes = [8, 128], strides = [1, 1]} : vector<8x512xf32> to vector<8x128xf32>
    %536 = arith.negf %535 : vector<8x128xf32>
    %537 = math.exp %536 : vector<8x128xf32>
    %cst_137 = arith.constant 1.000000e+00 : f32
    %538 = vector.broadcast %cst_137 : f32 to vector<8x128xf32>
    %539 = arith.addf %538, %537 : vector<8x128xf32>
    %540 = arith.divf %538, %539 : vector<8x128xf32>
    %541 = arith.mulf %532, %485 : vector<8x128xf32>
    %542 = arith.mulf %526, %534 : vector<8x128xf32>
    %543 = arith.addf %541, %542 : vector<8x128xf32>
    %544 = math.tanh %543 : vector<8x128xf32>
    %545 = arith.mulf %540, %544 : vector<8x128xf32>
    %c0_138 = arith.constant 0 : index
    %c0_139 = arith.constant 0 : index
    %546 = vector.load %arg14[%c0_138, %c0_139] : memref<40x128xf32, #tpu.memory_space<vmem>>, vector<8x128xf32>
    tpu.vector_store %arg14[%c0_138, %c0_139], %545 {strides = array<i32>} : memref<40x128xf32, #tpu.memory_space<vmem>>, vector<8x128xf32>,
    %547 = tpu.concatenate %516, %545 in 1 : vector<8x128xf32>, vector<8x128xf32> -> vector<8x256xf32>
    %c8_140 = arith.constant 8 : index
    %c0_141 = arith.constant 0 : index
    %548 = vector.load %arg13[%c8_140, %c0_141] : memref<40x512xf32, #tpu.memory_space<vmem>>, vector<8x512xf32>
    %549 = arith.addf %548, %19 : vector<8x512xf32>
    %c0_142 = arith.constant 0 : index
    %c0_143 = arith.constant 0 : index
    %550 = vector.load %arg6[%c0_142, %c0_143] : memref<256x512xf32, #tpu.memory_space<vmem>>, vector<256x512xf32>
    %cst_144 = arith.constant dense<0.000000e+00> : vector<8x512xf32>
    %551 = tpu.matmul %547, %550, %cst_144 {dimension_numbers = #tpu.dot_dimension_numbers<[1], [0], [0], [1], [0, 0, 1, 1], [], []>} : vector<8x256xf32>, vector<256x512xf32>, vector<8x512xf32> -> vector<8x512xf32>
    %552 = arith.addf %549, %551 : vector<8x512xf32>
    %553 = vector.extract_strided_slice %552 {offsets = [0, 0], sizes = [8, 128], strides = [1, 1]} : vector<8x512xf32> to vector<8x128xf32>
    %554 = arith.negf %553 : vector<8x128xf32>
    %555 = math.exp %554 : vector<8x128xf32>
    %cst_145 = arith.constant 1.000000e+00 : f32
    %556 = vector.broadcast %cst_145 : f32 to vector<8x128xf32>
    %557 = arith.addf %556, %555 : vector<8x128xf32>
    %558 = arith.divf %556, %557 : vector<8x128xf32>
    %559 = vector.extract_strided_slice %552 {offsets = [0, 128], sizes = [8, 128], strides = [1, 1]} : vector<8x512xf32> to vector<8x128xf32>
    %560 = arith.negf %559 : vector<8x128xf32>
    %561 = math.exp %560 : vector<8x128xf32>
    %cst_146 = arith.constant 1.000000e+00 : f32
    %562 = vector.broadcast %cst_146 : f32 to vector<8x128xf32>
    %563 = arith.addf %562, %561 : vector<8x128xf32>
    %564 = arith.divf %562, %563 : vector<8x128xf32>
    %565 = vector.extract_strided_slice %552 {offsets = [0, 256], sizes = [8, 128], strides = [1, 1]} : vector<8x512xf32> to vector<8x128xf32>
    %566 = math.tanh %565 : vector<8x128xf32>
    %567 = vector.extract_strided_slice %552 {offsets = [0, 384], sizes = [8, 128], strides = [1, 1]} : vector<8x512xf32> to vector<8x128xf32>
    %568 = arith.negf %567 : vector<8x128xf32>
    %569 = math.exp %568 : vector<8x128xf32>
    %cst_147 = arith.constant 1.000000e+00 : f32
    %570 = vector.broadcast %cst_147 : f32 to vector<8x128xf32>
    %571 = arith.addf %570, %569 : vector<8x128xf32>
    %572 = arith.divf %570, %571 : vector<8x128xf32>
    %573 = arith.mulf %564, %514 : vector<8x128xf32>
    %574 = arith.mulf %558, %566 : vector<8x128xf32>
    %575 = arith.addf %573, %574 : vector<8x128xf32>
    %576 = math.tanh %575 : vector<8x128xf32>
    %577 = arith.mulf %572, %576 : vector<8x128xf32>
    %578 = tpu.concatenate %577, %545 in 1 : vector<8x128xf32>, vector<8x128xf32> -> vector<8x256xf32>
    %c0_148 = arith.constant 0 : index
    %c0_149 = arith.constant 0 : index
    %579 = vector.load %arg7[%c0_148, %c0_149] : memref<256x512xf32, #tpu.memory_space<vmem>>, vector<256x512xf32>
    %cst_150 = arith.constant dense<0.000000e+00> : vector<8x512xf32>
    %580 = tpu.matmul %578, %579, %cst_150 {dimension_numbers = #tpu.dot_dimension_numbers<[1], [0], [0], [1], [0, 0, 1, 1], [], []>} : vector<8x256xf32>, vector<256x512xf32>, vector<8x512xf32> -> vector<8x512xf32>
    %581 = arith.addf %580, %22 : vector<8x512xf32>
    %582 = vector.extract_strided_slice %581 {offsets = [0, 0], sizes = [8, 128], strides = [1, 1]} : vector<8x512xf32> to vector<8x128xf32>
    %583 = arith.negf %582 : vector<8x128xf32>
    %584 = math.exp %583 : vector<8x128xf32>
    %cst_151 = arith.constant 1.000000e+00 : f32
    %585 = vector.broadcast %cst_151 : f32 to vector<8x128xf32>
    %586 = arith.addf %585, %584 : vector<8x128xf32>
    %587 = arith.divf %585, %586 : vector<8x128xf32>
    %588 = vector.extract_strided_slice %581 {offsets = [0, 128], sizes = [8, 128], strides = [1, 1]} : vector<8x512xf32> to vector<8x128xf32>
    %589 = arith.negf %588 : vector<8x128xf32>
    %590 = math.exp %589 : vector<8x128xf32>
    %cst_152 = arith.constant 1.000000e+00 : f32
    %591 = vector.broadcast %cst_152 : f32 to vector<8x128xf32>
    %592 = arith.addf %591, %590 : vector<8x128xf32>
    %593 = arith.divf %591, %592 : vector<8x128xf32>
    %594 = vector.extract_strided_slice %581 {offsets = [0, 256], sizes = [8, 128], strides = [1, 1]} : vector<8x512xf32> to vector<8x128xf32>
    %595 = math.tanh %594 : vector<8x128xf32>
    %596 = vector.extract_strided_slice %581 {offsets = [0, 384], sizes = [8, 128], strides = [1, 1]} : vector<8x512xf32> to vector<8x128xf32>
    %597 = arith.negf %596 : vector<8x128xf32>
    %598 = math.exp %597 : vector<8x128xf32>
    %cst_153 = arith.constant 1.000000e+00 : f32
    %599 = vector.broadcast %cst_153 : f32 to vector<8x128xf32>
    %600 = arith.addf %599, %598 : vector<8x128xf32>
    %601 = arith.divf %599, %600 : vector<8x128xf32>
    %602 = arith.mulf %593, %543 : vector<8x128xf32>
    %603 = arith.mulf %587, %595 : vector<8x128xf32>
    %604 = arith.addf %602, %603 : vector<8x128xf32>
    %605 = math.tanh %604 : vector<8x128xf32>
    %606 = arith.mulf %601, %605 : vector<8x128xf32>
    %c8_154 = arith.constant 8 : index
    %c0_155 = arith.constant 0 : index
    %607 = vector.load %arg14[%c8_154, %c0_155] : memref<40x128xf32, #tpu.memory_space<vmem>>, vector<8x128xf32>
    tpu.vector_store %arg14[%c8_154, %c0_155], %606 {strides = array<i32>} : memref<40x128xf32, #tpu.memory_space<vmem>>, vector<8x128xf32>,
    %608 = tpu.concatenate %577, %606 in 1 : vector<8x128xf32>, vector<8x128xf32> -> vector<8x256xf32>
    %c16_156 = arith.constant 16 : index
    %c0_157 = arith.constant 0 : index
    %609 = vector.load %arg13[%c16_156, %c0_157] : memref<40x512xf32, #tpu.memory_space<vmem>>, vector<8x512xf32>
    %610 = arith.addf %609, %19 : vector<8x512xf32>
    %c0_158 = arith.constant 0 : index
    %c0_159 = arith.constant 0 : index
    %611 = vector.load %arg6[%c0_158, %c0_159] : memref<256x512xf32, #tpu.memory_space<vmem>>, vector<256x512xf32>
    %cst_160 = arith.constant dense<0.000000e+00> : vector<8x512xf32>
    %612 = tpu.matmul %608, %611, %cst_160 {dimension_numbers = #tpu.dot_dimension_numbers<[1], [0], [0], [1], [0, 0, 1, 1], [], []>} : vector<8x256xf32>, vector<256x512xf32>, vector<8x512xf32> -> vector<8x512xf32>
    %613 = arith.addf %610, %612 : vector<8x512xf32>
    %614 = vector.extract_strided_slice %613 {offsets = [0, 0], sizes = [8, 128], strides = [1, 1]} : vector<8x512xf32> to vector<8x128xf32>
    %615 = arith.negf %614 : vector<8x128xf32>
    %616 = math.exp %615 : vector<8x128xf32>
    %cst_161 = arith.constant 1.000000e+00 : f32
    %617 = vector.broadcast %cst_161 : f32 to vector<8x128xf32>
    %618 = arith.addf %617, %616 : vector<8x128xf32>
    %619 = arith.divf %617, %618 : vector<8x128xf32>
    %620 = vector.extract_strided_slice %613 {offsets = [0, 128], sizes = [8, 128], strides = [1, 1]} : vector<8x512xf32> to vector<8x128xf32>
    %621 = arith.negf %620 : vector<8x128xf32>
    %622 = math.exp %621 : vector<8x128xf32>
    %cst_162 = arith.constant 1.000000e+00 : f32
    %623 = vector.broadcast %cst_162 : f32 to vector<8x128xf32>
    %624 = arith.addf %623, %622 : vector<8x128xf32>
    %625 = arith.divf %623, %624 : vector<8x128xf32>
    %626 = vector.extract_strided_slice %613 {offsets = [0, 256], sizes = [8, 128], strides = [1, 1]} : vector<8x512xf32> to vector<8x128xf32>
    %627 = math.tanh %626 : vector<8x128xf32>
    %628 = vector.extract_strided_slice %613 {offsets = [0, 384], sizes = [8, 128], strides = [1, 1]} : vector<8x512xf32> to vector<8x128xf32>
    %629 = arith.negf %628 : vector<8x128xf32>
    %630 = math.exp %629 : vector<8x128xf32>
    %cst_163 = arith.constant 1.000000e+00 : f32
    %631 = vector.broadcast %cst_163 : f32 to vector<8x128xf32>
    %632 = arith.addf %631, %630 : vector<8x128xf32>
    %633 = arith.divf %631, %632 : vector<8x128xf32>
    %634 = arith.mulf %625, %575 : vector<8x128xf32>
    %635 = arith.mulf %619, %627 : vector<8x128xf32>
    %636 = arith.addf %634, %635 : vector<8x128xf32>
    %637 = math.tanh %636 : vector<8x128xf32>
    %638 = arith.mulf %633, %637 : vector<8x128xf32>
    %639 = tpu.concatenate %638, %606 in 1 : vector<8x128xf32>, vector<8x128xf32> -> vector<8x256xf32>
    %c0_164 = arith.constant 0 : index
    %c0_165 = arith.constant 0 : index
    %640 = vector.load %arg7[%c0_164, %c0_165] : memref<256x512xf32, #tpu.memory_space<vmem>>, vector<256x512xf32>
    %cst_166 = arith.constant dense<0.000000e+00> : vector<8x512xf32>
    %641 = tpu.matmul %639, %640, %cst_166 {dimension_numbers = #tpu.dot_dimension_numbers<[1], [0], [0], [1], [0, 0, 1, 1], [], []>} : vector<8x256xf32>, vector<256x512xf32>, vector<8x512xf32> -> vector<8x512xf32>
    %642 = arith.addf %641, %22 : vector<8x512xf32>
    %643 = vector.extract_strided_slice %642 {offsets = [0, 0], sizes = [8, 128], strides = [1, 1]} : vector<8x512xf32> to vector<8x128xf32>
    %644 = arith.negf %643 : vector<8x128xf32>
    %645 = math.exp %644 : vector<8x128xf32>
    %cst_167 = arith.constant 1.000000e+00 : f32
    %646 = vector.broadcast %cst_167 : f32 to vector<8x128xf32>
    %647 = arith.addf %646, %645 : vector<8x128xf32>
    %648 = arith.divf %646, %647 : vector<8x128xf32>
    %649 = vector.extract_strided_slice %642 {offsets = [0, 128], sizes = [8, 128], strides = [1, 1]} : vector<8x512xf32> to vector<8x128xf32>
    %650 = arith.negf %649 : vector<8x128xf32>
    %651 = math.exp %650 : vector<8x128xf32>
    %cst_168 = arith.constant 1.000000e+00 : f32
    %652 = vector.broadcast %cst_168 : f32 to vector<8x128xf32>
    %653 = arith.addf %652, %651 : vector<8x128xf32>
    %654 = arith.divf %652, %653 : vector<8x128xf32>
    %655 = vector.extract_strided_slice %642 {offsets = [0, 256], sizes = [8, 128], strides = [1, 1]} : vector<8x512xf32> to vector<8x128xf32>
    %656 = math.tanh %655 : vector<8x128xf32>
    %657 = vector.extract_strided_slice %642 {offsets = [0, 384], sizes = [8, 128], strides = [1, 1]} : vector<8x512xf32> to vector<8x128xf32>
    %658 = arith.negf %657 : vector<8x128xf32>
    %659 = math.exp %658 : vector<8x128xf32>
    %cst_169 = arith.constant 1.000000e+00 : f32
    %660 = vector.broadcast %cst_169 : f32 to vector<8x128xf32>
    %661 = arith.addf %660, %659 : vector<8x128xf32>
    %662 = arith.divf %660, %661 : vector<8x128xf32>
    %663 = arith.mulf %654, %604 : vector<8x128xf32>
    %664 = arith.mulf %648, %656 : vector<8x128xf32>
    %665 = arith.addf %663, %664 : vector<8x128xf32>
    %666 = math.tanh %665 : vector<8x128xf32>
    %667 = arith.mulf %662, %666 : vector<8x128xf32>
    %c16_170 = arith.constant 16 : index
    %c0_171 = arith.constant 0 : index
    %668 = vector.load %arg14[%c16_170, %c0_171] : memref<40x128xf32, #tpu.memory_space<vmem>>, vector<8x128xf32>
    tpu.vector_store %arg14[%c16_170, %c0_171], %667 {strides = array<i32>} : memref<40x128xf32, #tpu.memory_space<vmem>>, vector<8x128xf32>,
    %669 = tpu.concatenate %638, %667 in 1 : vector<8x128xf32>, vector<8x128xf32> -> vector<8x256xf32>
    %c24_172 = arith.constant 24 : index
    %c0_173 = arith.constant 0 : index
    %670 = vector.load %arg13[%c24_172, %c0_173] : memref<40x512xf32, #tpu.memory_space<vmem>>, vector<8x512xf32>
    %671 = arith.addf %670, %19 : vector<8x512xf32>
    %c0_174 = arith.constant 0 : index
    %c0_175 = arith.constant 0 : index
    %672 = vector.load %arg6[%c0_174, %c0_175] : memref<256x512xf32, #tpu.memory_space<vmem>>, vector<256x512xf32>
    %cst_176 = arith.constant dense<0.000000e+00> : vector<8x512xf32>
    %673 = tpu.matmul %669, %672, %cst_176 {dimension_numbers = #tpu.dot_dimension_numbers<[1], [0], [0], [1], [0, 0, 1, 1], [], []>} : vector<8x256xf32>, vector<256x512xf32>, vector<8x512xf32> -> vector<8x512xf32>
    %674 = arith.addf %671, %673 : vector<8x512xf32>
    %675 = vector.extract_strided_slice %674 {offsets = [0, 0], sizes = [8, 128], strides = [1, 1]} : vector<8x512xf32> to vector<8x128xf32>
    %676 = arith.negf %675 : vector<8x128xf32>
    %677 = math.exp %676 : vector<8x128xf32>
    %cst_177 = arith.constant 1.000000e+00 : f32
    %678 = vector.broadcast %cst_177 : f32 to vector<8x128xf32>
    %679 = arith.addf %678, %677 : vector<8x128xf32>
    %680 = arith.divf %678, %679 : vector<8x128xf32>
    %681 = vector.extract_strided_slice %674 {offsets = [0, 128], sizes = [8, 128], strides = [1, 1]} : vector<8x512xf32> to vector<8x128xf32>
    %682 = arith.negf %681 : vector<8x128xf32>
    %683 = math.exp %682 : vector<8x128xf32>
    %cst_178 = arith.constant 1.000000e+00 : f32
    %684 = vector.broadcast %cst_178 : f32 to vector<8x128xf32>
    %685 = arith.addf %684, %683 : vector<8x128xf32>
    %686 = arith.divf %684, %685 : vector<8x128xf32>
    %687 = vector.extract_strided_slice %674 {offsets = [0, 256], sizes = [8, 128], strides = [1, 1]} : vector<8x512xf32> to vector<8x128xf32>
    %688 = math.tanh %687 : vector<8x128xf32>
    %689 = vector.extract_strided_slice %674 {offsets = [0, 384], sizes = [8, 128], strides = [1, 1]} : vector<8x512xf32> to vector<8x128xf32>
    %690 = arith.negf %689 : vector<8x128xf32>
    %691 = math.exp %690 : vector<8x128xf32>
    %cst_179 = arith.constant 1.000000e+00 : f32
    %692 = vector.broadcast %cst_179 : f32 to vector<8x128xf32>
    %693 = arith.addf %692, %691 : vector<8x128xf32>
    %694 = arith.divf %692, %693 : vector<8x128xf32>
    %695 = arith.mulf %686, %636 : vector<8x128xf32>
    %696 = arith.mulf %680, %688 : vector<8x128xf32>
    %697 = arith.addf %695, %696 : vector<8x128xf32>
    %698 = math.tanh %697 : vector<8x128xf32>
    %699 = arith.mulf %694, %698 : vector<8x128xf32>
    %700 = tpu.concatenate %699, %667 in 1 : vector<8x128xf32>, vector<8x128xf32> -> vector<8x256xf32>
    %c0_180 = arith.constant 0 : index
    %c0_181 = arith.constant 0 : index
    %701 = vector.load %arg7[%c0_180, %c0_181] : memref<256x512xf32, #tpu.memory_space<vmem>>, vector<256x512xf32>
    %cst_182 = arith.constant dense<0.000000e+00> : vector<8x512xf32>
    %702 = tpu.matmul %700, %701, %cst_182 {dimension_numbers = #tpu.dot_dimension_numbers<[1], [0], [0], [1], [0, 0, 1, 1], [], []>} : vector<8x256xf32>, vector<256x512xf32>, vector<8x512xf32> -> vector<8x512xf32>
    %703 = arith.addf %702, %22 : vector<8x512xf32>
    %704 = vector.extract_strided_slice %703 {offsets = [0, 0], sizes = [8, 128], strides = [1, 1]} : vector<8x512xf32> to vector<8x128xf32>
    %705 = arith.negf %704 : vector<8x128xf32>
    %706 = math.exp %705 : vector<8x128xf32>
    %cst_183 = arith.constant 1.000000e+00 : f32
    %707 = vector.broadcast %cst_183 : f32 to vector<8x128xf32>
    %708 = arith.addf %707, %706 : vector<8x128xf32>
    %709 = arith.divf %707, %708 : vector<8x128xf32>
    %710 = vector.extract_strided_slice %703 {offsets = [0, 128], sizes = [8, 128], strides = [1, 1]} : vector<8x512xf32> to vector<8x128xf32>
    %711 = arith.negf %710 : vector<8x128xf32>
    %712 = math.exp %711 : vector<8x128xf32>
    %cst_184 = arith.constant 1.000000e+00 : f32
    %713 = vector.broadcast %cst_184 : f32 to vector<8x128xf32>
    %714 = arith.addf %713, %712 : vector<8x128xf32>
    %715 = arith.divf %713, %714 : vector<8x128xf32>
    %716 = vector.extract_strided_slice %703 {offsets = [0, 256], sizes = [8, 128], strides = [1, 1]} : vector<8x512xf32> to vector<8x128xf32>
    %717 = math.tanh %716 : vector<8x128xf32>
    %718 = vector.extract_strided_slice %703 {offsets = [0, 384], sizes = [8, 128], strides = [1, 1]} : vector<8x512xf32> to vector<8x128xf32>
    %719 = arith.negf %718 : vector<8x128xf32>
    %720 = math.exp %719 : vector<8x128xf32>
    %cst_185 = arith.constant 1.000000e+00 : f32
    %721 = vector.broadcast %cst_185 : f32 to vector<8x128xf32>
    %722 = arith.addf %721, %720 : vector<8x128xf32>
    %723 = arith.divf %721, %722 : vector<8x128xf32>
    %724 = arith.mulf %715, %665 : vector<8x128xf32>
    %725 = arith.mulf %709, %717 : vector<8x128xf32>
    %726 = arith.addf %724, %725 : vector<8x128xf32>
    %727 = math.tanh %726 : vector<8x128xf32>
    %728 = arith.mulf %723, %727 : vector<8x128xf32>
    %c24_186 = arith.constant 24 : index
    %c0_187 = arith.constant 0 : index
    %729 = vector.load %arg14[%c24_186, %c0_187] : memref<40x128xf32, #tpu.memory_space<vmem>>, vector<8x128xf32>
    tpu.vector_store %arg14[%c24_186, %c0_187], %728 {strides = array<i32>} : memref<40x128xf32, #tpu.memory_space<vmem>>, vector<8x128xf32>,
    %730 = tpu.concatenate %699, %728 in 1 : vector<8x128xf32>, vector<8x128xf32> -> vector<8x256xf32>
    %c32_188 = arith.constant 32 : index
    %c0_189 = arith.constant 0 : index
    %731 = vector.load %arg13[%c32_188, %c0_189] : memref<40x512xf32, #tpu.memory_space<vmem>>, vector<8x512xf32>
    %732 = arith.addf %731, %19 : vector<8x512xf32>
    %c0_190 = arith.constant 0 : index
    %c0_191 = arith.constant 0 : index
    %733 = vector.load %arg6[%c0_190, %c0_191] : memref<256x512xf32, #tpu.memory_space<vmem>>, vector<256x512xf32>
    %cst_192 = arith.constant dense<0.000000e+00> : vector<8x512xf32>
    %734 = tpu.matmul %730, %733, %cst_192 {dimension_numbers = #tpu.dot_dimension_numbers<[1], [0], [0], [1], [0, 0, 1, 1], [], []>} : vector<8x256xf32>, vector<256x512xf32>, vector<8x512xf32> -> vector<8x512xf32>
    %735 = arith.addf %732, %734 : vector<8x512xf32>
    %736 = vector.extract_strided_slice %735 {offsets = [0, 0], sizes = [8, 128], strides = [1, 1]} : vector<8x512xf32> to vector<8x128xf32>
    %737 = arith.negf %736 : vector<8x128xf32>
    %738 = math.exp %737 : vector<8x128xf32>
    %cst_193 = arith.constant 1.000000e+00 : f32
    %739 = vector.broadcast %cst_193 : f32 to vector<8x128xf32>
    %740 = arith.addf %739, %738 : vector<8x128xf32>
    %741 = arith.divf %739, %740 : vector<8x128xf32>
    %742 = vector.extract_strided_slice %735 {offsets = [0, 128], sizes = [8, 128], strides = [1, 1]} : vector<8x512xf32> to vector<8x128xf32>
    %743 = arith.negf %742 : vector<8x128xf32>
    %744 = math.exp %743 : vector<8x128xf32>
    %cst_194 = arith.constant 1.000000e+00 : f32
    %745 = vector.broadcast %cst_194 : f32 to vector<8x128xf32>
    %746 = arith.addf %745, %744 : vector<8x128xf32>
    %747 = arith.divf %745, %746 : vector<8x128xf32>
    %748 = vector.extract_strided_slice %735 {offsets = [0, 256], sizes = [8, 128], strides = [1, 1]} : vector<8x512xf32> to vector<8x128xf32>
    %749 = math.tanh %748 : vector<8x128xf32>
    %750 = vector.extract_strided_slice %735 {offsets = [0, 384], sizes = [8, 128], strides = [1, 1]} : vector<8x512xf32> to vector<8x128xf32>
    %751 = arith.negf %750 : vector<8x128xf32>
    %752 = math.exp %751 : vector<8x128xf32>
    %cst_195 = arith.constant 1.000000e+00 : f32
    %753 = vector.broadcast %cst_195 : f32 to vector<8x128xf32>
    %754 = arith.addf %753, %752 : vector<8x128xf32>
    %755 = arith.divf %753, %754 : vector<8x128xf32>
    %756 = arith.mulf %747, %697 : vector<8x128xf32>
    %757 = arith.mulf %741, %749 : vector<8x128xf32>
    %758 = arith.addf %756, %757 : vector<8x128xf32>
    %759 = math.tanh %758 : vector<8x128xf32>
    %760 = arith.mulf %755, %759 : vector<8x128xf32>
    %761 = tpu.concatenate %760, %728 in 1 : vector<8x128xf32>, vector<8x128xf32> -> vector<8x256xf32>
    %c0_196 = arith.constant 0 : index
    %c0_197 = arith.constant 0 : index
    %762 = vector.load %arg7[%c0_196, %c0_197] : memref<256x512xf32, #tpu.memory_space<vmem>>, vector<256x512xf32>
    %cst_198 = arith.constant dense<0.000000e+00> : vector<8x512xf32>
    %763 = tpu.matmul %761, %762, %cst_198 {dimension_numbers = #tpu.dot_dimension_numbers<[1], [0], [0], [1], [0, 0, 1, 1], [], []>} : vector<8x256xf32>, vector<256x512xf32>, vector<8x512xf32> -> vector<8x512xf32>
    %764 = arith.addf %763, %22 : vector<8x512xf32>
    %765 = vector.extract_strided_slice %764 {offsets = [0, 0], sizes = [8, 128], strides = [1, 1]} : vector<8x512xf32> to vector<8x128xf32>
    %766 = arith.negf %765 : vector<8x128xf32>
    %767 = math.exp %766 : vector<8x128xf32>
    %cst_199 = arith.constant 1.000000e+00 : f32
    %768 = vector.broadcast %cst_199 : f32 to vector<8x128xf32>
    %769 = arith.addf %768, %767 : vector<8x128xf32>
    %770 = arith.divf %768, %769 : vector<8x128xf32>
    %771 = vector.extract_strided_slice %764 {offsets = [0, 128], sizes = [8, 128], strides = [1, 1]} : vector<8x512xf32> to vector<8x128xf32>
    %772 = arith.negf %771 : vector<8x128xf32>
    %773 = math.exp %772 : vector<8x128xf32>
    %cst_200 = arith.constant 1.000000e+00 : f32
    %774 = vector.broadcast %cst_200 : f32 to vector<8x128xf32>
    %775 = arith.addf %774, %773 : vector<8x128xf32>
    %776 = arith.divf %774, %775 : vector<8x128xf32>
    %777 = vector.extract_strided_slice %764 {offsets = [0, 256], sizes = [8, 128], strides = [1, 1]} : vector<8x512xf32> to vector<8x128xf32>
    %778 = math.tanh %777 : vector<8x128xf32>
    %779 = vector.extract_strided_slice %764 {offsets = [0, 384], sizes = [8, 128], strides = [1, 1]} : vector<8x512xf32> to vector<8x128xf32>
    %780 = arith.negf %779 : vector<8x128xf32>
    %781 = math.exp %780 : vector<8x128xf32>
    %cst_201 = arith.constant 1.000000e+00 : f32
    %782 = vector.broadcast %cst_201 : f32 to vector<8x128xf32>
    %783 = arith.addf %782, %781 : vector<8x128xf32>
    %784 = arith.divf %782, %783 : vector<8x128xf32>
    %785 = arith.mulf %776, %726 : vector<8x128xf32>
    %786 = arith.mulf %770, %778 : vector<8x128xf32>
    %787 = arith.addf %785, %786 : vector<8x128xf32>
    %788 = math.tanh %787 : vector<8x128xf32>
    %789 = arith.mulf %784, %788 : vector<8x128xf32>
    %c32_202 = arith.constant 32 : index
    %c0_203 = arith.constant 0 : index
    %790 = vector.load %arg14[%c32_202, %c0_203] : memref<40x128xf32, #tpu.memory_space<vmem>>, vector<8x128xf32>
    tpu.vector_store %arg14[%c32_202, %c0_203], %789 {strides = array<i32>} : memref<40x128xf32, #tpu.memory_space<vmem>>, vector<8x128xf32>,
    %c0_204 = arith.constant 0 : index
    %c0_205 = arith.constant 0 : index
    %791 = vector.load %arg14[%c0_204, %c0_205] : memref<40x128xf32, #tpu.memory_space<vmem>>, vector<40x128xf32>
    %c0_206 = arith.constant 0 : index
    %c0_207 = arith.constant 0 : index
    %792 = vector.load %arg8[%c0_206, %c0_207] : memref<128x8xf32, #tpu.memory_space<vmem>>, vector<128x8xf32>
    %cst_208 = arith.constant dense<0.000000e+00> : vector<40x8xf32>
    %793 = tpu.matmul %791, %792, %cst_208 {dimension_numbers = #tpu.dot_dimension_numbers<[1], [0], [0], [1], [0, 0, 1, 1], [], []>} : vector<40x128xf32>, vector<128x8xf32>, vector<40x8xf32> -> vector<40x8xf32>
    %c0_209 = arith.constant 0 : index
    %c0_210 = arith.constant 0 : index
    %794 = vector.load %arg10[%c0_209, %c0_210] : memref<1x8xf32, #tpu.memory_space<vmem>>, vector<1x8xf32>
    %795 = vector.shape_cast %794 : vector<1x8xf32> to vector<1x8xf32>
    %796 = vector.broadcast %795 : vector<1x8xf32> to vector<40x8xf32>
    %797 = arith.addf %793, %796 : vector<40x8xf32>
    %c0_211 = arith.constant 0 : index
    %c0_212 = arith.constant 0 : index
    %798 = vector.load %arg11[%c0_211, %c0_212] : memref<40x8xf32, #tpu.memory_space<vmem>>, vector<40x8xf32>
    tpu.vector_store %arg11[%c0_211, %c0_212], %797 {strides = array<i32>} : memref<40x8xf32, #tpu.memory_space<vmem>>, vector<40x8xf32>,
    return
  }
}

</mosaic_0001>

<llo_original>
// kernel: seq2seq_forward.1
$region0: #{seq2seq_forward.1}
  #allocation0 [shape = 'u32[]', space=smem, size = 0x4, offset = 0x4, fixed_abs, tag = 'smem constant byte address 0x4 - core index']
  #allocation1 [shape = 'u32[72,128]{1,0:T(1,128)}', space=vmem, size = 0x9000, scoped, tag = 'internal scratch']
  #allocation2 [shape = 'f32[64,512]{1,0:T(8,128)}', space=vmem, size = 0x20000, scoped, tag = 'scratch operand']
  #allocation3 [shape = 'f32[40,512]{1,0:T(8,128)}', space=vmem, size = 0x14000, scoped, tag = 'scratch operand']
  #allocation4 [shape = 'f32[40,128]{1,0:T(8,128)}', space=vmem, size = 0x5000, scoped, tag = 'scratch operand']
  %s0 = inlined_call_operand.vmem [shape: f32[64,14], index: 0, kind: input, shape index: {}]
  %s1 = inlined_call_operand.vmem [shape: f32[40,3], index: 1, kind: input, shape index: {}]
  %s2 = inlined_call_operand.vmem [shape: f32[14,512], index: 2, kind: input, shape index: {}]
  %s3 = inlined_call_operand.hbm [shape: f32[128,512], index: 3, kind: input, shape index: {}]
  %s4 = inlined_call_operand.hbm [shape: f32[256,512], index: 4, kind: input, shape index: {}]
  %s5 = inlined_call_operand.vmem [shape: f32[3,512], index: 5, kind: input, shape index: {}]
  %s6 = inlined_call_operand.hbm [shape: f32[256,512], index: 6, kind: input, shape index: {}]
  %s7 = inlined_call_operand.hbm [shape: f32[256,512], index: 7, kind: input, shape index: {}]
  %s8 = inlined_call_operand.vmem [shape: f32[128,8], index: 8, kind: input, shape index: {}]
  %s9 = inlined_call_operand.vmem [shape: f32[5,512], index: 9, kind: input, shape index: {}]
  %s10 = inlined_call_operand.vmem [shape: f32[1,8], index: 10, kind: input, shape index: {}]
  %s11 = inlined_call_operand.hbm [shape: f32[40,8], index: 11, kind: output, shape index: {}]
  %s12 = sld [smem:[#allocation0]]
  $region70: #{seq2seq_forward.1} parent=0
    _
  %s14 = ssub.s32 1, %s12
  %s15 = scalar_select 0, %s14, %s12
  $region1: #{seq2seq_forward.1} parent=0
    #allocation5 [shape = 'u8[262144]{0}', space=vmem, size = 0x40000, scoped, tag = 'input window, operand 3, single buffered']
    #allocation6 [shape = 's32[1]{0}', space=sflag, size = 0x4, scoped, tag = 'scoped memory for seq2seq_forward.1']
    #allocation7 [shape = 's32[1]{0}', space=sflag, size = 0x4, scoped, tag = 'scoped memory for seq2seq_forward.1']
    #allocation8 [shape = 'u8[524288]{0}', space=vmem, size = 0x80000, scoped, tag = 'input window, operand 4, single buffered']
    #allocation9 [shape = 's32[1]{0}', space=sflag, size = 0x4, scoped, tag = 'scoped memory for seq2seq_forward.1']
    #allocation10 [shape = 'u8[524288]{0}', space=vmem, size = 0x80000, scoped, tag = 'input window, operand 6, single buffered']
    #allocation11 [shape = 'u8[524288]{0}', space=vmem, size = 0x80000, scoped, tag = 'input window, operand 7, single buffered']
    #allocation12 [shape = 's32[1]{0}', space=sflag, size = 0x4, scoped, tag = 'scoped memory for seq2seq_forward.1']
    #allocation13 [shape = 'u8[20480]{0}', space=vmem, size = 0x5000, scoped, tag = 'output window, operand 0, single buffered']
    %16 = vsyncpa [#allocation6], 0
    %17 = vsyncpa [#allocation9], 0
    %18 = vsyncpa [#allocation12], 0
    %19 = vsyncpa [#allocation7], 0
    // Predicated region
    $region2: #{seq2seq_forward.1} parent=1 // pred_check
      _
    $region3: #{seq2seq_forward.1} parent=1 // pred_check_branch
      %21 = sbr.rel (0) target = $region5
    $region4: #{seq2seq_forward.1} parent=1 // pred_region
      _
    $region5: #{seq2seq_forward.1} parent=1 // pred_fallthru
      _
    // Predicated region
    $region6: #{seq2seq_forward.1} parent=1 // pred_check
      _
    $region7: #{seq2seq_forward.1} parent=1 // pred_check_branch
      %23 = sbr.rel (0) target = $region9
    $region8: #{seq2seq_forward.1} parent=1 // pred_region
      _
    $region9: #{seq2seq_forward.1} parent=1 // pred_fallthru
      _
    // Predicated region
    $region10: #{seq2seq_forward.1} parent=1 // pred_check
      _
    $region11: #{seq2seq_forward.1} parent=1 // pred_check_branch
      %25 = sbr.rel (0) target = $region13
    $region12: #{seq2seq_forward.1} parent=1 // pred_region
      _
    $region13: #{seq2seq_forward.1} parent=1 // pred_fallthru
      _
    // Predicated region
    $region14: #{seq2seq_forward.1} parent=1 // pred_check
      _
    $region15: #{seq2seq_forward.1} parent=1 // pred_check_branch
      %27 = sbr.rel (0) target = $region17
    $region16: #{seq2seq_forward.1} parent=1 // pred_region
      %29 = vsyncadd [#allocation6], 0
      %s30 = sshll.u32 %s3, 4
      %s31 = int_to_ptr.hbm [resolvable:$true] %s30
      %s32 = sshll.u32 [#allocation5], 4
      %s33 = int_to_ptr.vmem [resolvable:$true] %s32
      %38 = dma.hbm_to_vmem [thread:$0]  %s31, 8192, %s33, [#allocation6], 512, 512, 32
    $region17: #{seq2seq_forward.1} parent=1 // pred_fallthru
      _
    // Predicated region
    $region18: #{seq2seq_forward.1} parent=1 // pred_check
      _
    $region19: #{seq2seq_forward.1} parent=1 // pred_check_branch
      %40 = sbr.rel (0) target = $region21
    $region20: #{seq2seq_forward.1} parent=1 // pred_region
      %42 = vsyncadd [#allocation9], 0
      %s43 = sshll.u32 %s4, 4
      %s44 = int_to_ptr.hbm [resolvable:$true] %s43
      %s45 = sshll.u32 [#allocation8], 4
      %s46 = int_to_ptr.vmem [resolvable:$true] %s45
      %51 = dma.hbm_to_vmem [thread:$0]  %s44, 16384, %s46, [#allocation9], 512, 512, 32
    $region21: #{seq2seq_forward.1} parent=1 // pred_fallthru
      _
    // Predicated region
    $region22: #{seq2seq_forward.1} parent=1 // pred_check
      _
    $region23: #{seq2seq_forward.1} parent=1 // pred_check_branch
      %53 = sbr.rel (0) target = $region25
    $region24: #{seq2seq_forward.1} parent=1 // pred_region
      _
    $region25: #{seq2seq_forward.1} parent=1 // pred_fallthru
      _
    // Predicated region
    $region26: #{seq2seq_forward.1} parent=1 // pred_check
      _
    $region27: #{seq2seq_forward.1} parent=1 // pred_check_branch
      %55 = sbr.rel (0) target = $region29
    $region28: #{seq2seq_forward.1} parent=1 // pred_region
      %57 = vsyncadd [#allocation9], 0
      %s58 = sshll.u32 %s6, 4
      %s59 = int_to_ptr.hbm [resolvable:$true] %s58
      %s60 = sshll.u32 [#allocation10], 4
      %s61 = int_to_ptr.vmem [resolvable:$true] %s60
      %66 = dma.hbm_to_vmem [thread:$0]  %s59, 16384, %s61, [#allocation9], 512, 512, 32
    $region29: #{seq2seq_forward.1} parent=1 // pred_fallthru
      _
    // Predicated region
    $region30: #{seq2seq_forward.1} parent=1 // pred_check
      _
    $region31: #{seq2seq_forward.1} parent=1 // pred_check_branch
      %68 = sbr.rel (0) target = $region33
    $region32: #{seq2seq_forward.1} parent=1 // pred_region
      %70 = vsyncadd [#allocation12], 0
      %s71 = sshll.u32 %s7, 4
      %s72 = int_to_ptr.hbm [resolvable:$true] %s71
      %s73 = sshll.u32 [#allocation11], 4
      %s74 = int_to_ptr.vmem [resolvable:$true] %s73
      %79 = dma.hbm_to_vmem [thread:$0]  %s72, 16384, %s74, [#allocation12], 512, 512, 32
    $region33: #{seq2seq_forward.1} parent=1 // pred_fallthru
      _
    // Predicated region
    $region34: #{seq2seq_forward.1} parent=1 // pred_check
      _
    $region35: #{seq2seq_forward.1} parent=1 // pred_check_branch
      %81 = sbr.rel (0) target = $region37
    $region36: #{seq2seq_forward.1} parent=1 // pred_region
      _
    $region37: #{seq2seq_forward.1} parent=1 // pred_fallthru
      _
    // Predicated region
    $region38: #{seq2seq_forward.1} parent=1 // pred_check
      _
    $region39: #{seq2seq_forward.1} parent=1 // pred_check_branch
      %83 = sbr.rel (0) target = $region41
    $region40: #{seq2seq_forward.1} parent=1 // pred_region
      _
    $region41: #{seq2seq_forward.1} parent=1 // pred_fallthru
      _
    // Predicated region
    $region42: #{seq2seq_forward.1} parent=1 // pred_check
      _
    $region43: #{seq2seq_forward.1} parent=1 // pred_check_branch
      %85 = sbr.rel (0) target = $region45
    $region44: #{seq2seq_forward.1} parent=1 // pred_region
      _
    $region45: #{seq2seq_forward.1} parent=1 // pred_fallthru
      _
    // Predicated region
    $region46: #{seq2seq_forward.1} parent=1 // pred_check
      _
    $region47: #{seq2seq_forward.1} parent=1 // pred_check_branch
      %87 = sbr.rel (0) target = $region49
    $region48: #{seq2seq_forward.1} parent=1 // pred_region
      %89 = dma.done [#allocation6], 8192
    $region49: #{seq2seq_forward.1} parent=1 // pred_fallthru
      _
    // Predicated region
    $region50: #{seq2seq_forward.1} parent=1 // pred_check
      _
    $region51: #{seq2seq_forward.1} parent=1 // pred_check_branch
      %91 = sbr.rel (0) target = $region53
    $region52: #{seq2seq_forward.1} parent=1 // pred_region
      %93 = dma.done [#allocation9], 16384
    $region53: #{seq2seq_forward.1} parent=1 // pred_fallthru
      _
    // Predicated region
    $region54: #{seq2seq_forward.1} parent=1 // pred_check
      _
    $region55: #{seq2seq_forward.1} parent=1 // pred_check_branch
      %95 = sbr.rel (0) target = $region57
    $region56: #{seq2seq_forward.1} parent=1 // pred_region
      %97 = dma.done [#allocation9], 16384
    $region57: #{seq2seq_forward.1} parent=1 // pred_fallthru
      _
    // Predicated region
    $region58: #{seq2seq_forward.1} parent=1 // pred_check
      _
    $region59: #{seq2seq_forward.1} parent=1 // pred_check_branch
      %99 = sbr.rel (0) target = $region61
    $region60: #{seq2seq_forward.1} parent=1 // pred_region
      %101 = dma.done [#allocation12], 16384
    $region61: #{seq2seq_forward.1} parent=1 // pred_fallthru
      _
    %v102 = vld [vmem:[%s0] sm:$0xff]
    %v103 = vld [vmem:[%s0 + $0x8] sm:$0xff]
    %v104 = vld [vmem:[%s0 + $0x10] sm:$0xff]
    %v105 = vld [vmem:[%s0 + $0x18] sm:$0xff]
    %v106 = vld [vmem:[%s0 + $0x20] sm:$0xff]
    %v107 = vld [vmem:[%s0 + $0x28] sm:$0xff]
    %v108 = vld [vmem:[%s0 + $0x30] sm:$0xff]
    %v109 = vld [vmem:[%s0 + $0x38] sm:$0xff]
    %v110 = vld [vmem:[%s2] sm:$0xff]
    %v111 = vld [vmem:[%s2 + $0x8] sm:$0xff]
    %v112 = vld [vmem:[%s2 + $0x10] sm:$0xff]
    %v113 = vld [vmem:[%s2 + $0x18] sm:$0xff]
    %v114 = vld [vmem:[%s2 + $0x20] sm:$0x3f]
    %v115 = vld [vmem:[%s2 + $0x28] sm:$0x3f]
    %v116 = vld [vmem:[%s2 + $0x30] sm:$0x3f]
    %v117 = vld [vmem:[%s2 + $0x38] sm:$0x3f]
    %v118 = vld [vmem:[%s9] ss:$8 sm:$0xf]
    %v120 = vperm.slane %v118, 0
    %v121 = vperm.slane %v118, 1
    %v122 = vperm.slane %v118, 2
    %v123 = vperm.slane %v118, 3
    %vm128 = vcmask 113664
    %v130 = vsel %vm128, %v102, 0
    %v133 = vsel %vm128, %v103, 0
    %v136 = vsel %vm128, %v104, 0
    %v139 = vsel %vm128, %v105, 0
    %v142 = vsel %vm128, %v106, 0
    %v145 = vsel %vm128, %v107, 0
    %v148 = vsel %vm128, %v108, 0
    %v151 = vsel %vm128, %v109, 0
    %vm153 = vcmask 1045504
    %v155 = vsel %vm153, %v114, 0
    %v158 = vsel %vm153, %v115, 0
    %v161 = vsel %vm153, %v116, 0
    %v164 = vsel %vm153, %v117, 0
    %166 = vmatpush.msra.mxu0 0.0
    %167 = vmatpush.msra.mxu0 0.0
    %168 = vmatpush.msra.mxu0 0.0
    %169 = vmatpush.msra.mxu0 0.0
    %170 = vmatpush.msra.mxu0 0.0
    %171 = vmatpush.msra.mxu0 0.0
    %172 = vmatpush.msra.mxu0 0.0
    %173 = vmatpush.msra.mxu0 0.0
    %174 = vmatpush.msra.mxu0 0.0
    %175 = vmatpush.msra.mxu0 0.0
    %176 = vmatpush.msra.mxu0 0.0
    %177 = vmatpush.msra.mxu0 0.0
    %178 = vmatpush.msra.mxu0 0.0
    %179 = vmatpush.msra.mxu0 0.0
    %180 = vmatpush.msra.mxu0 %v155
    %181 = vmatpush.msra.mxu0 %v110
    %182 = vmatmul.f32.gmra.mxu0 %v130
    %v183 = vpop.f32.mrf.mxu0
    %v184 = vadd.f32 %v120, %v183
    %185 = vmatmul.f32.gmra.mxu0 %v133
    %v186 = vpop.f32.mrf.mxu0
    %v187 = vadd.f32 %v120, %v186
    %188 = vmatmul.f32.gmra.mxu0 %v136
    %v189 = vpop.f32.mrf.mxu0
    %v190 = vadd.f32 %v120, %v189
    %191 = vmatmul.f32.gmra.mxu0 %v139
    %v192 = vpop.f32.mrf.mxu0
    %v193 = vadd.f32 %v120, %v192
    %194 = vmatmul.f32.gmra.mxu0 %v142
    %v195 = vpop.f32.mrf.mxu0
    %v196 = vadd.f32 %v120, %v195
    %197 = vmatmul.f32.gmra.mxu0 %v145
    %v198 = vpop.f32.mrf.mxu0
    %v199 = vadd.f32 %v120, %v198
    %200 = vmatmul.f32.gmra.mxu0 %v148
    %v201 = vpop.f32.mrf.mxu0
    %v202 = vadd.f32 %v120, %v201
    %203 = vmatmul.f32.gmra.mxu0 %v151
    %v204 = vpop.f32.mrf.mxu0
    %v205 = vadd.f32 %v120, %v204
    %206 = vdwg.mxu0
    %207 = vmatpush.msra.mxu0 0.0
    %208 = vmatpush.msra.mxu0 0.0
    %209 = vmatpush.msra.mxu0 0.0
    %210 = vmatpush.msra.mxu0 0.0
    %211 = vmatpush.msra.mxu0 0.0
    %212 = vmatpush.msra.mxu0 0.0
    %213 = vmatpush.msra.mxu0 0.0
    %214 = vmatpush.msra.mxu0 0.0
    %215 = vmatpush.msra.mxu0 0.0
    %216 = vmatpush.msra.mxu0 0.0
    %217 = vmatpush.msra.mxu0 0.0
    %218 = vmatpush.msra.mxu0 0.0
    %219 = vmatpush.msra.mxu0 0.0
    %220 = vmatpush.msra.mxu0 0.0
    %221 = vmatpush.msra.mxu0 %v158
    %222 = vmatpush.msra.mxu0 %v111
    %223 = vmatmul.f32.gmra.mxu0 %v130
    %v224 = vpop.f32.mrf.mxu0
    %v225 = vadd.f32 %v121, %v224
    %226 = vmatmul.f32.gmra.mxu0 %v133
    %v227 = vpop.f32.mrf.mxu0
    %v228 = vadd.f32 %v121, %v227
    %229 = vmatmul.f32.gmra.mxu0 %v136
    %v230 = vpop.f32.mrf.mxu0
    %v231 = vadd.f32 %v121, %v230
    %232 = vmatmul.f32.gmra.mxu0 %v139
    %v233 = vpop.f32.mrf.mxu0
    %v234 = vadd.f32 %v121, %v233
    %235 = vmatmul.f32.gmra.mxu0 %v142
    %v236 = vpop.f32.mrf.mxu0
    %v237 = vadd.f32 %v121, %v236
    %238 = vmatmul.f32.gmra.mxu0 %v145
    %v239 = vpop.f32.mrf.mxu0
    %v240 = vadd.f32 %v121, %v239
    %241 = vmatmul.f32.gmra.mxu0 %v148
    %v242 = vpop.f32.mrf.mxu0
    %v243 = vadd.f32 %v121, %v242
    %244 = vmatmul.f32.gmra.mxu0 %v151
    %v245 = vpop.f32.mrf.mxu0
    %v246 = vadd.f32 %v121, %v245
    %247 = vdwg.mxu0
    %248 = vmatpush.msra.mxu0 0.0
    %249 = vmatpush.msra.mxu0 0.0
    %250 = vmatpush.msra.mxu0 0.0
    %251 = vmatpush.msra.mxu0 0.0
    %252 = vmatpush.msra.mxu0 0.0
    %253 = vmatpush.msra.mxu0 0.0
    %254 = vmatpush.msra.mxu0 0.0
    %255 = vmatpush.msra.mxu0 0.0
    %256 = vmatpush.msra.mxu0 0.0
    %257 = vmatpush.msra.mxu0 0.0
    %258 = vmatpush.msra.mxu0 0.0
    %259 = vmatpush.msra.mxu0 0.0
    %260 = vmatpush.msra.mxu0 0.0
    %261 = vmatpush.msra.mxu0 0.0
    %262 = vmatpush.msra.mxu0 %v161
    %263 = vmatpush.msra.mxu0 %v112
    %264 = vmatmul.f32.gmra.mxu0 %v130
    %v265 = vpop.f32.mrf.mxu0
    %v266 = vadd.f32 %v122, %v265
    %267 = vmatmul.f32.gmra.mxu0 %v133
    %v268 = vpop.f32.mrf.mxu0
    %v269 = vadd.f32 %v122, %v268
    %270 = vmatmul.f32.gmra.mxu0 %v136
    %v271 = vpop.f32.mrf.mxu0
    %v272 = vadd.f32 %v122, %v271
    %273 = vmatmul.f32.gmra.mxu0 %v139
    %v274 = vpop.f32.mrf.mxu0
    %v275 = vadd.f32 %v122, %v274
    %276 = vmatmul.f32.gmra.mxu0 %v142
    %v277 = vpop.f32.mrf.mxu0
    %v278 = vadd.f32 %v122, %v277
    %279 = vmatmul.f32.gmra.mxu0 %v145
    %v280 = vpop.f32.mrf.mxu0
    %v281 = vadd.f32 %v122, %v280
    %282 = vmatmul.f32.gmra.mxu0 %v148
    %v283 = vpop.f32.mrf.mxu0
    %v284 = vadd.f32 %v122, %v283
    %285 = vmatmul.f32.gmra.mxu0 %v151
    %v286 = vpop.f32.mrf.mxu0
    %v287 = vadd.f32 %v122, %v286
    %288 = vdwg.mxu0
    %289 = vmatpush.msra.mxu0 0.0
    %290 = vmatpush.msra.mxu0 0.0
    %291 = vmatpush.msra.mxu0 0.0
    %292 = vmatpush.msra.mxu0 0.0
    %293 = vmatpush.msra.mxu0 0.0
    %294 = vmatpush.msra.mxu0 0.0
    %295 = vmatpush.msra.mxu0 0.0
    %296 = vmatpush.msra.mxu0 0.0
    %297 = vmatpush.msra.mxu0 0.0
    %298 = vmatpush.msra.mxu0 0.0
    %299 = vmatpush.msra.mxu0 0.0
    %300 = vmatpush.msra.mxu0 0.0
    %301 = vmatpush.msra.mxu0 0.0
    %302 = vmatpush.msra.mxu0 0.0
    %303 = vmatpush.msra.mxu0 %v164
    %304 = vmatpush.msra.mxu0 %v113
    %305 = vmatmul.f32.gmra.mxu0 %v130
    %v306 = vpop.f32.mrf.mxu0
    %v307 = vadd.f32 %v123, %v306
    %308 = vmatmul.f32.gmra.mxu0 %v133
    %v309 = vpop.f32.mrf.mxu0
    %v310 = vadd.f32 %v123, %v309
    %311 = vmatmul.f32.gmra.mxu0 %v136
    %v312 = vpop.f32.mrf.mxu0
    %v313 = vadd.f32 %v123, %v312
    %314 = vmatmul.f32.gmra.mxu0 %v139
    %v315 = vpop.f32.mrf.mxu0
    %v316 = vadd.f32 %v123, %v315
    %317 = vmatmul.f32.gmra.mxu0 %v142
    %v318 = vpop.f32.mrf.mxu0
    %v319 = vadd.f32 %v123, %v318
    %320 = vmatmul.f32.gmra.mxu0 %v145
    %v321 = vpop.f32.mrf.mxu0
    %v322 = vadd.f32 %v123, %v321
    %323 = vmatmul.f32.gmra.mxu0 %v148
    %v324 = vpop.f32.mrf.mxu0
    %v325 = vadd.f32 %v123, %v324
    %326 = vmatmul.f32.gmra.mxu0 %v151
    %v327 = vpop.f32.mrf.mxu0
    %v328 = vadd.f32 %v123, %v327
    %329 = vdwg.mxu0
    %330 = vst [vmem:[#allocation2] sm:$0xff] %v184
    %331 = vst [vmem:[#allocation2 + $0x8] sm:$0xff] %v225
    %332 = vst [vmem:[#allocation2 + $0x10] sm:$0xff] %v266
    %333 = vst [vmem:[#allocation2 + $0x18] sm:$0xff] %v307
    %334 = vst [vmem:[#allocation2 + $0x20] sm:$0xff] %v187
    %335 = vst [vmem:[#allocation2 + $0x28] sm:$0xff] %v228
    %336 = vst [vmem:[#allocation2 + $0x30] sm:$0xff] %v269
    %337 = vst [vmem:[#allocation2 + $0x38] sm:$0xff] %v310
    %338 = vst [vmem:[#allocation2 + $0x40] sm:$0xff] %v190
    %339 = vst [vmem:[#allocation2 + $0x48] sm:$0xff] %v231
    %340 = vst [vmem:[#allocation2 + $0x50] sm:$0xff] %v272
    %341 = vst [vmem:[#allocation2 + $0x58] sm:$0xff] %v313
    %342 = vst [vmem:[#allocation2 + $0x60] sm:$0xff] %v193
    %343 = vst [vmem:[#allocation2 + $0x68] sm:$0xff] %v234
    %344 = vst [vmem:[#allocation2 + $0x70] sm:$0xff] %v275
    %345 = vst [vmem:[#allocation2 + $0x78] sm:$0xff] %v316
    %346 = vst [vmem:[#allocation2 + $0x80] sm:$0xff] %v196
    %347 = vst [vmem:[#allocation2 + $0x88] sm:$0xff] %v237
    %348 = vst [vmem:[#allocation2 + $0x90] sm:$0xff] %v278
    %349 = vst [vmem:[#allocation2 + $0x98] sm:$0xff] %v319
    %350 = vst [vmem:[#allocation2 + $0xa0] sm:$0xff] %v199
    %351 = vst [vmem:[#allocation2 + $0xa8] sm:$0xff] %v240
    %352 = vst [vmem:[#allocation2 + $0xb0] sm:$0xff] %v281
    %353 = vst [vmem:[#allocation2 + $0xb8] sm:$0xff] %v322
    %354 = vst [vmem:[#allocation2 + $0xc0] sm:$0xff] %v202
    %355 = vst [vmem:[#allocation2 + $0xc8] sm:$0xff] %v243
    %356 = vst [vmem:[#allocation2 + $0xd0] sm:$0xff] %v284
    %357 = vst [vmem:[#allocation2 + $0xd8] sm:$0xff] %v325
    %358 = vst [vmem:[#allocation2 + $0xe0] sm:$0xff] %v205
    %359 = vst [vmem:[#allocation2 + $0xe8] sm:$0xff] %v246
    %360 = vst [vmem:[#allocation2 + $0xf0] sm:$0xff] %v287
    %361 = vst [vmem:[#allocation2 + $0xf8] sm:$0xff] %v328
    %v362 = vld [vmem:[%s1] sm:$0xff]
    %v363 = vld [vmem:[%s1 + $0x8] sm:$0xff]
    %v364 = vld [vmem:[%s1 + $0x10] sm:$0xff]
    %v365 = vld [vmem:[%s1 + $0x18] sm:$0xff]
    %v366 = vld [vmem:[%s1 + $0x20] sm:$0xff]
    %v367 = vld [vmem:[%s5] sm:$0x77]
    %v368 = vld [vmem:[%s5 + $0x8] sm:$0x77]
    %s369 = scalar_lea.vmem %s9, 2
    %v370 = vld [vmem:[%s369] ss:$8 sm:$0xf]
    %v372 = vperm.slane %v370, 0
    %v373 = vperm.slane %v370, 1
    %v374 = vperm.slane %v370, 2
    %v375 = vperm.slane %v370, 3
    %382 = vst [vmem:[#allocation1] ss:$2 sm:$0xff] %v367
    %s383 = scalar_lea.vmem [#allocation1], 16
    %384 = vst [vmem:[%s383] ss:$2 sm:$0xff] %v368
    %v385 = vld.sshfl [vmem:[#allocation1] sm:$0xff pattern:$0x75316420]
    %v386 = vld.sshfl [vmem:[#allocation1 + $0x8] sm:$0xff pattern:$0x75316420]
    %v387 = vld.sshfl [vmem:[#allocation1 + $0x10] sm:$0xff pattern:$0x75316420]
    %v388 = vld.sshfl [vmem:[#allocation1 + $0x18] sm:$0xff pattern:$0x75316420]
    %vm389 = vcmask 23552
    %v391 = vsel %vm389, %v362, 0
    %v394 = vsel %vm389, %v363, 0
    %v397 = vsel %vm389, %v364, 0
    %v400 = vsel %vm389, %v365, 0
    %v403 = vsel %vm389, %v366, 0
    %vm405 = vcmask 1042432
    %v406 = vsel %vm405, %v385, 0
    %v408 = vsel %vm405, %v386, 0
    %v410 = vsel %vm405, %v387, 0
    %v412 = vsel %vm405, %v388, 0
    %414 = vmatpush.msra.mxu0 0.0
    %415 = vmatpush.msra.mxu0 0.0
    %416 = vmatpush.msra.mxu0 0.0
    %417 = vmatpush.msra.mxu0 0.0
    %418 = vmatpush.msra.mxu0 0.0
    %419 = vmatpush.msra.mxu0 0.0
    %420 = vmatpush.msra.mxu0 0.0
    %421 = vmatpush.msra.mxu0 0.0
    %422 = vmatpush.msra.mxu0 0.0
    %423 = vmatpush.msra.mxu0 0.0
    %424 = vmatpush.msra.mxu0 0.0
    %425 = vmatpush.msra.mxu0 0.0
    %426 = vmatpush.msra.mxu0 0.0
    %427 = vmatpush.msra.mxu0 0.0
    %428 = vmatpush.msra.mxu0 0.0
    %429 = vmatpush.msra.mxu0 %v406
    %430 = vmatmul.f32.gmra.mxu0 %v391
    %v431 = vpop.f32.mrf.mxu0
    %v432 = vadd.f32 %v372, %v431
    %433 = vmatmul.f32.gmra.mxu0 %v394
    %v434 = vpop.f32.mrf.mxu0
    %v435 = vadd.f32 %v372, %v434
    %436 = vmatmul.f32.gmra.mxu0 %v397
    %v437 = vpop.f32.mrf.mxu0
    %v438 = vadd.f32 %v372, %v437
    %439 = vmatmul.f32.gmra.mxu0 %v400
    %v440 = vpop.f32.mrf.mxu0
    %v441 = vadd.f32 %v372, %v440
    %442 = vmatmul.f32.gmra.mxu0 %v403
    %v443 = vpop.f32.mrf.mxu0
    %v444 = vadd.f32 %v372, %v443
    %445 = vdwg.mxu0
    %446 = vmatpush.msra.mxu0 0.0
    %447 = vmatpush.msra.mxu0 0.0
    %448 = vmatpush.msra.mxu0 0.0
    %449 = vmatpush.msra.mxu0 0.0
    %450 = vmatpush.msra.mxu0 0.0
    %451 = vmatpush.msra.mxu0 0.0
    %452 = vmatpush.msra.mxu0 0.0
    %453 = vmatpush.msra.mxu0 0.0
    %454 = vmatpush.msra.mxu0 0.0
    %455 = vmatpush.msra.mxu0 0.0
    %456 = vmatpush.msra.mxu0 0.0
    %457 = vmatpush.msra.mxu0 0.0
    %458 = vmatpush.msra.mxu0 0.0
    %459 = vmatpush.msra.mxu0 0.0
    %460 = vmatpush.msra.mxu0 0.0
    %461 = vmatpush.msra.mxu0 %v408
    %462 = vmatmul.f32.gmra.mxu0 %v391
    %v463 = vpop.f32.mrf.mxu0
    %v464 = vadd.f32 %v373, %v463
    %465 = vmatmul.f32.gmra.mxu0 %v394
    %v466 = vpop.f32.mrf.mxu0
    %v467 = vadd.f32 %v373, %v466
    %468 = vmatmul.f32.gmra.mxu0 %v397
    %v469 = vpop.f32.mrf.mxu0
    %v470 = vadd.f32 %v373, %v469
    %471 = vmatmul.f32.gmra.mxu0 %v400
    %v472 = vpop.f32.mrf.mxu0
    %v473 = vadd.f32 %v373, %v472
    %474 = vmatmul.f32.gmra.mxu0 %v403
    %v475 = vpop.f32.mrf.mxu0
    %v476 = vadd.f32 %v373, %v475
    %477 = vdwg.mxu0
    %478 = vmatpush.msra.mxu0 0.0
    %479 = vmatpush.msra.mxu0 0.0
    %480 = vmatpush.msra.mxu0 0.0
    %481 = vmatpush.msra.mxu0 0.0
    %482 = vmatpush.msra.mxu0 0.0
    %483 = vmatpush.msra.mxu0 0.0
    %484 = vmatpush.msra.mxu0 0.0
    %485 = vmatpush.msra.mxu0 0.0
    %486 = vmatpush.msra.mxu0 0.0
    %487 = vmatpush.msra.mxu0 0.0
    %488 = vmatpush.msra.mxu0 0.0
    %489 = vmatpush.msra.mxu0 0.0
    %490 = vmatpush.msra.mxu0 0.0
    %491 = vmatpush.msra.mxu0 0.0
    %492 = vmatpush.msra.mxu0 0.0
    %493 = vmatpush.msra.mxu0 %v410
    %494 = vmatmul.f32.gmra.mxu0 %v391
    %v495 = vpop.f32.mrf.mxu0
    %v496 = vadd.f32 %v374, %v495
    %497 = vmatmul.f32.gmra.mxu0 %v394
    %v498 = vpop.f32.mrf.mxu0
    %v499 = vadd.f32 %v374, %v498
    %500 = vmatmul.f32.gmra.mxu0 %v397
    %v501 = vpop.f32.mrf.mxu0
    %v502 = vadd.f32 %v374, %v501
    %503 = vmatmul.f32.gmra.mxu0 %v400
    %v504 = vpop.f32.mrf.mxu0
    %v505 = vadd.f32 %v374, %v504
    %506 = vmatmul.f32.gmra.mxu0 %v403
    %v507 = vpop.f32.mrf.mxu0
    %v508 = vadd.f32 %v374, %v507
    %509 = vdwg.mxu0
    %510 = vmatpush.msra.mxu0 0.0
    %511 = vmatpush.msra.mxu0 0.0
    %512 = vmatpush.msra.mxu0 0.0
    %513 = vmatpush.msra.mxu0 0.0
    %514 = vmatpush.msra.mxu0 0.0
    %515 = vmatpush.msra.mxu0 0.0
    %516 = vmatpush.msra.mxu0 0.0
    %517 = vmatpush.msra.mxu0 0.0
    %518 = vmatpush.msra.mxu0 0.0
    %519 = vmatpush.msra.mxu0 0.0
    %520 = vmatpush.msra.mxu0 0.0
    %521 = vmatpush.msra.mxu0 0.0
    %522 = vmatpush.msra.mxu0 0.0
    %523 = vmatpush.msra.mxu0 0.0
    %524 = vmatpush.msra.mxu0 0.0
    %525 = vmatpush.msra.mxu0 %v412
    %526 = vmatmul.f32.gmra.mxu0 %v391
    %v527 = vpop.f32.mrf.mxu0
    %v528 = vadd.f32 %v375, %v527
    %529 = vmatmul.f32.gmra.mxu0 %v394
    %v530 = vpop.f32.mrf.mxu0
    %v531 = vadd.f32 %v375, %v530
    %532 = vmatmul.f32.gmra.mxu0 %v397
    %v533 = vpop.f32.mrf.mxu0
    %v534 = vadd.f32 %v375, %v533
    %535 = vmatmul.f32.gmra.mxu0 %v400
    %v536 = vpop.f32.mrf.mxu0
    %v537 = vadd.f32 %v375, %v536
    %538 = vmatmul.f32.gmra.mxu0 %v403
    %v539 = vpop.f32.mrf.mxu0
    %v540 = vadd.f32 %v375, %v539
    %541 = vdwg.mxu0
    %542 = vst [vmem:[#allocation3] sm:$0xff] %v432
    %543 = vst [vmem:[#allocation3 + $0x8] sm:$0xff] %v464
    %544 = vst [vmem:[#allocation3 + $0x10] sm:$0xff] %v496
    %545 = vst [vmem:[#allocation3 + $0x18] sm:$0xff] %v528
    %546 = vst [vmem:[#allocation3 + $0x20] sm:$0xff] %v435
    %547 = vst [vmem:[#allocation3 + $0x28] sm:$0xff] %v467
    %548 = vst [vmem:[#allocation3 + $0x30] sm:$0xff] %v499
    %549 = vst [vmem:[#allocation3 + $0x38] sm:$0xff] %v531
    %550 = vst [vmem:[#allocation3 + $0x40] sm:$0xff] %v438
    %551 = vst [vmem:[#allocation3 + $0x48] sm:$0xff] %v470
    %552 = vst [vmem:[#allocation3 + $0x50] sm:$0xff] %v502
    %553 = vst [vmem:[#allocation3 + $0x58] sm:$0xff] %v534
    %554 = vst [vmem:[#allocation3 + $0x60] sm:$0xff] %v441
    %555 = vst [vmem:[#allocation3 + $0x68] sm:$0xff] %v473
    %556 = vst [vmem:[#allocation3 + $0x70] sm:$0xff] %v505
    %557 = vst [vmem:[#allocation3 + $0x78] sm:$0xff] %v537
    %558 = vst [vmem:[#allocation3 + $0x80] sm:$0xff] %v444
    %559 = vst [vmem:[#allocation3 + $0x88] sm:$0xff] %v476
    %560 = vst [vmem:[#allocation3 + $0x90] sm:$0xff] %v508
    %561 = vst [vmem:[#allocation3 + $0x98] sm:$0xff] %v540
    %s562 = scalar_lea.vmem %s9, 1
    %v563 = vld [vmem:[%s562] ss:$8 sm:$0xf]
    %v565 = vperm.slane %v563, 0
    %v566 = vperm.slane %v563, 1
    %v567 = vperm.slane %v563, 2
    %v568 = vperm.slane %v563, 3
    %s573 = scalar_lea.vmem %s9, 3
    %v574 = vld [vmem:[%s573] ss:$8 sm:$0xf]
    %v576 = vperm.slane %v574, 0
    %v577 = vperm.slane %v574, 1
    %v578 = vperm.slane %v574, 2
    %v579 = vperm.slane %v574, 3
    %s584 = scalar_lea.vmem %s9, 4
    %v585 = vld [vmem:[%s584] ss:$8 sm:$0xf]
    %v587 = vperm.slane %v585, 0
    %v588 = vperm.slane %v585, 1
    %v589 = vperm.slane %v585, 2
    %v590 = vperm.slane %v585, 3
    %v595 = vld [vmem:[#allocation2] sm:$0xff]
    %v596 = vld [vmem:[#allocation2 + $0x8] sm:$0xff]
    %v597 = vld [vmem:[#allocation2 + $0x10] sm:$0xff]
    %v598 = vld [vmem:[#allocation2 + $0x18] sm:$0xff]
    %v599 = vld [vmem:[#allocation5] sm:$0xff]
    %v600 = vld [vmem:[#allocation5 + $0x8] sm:$0xff]
    %v601 = vld [vmem:[#allocation5 + $0x10] sm:$0xff]
    %v602 = vld [vmem:[#allocation5 + $0x18] sm:$0xff]
    %v603 = vld [vmem:[#allocation5 + $0x20] sm:$0xff]
    %v604 = vld [vmem:[#allocation5 + $0x28] sm:$0xff]
    %v605 = vld [vmem:[#allocation5 + $0x30] sm:$0xff]
    %v606 = vld [vmem:[#allocation5 + $0x38] sm:$0xff]
    %v607 = vld [vmem:[#allocation5 + $0x40] sm:$0xff]
    %v608 = vld [vmem:[#allocation5 + $0x48] sm:$0xff]
    %v609 = vld [vmem:[#allocation5 + $0x50] sm:$0xff]
    %v610 = vld [vmem:[#allocation5 + $0x58] sm:$0xff]
    %v611 = vld [vmem:[#allocation5 + $0x60] sm:$0xff]
    %v612 = vld [vmem:[#allocation5 + $0x68] sm:$0xff]
    %v613 = vld [vmem:[#allocation5 + $0x70] sm:$0xff]
    %v614 = vld [vmem:[#allocation5 + $0x78] sm:$0xff]
    %v615 = vld [vmem:[#allocation5 + $0x80] sm:$0xff]
    %v616 = vld [vmem:[#allocation5 + $0x88] sm:$0xff]
    %v617 = vld [vmem:[#allocation5 + $0x90] sm:$0xff]
    %v618 = vld [vmem:[#allocation5 + $0x98] sm:$0xff]
    %v619 = vld [vmem:[#allocation5 + $0xa0] sm:$0xff]
    %v620 = vld [vmem:[#allocation5 + $0xa8] sm:$0xff]
    %v621 = vld [vmem:[#allocation5 + $0xb0] sm:$0xff]
    %v622 = vld [vmem:[#allocation5 + $0xb8] sm:$0xff]
    %v623 = vld [vmem:[#allocation5 + $0xc0] sm:$0xff]
    %v624 = vld [vmem:[#allocation5 + $0xc8] sm:$0xff]
    %v625 = vld [vmem:[#allocation5 + $0xd0] sm:$0xff]
    %v626 = vld [vmem:[#allocation5 + $0xd8] sm:$0xff]
    %v627 = vld [vmem:[#allocation5 + $0xe0] sm:$0xff]
    %v628 = vld [vmem:[#allocation5 + $0xe8] sm:$0xff]
    %v629 = vld [vmem:[#allocation5 + $0xf0] sm:$0xff]
    %v630 = vld [vmem:[#allocation5 + $0xf8] sm:$0xff]
    %v631 = vld [vmem:[#allocation5 + $0x100] sm:$0xff]
    %v632 = vld [vmem:[#allocation5 + $0x108] sm:$0xff]
    %v633 = vld [vmem:[#allocation5 + $0x110] sm:$0xff]
    %v634 = vld [vmem:[#allocation5 + $0x118] sm:$0xff]
    %v635 = vld [vmem:[#allocation5 + $0x120] sm:$0xff]
    %v636 = vld [vmem:[#allocation5 + $0x128] sm:$0xff]
    %v637 = vld [vmem:[#allocation5 + $0x130] sm:$0xff]
    %v638 = vld [vmem:[#allocation5 + $0x138] sm:$0xff]
    %v639 = vld [vmem:[#allocation5 + $0x140] sm:$0xff]
    %v640 = vld [vmem:[#allocation5 + $0x148] sm:$0xff]
    %v641 = vld [vmem:[#allocation5 + $0x150] sm:$0xff]
    %v642 = vld [vmem:[#allocation5 + $0x158] sm:$0xff]
    %v643 = vld [vmem:[#allocation5 + $0x160] sm:$0xff]
    %v644 = vld [vmem:[#allocation5 + $0x168] sm:$0xff]
    %v645 = vld [vmem:[#allocation5 + $0x170] sm:$0xff]
    %v646 = vld [vmem:[#allocation5 + $0x178] sm:$0xff]
    %v647 = vld [vmem:[#allocation5 + $0x180] sm:$0xff]
    %v648 = vld [vmem:[#allocation5 + $0x188] sm:$0xff]
    %v649 = vld [vmem:[#allocation5 + $0x190] sm:$0xff]
    %v650 = vld [vmem:[#allocation5 + $0x198] sm:$0xff]
    %v651 = vld [vmem:[#allocation5 + $0x1a0] sm:$0xff]
    %v652 = vld [vmem:[#allocation5 + $0x1a8] sm:$0xff]
    %v653 = vld [vmem:[#allocation5 + $0x1b0] sm:$0xff]
    %v654 = vld [vmem:[#allocation5 + $0x1b8] sm:$0xff]
    %v655 = vld [vmem:[#allocation5 + $0x1c0] sm:$0xff]
    %v656 = vld [vmem:[#allocation5 + $0x1c8] sm:$0xff]
    %v657 = vld [vmem:[#allocation5 + $0x1d0] sm:$0xff]
    %v658 = vld [vmem:[#allocation5 + $0x1d8] sm:$0xff]
    %v659 = vld [vmem:[#allocation5 + $0x1e0] sm:$0xff]
    %v660 = vld [vmem:[#allocation5 + $0x1e8] sm:$0xff]
    %v661 = vld [vmem:[#allocation5 + $0x1f0] sm:$0xff]
    %v662 = vld [vmem:[#allocation5 + $0x1f8] sm:$0xff]
    %663 = vmatpush.msra.mxu0 %v659
    %664 = vmatpush.msra.mxu0 %v655
    %665 = vmatpush.msra.mxu0 %v651
    %666 = vmatpush.msra.mxu0 %v647
    %667 = vmatpush.msra.mxu0 %v643
    %668 = vmatpush.msra.mxu0 %v639
    %669 = vmatpush.msra.mxu0 %v635
    %670 = vmatpush.msra.mxu0 %v631
    %671 = vmatpush.msra.mxu0 %v627
    %672 = vmatpush.msra.mxu0 %v623
    %673 = vmatpush.msra.mxu0 %v619
    %674 = vmatpush.msra.mxu0 %v615
    %675 = vmatpush.msra.mxu0 %v611
    %676 = vmatpush.msra.mxu0 %v607
    %677 = vmatpush.msra.mxu0 %v603
    %678 = vmatpush.msra.mxu0 %v599
    %679 = vmatmul.f32.gmra.mxu0 0.0
    %v680 = vpop.f32.mrf.mxu0
    %v681 = vadd.f32 0.0, %v680
    %682 = vdwg.mxu0
    %683 = vmatpush.msra.mxu0 %v660
    %684 = vmatpush.msra.mxu0 %v656
    %685 = vmatpush.msra.mxu0 %v652
    %686 = vmatpush.msra.mxu0 %v648
    %687 = vmatpush.msra.mxu0 %v644
    %688 = vmatpush.msra.mxu0 %v640
    %689 = vmatpush.msra.mxu0 %v636
    %690 = vmatpush.msra.mxu0 %v632
    %691 = vmatpush.msra.mxu0 %v628
    %692 = vmatpush.msra.mxu0 %v624
    %693 = vmatpush.msra.mxu0 %v620
    %694 = vmatpush.msra.mxu0 %v616
    %695 = vmatpush.msra.mxu0 %v612
    %696 = vmatpush.msra.mxu0 %v608
    %697 = vmatpush.msra.mxu0 %v604
    %698 = vmatpush.msra.mxu0 %v600
    %699 = vmatmul.f32.gmra.mxu0 0.0
    %v700 = vpop.f32.mrf.mxu0
    %v701 = vadd.f32 0.0, %v700
    %702 = vdwg.mxu0
    %703 = vmatpush.msra.mxu0 %v661
    %704 = vmatpush.msra.mxu0 %v657
    %705 = vmatpush.msra.mxu0 %v653
    %706 = vmatpush.msra.mxu0 %v649
    %707 = vmatpush.msra.mxu0 %v645
    %708 = vmatpush.msra.mxu0 %v641
    %709 = vmatpush.msra.mxu0 %v637
    %710 = vmatpush.msra.mxu0 %v633
    %711 = vmatpush.msra.mxu0 %v629
    %712 = vmatpush.msra.mxu0 %v625
    %713 = vmatpush.msra.mxu0 %v621
    %714 = vmatpush.msra.mxu0 %v617
    %715 = vmatpush.msra.mxu0 %v613
    %716 = vmatpush.msra.mxu0 %v609
    %717 = vmatpush.msra.mxu0 %v605
    %718 = vmatpush.msra.mxu0 %v601
    %719 = vmatmul.f32.gmra.mxu0 0.0
    %v720 = vpop.f32.mrf.mxu0
    %v721 = vadd.f32 0.0, %v720
    %722 = vdwg.mxu0
    %723 = vmatpush.msra.mxu0 %v662
    %724 = vmatpush.msra.mxu0 %v658
    %725 = vmatpush.msra.mxu0 %v654
    %726 = vmatpush.msra.mxu0 %v650
    %727 = vmatpush.msra.mxu0 %v646
    %728 = vmatpush.msra.mxu0 %v642
    %729 = vmatpush.msra.mxu0 %v638
    %730 = vmatpush.msra.mxu0 %v634
    %731 = vmatpush.msra.mxu0 %v630
    %732 = vmatpush.msra.mxu0 %v626
    %733 = vmatpush.msra.mxu0 %v622
    %734 = vmatpush.msra.mxu0 %v618
    %735 = vmatpush.msra.mxu0 %v614
    %736 = vmatpush.msra.mxu0 %v610
    %737 = vmatpush.msra.mxu0 %v606
    %738 = vmatpush.msra.mxu0 %v602
    %739 = vmatmul.f32.gmra.mxu0 0.0
    %v740 = vpop.f32.mrf.mxu0
    %v741 = vadd.f32 0.0, %v740
    %742 = vdwg.mxu0
    %v743 = vadd.f32 %v595, %v681
    %v744 = vadd.f32 %v596, %v701
    %v745 = vadd.f32 %v597, %v721
    %v746 = vadd.f32 %v598, %v741
    %v747 = vxor.u32 %v743, 2147483648
    %v748 = vmul.f32 %v747, 1.442695
    %v749 = vpow.pop %v748
    %v750 = vadd.f32 %v749, 1.0
    %v751 = vrcp.pop %v750
    %v752 = vmul.f32 %v750, %v751
    %v753 = vsub.f32 1.0, %v752
    %v754 = vmul.f32 %v751, %v753
    %v755 = vadd.f32 %v751, %v754
    %vm756 = vweird.f32 %v750
    %vm757 = vweird.f32 %v751
    %vm758 = vmor %vm756, %vm757
    %v759 = vsel %vm758, %v751, %v755
    %v760 = vand.u32 2147483647, %v750
    %vm761 = vcmp.eq.f32.partialorder %v760, 8.507059e+37
    %v762 = vand.u32 %v750, 2147483648
    %v763 = vor.u32 1.1754944e-38, %v762
    %v764 = vsel %vm761, %v763, %v759
    %v765 = vmul.f32 1.0, %v764
    %v766 = vxor.u32 %v744, 2147483648
    %v767 = vmul.f32 %v766, 1.442695
    %v768 = vpow.pop %v767
    %v769 = vadd.f32 %v768, 1.0
    %v770 = vrcp.pop %v769
    %v771 = vmul.f32 %v769, %v770
    %v772 = vsub.f32 1.0, %v771
    %v773 = vmul.f32 %v770, %v772
    %v774 = vadd.f32 %v770, %v773
    %vm775 = vweird.f32 %v769
    %vm776 = vweird.f32 %v770
    %vm777 = vmor %vm775, %vm776
    %v778 = vsel %vm777, %v770, %v774
    %v779 = vand.u32 2147483647, %v769
    %vm780 = vcmp.eq.f32.partialorder %v779, 8.507059e+37
    %v781 = vand.u32 %v769, 2147483648
    %v782 = vor.u32 1.1754944e-38, %v781
    %v783 = vsel %vm780, %v782, %v778
    %v784 = vmul.f32 1.0, %v783
    %v785 = vtanh.pop %v745
    %v786 = vxor.u32 %v746, 2147483648
    %v787 = vmul.f32 %v786, 1.442695
    %v788 = vpow.pop %v787
    %v789 = vadd.f32 %v788, 1.0
    %v790 = vrcp.pop %v789
    %v791 = vmul.f32 %v789, %v790
    %v792 = vsub.f32 1.0, %v791
    %v793 = vmul.f32 %v790, %v792
    %v794 = vadd.f32 %v790, %v793
    %vm795 = vweird.f32 %v789
    %vm796 = vweird.f32 %v790
    %vm797 = vmor %vm795, %vm796
    %v798 = vsel %vm797, %v790, %v794
    %v799 = vand.u32 2147483647, %v789
    %vm800 = vcmp.eq.f32.partialorder %v799, 8.507059e+37
    %v801 = vand.u32 %v789, 2147483648
    %v802 = vor.u32 1.1754944e-38, %v801
    %v803 = vsel %vm800, %v802, %v798
    %v804 = vmul.f32 1.0, %v803
    %v805 = vmul.f32 %v784, 0.0
    %v806 = vmul.f32 %v765, %v785
    %v807 = vadd.f32 %v805, %v806
    %v808 = vtanh.pop %v807
    %v809 = vmul.f32 %v804, %v808
    %v810 = vld [vmem:[#allocation8] sm:$0xff]
    %v811 = vld [vmem:[#allocation8 + $0x8] sm:$0xff]
    %v812 = vld [vmem:[#allocation8 + $0x10] sm:$0xff]
    %v813 = vld [vmem:[#allocation8 + $0x18] sm:$0xff]
    %v814 = vld [vmem:[#allocation8 + $0x20] sm:$0xff]
    %v815 = vld [vmem:[#allocation8 + $0x28] sm:$0xff]
    %v816 = vld [vmem:[#allocation8 + $0x30] sm:$0xff]
    %v817 = vld [vmem:[#allocation8 + $0x38] sm:$0xff]
    %v818 = vld [vmem:[#allocation8 + $0x40] sm:$0xff]
    %v819 = vld [vmem:[#allocation8 + $0x48] sm:$0xff]
    %v820 = vld [vmem:[#allocation8 + $0x50] sm:$0xff]
    %v821 = vld [vmem:[#allocation8 + $0x58] sm:$0xff]
    %v822 = vld [vmem:[#allocation8 + $0x60] sm:$0xff]
    %v823 = vld [vmem:[#allocation8 + $0x68] sm:$0xff]
    %v824 = vld [vmem:[#allocation8 + $0x70] sm:$0xff]
    %v825 = vld [vmem:[#allocation8 + $0x78] sm:$0xff]
    %v826 = vld [vmem:[#allocation8 + $0x80] sm:$0xff]
    %v827 = vld [vmem:[#allocation8 + $0x88] sm:$0xff]
    %v828 = vld [vmem:[#allocation8 + $0x90] sm:$0xff]
    %v829 = vld [vmem:[#allocation8 + $0x98] sm:$0xff]
    %v830 = vld [vmem:[#allocation8 + $0xa0] sm:$0xff]
    %v831 = vld [vmem:[#allocation8 + $0xa8] sm:$0xff]
    %v832 = vld [vmem:[#allocation8 + $0xb0] sm:$0xff]
    %v833 = vld [vmem:[#allocation8 + $0xb8] sm:$0xff]
    %v834 = vld [vmem:[#allocation8 + $0xc0] sm:$0xff]
    %v835 = vld [vmem:[#allocation8 + $0xc8] sm:$0xff]
    %v836 = vld [vmem:[#allocation8 + $0xd0] sm:$0xff]
    %v837 = vld [vmem:[#allocation8 + $0xd8] sm:$0xff]
    %v838 = vld [vmem:[#allocation8 + $0xe0] sm:$0xff]
    %v839 = vld [vmem:[#allocation8 + $0xe8] sm:$0xff]
    %v840 = vld [vmem:[#allocation8 + $0xf0] sm:$0xff]
    %v841 = vld [vmem:[#allocation8 + $0xf8] sm:$0xff]
    %v842 = vld [vmem:[#allocation8 + $0x100] sm:$0xff]
    %v843 = vld [vmem:[#allocation8 + $0x108] sm:$0xff]
    %v844 = vld [vmem:[#allocation8 + $0x110] sm:$0xff]
    %v845 = vld [vmem:[#allocation8 + $0x118] sm:$0xff]
    %v846 = vld [vmem:[#allocation8 + $0x120] sm:$0xff]
    %v847 = vld [vmem:[#allocation8 + $0x128] sm:$0xff]
    %v848 = vld [vmem:[#allocation8 + $0x130] sm:$0xff]
    %v849 = vld [vmem:[#allocation8 + $0x138] sm:$0xff]
    %v850 = vld [vmem:[#allocation8 + $0x140] sm:$0xff]
    %v851 = vld [vmem:[#allocation8 + $0x148] sm:$0xff]
    %v852 = vld [vmem:[#allocation8 + $0x150] sm:$0xff]
    %v853 = vld [vmem:[#allocation8 + $0x158] sm:$0xff]
    %v854 = vld [vmem:[#allocation8 + $0x160] sm:$0xff]
    %v855 = vld [vmem:[#allocation8 + $0x168] sm:$0xff]
    %v856 = vld [vmem:[#allocation8 + $0x170] sm:$0xff]
    %v857 = vld [vmem:[#allocation8 + $0x178] sm:$0xff]
    %v858 = vld [vmem:[#allocation8 + $0x180] sm:$0xff]
    %v859 = vld [vmem:[#allocation8 + $0x188] sm:$0xff]
    %v860 = vld [vmem:[#allocation8 + $0x190] sm:$0xff]
    %v861 = vld [vmem:[#allocation8 + $0x198] sm:$0xff]
    %v862 = vld [vmem:[#allocation8 + $0x1a0] sm:$0xff]
    %v863 = vld [vmem:[#allocation8 + $0x1a8] sm:$0xff]
    %v864 = vld [vmem:[#allocation8 + $0x1b0] sm:$0xff]
    %v865 = vld [vmem:[#allocation8 + $0x1b8] sm:$0xff]
    %v866 = vld [vmem:[#allocation8 + $0x1c0] sm:$0xff]
    %v867 = vld [vmem:[#allocation8 + $0x1c8] sm:$0xff]
    %v868 = vld [vmem:[#allocation8 + $0x1d0] sm:$0xff]
    %v869 = vld [vmem:[#allocation8 + $0x1d8] sm:$0xff]
    %v870 = vld [vmem:[#allocation8 + $0x1e0] sm:$0xff]
    %v871 = vld [vmem:[#allocation8 + $0x1e8] sm:$0xff]
    %v872 = vld [vmem:[#allocation8 + $0x1f0] sm:$0xff]
    %v873 = vld [vmem:[#allocation8 + $0x1f8] sm:$0xff]
    %v874 = vld [vmem:[#allocation8 + $0x200] sm:$0xff]
    %v875 = vld [vmem:[#allocation8 + $0x208] sm:$0xff]
    %v876 = vld [vmem:[#allocation8 + $0x210] sm:$0xff]
    %v877 = vld [vmem:[#allocation8 + $0x218] sm:$0xff]
    %v878 = vld [vmem:[#allocation8 + $0x220] sm:$0xff]
    %v879 = vld [vmem:[#allocation8 + $0x228] sm:$0xff]
    %v880 = vld [vmem:[#allocation8 + $0x230] sm:$0xff]
    %v881 = vld [vmem:[#allocation8 + $0x238] sm:$0xff]
    %v882 = vld [vmem:[#allocation8 + $0x240] sm:$0xff]
    %v883 = vld [vmem:[#allocation8 + $0x248] sm:$0xff]
    %v884 = vld [vmem:[#allocation8 + $0x250] sm:$0xff]
    %v885 = vld [vmem:[#allocation8 + $0x258] sm:$0xff]
    %v886 = vld [vmem:[#allocation8 + $0x260] sm:$0xff]
    %v887 = vld [vmem:[#allocation8 + $0x268] sm:$0xff]
    %v888 = vld [vmem:[#allocation8 + $0x270] sm:$0xff]
    %v889 = vld [vmem:[#allocation8 + $0x278] sm:$0xff]
    %v890 = vld [vmem:[#allocation8 + $0x280] sm:$0xff]
    %v891 = vld [vmem:[#allocation8 + $0x288] sm:$0xff]
    %v892 = vld [vmem:[#allocation8 + $0x290] sm:$0xff]
    %v893 = vld [vmem:[#allocation8 + $0x298] sm:$0xff]
    %v894 = vld [vmem:[#allocation8 + $0x2a0] sm:$0xff]
    %v895 = vld [vmem:[#allocation8 + $0x2a8] sm:$0xff]
    %v896 = vld [vmem:[#allocation8 + $0x2b0] sm:$0xff]
    %v897 = vld [vmem:[#allocation8 + $0x2b8] sm:$0xff]
    %v898 = vld [vmem:[#allocation8 + $0x2c0] sm:$0xff]
    %v899 = vld [vmem:[#allocation8 + $0x2c8] sm:$0xff]
    %v900 = vld [vmem:[#allocation8 + $0x2d0] sm:$0xff]
    %v901 = vld [vmem:[#allocation8 + $0x2d8] sm:$0xff]
    %v902 = vld [vmem:[#allocation8 + $0x2e0] sm:$0xff]
    %v903 = vld [vmem:[#allocation8 + $0x2e8] sm:$0xff]
    %v904 = vld [vmem:[#allocation8 + $0x2f0] sm:$0xff]
    %v905 = vld [vmem:[#allocation8 + $0x2f8] sm:$0xff]
    %v906 = vld [vmem:[#allocation8 + $0x300] sm:$0xff]
    %v907 = vld [vmem:[#allocation8 + $0x308] sm:$0xff]
    %v908 = vld [vmem:[#allocation8 + $0x310] sm:$0xff]
    %v909 = vld [vmem:[#allocation8 + $0x318] sm:$0xff]
    %v910 = vld [vmem:[#allocation8 + $0x320] sm:$0xff]
    %v911 = vld [vmem:[#allocation8 + $0x328] sm:$0xff]
    %v912 = vld [vmem:[#allocation8 + $0x330] sm:$0xff]
    %v913 = vld [vmem:[#allocation8 + $0x338] sm:$0xff]
    %v914 = vld [vmem:[#allocation8 + $0x340] sm:$0xff]
    %v915 = vld [vmem:[#allocation8 + $0x348] sm:$0xff]
    %v916 = vld [vmem:[#allocation8 + $0x350] sm:$0xff]
    %v917 = vld [vmem:[#allocation8 + $0x358] sm:$0xff]
    %v918 = vld [vmem:[#allocation8 + $0x360] sm:$0xff]
    %v919 = vld [vmem:[#allocation8 + $0x368] sm:$0xff]
    %v920 = vld [vmem:[#allocation8 + $0x370] sm:$0xff]
    %v921 = vld [vmem:[#allocation8 + $0x378] sm:$0xff]
    %v922 = vld [vmem:[#allocation8 + $0x380] sm:$0xff]
    %v923 = vld [vmem:[#allocation8 + $0x388] sm:$0xff]
    %v924 = vld [vmem:[#allocation8 + $0x390] sm:$0xff]
    %v925 = vld [vmem:[#allocation8 + $0x398] sm:$0xff]
    %v926 = vld [vmem:[#allocation8 + $0x3a0] sm:$0xff]
    %v927 = vld [vmem:[#allocation8 + $0x3a8] sm:$0xff]
    %v928 = vld [vmem:[#allocation8 + $0x3b0] sm:$0xff]
    %v929 = vld [vmem:[#allocation8 + $0x3b8] sm:$0xff]
    %v930 = vld [vmem:[#allocation8 + $0x3c0] sm:$0xff]
    %v931 = vld [vmem:[#allocation8 + $0x3c8] sm:$0xff]
    %v932 = vld [vmem:[#allocation8 + $0x3d0] sm:$0xff]
    %v933 = vld [vmem:[#allocation8 + $0x3d8] sm:$0xff]
    %v934 = vld [vmem:[#allocation8 + $0x3e0] sm:$0xff]
    %v935 = vld [vmem:[#allocation8 + $0x3e8] sm:$0xff]
    %v936 = vld [vmem:[#allocation8 + $0x3f0] sm:$0xff]
    %v937 = vld [vmem:[#allocation8 + $0x3f8] sm:$0xff]
    %938 = vmatpush.msra.mxu0 %v870
    %939 = vmatpush.msra.mxu0 %v866
    %940 = vmatpush.msra.mxu0 %v862
    %941 = vmatpush.msra.mxu0 %v858
    %942 = vmatpush.msra.mxu0 %v854
    %943 = vmatpush.msra.mxu0 %v850
    %944 = vmatpush.msra.mxu0 %v846
    %945 = vmatpush.msra.mxu0 %v842
    %946 = vmatpush.msra.mxu0 %v838
    %947 = vmatpush.msra.mxu0 %v834
    %948 = vmatpush.msra.mxu0 %v830
    %949 = vmatpush.msra.mxu0 %v826
    %950 = vmatpush.msra.mxu0 %v822
    %951 = vmatpush.msra.mxu0 %v818
    %952 = vmatpush.msra.mxu0 %v814
    %953 = vmatpush.msra.mxu0 %v810
    %954 = vmatmul.f32.gmra.mxu0 %v809
    %v955 = vpop.f32.mrf.mxu0
    %v956 = vadd.f32 %v565, %v955
    %957 = vdwg.mxu0
    %958 = vmatpush.msra.mxu0 %v934
    %959 = vmatpush.msra.mxu0 %v930
    %960 = vmatpush.msra.mxu0 %v926
    %961 = vmatpush.msra.mxu0 %v922
    %962 = vmatpush.msra.mxu0 %v918
    %963 = vmatpush.msra.mxu0 %v914
    %964 = vmatpush.msra.mxu0 %v910
    %965 = vmatpush.msra.mxu0 %v906
    %966 = vmatpush.msra.mxu0 %v902
    %967 = vmatpush.msra.mxu0 %v898
    %968 = vmatpush.msra.mxu0 %v894
    %969 = vmatpush.msra.mxu0 %v890
    %970 = vmatpush.msra.mxu0 %v886
    %971 = vmatpush.msra.mxu0 %v882
    %972 = vmatpush.msra.mxu0 %v878
    %973 = vmatpush.msra.mxu0 %v874
    %974 = vmatmul.f32.gmra.mxu0 0.0
    %v975 = vpop.f32.mrf.mxu0
    %v976 = vadd.f32 %v956, %v975
    %977 = vdwg.mxu0
    %978 = vmatpush.msra.mxu0 %v871
    %979 = vmatpush.msra.mxu0 %v867
    %980 = vmatpush.msra.mxu0 %v863
    %981 = vmatpush.msra.mxu0 %v859
    %982 = vmatpush.msra.mxu0 %v855
    %983 = vmatpush.msra.mxu0 %v851
    %984 = vmatpush.msra.mxu0 %v847
    %985 = vmatpush.msra.mxu0 %v843
    %986 = vmatpush.msra.mxu0 %v839
    %987 = vmatpush.msra.mxu0 %v835
    %988 = vmatpush.msra.mxu0 %v831
    %989 = vmatpush.msra.mxu0 %v827
    %990 = vmatpush.msra.mxu0 %v823
    %991 = vmatpush.msra.mxu0 %v819
    %992 = vmatpush.msra.mxu0 %v815
    %993 = vmatpush.msra.mxu0 %v811
    %994 = vmatmul.f32.gmra.mxu0 %v809
    %v995 = vpop.f32.mrf.mxu0
    %v996 = vadd.f32 %v566, %v995
    %997 = vdwg.mxu0
    %998 = vmatpush.msra.mxu0 %v935
    %999 = vmatpush.msra.mxu0 %v931
    %1000 = vmatpush.msra.mxu0 %v927
    %1001 = vmatpush.msra.mxu0 %v923
    %1002 = vmatpush.msra.mxu0 %v919
    %1003 = vmatpush.msra.mxu0 %v915
    %1004 = vmatpush.msra.mxu0 %v911
    %1005 = vmatpush.msra.mxu0 %v907
    %1006 = vmatpush.msra.mxu0 %v903
    %1007 = vmatpush.msra.mxu0 %v899
    %1008 = vmatpush.msra.mxu0 %v895
    %1009 = vmatpush.msra.mxu0 %v891
    %1010 = vmatpush.msra.mxu0 %v887
    %1011 = vmatpush.msra.mxu0 %v883
    %1012 = vmatpush.msra.mxu0 %v879
    %1013 = vmatpush.msra.mxu0 %v875
    %1014 = vmatmul.f32.gmra.mxu0 0.0
    %v1015 = vpop.f32.mrf.mxu0
    %v1016 = vadd.f32 %v996, %v1015
    %1017 = vdwg.mxu0
    %1018 = vmatpush.msra.mxu0 %v872
    %1019 = vmatpush.msra.mxu0 %v868
    %1020 = vmatpush.msra.mxu0 %v864
    %1021 = vmatpush.msra.mxu0 %v860
    %1022 = vmatpush.msra.mxu0 %v856
    %1023 = vmatpush.msra.mxu0 %v852
    %1024 = vmatpush.msra.mxu0 %v848
    %1025 = vmatpush.msra.mxu0 %v844
    %1026 = vmatpush.msra.mxu0 %v840
    %1027 = vmatpush.msra.mxu0 %v836
    %1028 = vmatpush.msra.mxu0 %v832
    %1029 = vmatpush.msra.mxu0 %v828
    %1030 = vmatpush.msra.mxu0 %v824
    %1031 = vmatpush.msra.mxu0 %v820
    %1032 = vmatpush.msra.mxu0 %v816
    %1033 = vmatpush.msra.mxu0 %v812
    %1034 = vmatmul.f32.gmra.mxu0 %v809
    %v1035 = vpop.f32.mrf.mxu0
    %v1036 = vadd.f32 %v567, %v1035
    %1037 = vdwg.mxu0
    %1038 = vmatpush.msra.mxu0 %v936
    %1039 = vmatpush.msra.mxu0 %v932
    %1040 = vmatpush.msra.mxu0 %v928
    %1041 = vmatpush.msra.mxu0 %v924
    %1042 = vmatpush.msra.mxu0 %v920
    %1043 = vmatpush.msra.mxu0 %v916
    %1044 = vmatpush.msra.mxu0 %v912
    %1045 = vmatpush.msra.mxu0 %v908
    %1046 = vmatpush.msra.mxu0 %v904
    %1047 = vmatpush.msra.mxu0 %v900
    %1048 = vmatpush.msra.mxu0 %v896
    %1049 = vmatpush.msra.mxu0 %v892
    %1050 = vmatpush.msra.mxu0 %v888
    %1051 = vmatpush.msra.mxu0 %v884
    %1052 = vmatpush.msra.mxu0 %v880
    %1053 = vmatpush.msra.mxu0 %v876
    %1054 = vmatmul.f32.gmra.mxu0 0.0
    %v1055 = vpop.f32.mrf.mxu0
    %v1056 = vadd.f32 %v1036, %v1055
    %1057 = vdwg.mxu0
    %1058 = vmatpush.msra.mxu0 %v873
    %1059 = vmatpush.msra.mxu0 %v869
    %1060 = vmatpush.msra.mxu0 %v865
    %1061 = vmatpush.msra.mxu0 %v861
    %1062 = vmatpush.msra.mxu0 %v857
    %1063 = vmatpush.msra.mxu0 %v853
    %1064 = vmatpush.msra.mxu0 %v849
    %1065 = vmatpush.msra.mxu0 %v845
    %1066 = vmatpush.msra.mxu0 %v841
    %1067 = vmatpush.msra.mxu0 %v837
    %1068 = vmatpush.msra.mxu0 %v833
    %1069 = vmatpush.msra.mxu0 %v829
    %1070 = vmatpush.msra.mxu0 %v825
    %1071 = vmatpush.msra.mxu0 %v821
    %1072 = vmatpush.msra.mxu0 %v817
    %1073 = vmatpush.msra.mxu0 %v813
    %1074 = vmatmul.f32.gmra.mxu0 %v809
    %v1075 = vpop.f32.mrf.mxu0
    %v1076 = vadd.f32 %v568, %v1075
    %1077 = vdwg.mxu0
    %1078 = vmatpush.msra.mxu0 %v937
    %1079 = vmatpush.msra.mxu0 %v933
    %1080 = vmatpush.msra.mxu0 %v929
    %1081 = vmatpush.msra.mxu0 %v925
    %1082 = vmatpush.msra.mxu0 %v921
    %1083 = vmatpush.msra.mxu0 %v917
    %1084 = vmatpush.msra.mxu0 %v913
    %1085 = vmatpush.msra.mxu0 %v909
    %1086 = vmatpush.msra.mxu0 %v905
    %1087 = vmatpush.msra.mxu0 %v901
    %1088 = vmatpush.msra.mxu0 %v897
    %1089 = vmatpush.msra.mxu0 %v893
    %1090 = vmatpush.msra.mxu0 %v889
    %1091 = vmatpush.msra.mxu0 %v885
    %1092 = vmatpush.msra.mxu0 %v881
    %1093 = vmatpush.msra.mxu0 %v877
    %1094 = vmatmul.f32.gmra.mxu0 0.0
    %v1095 = vpop.f32.mrf.mxu0
    %v1096 = vadd.f32 %v1076, %v1095
    %1097 = vdwg.mxu0
    %v1098 = vxor.u32 %v976, 2147483648
    %v1099 = vmul.f32 %v1098, 1.442695
    %v1100 = vpow.pop %v1099
    %v1101 = vadd.f32 %v1100, 1.0
    %v1102 = vrcp.pop %v1101
    %v1103 = vmul.f32 %v1101, %v1102
    %v1104 = vsub.f32 1.0, %v1103
    %v1105 = vmul.f32 %v1102, %v1104
    %v1106 = vadd.f32 %v1102, %v1105
    %vm1107 = vweird.f32 %v1101
    %vm1108 = vweird.f32 %v1102
    %vm1109 = vmor %vm1107, %vm1108
    %v1110 = vsel %vm1109, %v1102, %v1106
    %v1111 = vand.u32 2147483647, %v1101
    %vm1112 = vcmp.eq.f32.partialorder %v1111, 8.507059e+37
    %v1113 = vand.u32 %v1101, 2147483648
    %v1114 = vor.u32 1.1754944e-38, %v1113
    %v1115 = vsel %vm1112, %v1114, %v1110
    %v1116 = vmul.f32 1.0, %v1115
    %v1117 = vxor.u32 %v1016, 2147483648
    %v1118 = vmul.f32 %v1117, 1.442695
    %v1119 = vpow.pop %v1118
    %v1120 = vadd.f32 %v1119, 1.0
    %v1121 = vrcp.pop %v1120
    %v1122 = vmul.f32 %v1120, %v1121
    %v1123 = vsub.f32 1.0, %v1122
    %v1124 = vmul.f32 %v1121, %v1123
    %v1125 = vadd.f32 %v1121, %v1124
    %vm1126 = vweird.f32 %v1120
    %vm1127 = vweird.f32 %v1121
    %vm1128 = vmor %vm1126, %vm1127
    %v1129 = vsel %vm1128, %v1121, %v1125
    %v1130 = vand.u32 2147483647, %v1120
    %vm1131 = vcmp.eq.f32.partialorder %v1130, 8.507059e+37
    %v1132 = vand.u32 %v1120, 2147483648
    %v1133 = vor.u32 1.1754944e-38, %v1132
    %v1134 = vsel %vm1131, %v1133, %v1129
    %v1135 = vmul.f32 1.0, %v1134
    %v1136 = vtanh.pop %v1056
    %v1137 = vxor.u32 %v1096, 2147483648
    %v1138 = vmul.f32 %v1137, 1.442695
    %v1139 = vpow.pop %v1138
    %v1140 = vadd.f32 %v1139, 1.0
    %v1141 = vrcp.pop %v1140
    %v1142 = vmul.f32 %v1140, %v1141
    %v1143 = vsub.f32 1.0, %v1142
    %v1144 = vmul.f32 %v1141, %v1143
    %v1145 = vadd.f32 %v1141, %v1144
    %vm1146 = vweird.f32 %v1140
    %vm1147 = vweird.f32 %v1141
    %vm1148 = vmor %vm1146, %vm1147
    %v1149 = vsel %vm1148, %v1141, %v1145
    %v1150 = vand.u32 2147483647, %v1140
    %vm1151 = vcmp.eq.f32.partialorder %v1150, 8.507059e+37
    %v1152 = vand.u32 %v1140, 2147483648
    %v1153 = vor.u32 1.1754944e-38, %v1152
    %v1154 = vsel %vm1151, %v1153, %v1149
    %v1155 = vmul.f32 1.0, %v1154
    %v1156 = vmul.f32 %v1135, 0.0
    %v1157 = vmul.f32 %v1116, %v1136
    %v1158 = vadd.f32 %v1156, %v1157
    %v1159 = vtanh.pop %v1158
    %v1160 = vmul.f32 %v1155, %v1159
    %v1161 = vld [vmem:[#allocation2 + $0x20] sm:$0xff]
    %v1162 = vld [vmem:[#allocation2 + $0x28] sm:$0xff]
    %v1163 = vld [vmem:[#allocation2 + $0x30] sm:$0xff]
    %v1164 = vld [vmem:[#allocation2 + $0x38] sm:$0xff]
    %1165 = vmatpush.msra.mxu0 %v659
    %1166 = vmatpush.msra.mxu0 %v655
    %1167 = vmatpush.msra.mxu0 %v651
    %1168 = vmatpush.msra.mxu0 %v647
    %1169 = vmatpush.msra.mxu0 %v643
    %1170 = vmatpush.msra.mxu0 %v639
    %1171 = vmatpush.msra.mxu0 %v635
    %1172 = vmatpush.msra.mxu0 %v631
    %1173 = vmatpush.msra.mxu0 %v627
    %1174 = vmatpush.msra.mxu0 %v623
    %1175 = vmatpush.msra.mxu0 %v619
    %1176 = vmatpush.msra.mxu0 %v615
    %1177 = vmatpush.msra.mxu0 %v611
    %1178 = vmatpush.msra.mxu0 %v607
    %1179 = vmatpush.msra.mxu0 %v603
    %1180 = vmatpush.msra.mxu0 %v599
    %1181 = vmatmul.f32.gmra.mxu0 %v809
    %v1182 = vpop.f32.mrf.mxu0
    %v1183 = vadd.f32 0.0, %v1182
    %1184 = vdwg.mxu0
    %1185 = vmatpush.msra.mxu0 %v660
    %1186 = vmatpush.msra.mxu0 %v656
    %1187 = vmatpush.msra.mxu0 %v652
    %1188 = vmatpush.msra.mxu0 %v648
    %1189 = vmatpush.msra.mxu0 %v644
    %1190 = vmatpush.msra.mxu0 %v640
    %1191 = vmatpush.msra.mxu0 %v636
    %1192 = vmatpush.msra.mxu0 %v632
    %1193 = vmatpush.msra.mxu0 %v628
    %1194 = vmatpush.msra.mxu0 %v624
    %1195 = vmatpush.msra.mxu0 %v620
    %1196 = vmatpush.msra.mxu0 %v616
    %1197 = vmatpush.msra.mxu0 %v612
    %1198 = vmatpush.msra.mxu0 %v608
    %1199 = vmatpush.msra.mxu0 %v604
    %1200 = vmatpush.msra.mxu0 %v600
    %1201 = vmatmul.f32.gmra.mxu0 %v809
    %v1202 = vpop.f32.mrf.mxu0
    %v1203 = vadd.f32 0.0, %v1202
    %1204 = vdwg.mxu0
    %1205 = vmatpush.msra.mxu0 %v661
    %1206 = vmatpush.msra.mxu0 %v657
    %1207 = vmatpush.msra.mxu0 %v653
    %1208 = vmatpush.msra.mxu0 %v649
    %1209 = vmatpush.msra.mxu0 %v645
    %1210 = vmatpush.msra.mxu0 %v641
    %1211 = vmatpush.msra.mxu0 %v637
    %1212 = vmatpush.msra.mxu0 %v633
    %1213 = vmatpush.msra.mxu0 %v629
    %1214 = vmatpush.msra.mxu0 %v625
    %1215 = vmatpush.msra.mxu0 %v621
    %1216 = vmatpush.msra.mxu0 %v617
    %1217 = vmatpush.msra.mxu0 %v613
    %1218 = vmatpush.msra.mxu0 %v609
    %1219 = vmatpush.msra.mxu0 %v605
    %1220 = vmatpush.msra.mxu0 %v601
    %1221 = vmatmul.f32.gmra.mxu0 %v809
    %v1222 = vpop.f32.mrf.mxu0
    %v1223 = vadd.f32 0.0, %v1222
    %1224 = vdwg.mxu0
    %1225 = vmatpush.msra.mxu0 %v662
    %1226 = vmatpush.msra.mxu0 %v658
    %1227 = vmatpush.msra.mxu0 %v654
    %1228 = vmatpush.msra.mxu0 %v650
    %1229 = vmatpush.msra.mxu0 %v646
    %1230 = vmatpush.msra.mxu0 %v642
    %1231 = vmatpush.msra.mxu0 %v638
    %1232 = vmatpush.msra.mxu0 %v634
    %1233 = vmatpush.msra.mxu0 %v630
    %1234 = vmatpush.msra.mxu0 %v626
    %1235 = vmatpush.msra.mxu0 %v622
    %1236 = vmatpush.msra.mxu0 %v618
    %1237 = vmatpush.msra.mxu0 %v614
    %1238 = vmatpush.msra.mxu0 %v610
    %1239 = vmatpush.msra.mxu0 %v606
    %1240 = vmatpush.msra.mxu0 %v602
    %1241 = vmatmul.f32.gmra.mxu0 %v809
    %v1242 = vpop.f32.mrf.mxu0
    %v1243 = vadd.f32 0.0, %v1242
    %1244 = vdwg.mxu0
    %v1245 = vadd.f32 %v1161, %v1183
    %v1246 = vadd.f32 %v1162, %v1203
    %v1247 = vadd.f32 %v1163, %v1223
    %v1248 = vadd.f32 %v1164, %v1243
    %v1249 = vxor.u32 %v1245, 2147483648
    %v1250 = vmul.f32 %v1249, 1.442695
    %v1251 = vpow.pop %v1250
    %v1252 = vadd.f32 %v1251, 1.0
    %v1253 = vrcp.pop %v1252
    %v1254 = vmul.f32 %v1252, %v1253
    %v1255 = vsub.f32 1.0, %v1254
    %v1256 = vmul.f32 %v1253, %v1255
    %v1257 = vadd.f32 %v1253, %v1256
    %vm1258 = vweird.f32 %v1252
    %vm1259 = vweird.f32 %v1253
    %vm1260 = vmor %vm1258, %vm1259
    %v1261 = vsel %vm1260, %v1253, %v1257
    %v1262 = vand.u32 2147483647, %v1252
    %vm1263 = vcmp.eq.f32.partialorder %v1262, 8.507059e+37
    %v1264 = vand.u32 %v1252, 2147483648
    %v1265 = vor.u32 1.1754944e-38, %v1264
    %v1266 = vsel %vm1263, %v1265, %v1261
    %v1267 = vmul.f32 1.0, %v1266
    %v1268 = vxor.u32 %v1246, 2147483648
    %v1269 = vmul.f32 %v1268, 1.442695
    %v1270 = vpow.pop %v1269
    %v1271 = vadd.f32 %v1270, 1.0
    %v1272 = vrcp.pop %v1271
    %v1273 = vmul.f32 %v1271, %v1272
    %v1274 = vsub.f32 1.0, %v1273
    %v1275 = vmul.f32 %v1272, %v1274
    %v1276 = vadd.f32 %v1272, %v1275
    %vm1277 = vweird.f32 %v1271
    %vm1278 = vweird.f32 %v1272
    %vm1279 = vmor %vm1277, %vm1278
    %v1280 = vsel %vm1279, %v1272, %v1276
    %v1281 = vand.u32 2147483647, %v1271
    %vm1282 = vcmp.eq.f32.partialorder %v1281, 8.507059e+37
    %v1283 = vand.u32 %v1271, 2147483648
    %v1284 = vor.u32 1.1754944e-38, %v1283
    %v1285 = vsel %vm1282, %v1284, %v1280
    %v1286 = vmul.f32 1.0, %v1285
    %v1287 = vtanh.pop %v1247
    %v1288 = vxor.u32 %v1248, 2147483648
    %v1289 = vmul.f32 %v1288, 1.442695
    %v1290 = vpow.pop %v1289
    %v1291 = vadd.f32 %v1290, 1.0
    %v1292 = vrcp.pop %v1291
    %v1293 = vmul.f32 %v1291, %v1292
    %v1294 = vsub.f32 1.0, %v1293
    %v1295 = vmul.f32 %v1292, %v1294
    %v1296 = vadd.f32 %v1292, %v1295
    %vm1297 = vweird.f32 %v1291
    %vm1298 = vweird.f32 %v1292
    %vm1299 = vmor %vm1297, %vm1298
    %v1300 = vsel %vm1299, %v1292, %v1296
    %v1301 = vand.u32 2147483647, %v1291
    %vm1302 = vcmp.eq.f32.partialorder %v1301, 8.507059e+37
    %v1303 = vand.u32 %v1291, 2147483648
    %v1304 = vor.u32 1.1754944e-38, %v1303
    %v1305 = vsel %vm1302, %v1304, %v1300
    %v1306 = vmul.f32 1.0, %v1305
    %v1307 = vmul.f32 %v1286, %v807
    %v1308 = vmul.f32 %v1267, %v1287
    %v1309 = vadd.f32 %v1307, %v1308
    %v1310 = vtanh.pop %v1309
    %v1311 = vmul.f32 %v1306, %v1310
    %1312 = vmatpush.msra.mxu0 %v870
    %1313 = vmatpush.msra.mxu0 %v866
    %1314 = vmatpush.msra.mxu0 %v862
    %1315 = vmatpush.msra.mxu0 %v858
    %1316 = vmatpush.msra.mxu0 %v854
    %1317 = vmatpush.msra.mxu0 %v850
    %1318 = vmatpush.msra.mxu0 %v846
    %1319 = vmatpush.msra.mxu0 %v842
    %1320 = vmatpush.msra.mxu0 %v838
    %1321 = vmatpush.msra.mxu0 %v834
    %1322 = vmatpush.msra.mxu0 %v830
    %1323 = vmatpush.msra.mxu0 %v826
    %1324 = vmatpush.msra.mxu0 %v822
    %1325 = vmatpush.msra.mxu0 %v818
    %1326 = vmatpush.msra.mxu0 %v814
    %1327 = vmatpush.msra.mxu0 %v810
    %1328 = vmatmul.f32.gmra.mxu0 %v1311
    %v1329 = vpop.f32.mrf.mxu0
    %v1330 = vadd.f32 %v565, %v1329
    %1331 = vdwg.mxu0
    %1332 = vmatpush.msra.mxu0 %v934
    %1333 = vmatpush.msra.mxu0 %v930
    %1334 = vmatpush.msra.mxu0 %v926
    %1335 = vmatpush.msra.mxu0 %v922
    %1336 = vmatpush.msra.mxu0 %v918
    %1337 = vmatpush.msra.mxu0 %v914
    %1338 = vmatpush.msra.mxu0 %v910
    %1339 = vmatpush.msra.mxu0 %v906
    %1340 = vmatpush.msra.mxu0 %v902
    %1341 = vmatpush.msra.mxu0 %v898
    %1342 = vmatpush.msra.mxu0 %v894
    %1343 = vmatpush.msra.mxu0 %v890
    %1344 = vmatpush.msra.mxu0 %v886
    %1345 = vmatpush.msra.mxu0 %v882
    %1346 = vmatpush.msra.mxu0 %v878
    %1347 = vmatpush.msra.mxu0 %v874
    %1348 = vmatmul.f32.gmra.mxu0 %v1160
    %v1349 = vpop.f32.mrf.mxu0
    %v1350 = vadd.f32 %v1330, %v1349
    %1351 = vdwg.mxu0
    %1352 = vmatpush.msra.mxu0 %v871
    %1353 = vmatpush.msra.mxu0 %v867
    %1354 = vmatpush.msra.mxu0 %v863
    %1355 = vmatpush.msra.mxu0 %v859
    %1356 = vmatpush.msra.mxu0 %v855
    %1357 = vmatpush.msra.mxu0 %v851
    %1358 = vmatpush.msra.mxu0 %v847
    %1359 = vmatpush.msra.mxu0 %v843
    %1360 = vmatpush.msra.mxu0 %v839
    %1361 = vmatpush.msra.mxu0 %v835
    %1362 = vmatpush.msra.mxu0 %v831
    %1363 = vmatpush.msra.mxu0 %v827
    %1364 = vmatpush.msra.mxu0 %v823
    %1365 = vmatpush.msra.mxu0 %v819
    %1366 = vmatpush.msra.mxu0 %v815
    %1367 = vmatpush.msra.mxu0 %v811
    %1368 = vmatmul.f32.gmra.mxu0 %v1311
    %v1369 = vpop.f32.mrf.mxu0
    %v1370 = vadd.f32 %v566, %v1369
    %1371 = vdwg.mxu0
    %1372 = vmatpush.msra.mxu0 %v935
    %1373 = vmatpush.msra.mxu0 %v931
    %1374 = vmatpush.msra.mxu0 %v927
    %1375 = vmatpush.msra.mxu0 %v923
    %1376 = vmatpush.msra.mxu0 %v919
    %1377 = vmatpush.msra.mxu0 %v915
    %1378 = vmatpush.msra.mxu0 %v911
    %1379 = vmatpush.msra.mxu0 %v907
    %1380 = vmatpush.msra.mxu0 %v903
    %1381 = vmatpush.msra.mxu0 %v899
    %1382 = vmatpush.msra.mxu0 %v895
    %1383 = vmatpush.msra.mxu0 %v891
    %1384 = vmatpush.msra.mxu0 %v887
    %1385 = vmatpush.msra.mxu0 %v883
    %1386 = vmatpush.msra.mxu0 %v879
    %1387 = vmatpush.msra.mxu0 %v875
    %1388 = vmatmul.f32.gmra.mxu0 %v1160
    %v1389 = vpop.f32.mrf.mxu0
    %v1390 = vadd.f32 %v1370, %v1389
    %1391 = vdwg.mxu0
    %1392 = vmatpush.msra.mxu0 %v872
    %1393 = vmatpush.msra.mxu0 %v868
    %1394 = vmatpush.msra.mxu0 %v864
    %1395 = vmatpush.msra.mxu0 %v860
    %1396 = vmatpush.msra.mxu0 %v856
    %1397 = vmatpush.msra.mxu0 %v852
    %1398 = vmatpush.msra.mxu0 %v848
    %1399 = vmatpush.msra.mxu0 %v844
    %1400 = vmatpush.msra.mxu0 %v840
    %1401 = vmatpush.msra.mxu0 %v836
    %1402 = vmatpush.msra.mxu0 %v832
    %1403 = vmatpush.msra.mxu0 %v828
    %1404 = vmatpush.msra.mxu0 %v824
    %1405 = vmatpush.msra.mxu0 %v820
    %1406 = vmatpush.msra.mxu0 %v816
    %1407 = vmatpush.msra.mxu0 %v812
    %1408 = vmatmul.f32.gmra.mxu0 %v1311
    %v1409 = vpop.f32.mrf.mxu0
    %v1410 = vadd.f32 %v567, %v1409
    %1411 = vdwg.mxu0
    %1412 = vmatpush.msra.mxu0 %v936
    %1413 = vmatpush.msra.mxu0 %v932
    %1414 = vmatpush.msra.mxu0 %v928
    %1415 = vmatpush.msra.mxu0 %v924
    %1416 = vmatpush.msra.mxu0 %v920
    %1417 = vmatpush.msra.mxu0 %v916
    %1418 = vmatpush.msra.mxu0 %v912
    %1419 = vmatpush.msra.mxu0 %v908
    %1420 = vmatpush.msra.mxu0 %v904
    %1421 = vmatpush.msra.mxu0 %v900
    %1422 = vmatpush.msra.mxu0 %v896
    %1423 = vmatpush.msra.mxu0 %v892
    %1424 = vmatpush.msra.mxu0 %v888
    %1425 = vmatpush.msra.mxu0 %v884
    %1426 = vmatpush.msra.mxu0 %v880
    %1427 = vmatpush.msra.mxu0 %v876
    %1428 = vmatmul.f32.gmra.mxu0 %v1160
    %v1429 = vpop.f32.mrf.mxu0
    %v1430 = vadd.f32 %v1410, %v1429
    %1431 = vdwg.mxu0
    %1432 = vmatpush.msra.mxu0 %v873
    %1433 = vmatpush.msra.mxu0 %v869
    %1434 = vmatpush.msra.mxu0 %v865
    %1435 = vmatpush.msra.mxu0 %v861
    %1436 = vmatpush.msra.mxu0 %v857
    %1437 = vmatpush.msra.mxu0 %v853
    %1438 = vmatpush.msra.mxu0 %v849
    %1439 = vmatpush.msra.mxu0 %v845
    %1440 = vmatpush.msra.mxu0 %v841
    %1441 = vmatpush.msra.mxu0 %v837
    %1442 = vmatpush.msra.mxu0 %v833
    %1443 = vmatpush.msra.mxu0 %v829
    %1444 = vmatpush.msra.mxu0 %v825
    %1445 = vmatpush.msra.mxu0 %v821
    %1446 = vmatpush.msra.mxu0 %v817
    %1447 = vmatpush.msra.mxu0 %v813
    %1448 = vmatmul.f32.gmra.mxu0 %v1311
    %v1449 = vpop.f32.mrf.mxu0
    %v1450 = vadd.f32 %v568, %v1449
    %1451 = vdwg.mxu0
    %1452 = vmatpush.msra.mxu0 %v937
    %1453 = vmatpush.msra.mxu0 %v933
    %1454 = vmatpush.msra.mxu0 %v929
    %1455 = vmatpush.msra.mxu0 %v925
    %1456 = vmatpush.msra.mxu0 %v921
    %1457 = vmatpush.msra.mxu0 %v917
    %1458 = vmatpush.msra.mxu0 %v913
    %1459 = vmatpush.msra.mxu0 %v909
    %1460 = vmatpush.msra.mxu0 %v905
    %1461 = vmatpush.msra.mxu0 %v901
    %1462 = vmatpush.msra.mxu0 %v897
    %1463 = vmatpush.msra.mxu0 %v893
    %1464 = vmatpush.msra.mxu0 %v889
    %1465 = vmatpush.msra.mxu0 %v885
    %1466 = vmatpush.msra.mxu0 %v881
    %1467 = vmatpush.msra.mxu0 %v877
    %1468 = vmatmul.f32.gmra.mxu0 %v1160
    %v1469 = vpop.f32.mrf.mxu0
    %v1470 = vadd.f32 %v1450, %v1469
    %1471 = vdwg.mxu0
    %v1472 = vxor.u32 %v1350, 2147483648
    %v1473 = vmul.f32 %v1472, 1.442695
    %v1474 = vpow.pop %v1473
    %v1475 = vadd.f32 %v1474, 1.0
    %v1476 = vrcp.pop %v1475
    %v1477 = vmul.f32 %v1475, %v1476
    %v1478 = vsub.f32 1.0, %v1477
    %v1479 = vmul.f32 %v1476, %v1478
    %v1480 = vadd.f32 %v1476, %v1479
    %vm1481 = vweird.f32 %v1475
    %vm1482 = vweird.f32 %v1476
    %vm1483 = vmor %vm1481, %vm1482
    %v1484 = vsel %vm1483, %v1476, %v1480
    %v1485 = vand.u32 2147483647, %v1475
    %vm1486 = vcmp.eq.f32.partialorder %v1485, 8.507059e+37
    %v1487 = vand.u32 %v1475, 2147483648
    %v1488 = vor.u32 1.1754944e-38, %v1487
    %v1489 = vsel %vm1486, %v1488, %v1484
    %v1490 = vmul.f32 1.0, %v1489
    %v1491 = vxor.u32 %v1390, 2147483648
    %v1492 = vmul.f32 %v1491, 1.442695
    %v1493 = vpow.pop %v1492
    %v1494 = vadd.f32 %v1493, 1.0
    %v1495 = vrcp.pop %v1494
    %v1496 = vmul.f32 %v1494, %v1495
    %v1497 = vsub.f32 1.0, %v1496
    %v1498 = vmul.f32 %v1495, %v1497
    %v1499 = vadd.f32 %v1495, %v1498
    %vm1500 = vweird.f32 %v1494
    %vm1501 = vweird.f32 %v1495
    %vm1502 = vmor %vm1500, %vm1501
    %v1503 = vsel %vm1502, %v1495, %v1499
    %v1504 = vand.u32 2147483647, %v1494
    %vm1505 = vcmp.eq.f32.partialorder %v1504, 8.507059e+37
    %v1506 = vand.u32 %v1494, 2147483648
    %v1507 = vor.u32 1.1754944e-38, %v1506
    %v1508 = vsel %vm1505, %v1507, %v1503
    %v1509 = vmul.f32 1.0, %v1508
    %v1510 = vtanh.pop %v1430
    %v1511 = vxor.u32 %v1470, 2147483648
    %v1512 = vmul.f32 %v1511, 1.442695
    %v1513 = vpow.pop %v1512
    %v1514 = vadd.f32 %v1513, 1.0
    %v1515 = vrcp.pop %v1514
    %v1516 = vmul.f32 %v1514, %v1515
    %v1517 = vsub.f32 1.0, %v1516
    %v1518 = vmul.f32 %v1515, %v1517
    %v1519 = vadd.f32 %v1515, %v1518
    %vm1520 = vweird.f32 %v1514
    %vm1521 = vweird.f32 %v1515
    %vm1522 = vmor %vm1520, %vm1521
    %v1523 = vsel %vm1522, %v1515, %v1519
    %v1524 = vand.u32 2147483647, %v1514
    %vm1525 = vcmp.eq.f32.partialorder %v1524, 8.507059e+37
    %v1526 = vand.u32 %v1514, 2147483648
    %v1527 = vor.u32 1.1754944e-38, %v1526
    %v1528 = vsel %vm1525, %v1527, %v1523
    %v1529 = vmul.f32 1.0, %v1528
    %v1530 = vmul.f32 %v1509, %v1158
    %v1531 = vmul.f32 %v1490, %v1510
    %v1532 = vadd.f32 %v1530, %v1531
    %v1533 = vtanh.pop %v1532
    %v1534 = vmul.f32 %v1529, %v1533
    %v1535 = vld [vmem:[#allocation2 + $0x40] sm:$0xff]
    %v1536 = vld [vmem:[#allocation2 + $0x48] sm:$0xff]
    %v1537 = vld [vmem:[#allocation2 + $0x50] sm:$0xff]
    %v1538 = vld [vmem:[#allocation2 + $0x58] sm:$0xff]
    %1539 = vmatpush.msra.mxu0 %v659
    %1540 = vmatpush.msra.mxu0 %v655
    %1541 = vmatpush.msra.mxu0 %v651
    %1542 = vmatpush.msra.mxu0 %v647
    %1543 = vmatpush.msra.mxu0 %v643
    %1544 = vmatpush.msra.mxu0 %v639
    %1545 = vmatpush.msra.mxu0 %v635
    %1546 = vmatpush.msra.mxu0 %v631
    %1547 = vmatpush.msra.mxu0 %v627
    %1548 = vmatpush.msra.mxu0 %v623
    %1549 = vmatpush.msra.mxu0 %v619
    %1550 = vmatpush.msra.mxu0 %v615
    %1551 = vmatpush.msra.mxu0 %v611
    %1552 = vmatpush.msra.mxu0 %v607
    %1553 = vmatpush.msra.mxu0 %v603
    %1554 = vmatpush.msra.mxu0 %v599
    %1555 = vmatmul.f32.gmra.mxu0 %v1311
    %v1556 = vpop.f32.mrf.mxu0
    %v1557 = vadd.f32 0.0, %v1556
    %1558 = vdwg.mxu0
    %1559 = vmatpush.msra.mxu0 %v660
    %1560 = vmatpush.msra.mxu0 %v656
    %1561 = vmatpush.msra.mxu0 %v652
    %1562 = vmatpush.msra.mxu0 %v648
    %1563 = vmatpush.msra.mxu0 %v644
    %1564 = vmatpush.msra.mxu0 %v640
    %1565 = vmatpush.msra.mxu0 %v636
    %1566 = vmatpush.msra.mxu0 %v632
    %1567 = vmatpush.msra.mxu0 %v628
    %1568 = vmatpush.msra.mxu0 %v624
    %1569 = vmatpush.msra.mxu0 %v620
    %1570 = vmatpush.msra.mxu0 %v616
    %1571 = vmatpush.msra.mxu0 %v612
    %1572 = vmatpush.msra.mxu0 %v608
    %1573 = vmatpush.msra.mxu0 %v604
    %1574 = vmatpush.msra.mxu0 %v600
    %1575 = vmatmul.f32.gmra.mxu0 %v1311
    %v1576 = vpop.f32.mrf.mxu0
    %v1577 = vadd.f32 0.0, %v1576
    %1578 = vdwg.mxu0
    %1579 = vmatpush.msra.mxu0 %v661
    %1580 = vmatpush.msra.mxu0 %v657
    %1581 = vmatpush.msra.mxu0 %v653
    %1582 = vmatpush.msra.mxu0 %v649
    %1583 = vmatpush.msra.mxu0 %v645
    %1584 = vmatpush.msra.mxu0 %v641
    %1585 = vmatpush.msra.mxu0 %v637
    %1586 = vmatpush.msra.mxu0 %v633
    %1587 = vmatpush.msra.mxu0 %v629
    %1588 = vmatpush.msra.mxu0 %v625
    %1589 = vmatpush.msra.mxu0 %v621
    %1590 = vmatpush.msra.mxu0 %v617
    %1591 = vmatpush.msra.mxu0 %v613
    %1592 = vmatpush.msra.mxu0 %v609
    %1593 = vmatpush.msra.mxu0 %v605
    %1594 = vmatpush.msra.mxu0 %v601
    %1595 = vmatmul.f32.gmra.mxu0 %v1311
    %v1596 = vpop.f32.mrf.mxu0
    %v1597 = vadd.f32 0.0, %v1596
    %1598 = vdwg.mxu0
    %1599 = vmatpush.msra.mxu0 %v662
    %1600 = vmatpush.msra.mxu0 %v658
    %1601 = vmatpush.msra.mxu0 %v654
    %1602 = vmatpush.msra.mxu0 %v650
    %1603 = vmatpush.msra.mxu0 %v646
    %1604 = vmatpush.msra.mxu0 %v642
    %1605 = vmatpush.msra.mxu0 %v638
    %1606 = vmatpush.msra.mxu0 %v634
    %1607 = vmatpush.msra.mxu0 %v630
    %1608 = vmatpush.msra.mxu0 %v626
    %1609 = vmatpush.msra.mxu0 %v622
    %1610 = vmatpush.msra.mxu0 %v618
    %1611 = vmatpush.msra.mxu0 %v614
    %1612 = vmatpush.msra.mxu0 %v610
    %1613 = vmatpush.msra.mxu0 %v606
    %1614 = vmatpush.msra.mxu0 %v602
    %1615 = vmatmul.f32.gmra.mxu0 %v1311
    %v1616 = vpop.f32.mrf.mxu0
    %v1617 = vadd.f32 0.0, %v1616
    %1618 = vdwg.mxu0
    %v1619 = vadd.f32 %v1535, %v1557
    %v1620 = vadd.f32 %v1536, %v1577
    %v1621 = vadd.f32 %v1537, %v1597
    %v1622 = vadd.f32 %v1538, %v1617
    %v1623 = vxor.u32 %v1619, 2147483648
    %v1624 = vmul.f32 %v1623, 1.442695
    %v1625 = vpow.pop %v1624
    %v1626 = vadd.f32 %v1625, 1.0
    %v1627 = vrcp.pop %v1626
    %v1628 = vmul.f32 %v1626, %v1627
    %v1629 = vsub.f32 1.0, %v1628
    %v1630 = vmul.f32 %v1627, %v1629
    %v1631 = vadd.f32 %v1627, %v1630
    %vm1632 = vweird.f32 %v1626
    %vm1633 = vweird.f32 %v1627
    %vm1634 = vmor %vm1632, %vm1633
    %v1635 = vsel %vm1634, %v1627, %v1631
    %v1636 = vand.u32 2147483647, %v1626
    %vm1637 = vcmp.eq.f32.partialorder %v1636, 8.507059e+37
    %v1638 = vand.u32 %v1626, 2147483648
    %v1639 = vor.u32 1.1754944e-38, %v1638
    %v1640 = vsel %vm1637, %v1639, %v1635
    %v1641 = vmul.f32 1.0, %v1640
    %v1642 = vxor.u32 %v1620, 2147483648
    %v1643 = vmul.f32 %v1642, 1.442695
    %v1644 = vpow.pop %v1643
    %v1645 = vadd.f32 %v1644, 1.0
    %v1646 = vrcp.pop %v1645
    %v1647 = vmul.f32 %v1645, %v1646
    %v1648 = vsub.f32 1.0, %v1647
    %v1649 = vmul.f32 %v1646, %v1648
    %v1650 = vadd.f32 %v1646, %v1649
    %vm1651 = vweird.f32 %v1645
    %vm1652 = vweird.f32 %v1646
    %vm1653 = vmor %vm1651, %vm1652
    %v1654 = vsel %vm1653, %v1646, %v1650
    %v1655 = vand.u32 2147483647, %v1645
    %vm1656 = vcmp.eq.f32.partialorder %v1655, 8.507059e+37
    %v1657 = vand.u32 %v1645, 2147483648
    %v1658 = vor.u32 1.1754944e-38, %v1657
    %v1659 = vsel %vm1656, %v1658, %v1654
    %v1660 = vmul.f32 1.0, %v1659
    %v1661 = vtanh.pop %v1621
    %v1662 = vxor.u32 %v1622, 2147483648
    %v1663 = vmul.f32 %v1662, 1.442695
    %v1664 = vpow.pop %v1663
    %v1665 = vadd.f32 %v1664, 1.0
    %v1666 = vrcp.pop %v1665
    %v1667 = vmul.f32 %v1665, %v1666
    %v1668 = vsub.f32 1.0, %v1667
    %v1669 = vmul.f32 %v1666, %v1668
    %v1670 = vadd.f32 %v1666, %v1669
    %vm1671 = vweird.f32 %v1665
    %vm1672 = vweird.f32 %v1666
    %vm1673 = vmor %vm1671, %vm1672
    %v1674 = vsel %vm1673, %v1666, %v1670
    %v1675 = vand.u32 2147483647, %v1665
    %vm1676 = vcmp.eq.f32.partialorder %v1675, 8.507059e+37
    %v1677 = vand.u32 %v1665, 2147483648
    %v1678 = vor.u32 1.1754944e-38, %v1677
    %v1679 = vsel %vm1676, %v1678, %v1674
    %v1680 = vmul.f32 1.0, %v1679
    %v1681 = vmul.f32 %v1660, %v1309
    %v1682 = vmul.f32 %v1641, %v1661
    %v1683 = vadd.f32 %v1681, %v1682
    %v1684 = vtanh.pop %v1683
    %v1685 = vmul.f32 %v1680, %v1684
    %1686 = vmatpush.msra.mxu0 %v870
    %1687 = vmatpush.msra.mxu0 %v866
    %1688 = vmatpush.msra.mxu0 %v862
    %1689 = vmatpush.msra.mxu0 %v858
    %1690 = vmatpush.msra.mxu0 %v854
    %1691 = vmatpush.msra.mxu0 %v850
    %1692 = vmatpush.msra.mxu0 %v846
    %1693 = vmatpush.msra.mxu0 %v842
    %1694 = vmatpush.msra.mxu0 %v838
    %1695 = vmatpush.msra.mxu0 %v834
    %1696 = vmatpush.msra.mxu0 %v830
    %1697 = vmatpush.msra.mxu0 %v826
    %1698 = vmatpush.msra.mxu0 %v822
    %1699 = vmatpush.msra.mxu0 %v818
    %1700 = vmatpush.msra.mxu0 %v814
    %1701 = vmatpush.msra.mxu0 %v810
    %1702 = vmatmul.f32.gmra.mxu0 %v1685
    %v1703 = vpop.f32.mrf.mxu0
    %v1704 = vadd.f32 %v565, %v1703
    %1705 = vdwg.mxu0
    %1706 = vmatpush.msra.mxu0 %v934
    %1707 = vmatpush.msra.mxu0 %v930
    %1708 = vmatpush.msra.mxu0 %v926
    %1709 = vmatpush.msra.mxu0 %v922
    %1710 = vmatpush.msra.mxu0 %v918
    %1711 = vmatpush.msra.mxu0 %v914
    %1712 = vmatpush.msra.mxu0 %v910
    %1713 = vmatpush.msra.mxu0 %v906
    %1714 = vmatpush.msra.mxu0 %v902
    %1715 = vmatpush.msra.mxu0 %v898
    %1716 = vmatpush.msra.mxu0 %v894
    %1717 = vmatpush.msra.mxu0 %v890
    %1718 = vmatpush.msra.mxu0 %v886
    %1719 = vmatpush.msra.mxu0 %v882
    %1720 = vmatpush.msra.mxu0 %v878
    %1721 = vmatpush.msra.mxu0 %v874
    %1722 = vmatmul.f32.gmra.mxu0 %v1534
    %v1723 = vpop.f32.mrf.mxu0
    %v1724 = vadd.f32 %v1704, %v1723
    %1725 = vdwg.mxu0
    %1726 = vmatpush.msra.mxu0 %v871
    %1727 = vmatpush.msra.mxu0 %v867
    %1728 = vmatpush.msra.mxu0 %v863
    %1729 = vmatpush.msra.mxu0 %v859
    %1730 = vmatpush.msra.mxu0 %v855
    %1731 = vmatpush.msra.mxu0 %v851
    %1732 = vmatpush.msra.mxu0 %v847
    %1733 = vmatpush.msra.mxu0 %v843
    %1734 = vmatpush.msra.mxu0 %v839
    %1735 = vmatpush.msra.mxu0 %v835
    %1736 = vmatpush.msra.mxu0 %v831
    %1737 = vmatpush.msra.mxu0 %v827
    %1738 = vmatpush.msra.mxu0 %v823
    %1739 = vmatpush.msra.mxu0 %v819
    %1740 = vmatpush.msra.mxu0 %v815
    %1741 = vmatpush.msra.mxu0 %v811
    %1742 = vmatmul.f32.gmra.mxu0 %v1685
    %v1743 = vpop.f32.mrf.mxu0
    %v1744 = vadd.f32 %v566, %v1743
    %1745 = vdwg.mxu0
    %1746 = vmatpush.msra.mxu0 %v935
    %1747 = vmatpush.msra.mxu0 %v931
    %1748 = vmatpush.msra.mxu0 %v927
    %1749 = vmatpush.msra.mxu0 %v923
    %1750 = vmatpush.msra.mxu0 %v919
    %1751 = vmatpush.msra.mxu0 %v915
    %1752 = vmatpush.msra.mxu0 %v911
    %1753 = vmatpush.msra.mxu0 %v907
    %1754 = vmatpush.msra.mxu0 %v903
    %1755 = vmatpush.msra.mxu0 %v899
    %1756 = vmatpush.msra.mxu0 %v895
    %1757 = vmatpush.msra.mxu0 %v891
    %1758 = vmatpush.msra.mxu0 %v887
    %1759 = vmatpush.msra.mxu0 %v883
    %1760 = vmatpush.msra.mxu0 %v879
    %1761 = vmatpush.msra.mxu0 %v875
    %1762 = vmatmul.f32.gmra.mxu0 %v1534
    %v1763 = vpop.f32.mrf.mxu0
    %v1764 = vadd.f32 %v1744, %v1763
    %1765 = vdwg.mxu0
    %1766 = vmatpush.msra.mxu0 %v872
    %1767 = vmatpush.msra.mxu0 %v868
    %1768 = vmatpush.msra.mxu0 %v864
    %1769 = vmatpush.msra.mxu0 %v860
    %1770 = vmatpush.msra.mxu0 %v856
    %1771 = vmatpush.msra.mxu0 %v852
    %1772 = vmatpush.msra.mxu0 %v848
    %1773 = vmatpush.msra.mxu0 %v844
    %1774 = vmatpush.msra.mxu0 %v840
    %1775 = vmatpush.msra.mxu0 %v836
    %1776 = vmatpush.msra.mxu0 %v832
    %1777 = vmatpush.msra.mxu0 %v828
    %1778 = vmatpush.msra.mxu0 %v824
    %1779 = vmatpush.msra.mxu0 %v820
    %1780 = vmatpush.msra.mxu0 %v816
    %1781 = vmatpush.msra.mxu0 %v812
    %1782 = vmatmul.f32.gmra.mxu0 %v1685
    %v1783 = vpop.f32.mrf.mxu0
    %v1784 = vadd.f32 %v567, %v1783
    %1785 = vdwg.mxu0
    %1786 = vmatpush.msra.mxu0 %v936
    %1787 = vmatpush.msra.mxu0 %v932
    %1788 = vmatpush.msra.mxu0 %v928
    %1789 = vmatpush.msra.mxu0 %v924
    %1790 = vmatpush.msra.mxu0 %v920
    %1791 = vmatpush.msra.mxu0 %v916
    %1792 = vmatpush.msra.mxu0 %v912
    %1793 = vmatpush.msra.mxu0 %v908
    %1794 = vmatpush.msra.mxu0 %v904
    %1795 = vmatpush.msra.mxu0 %v900
    %1796 = vmatpush.msra.mxu0 %v896
    %1797 = vmatpush.msra.mxu0 %v892
    %1798 = vmatpush.msra.mxu0 %v888
    %1799 = vmatpush.msra.mxu0 %v884
    %1800 = vmatpush.msra.mxu0 %v880
    %1801 = vmatpush.msra.mxu0 %v876
    %1802 = vmatmul.f32.gmra.mxu0 %v1534
    %v1803 = vpop.f32.mrf.mxu0
    %v1804 = vadd.f32 %v1784, %v1803
    %1805 = vdwg.mxu0
    %1806 = vmatpush.msra.mxu0 %v873
    %1807 = vmatpush.msra.mxu0 %v869
    %1808 = vmatpush.msra.mxu0 %v865
    %1809 = vmatpush.msra.mxu0 %v861
    %1810 = vmatpush.msra.mxu0 %v857
    %1811 = vmatpush.msra.mxu0 %v853
    %1812 = vmatpush.msra.mxu0 %v849
    %1813 = vmatpush.msra.mxu0 %v845
    %1814 = vmatpush.msra.mxu0 %v841
    %1815 = vmatpush.msra.mxu0 %v837
    %1816 = vmatpush.msra.mxu0 %v833
    %1817 = vmatpush.msra.mxu0 %v829
    %1818 = vmatpush.msra.mxu0 %v825
    %1819 = vmatpush.msra.mxu0 %v821
    %1820 = vmatpush.msra.mxu0 %v817
    %1821 = vmatpush.msra.mxu0 %v813
    %1822 = vmatmul.f32.gmra.mxu0 %v1685
    %v1823 = vpop.f32.mrf.mxu0
    %v1824 = vadd.f32 %v568, %v1823
    %1825 = vdwg.mxu0
    %1826 = vmatpush.msra.mxu0 %v937
    %1827 = vmatpush.msra.mxu0 %v933
    %1828 = vmatpush.msra.mxu0 %v929
    %1829 = vmatpush.msra.mxu0 %v925
    %1830 = vmatpush.msra.mxu0 %v921
    %1831 = vmatpush.msra.mxu0 %v917
    %1832 = vmatpush.msra.mxu0 %v913
    %1833 = vmatpush.msra.mxu0 %v909
    %1834 = vmatpush.msra.mxu0 %v905
    %1835 = vmatpush.msra.mxu0 %v901
    %1836 = vmatpush.msra.mxu0 %v897
    %1837 = vmatpush.msra.mxu0 %v893
    %1838 = vmatpush.msra.mxu0 %v889
    %1839 = vmatpush.msra.mxu0 %v885
    %1840 = vmatpush.msra.mxu0 %v881
    %1841 = vmatpush.msra.mxu0 %v877
    %1842 = vmatmul.f32.gmra.mxu0 %v1534
    %v1843 = vpop.f32.mrf.mxu0
    %v1844 = vadd.f32 %v1824, %v1843
    %1845 = vdwg.mxu0
    %v1846 = vxor.u32 %v1724, 2147483648
    %v1847 = vmul.f32 %v1846, 1.442695
    %v1848 = vpow.pop %v1847
    %v1849 = vadd.f32 %v1848, 1.0
    %v1850 = vrcp.pop %v1849
    %v1851 = vmul.f32 %v1849, %v1850
    %v1852 = vsub.f32 1.0, %v1851
    %v1853 = vmul.f32 %v1850, %v1852
    %v1854 = vadd.f32 %v1850, %v1853
    %vm1855 = vweird.f32 %v1849
    %vm1856 = vweird.f32 %v1850
    %vm1857 = vmor %vm1855, %vm1856
    %v1858 = vsel %vm1857, %v1850, %v1854
    %v1859 = vand.u32 2147483647, %v1849
    %vm1860 = vcmp.eq.f32.partialorder %v1859, 8.507059e+37
    %v1861 = vand.u32 %v1849, 2147483648
    %v1862 = vor.u32 1.1754944e-38, %v1861
    %v1863 = vsel %vm1860, %v1862, %v1858
    %v1864 = vmul.f32 1.0, %v1863
    %v1865 = vxor.u32 %v1764, 2147483648
    %v1866 = vmul.f32 %v1865, 1.442695
    %v1867 = vpow.pop %v1866
    %v1868 = vadd.f32 %v1867, 1.0
    %v1869 = vrcp.pop %v1868
    %v1870 = vmul.f32 %v1868, %v1869
    %v1871 = vsub.f32 1.0, %v1870
    %v1872 = vmul.f32 %v1869, %v1871
    %v1873 = vadd.f32 %v1869, %v1872
    %vm1874 = vweird.f32 %v1868
    %vm1875 = vweird.f32 %v1869
    %vm1876 = vmor %vm1874, %vm1875
    %v1877 = vsel %vm1876, %v1869, %v1873
    %v1878 = vand.u32 2147483647, %v1868
    %vm1879 = vcmp.eq.f32.partialorder %v1878, 8.507059e+37
    %v1880 = vand.u32 %v1868, 2147483648
    %v1881 = vor.u32 1.1754944e-38, %v1880
    %v1882 = vsel %vm1879, %v1881, %v1877
    %v1883 = vmul.f32 1.0, %v1882
    %v1884 = vtanh.pop %v1804
    %v1885 = vxor.u32 %v1844, 2147483648
    %v1886 = vmul.f32 %v1885, 1.442695
    %v1887 = vpow.pop %v1886
    %v1888 = vadd.f32 %v1887, 1.0
    %v1889 = vrcp.pop %v1888
    %v1890 = vmul.f32 %v1888, %v1889
    %v1891 = vsub.f32 1.0, %v1890
    %v1892 = vmul.f32 %v1889, %v1891
    %v1893 = vadd.f32 %v1889, %v1892
    %vm1894 = vweird.f32 %v1888
    %vm1895 = vweird.f32 %v1889
    %vm1896 = vmor %vm1894, %vm1895
    %v1897 = vsel %vm1896, %v1889, %v1893
    %v1898 = vand.u32 2147483647, %v1888
    %vm1899 = vcmp.eq.f32.partialorder %v1898, 8.507059e+37
    %v1900 = vand.u32 %v1888, 2147483648
    %v1901 = vor.u32 1.1754944e-38, %v1900
    %v1902 = vsel %vm1899, %v1901, %v1897
    %v1903 = vmul.f32 1.0, %v1902
    %v1904 = vmul.f32 %v1883, %v1532
    %v1905 = vmul.f32 %v1864, %v1884
    %v1906 = vadd.f32 %v1904, %v1905
    %v1907 = vtanh.pop %v1906
    %v1908 = vmul.f32 %v1903, %v1907
    %v1909 = vld [vmem:[#allocation2 + $0x60] sm:$0xff]
    %v1910 = vld [vmem:[#allocation2 + $0x68] sm:$0xff]
    %v1911 = vld [vmem:[#allocation2 + $0x70] sm:$0xff]
    %v1912 = vld [vmem:[#allocation2 + $0x78] sm:$0xff]
    %1913 = vmatpush.msra.mxu0 %v659
    %1914 = vmatpush.msra.mxu0 %v655
    %1915 = vmatpush.msra.mxu0 %v651
    %1916 = vmatpush.msra.mxu0 %v647
    %1917 = vmatpush.msra.mxu0 %v643
    %1918 = vmatpush.msra.mxu0 %v639
    %1919 = vmatpush.msra.mxu0 %v635
    %1920 = vmatpush.msra.mxu0 %v631
    %1921 = vmatpush.msra.mxu0 %v627
    %1922 = vmatpush.msra.mxu0 %v623
    %1923 = vmatpush.msra.mxu0 %v619
    %1924 = vmatpush.msra.mxu0 %v615
    %1925 = vmatpush.msra.mxu0 %v611
    %1926 = vmatpush.msra.mxu0 %v607
    %1927 = vmatpush.msra.mxu0 %v603
    %1928 = vmatpush.msra.mxu0 %v599
    %1929 = vmatmul.f32.gmra.mxu0 %v1685
    %v1930 = vpop.f32.mrf.mxu0
    %v1931 = vadd.f32 0.0, %v1930
    %1932 = vdwg.mxu0
    %1933 = vmatpush.msra.mxu0 %v660
    %1934 = vmatpush.msra.mxu0 %v656
    %1935 = vmatpush.msra.mxu0 %v652
    %1936 = vmatpush.msra.mxu0 %v648
    %1937 = vmatpush.msra.mxu0 %v644
    %1938 = vmatpush.msra.mxu0 %v640
    %1939 = vmatpush.msra.mxu0 %v636
    %1940 = vmatpush.msra.mxu0 %v632
    %1941 = vmatpush.msra.mxu0 %v628
    %1942 = vmatpush.msra.mxu0 %v624
    %1943 = vmatpush.msra.mxu0 %v620
    %1944 = vmatpush.msra.mxu0 %v616
    %1945 = vmatpush.msra.mxu0 %v612
    %1946 = vmatpush.msra.mxu0 %v608
    %1947 = vmatpush.msra.mxu0 %v604
    %1948 = vmatpush.msra.mxu0 %v600
    %1949 = vmatmul.f32.gmra.mxu0 %v1685
    %v1950 = vpop.f32.mrf.mxu0
    %v1951 = vadd.f32 0.0, %v1950
    %1952 = vdwg.mxu0
    %1953 = vmatpush.msra.mxu0 %v661
    %1954 = vmatpush.msra.mxu0 %v657
    %1955 = vmatpush.msra.mxu0 %v653
    %1956 = vmatpush.msra.mxu0 %v649
    %1957 = vmatpush.msra.mxu0 %v645
    %1958 = vmatpush.msra.mxu0 %v641
    %1959 = vmatpush.msra.mxu0 %v637
    %1960 = vmatpush.msra.mxu0 %v633
    %1961 = vmatpush.msra.mxu0 %v629
    %1962 = vmatpush.msra.mxu0 %v625
    %1963 = vmatpush.msra.mxu0 %v621
    %1964 = vmatpush.msra.mxu0 %v617
    %1965 = vmatpush.msra.mxu0 %v613
    %1966 = vmatpush.msra.mxu0 %v609
    %1967 = vmatpush.msra.mxu0 %v605
    %1968 = vmatpush.msra.mxu0 %v601
    %1969 = vmatmul.f32.gmra.mxu0 %v1685
    %v1970 = vpop.f32.mrf.mxu0
    %v1971 = vadd.f32 0.0, %v1970
    %1972 = vdwg.mxu0
    %1973 = vmatpush.msra.mxu0 %v662
    %1974 = vmatpush.msra.mxu0 %v658
    %1975 = vmatpush.msra.mxu0 %v654
    %1976 = vmatpush.msra.mxu0 %v650
    %1977 = vmatpush.msra.mxu0 %v646
    %1978 = vmatpush.msra.mxu0 %v642
    %1979 = vmatpush.msra.mxu0 %v638
    %1980 = vmatpush.msra.mxu0 %v634
    %1981 = vmatpush.msra.mxu0 %v630
    %1982 = vmatpush.msra.mxu0 %v626
    %1983 = vmatpush.msra.mxu0 %v622
    %1984 = vmatpush.msra.mxu0 %v618
    %1985 = vmatpush.msra.mxu0 %v614
    %1986 = vmatpush.msra.mxu0 %v610
    %1987 = vmatpush.msra.mxu0 %v606
    %1988 = vmatpush.msra.mxu0 %v602
    %1989 = vmatmul.f32.gmra.mxu0 %v1685
    %v1990 = vpop.f32.mrf.mxu0
    %v1991 = vadd.f32 0.0, %v1990
    %1992 = vdwg.mxu0
    %v1993 = vadd.f32 %v1909, %v1931
    %v1994 = vadd.f32 %v1910, %v1951
    %v1995 = vadd.f32 %v1911, %v1971
    %v1996 = vadd.f32 %v1912, %v1991
    %v1997 = vxor.u32 %v1993, 2147483648
    %v1998 = vmul.f32 %v1997, 1.442695
    %v1999 = vpow.pop %v1998
    %v2000 = vadd.f32 %v1999, 1.0
    %v2001 = vrcp.pop %v2000
    %v2002 = vmul.f32 %v2000, %v2001
    %v2003 = vsub.f32 1.0, %v2002
    %v2004 = vmul.f32 %v2001, %v2003
    %v2005 = vadd.f32 %v2001, %v2004
    %vm2006 = vweird.f32 %v2000
    %vm2007 = vweird.f32 %v2001
    %vm2008 = vmor %vm2006, %vm2007
    %v2009 = vsel %vm2008, %v2001, %v2005
    %v2010 = vand.u32 2147483647, %v2000
    %vm2011 = vcmp.eq.f32.partialorder %v2010, 8.507059e+37
    %v2012 = vand.u32 %v2000, 2147483648
    %v2013 = vor.u32 1.1754944e-38, %v2012
    %v2014 = vsel %vm2011, %v2013, %v2009
    %v2015 = vmul.f32 1.0, %v2014
    %v2016 = vxor.u32 %v1994, 2147483648
    %v2017 = vmul.f32 %v2016, 1.442695
    %v2018 = vpow.pop %v2017
    %v2019 = vadd.f32 %v2018, 1.0
    %v2020 = vrcp.pop %v2019
    %v2021 = vmul.f32 %v2019, %v2020
    %v2022 = vsub.f32 1.0, %v2021
    %v2023 = vmul.f32 %v2020, %v2022
    %v2024 = vadd.f32 %v2020, %v2023
    %vm2025 = vweird.f32 %v2019
    %vm2026 = vweird.f32 %v2020
    %vm2027 = vmor %vm2025, %vm2026
    %v2028 = vsel %vm2027, %v2020, %v2024
    %v2029 = vand.u32 2147483647, %v2019
    %vm2030 = vcmp.eq.f32.partialorder %v2029, 8.507059e+37
    %v2031 = vand.u32 %v2019, 2147483648
    %v2032 = vor.u32 1.1754944e-38, %v2031
    %v2033 = vsel %vm2030, %v2032, %v2028
    %v2034 = vmul.f32 1.0, %v2033
    %v2035 = vtanh.pop %v1995
    %v2036 = vxor.u32 %v1996, 2147483648
    %v2037 = vmul.f32 %v2036, 1.442695
    %v2038 = vpow.pop %v2037
    %v2039 = vadd.f32 %v2038, 1.0
    %v2040 = vrcp.pop %v2039
    %v2041 = vmul.f32 %v2039, %v2040
    %v2042 = vsub.f32 1.0, %v2041
    %v2043 = vmul.f32 %v2040, %v2042
    %v2044 = vadd.f32 %v2040, %v2043
    %vm2045 = vweird.f32 %v2039
    %vm2046 = vweird.f32 %v2040
    %vm2047 = vmor %vm2045, %vm2046
    %v2048 = vsel %vm2047, %v2040, %v2044
    %v2049 = vand.u32 2147483647, %v2039
    %vm2050 = vcmp.eq.f32.partialorder %v2049, 8.507059e+37
    %v2051 = vand.u32 %v2039, 2147483648
    %v2052 = vor.u32 1.1754944e-38, %v2051
    %v2053 = vsel %vm2050, %v2052, %v2048
    %v2054 = vmul.f32 1.0, %v2053
    %v2055 = vmul.f32 %v2034, %v1683
    %v2056 = vmul.f32 %v2015, %v2035
    %v2057 = vadd.f32 %v2055, %v2056
    %v2058 = vtanh.pop %v2057
    %v2059 = vmul.f32 %v2054, %v2058
    %2060 = vmatpush.msra.mxu0 %v870
    %2061 = vmatpush.msra.mxu0 %v866
    %2062 = vmatpush.msra.mxu0 %v862
    %2063 = vmatpush.msra.mxu0 %v858
    %2064 = vmatpush.msra.mxu0 %v854
    %2065 = vmatpush.msra.mxu0 %v850
    %2066 = vmatpush.msra.mxu0 %v846
    %2067 = vmatpush.msra.mxu0 %v842
    %2068 = vmatpush.msra.mxu0 %v838
    %2069 = vmatpush.msra.mxu0 %v834
    %2070 = vmatpush.msra.mxu0 %v830
    %2071 = vmatpush.msra.mxu0 %v826
    %2072 = vmatpush.msra.mxu0 %v822
    %2073 = vmatpush.msra.mxu0 %v818
    %2074 = vmatpush.msra.mxu0 %v814
    %2075 = vmatpush.msra.mxu0 %v810
    %2076 = vmatmul.f32.gmra.mxu0 %v2059
    %v2077 = vpop.f32.mrf.mxu0
    %v2078 = vadd.f32 %v565, %v2077
    %2079 = vdwg.mxu0
    %2080 = vmatpush.msra.mxu0 %v934
    %2081 = vmatpush.msra.mxu0 %v930
    %2082 = vmatpush.msra.mxu0 %v926
    %2083 = vmatpush.msra.mxu0 %v922
    %2084 = vmatpush.msra.mxu0 %v918
    %2085 = vmatpush.msra.mxu0 %v914
    %2086 = vmatpush.msra.mxu0 %v910
    %2087 = vmatpush.msra.mxu0 %v906
    %2088 = vmatpush.msra.mxu0 %v902
    %2089 = vmatpush.msra.mxu0 %v898
    %2090 = vmatpush.msra.mxu0 %v894
    %2091 = vmatpush.msra.mxu0 %v890
    %2092 = vmatpush.msra.mxu0 %v886
    %2093 = vmatpush.msra.mxu0 %v882
    %2094 = vmatpush.msra.mxu0 %v878
    %2095 = vmatpush.msra.mxu0 %v874
    %2096 = vmatmul.f32.gmra.mxu0 %v1908
    %v2097 = vpop.f32.mrf.mxu0
    %v2098 = vadd.f32 %v2078, %v2097
    %2099 = vdwg.mxu0
    %2100 = vmatpush.msra.mxu0 %v871
    %2101 = vmatpush.msra.mxu0 %v867
    %2102 = vmatpush.msra.mxu0 %v863
    %2103 = vmatpush.msra.mxu0 %v859
    %2104 = vmatpush.msra.mxu0 %v855
    %2105 = vmatpush.msra.mxu0 %v851
    %2106 = vmatpush.msra.mxu0 %v847
    %2107 = vmatpush.msra.mxu0 %v843
    %2108 = vmatpush.msra.mxu0 %v839
    %2109 = vmatpush.msra.mxu0 %v835
    %2110 = vmatpush.msra.mxu0 %v831
    %2111 = vmatpush.msra.mxu0 %v827
    %2112 = vmatpush.msra.mxu0 %v823
    %2113 = vmatpush.msra.mxu0 %v819
    %2114 = vmatpush.msra.mxu0 %v815
    %2115 = vmatpush.msra.mxu0 %v811
    %2116 = vmatmul.f32.gmra.mxu0 %v2059
    %v2117 = vpop.f32.mrf.mxu0
    %v2118 = vadd.f32 %v566, %v2117
    %2119 = vdwg.mxu0
    %2120 = vmatpush.msra.mxu0 %v935
    %2121 = vmatpush.msra.mxu0 %v931
    %2122 = vmatpush.msra.mxu0 %v927
    %2123 = vmatpush.msra.mxu0 %v923
    %2124 = vmatpush.msra.mxu0 %v919
    %2125 = vmatpush.msra.mxu0 %v915
    %2126 = vmatpush.msra.mxu0 %v911
    %2127 = vmatpush.msra.mxu0 %v907
    %2128 = vmatpush.msra.mxu0 %v903
    %2129 = vmatpush.msra.mxu0 %v899
    %2130 = vmatpush.msra.mxu0 %v895
    %2131 = vmatpush.msra.mxu0 %v891
    %2132 = vmatpush.msra.mxu0 %v887
    %2133 = vmatpush.msra.mxu0 %v883
    %2134 = vmatpush.msra.mxu0 %v879
    %2135 = vmatpush.msra.mxu0 %v875
    %2136 = vmatmul.f32.gmra.mxu0 %v1908
    %v2137 = vpop.f32.mrf.mxu0
    %v2138 = vadd.f32 %v2118, %v2137
    %2139 = vdwg.mxu0
    %2140 = vmatpush.msra.mxu0 %v872
    %2141 = vmatpush.msra.mxu0 %v868
    %2142 = vmatpush.msra.mxu0 %v864
    %2143 = vmatpush.msra.mxu0 %v860
    %2144 = vmatpush.msra.mxu0 %v856
    %2145 = vmatpush.msra.mxu0 %v852
    %2146 = vmatpush.msra.mxu0 %v848
    %2147 = vmatpush.msra.mxu0 %v844
    %2148 = vmatpush.msra.mxu0 %v840
    %2149 = vmatpush.msra.mxu0 %v836
    %2150 = vmatpush.msra.mxu0 %v832
    %2151 = vmatpush.msra.mxu0 %v828
    %2152 = vmatpush.msra.mxu0 %v824
    %2153 = vmatpush.msra.mxu0 %v820
    %2154 = vmatpush.msra.mxu0 %v816
    %2155 = vmatpush.msra.mxu0 %v812
    %2156 = vmatmul.f32.gmra.mxu0 %v2059
    %v2157 = vpop.f32.mrf.mxu0
    %v2158 = vadd.f32 %v567, %v2157
    %2159 = vdwg.mxu0
    %2160 = vmatpush.msra.mxu0 %v936
    %2161 = vmatpush.msra.mxu0 %v932
    %2162 = vmatpush.msra.mxu0 %v928
    %2163 = vmatpush.msra.mxu0 %v924
    %2164 = vmatpush.msra.mxu0 %v920
    %2165 = vmatpush.msra.mxu0 %v916
    %2166 = vmatpush.msra.mxu0 %v912
    %2167 = vmatpush.msra.mxu0 %v908
    %2168 = vmatpush.msra.mxu0 %v904
    %2169 = vmatpush.msra.mxu0 %v900
    %2170 = vmatpush.msra.mxu0 %v896
    %2171 = vmatpush.msra.mxu0 %v892
    %2172 = vmatpush.msra.mxu0 %v888
    %2173 = vmatpush.msra.mxu0 %v884
    %2174 = vmatpush.msra.mxu0 %v880
    %2175 = vmatpush.msra.mxu0 %v876
    %2176 = vmatmul.f32.gmra.mxu0 %v1908
    %v2177 = vpop.f32.mrf.mxu0
    %v2178 = vadd.f32 %v2158, %v2177
    %2179 = vdwg.mxu0
    %2180 = vmatpush.msra.mxu0 %v873
    %2181 = vmatpush.msra.mxu0 %v869
    %2182 = vmatpush.msra.mxu0 %v865
    %2183 = vmatpush.msra.mxu0 %v861
    %2184 = vmatpush.msra.mxu0 %v857
    %2185 = vmatpush.msra.mxu0 %v853
    %2186 = vmatpush.msra.mxu0 %v849
    %2187 = vmatpush.msra.mxu0 %v845
    %2188 = vmatpush.msra.mxu0 %v841
    %2189 = vmatpush.msra.mxu0 %v837
    %2190 = vmatpush.msra.mxu0 %v833
    %2191 = vmatpush.msra.mxu0 %v829
    %2192 = vmatpush.msra.mxu0 %v825
    %2193 = vmatpush.msra.mxu0 %v821
    %2194 = vmatpush.msra.mxu0 %v817
    %2195 = vmatpush.msra.mxu0 %v813
    %2196 = vmatmul.f32.gmra.mxu0 %v2059
    %v2197 = vpop.f32.mrf.mxu0
    %v2198 = vadd.f32 %v568, %v2197
    %2199 = vdwg.mxu0
    %2200 = vmatpush.msra.mxu0 %v937
    %2201 = vmatpush.msra.mxu0 %v933
    %2202 = vmatpush.msra.mxu0 %v929
    %2203 = vmatpush.msra.mxu0 %v925
    %2204 = vmatpush.msra.mxu0 %v921
    %2205 = vmatpush.msra.mxu0 %v917
    %2206 = vmatpush.msra.mxu0 %v913
    %2207 = vmatpush.msra.mxu0 %v909
    %2208 = vmatpush.msra.mxu0 %v905
    %2209 = vmatpush.msra.mxu0 %v901
    %2210 = vmatpush.msra.mxu0 %v897
    %2211 = vmatpush.msra.mxu0 %v893
    %2212 = vmatpush.msra.mxu0 %v889
    %2213 = vmatpush.msra.mxu0 %v885
    %2214 = vmatpush.msra.mxu0 %v881
    %2215 = vmatpush.msra.mxu0 %v877
    %2216 = vmatmul.f32.gmra.mxu0 %v1908
    %v2217 = vpop.f32.mrf.mxu0
    %v2218 = vadd.f32 %v2198, %v2217
    %2219 = vdwg.mxu0
    %v2220 = vxor.u32 %v2098, 2147483648
    %v2221 = vmul.f32 %v2220, 1.442695
    %v2222 = vpow.pop %v2221
    %v2223 = vadd.f32 %v2222, 1.0
    %v2224 = vrcp.pop %v2223
    %v2225 = vmul.f32 %v2223, %v2224
    %v2226 = vsub.f32 1.0, %v2225
    %v2227 = vmul.f32 %v2224, %v2226
    %v2228 = vadd.f32 %v2224, %v2227
    %vm2229 = vweird.f32 %v2223
    %vm2230 = vweird.f32 %v2224
    %vm2231 = vmor %vm2229, %vm2230
    %v2232 = vsel %vm2231, %v2224, %v2228
    %v2233 = vand.u32 2147483647, %v2223
    %vm2234 = vcmp.eq.f32.partialorder %v2233, 8.507059e+37
    %v2235 = vand.u32 %v2223, 2147483648
    %v2236 = vor.u32 1.1754944e-38, %v2235
    %v2237 = vsel %vm2234, %v2236, %v2232
    %v2238 = vmul.f32 1.0, %v2237
    %v2239 = vxor.u32 %v2138, 2147483648
    %v2240 = vmul.f32 %v2239, 1.442695
    %v2241 = vpow.pop %v2240
    %v2242 = vadd.f32 %v2241, 1.0
    %v2243 = vrcp.pop %v2242
    %v2244 = vmul.f32 %v2242, %v2243
    %v2245 = vsub.f32 1.0, %v2244
    %v2246 = vmul.f32 %v2243, %v2245
    %v2247 = vadd.f32 %v2243, %v2246
    %vm2248 = vweird.f32 %v2242
    %vm2249 = vweird.f32 %v2243
    %vm2250 = vmor %vm2248, %vm2249
    %v2251 = vsel %vm2250, %v2243, %v2247
    %v2252 = vand.u32 2147483647, %v2242
    %vm2253 = vcmp.eq.f32.partialorder %v2252, 8.507059e+37
    %v2254 = vand.u32 %v2242, 2147483648
    %v2255 = vor.u32 1.1754944e-38, %v2254
    %v2256 = vsel %vm2253, %v2255, %v2251
    %v2257 = vmul.f32 1.0, %v2256
    %v2258 = vtanh.pop %v2178
    %v2259 = vxor.u32 %v2218, 2147483648
    %v2260 = vmul.f32 %v2259, 1.442695
    %v2261 = vpow.pop %v2260
    %v2262 = vadd.f32 %v2261, 1.0
    %v2263 = vrcp.pop %v2262
    %v2264 = vmul.f32 %v2262, %v2263
    %v2265 = vsub.f32 1.0, %v2264
    %v2266 = vmul.f32 %v2263, %v2265
    %v2267 = vadd.f32 %v2263, %v2266
    %vm2268 = vweird.f32 %v2262
    %vm2269 = vweird.f32 %v2263
    %vm2270 = vmor %vm2268, %vm2269
    %v2271 = vsel %vm2270, %v2263, %v2267
    %v2272 = vand.u32 2147483647, %v2262
    %vm2273 = vcmp.eq.f32.partialorder %v2272, 8.507059e+37
    %v2274 = vand.u32 %v2262, 2147483648
    %v2275 = vor.u32 1.1754944e-38, %v2274
    %v2276 = vsel %vm2273, %v2275, %v2271
    %v2277 = vmul.f32 1.0, %v2276
    %v2278 = vmul.f32 %v2257, %v1906
    %v2279 = vmul.f32 %v2238, %v2258
    %v2280 = vadd.f32 %v2278, %v2279
    %v2281 = vtanh.pop %v2280
    %v2282 = vmul.f32 %v2277, %v2281
    %v2283 = vld [vmem:[#allocation2 + $0x80] sm:$0xff]
    %v2284 = vld [vmem:[#allocation2 + $0x88] sm:$0xff]
    %v2285 = vld [vmem:[#allocation2 + $0x90] sm:$0xff]
    %v2286 = vld [vmem:[#allocation2 + $0x98] sm:$0xff]
    %2287 = vmatpush.msra.mxu0 %v659
    %2288 = vmatpush.msra.mxu0 %v655
    %2289 = vmatpush.msra.mxu0 %v651
    %2290 = vmatpush.msra.mxu0 %v647
    %2291 = vmatpush.msra.mxu0 %v643
    %2292 = vmatpush.msra.mxu0 %v639
    %2293 = vmatpush.msra.mxu0 %v635
    %2294 = vmatpush.msra.mxu0 %v631
    %2295 = vmatpush.msra.mxu0 %v627
    %2296 = vmatpush.msra.mxu0 %v623
    %2297 = vmatpush.msra.mxu0 %v619
    %2298 = vmatpush.msra.mxu0 %v615
    %2299 = vmatpush.msra.mxu0 %v611
    %2300 = vmatpush.msra.mxu0 %v607
    %2301 = vmatpush.msra.mxu0 %v603
    %2302 = vmatpush.msra.mxu0 %v599
    %2303 = vmatmul.f32.gmra.mxu0 %v2059
    %v2304 = vpop.f32.mrf.mxu0
    %v2305 = vadd.f32 0.0, %v2304
    %2306 = vdwg.mxu0
    %2307 = vmatpush.msra.mxu0 %v660
    %2308 = vmatpush.msra.mxu0 %v656
    %2309 = vmatpush.msra.mxu0 %v652
    %2310 = vmatpush.msra.mxu0 %v648
    %2311 = vmatpush.msra.mxu0 %v644
    %2312 = vmatpush.msra.mxu0 %v640
    %2313 = vmatpush.msra.mxu0 %v636
    %2314 = vmatpush.msra.mxu0 %v632
    %2315 = vmatpush.msra.mxu0 %v628
    %2316 = vmatpush.msra.mxu0 %v624
    %2317 = vmatpush.msra.mxu0 %v620
    %2318 = vmatpush.msra.mxu0 %v616
    %2319 = vmatpush.msra.mxu0 %v612
    %2320 = vmatpush.msra.mxu0 %v608
    %2321 = vmatpush.msra.mxu0 %v604
    %2322 = vmatpush.msra.mxu0 %v600
    %2323 = vmatmul.f32.gmra.mxu0 %v2059
    %v2324 = vpop.f32.mrf.mxu0
    %v2325 = vadd.f32 0.0, %v2324
    %2326 = vdwg.mxu0
    %2327 = vmatpush.msra.mxu0 %v661
    %2328 = vmatpush.msra.mxu0 %v657
    %2329 = vmatpush.msra.mxu0 %v653
    %2330 = vmatpush.msra.mxu0 %v649
    %2331 = vmatpush.msra.mxu0 %v645
    %2332 = vmatpush.msra.mxu0 %v641
    %2333 = vmatpush.msra.mxu0 %v637
    %2334 = vmatpush.msra.mxu0 %v633
    %2335 = vmatpush.msra.mxu0 %v629
    %2336 = vmatpush.msra.mxu0 %v625
    %2337 = vmatpush.msra.mxu0 %v621
    %2338 = vmatpush.msra.mxu0 %v617
    %2339 = vmatpush.msra.mxu0 %v613
    %2340 = vmatpush.msra.mxu0 %v609
    %2341 = vmatpush.msra.mxu0 %v605
    %2342 = vmatpush.msra.mxu0 %v601
    %2343 = vmatmul.f32.gmra.mxu0 %v2059
    %v2344 = vpop.f32.mrf.mxu0
    %v2345 = vadd.f32 0.0, %v2344
    %2346 = vdwg.mxu0
    %2347 = vmatpush.msra.mxu0 %v662
    %2348 = vmatpush.msra.mxu0 %v658
    %2349 = vmatpush.msra.mxu0 %v654
    %2350 = vmatpush.msra.mxu0 %v650
    %2351 = vmatpush.msra.mxu0 %v646
    %2352 = vmatpush.msra.mxu0 %v642
    %2353 = vmatpush.msra.mxu0 %v638
    %2354 = vmatpush.msra.mxu0 %v634
    %2355 = vmatpush.msra.mxu0 %v630
    %2356 = vmatpush.msra.mxu0 %v626
    %2357 = vmatpush.msra.mxu0 %v622
    %2358 = vmatpush.msra.mxu0 %v618
    %2359 = vmatpush.msra.mxu0 %v614
    %2360 = vmatpush.msra.mxu0 %v610
    %2361 = vmatpush.msra.mxu0 %v606
    %2362 = vmatpush.msra.mxu0 %v602
    %2363 = vmatmul.f32.gmra.mxu0 %v2059
    %v2364 = vpop.f32.mrf.mxu0
    %v2365 = vadd.f32 0.0, %v2364
    %2366 = vdwg.mxu0
    %v2367 = vadd.f32 %v2283, %v2305
    %v2368 = vadd.f32 %v2284, %v2325
    %v2369 = vadd.f32 %v2285, %v2345
    %v2370 = vadd.f32 %v2286, %v2365
    %v2371 = vxor.u32 %v2367, 2147483648
    %v2372 = vmul.f32 %v2371, 1.442695
    %v2373 = vpow.pop %v2372
    %v2374 = vadd.f32 %v2373, 1.0
    %v2375 = vrcp.pop %v2374
    %v2376 = vmul.f32 %v2374, %v2375
    %v2377 = vsub.f32 1.0, %v2376
    %v2378 = vmul.f32 %v2375, %v2377
    %v2379 = vadd.f32 %v2375, %v2378
    %vm2380 = vweird.f32 %v2374
    %vm2381 = vweird.f32 %v2375
    %vm2382 = vmor %vm2380, %vm2381
    %v2383 = vsel %vm2382, %v2375, %v2379
    %v2384 = vand.u32 2147483647, %v2374
    %vm2385 = vcmp.eq.f32.partialorder %v2384, 8.507059e+37
    %v2386 = vand.u32 %v2374, 2147483648
    %v2387 = vor.u32 1.1754944e-38, %v2386
    %v2388 = vsel %vm2385, %v2387, %v2383
    %v2389 = vmul.f32 1.0, %v2388
    %v2390 = vxor.u32 %v2368, 2147483648
    %v2391 = vmul.f32 %v2390, 1.442695
    %v2392 = vpow.pop %v2391
    %v2393 = vadd.f32 %v2392, 1.0
    %v2394 = vrcp.pop %v2393
    %v2395 = vmul.f32 %v2393, %v2394
    %v2396 = vsub.f32 1.0, %v2395
    %v2397 = vmul.f32 %v2394, %v2396
    %v2398 = vadd.f32 %v2394, %v2397
    %vm2399 = vweird.f32 %v2393
    %vm2400 = vweird.f32 %v2394
    %vm2401 = vmor %vm2399, %vm2400
    %v2402 = vsel %vm2401, %v2394, %v2398
    %v2403 = vand.u32 2147483647, %v2393
    %vm2404 = vcmp.eq.f32.partialorder %v2403, 8.507059e+37
    %v2405 = vand.u32 %v2393, 2147483648
    %v2406 = vor.u32 1.1754944e-38, %v2405
    %v2407 = vsel %vm2404, %v2406, %v2402
    %v2408 = vmul.f32 1.0, %v2407
    %v2409 = vtanh.pop %v2369
    %v2410 = vxor.u32 %v2370, 2147483648
    %v2411 = vmul.f32 %v2410, 1.442695
    %v2412 = vpow.pop %v2411
    %v2413 = vadd.f32 %v2412, 1.0
    %v2414 = vrcp.pop %v2413
    %v2415 = vmul.f32 %v2413, %v2414
    %v2416 = vsub.f32 1.0, %v2415
    %v2417 = vmul.f32 %v2414, %v2416
    %v2418 = vadd.f32 %v2414, %v2417
    %vm2419 = vweird.f32 %v2413
    %vm2420 = vweird.f32 %v2414
    %vm2421 = vmor %vm2419, %vm2420
    %v2422 = vsel %vm2421, %v2414, %v2418
    %v2423 = vand.u32 2147483647, %v2413
    %vm2424 = vcmp.eq.f32.partialorder %v2423, 8.507059e+37
    %v2425 = vand.u32 %v2413, 2147483648
    %v2426 = vor.u32 1.1754944e-38, %v2425
    %v2427 = vsel %vm2424, %v2426, %v2422
    %v2428 = vmul.f32 1.0, %v2427
    %v2429 = vmul.f32 %v2408, %v2057
    %v2430 = vmul.f32 %v2389, %v2409
    %v2431 = vadd.f32 %v2429, %v2430
    %v2432 = vtanh.pop %v2431
    %v2433 = vmul.f32 %v2428, %v2432
    %2434 = vmatpush.msra.mxu0 %v870
    %2435 = vmatpush.msra.mxu0 %v866
    %2436 = vmatpush.msra.mxu0 %v862
    %2437 = vmatpush.msra.mxu0 %v858
    %2438 = vmatpush.msra.mxu0 %v854
    %2439 = vmatpush.msra.mxu0 %v850
    %2440 = vmatpush.msra.mxu0 %v846
    %2441 = vmatpush.msra.mxu0 %v842
    %2442 = vmatpush.msra.mxu0 %v838
    %2443 = vmatpush.msra.mxu0 %v834
    %2444 = vmatpush.msra.mxu0 %v830
    %2445 = vmatpush.msra.mxu0 %v826
    %2446 = vmatpush.msra.mxu0 %v822
    %2447 = vmatpush.msra.mxu0 %v818
    %2448 = vmatpush.msra.mxu0 %v814
    %2449 = vmatpush.msra.mxu0 %v810
    %2450 = vmatmul.f32.gmra.mxu0 %v2433
    %v2451 = vpop.f32.mrf.mxu0
    %v2452 = vadd.f32 %v565, %v2451
    %2453 = vdwg.mxu0
    %2454 = vmatpush.msra.mxu0 %v934
    %2455 = vmatpush.msra.mxu0 %v930
    %2456 = vmatpush.msra.mxu0 %v926
    %2457 = vmatpush.msra.mxu0 %v922
    %2458 = vmatpush.msra.mxu0 %v918
    %2459 = vmatpush.msra.mxu0 %v914
    %2460 = vmatpush.msra.mxu0 %v910
    %2461 = vmatpush.msra.mxu0 %v906
    %2462 = vmatpush.msra.mxu0 %v902
    %2463 = vmatpush.msra.mxu0 %v898
    %2464 = vmatpush.msra.mxu0 %v894
    %2465 = vmatpush.msra.mxu0 %v890
    %2466 = vmatpush.msra.mxu0 %v886
    %2467 = vmatpush.msra.mxu0 %v882
    %2468 = vmatpush.msra.mxu0 %v878
    %2469 = vmatpush.msra.mxu0 %v874
    %2470 = vmatmul.f32.gmra.mxu0 %v2282
    %v2471 = vpop.f32.mrf.mxu0
    %v2472 = vadd.f32 %v2452, %v2471
    %2473 = vdwg.mxu0
    %2474 = vmatpush.msra.mxu0 %v871
    %2475 = vmatpush.msra.mxu0 %v867
    %2476 = vmatpush.msra.mxu0 %v863
    %2477 = vmatpush.msra.mxu0 %v859
    %2478 = vmatpush.msra.mxu0 %v855
    %2479 = vmatpush.msra.mxu0 %v851
    %2480 = vmatpush.msra.mxu0 %v847
    %2481 = vmatpush.msra.mxu0 %v843
    %2482 = vmatpush.msra.mxu0 %v839
    %2483 = vmatpush.msra.mxu0 %v835
    %2484 = vmatpush.msra.mxu0 %v831
    %2485 = vmatpush.msra.mxu0 %v827
    %2486 = vmatpush.msra.mxu0 %v823
    %2487 = vmatpush.msra.mxu0 %v819
    %2488 = vmatpush.msra.mxu0 %v815
    %2489 = vmatpush.msra.mxu0 %v811
    %2490 = vmatmul.f32.gmra.mxu0 %v2433
    %v2491 = vpop.f32.mrf.mxu0
    %v2492 = vadd.f32 %v566, %v2491
    %2493 = vdwg.mxu0
    %2494 = vmatpush.msra.mxu0 %v935
    %2495 = vmatpush.msra.mxu0 %v931
    %2496 = vmatpush.msra.mxu0 %v927
    %2497 = vmatpush.msra.mxu0 %v923
    %2498 = vmatpush.msra.mxu0 %v919
    %2499 = vmatpush.msra.mxu0 %v915
    %2500 = vmatpush.msra.mxu0 %v911
    %2501 = vmatpush.msra.mxu0 %v907
    %2502 = vmatpush.msra.mxu0 %v903
    %2503 = vmatpush.msra.mxu0 %v899
    %2504 = vmatpush.msra.mxu0 %v895
    %2505 = vmatpush.msra.mxu0 %v891
    %2506 = vmatpush.msra.mxu0 %v887
    %2507 = vmatpush.msra.mxu0 %v883
    %2508 = vmatpush.msra.mxu0 %v879
    %2509 = vmatpush.msra.mxu0 %v875
    %2510 = vmatmul.f32.gmra.mxu0 %v2282
    %v2511 = vpop.f32.mrf.mxu0
    %v2512 = vadd.f32 %v2492, %v2511
    %2513 = vdwg.mxu0
    %2514 = vmatpush.msra.mxu0 %v872
    %2515 = vmatpush.msra.mxu0 %v868
    %2516 = vmatpush.msra.mxu0 %v864
    %2517 = vmatpush.msra.mxu0 %v860
    %2518 = vmatpush.msra.mxu0 %v856
    %2519 = vmatpush.msra.mxu0 %v852
    %2520 = vmatpush.msra.mxu0 %v848
    %2521 = vmatpush.msra.mxu0 %v844
    %2522 = vmatpush.msra.mxu0 %v840
    %2523 = vmatpush.msra.mxu0 %v836
    %2524 = vmatpush.msra.mxu0 %v832
    %2525 = vmatpush.msra.mxu0 %v828
    %2526 = vmatpush.msra.mxu0 %v824
    %2527 = vmatpush.msra.mxu0 %v820
    %2528 = vmatpush.msra.mxu0 %v816
    %2529 = vmatpush.msra.mxu0 %v812
    %2530 = vmatmul.f32.gmra.mxu0 %v2433
    %v2531 = vpop.f32.mrf.mxu0
    %v2532 = vadd.f32 %v567, %v2531
    %2533 = vdwg.mxu0
    %2534 = vmatpush.msra.mxu0 %v936
    %2535 = vmatpush.msra.mxu0 %v932
    %2536 = vmatpush.msra.mxu0 %v928
    %2537 = vmatpush.msra.mxu0 %v924
    %2538 = vmatpush.msra.mxu0 %v920
    %2539 = vmatpush.msra.mxu0 %v916
    %2540 = vmatpush.msra.mxu0 %v912
    %2541 = vmatpush.msra.mxu0 %v908
    %2542 = vmatpush.msra.mxu0 %v904
    %2543 = vmatpush.msra.mxu0 %v900
    %2544 = vmatpush.msra.mxu0 %v896
    %2545 = vmatpush.msra.mxu0 %v892
    %2546 = vmatpush.msra.mxu0 %v888
    %2547 = vmatpush.msra.mxu0 %v884
    %2548 = vmatpush.msra.mxu0 %v880
    %2549 = vmatpush.msra.mxu0 %v876
    %2550 = vmatmul.f32.gmra.mxu0 %v2282
    %v2551 = vpop.f32.mrf.mxu0
    %v2552 = vadd.f32 %v2532, %v2551
    %2553 = vdwg.mxu0
    %2554 = vmatpush.msra.mxu0 %v873
    %2555 = vmatpush.msra.mxu0 %v869
    %2556 = vmatpush.msra.mxu0 %v865
    %2557 = vmatpush.msra.mxu0 %v861
    %2558 = vmatpush.msra.mxu0 %v857
    %2559 = vmatpush.msra.mxu0 %v853
    %2560 = vmatpush.msra.mxu0 %v849
    %2561 = vmatpush.msra.mxu0 %v845
    %2562 = vmatpush.msra.mxu0 %v841
    %2563 = vmatpush.msra.mxu0 %v837
    %2564 = vmatpush.msra.mxu0 %v833
    %2565 = vmatpush.msra.mxu0 %v829
    %2566 = vmatpush.msra.mxu0 %v825
    %2567 = vmatpush.msra.mxu0 %v821
    %2568 = vmatpush.msra.mxu0 %v817
    %2569 = vmatpush.msra.mxu0 %v813
    %2570 = vmatmul.f32.gmra.mxu0 %v2433
    %v2571 = vpop.f32.mrf.mxu0
    %v2572 = vadd.f32 %v568, %v2571
    %2573 = vdwg.mxu0
    %2574 = vmatpush.msra.mxu0 %v937
    %2575 = vmatpush.msra.mxu0 %v933
    %2576 = vmatpush.msra.mxu0 %v929
    %2577 = vmatpush.msra.mxu0 %v925
    %2578 = vmatpush.msra.mxu0 %v921
    %2579 = vmatpush.msra.mxu0 %v917
    %2580 = vmatpush.msra.mxu0 %v913
    %2581 = vmatpush.msra.mxu0 %v909
    %2582 = vmatpush.msra.mxu0 %v905
    %2583 = vmatpush.msra.mxu0 %v901
    %2584 = vmatpush.msra.mxu0 %v897
    %2585 = vmatpush.msra.mxu0 %v893
    %2586 = vmatpush.msra.mxu0 %v889
    %2587 = vmatpush.msra.mxu0 %v885
    %2588 = vmatpush.msra.mxu0 %v881
    %2589 = vmatpush.msra.mxu0 %v877
    %2590 = vmatmul.f32.gmra.mxu0 %v2282
    %v2591 = vpop.f32.mrf.mxu0
    %v2592 = vadd.f32 %v2572, %v2591
    %2593 = vdwg.mxu0
    %v2594 = vxor.u32 %v2472, 2147483648
    %v2595 = vmul.f32 %v2594, 1.442695
    %v2596 = vpow.pop %v2595
    %v2597 = vadd.f32 %v2596, 1.0
    %v2598 = vrcp.pop %v2597
    %v2599 = vmul.f32 %v2597, %v2598
    %v2600 = vsub.f32 1.0, %v2599
    %v2601 = vmul.f32 %v2598, %v2600
    %v2602 = vadd.f32 %v2598, %v2601
    %vm2603 = vweird.f32 %v2597
    %vm2604 = vweird.f32 %v2598
    %vm2605 = vmor %vm2603, %vm2604
    %v2606 = vsel %vm2605, %v2598, %v2602
    %v2607 = vand.u32 2147483647, %v2597
    %vm2608 = vcmp.eq.f32.partialorder %v2607, 8.507059e+37
    %v2609 = vand.u32 %v2597, 2147483648
    %v2610 = vor.u32 1.1754944e-38, %v2609
    %v2611 = vsel %vm2608, %v2610, %v2606
    %v2612 = vmul.f32 1.0, %v2611
    %v2613 = vxor.u32 %v2512, 2147483648
    %v2614 = vmul.f32 %v2613, 1.442695
    %v2615 = vpow.pop %v2614
    %v2616 = vadd.f32 %v2615, 1.0
    %v2617 = vrcp.pop %v2616
    %v2618 = vmul.f32 %v2616, %v2617
    %v2619 = vsub.f32 1.0, %v2618
    %v2620 = vmul.f32 %v2617, %v2619
    %v2621 = vadd.f32 %v2617, %v2620
    %vm2622 = vweird.f32 %v2616
    %vm2623 = vweird.f32 %v2617
    %vm2624 = vmor %vm2622, %vm2623
    %v2625 = vsel %vm2624, %v2617, %v2621
    %v2626 = vand.u32 2147483647, %v2616
    %vm2627 = vcmp.eq.f32.partialorder %v2626, 8.507059e+37
    %v2628 = vand.u32 %v2616, 2147483648
    %v2629 = vor.u32 1.1754944e-38, %v2628
    %v2630 = vsel %vm2627, %v2629, %v2625
    %v2631 = vmul.f32 1.0, %v2630
    %v2632 = vtanh.pop %v2552
    %v2633 = vxor.u32 %v2592, 2147483648
    %v2634 = vmul.f32 %v2633, 1.442695
    %v2635 = vpow.pop %v2634
    %v2636 = vadd.f32 %v2635, 1.0
    %v2637 = vrcp.pop %v2636
    %v2638 = vmul.f32 %v2636, %v2637
    %v2639 = vsub.f32 1.0, %v2638
    %v2640 = vmul.f32 %v2637, %v2639
    %v2641 = vadd.f32 %v2637, %v2640
    %vm2642 = vweird.f32 %v2636
    %vm2643 = vweird.f32 %v2637
    %vm2644 = vmor %vm2642, %vm2643
    %v2645 = vsel %vm2644, %v2637, %v2641
    %v2646 = vand.u32 2147483647, %v2636
    %vm2647 = vcmp.eq.f32.partialorder %v2646, 8.507059e+37
    %v2648 = vand.u32 %v2636, 2147483648
    %v2649 = vor.u32 1.1754944e-38, %v2648
    %v2650 = vsel %vm2647, %v2649, %v2645
    %v2651 = vmul.f32 1.0, %v2650
    %v2652 = vmul.f32 %v2631, %v2280
    %v2653 = vmul.f32 %v2612, %v2632
    %v2654 = vadd.f32 %v2652, %v2653
    %v2655 = vtanh.pop %v2654
    %v2656 = vmul.f32 %v2651, %v2655
    %v2657 = vld [vmem:[#allocation2 + $0xa0] sm:$0xff]
    %v2658 = vld [vmem:[#allocation2 + $0xa8] sm:$0xff]
    %v2659 = vld [vmem:[#allocation2 + $0xb0] sm:$0xff]
    %v2660 = vld [vmem:[#allocation2 + $0xb8] sm:$0xff]
    %2661 = vmatpush.msra.mxu0 %v659
    %2662 = vmatpush.msra.mxu0 %v655
    %2663 = vmatpush.msra.mxu0 %v651
    %2664 = vmatpush.msra.mxu0 %v647
    %2665 = vmatpush.msra.mxu0 %v643
    %2666 = vmatpush.msra.mxu0 %v639
    %2667 = vmatpush.msra.mxu0 %v635
    %2668 = vmatpush.msra.mxu0 %v631
    %2669 = vmatpush.msra.mxu0 %v627
    %2670 = vmatpush.msra.mxu0 %v623
    %2671 = vmatpush.msra.mxu0 %v619
    %2672 = vmatpush.msra.mxu0 %v615
    %2673 = vmatpush.msra.mxu0 %v611
    %2674 = vmatpush.msra.mxu0 %v607
    %2675 = vmatpush.msra.mxu0 %v603
    %2676 = vmatpush.msra.mxu0 %v599
    %2677 = vmatmul.f32.gmra.mxu0 %v2433
    %v2678 = vpop.f32.mrf.mxu0
    %v2679 = vadd.f32 0.0, %v2678
    %2680 = vdwg.mxu0
    %2681 = vmatpush.msra.mxu0 %v660
    %2682 = vmatpush.msra.mxu0 %v656
    %2683 = vmatpush.msra.mxu0 %v652
    %2684 = vmatpush.msra.mxu0 %v648
    %2685 = vmatpush.msra.mxu0 %v644
    %2686 = vmatpush.msra.mxu0 %v640
    %2687 = vmatpush.msra.mxu0 %v636
    %2688 = vmatpush.msra.mxu0 %v632
    %2689 = vmatpush.msra.mxu0 %v628
    %2690 = vmatpush.msra.mxu0 %v624
    %2691 = vmatpush.msra.mxu0 %v620
    %2692 = vmatpush.msra.mxu0 %v616
    %2693 = vmatpush.msra.mxu0 %v612
    %2694 = vmatpush.msra.mxu0 %v608
    %2695 = vmatpush.msra.mxu0 %v604
    %2696 = vmatpush.msra.mxu0 %v600
    %2697 = vmatmul.f32.gmra.mxu0 %v2433
    %v2698 = vpop.f32.mrf.mxu0
    %v2699 = vadd.f32 0.0, %v2698
    %2700 = vdwg.mxu0
    %2701 = vmatpush.msra.mxu0 %v661
    %2702 = vmatpush.msra.mxu0 %v657
    %2703 = vmatpush.msra.mxu0 %v653
    %2704 = vmatpush.msra.mxu0 %v649
    %2705 = vmatpush.msra.mxu0 %v645
    %2706 = vmatpush.msra.mxu0 %v641
    %2707 = vmatpush.msra.mxu0 %v637
    %2708 = vmatpush.msra.mxu0 %v633
    %2709 = vmatpush.msra.mxu0 %v629
    %2710 = vmatpush.msra.mxu0 %v625
    %2711 = vmatpush.msra.mxu0 %v621
    %2712 = vmatpush.msra.mxu0 %v617
    %2713 = vmatpush.msra.mxu0 %v613
    %2714 = vmatpush.msra.mxu0 %v609
    %2715 = vmatpush.msra.mxu0 %v605
    %2716 = vmatpush.msra.mxu0 %v601
    %2717 = vmatmul.f32.gmra.mxu0 %v2433
    %v2718 = vpop.f32.mrf.mxu0
    %v2719 = vadd.f32 0.0, %v2718
    %2720 = vdwg.mxu0
    %2721 = vmatpush.msra.mxu0 %v662
    %2722 = vmatpush.msra.mxu0 %v658
    %2723 = vmatpush.msra.mxu0 %v654
    %2724 = vmatpush.msra.mxu0 %v650
    %2725 = vmatpush.msra.mxu0 %v646
    %2726 = vmatpush.msra.mxu0 %v642
    %2727 = vmatpush.msra.mxu0 %v638
    %2728 = vmatpush.msra.mxu0 %v634
    %2729 = vmatpush.msra.mxu0 %v630
    %2730 = vmatpush.msra.mxu0 %v626
    %2731 = vmatpush.msra.mxu0 %v622
    %2732 = vmatpush.msra.mxu0 %v618
    %2733 = vmatpush.msra.mxu0 %v614
    %2734 = vmatpush.msra.mxu0 %v610
    %2735 = vmatpush.msra.mxu0 %v606
    %2736 = vmatpush.msra.mxu0 %v602
    %2737 = vmatmul.f32.gmra.mxu0 %v2433
    %v2738 = vpop.f32.mrf.mxu0
    %v2739 = vadd.f32 0.0, %v2738
    %2740 = vdwg.mxu0
    %v2741 = vadd.f32 %v2657, %v2679
    %v2742 = vadd.f32 %v2658, %v2699
    %v2743 = vadd.f32 %v2659, %v2719
    %v2744 = vadd.f32 %v2660, %v2739
    %v2745 = vxor.u32 %v2741, 2147483648
    %v2746 = vmul.f32 %v2745, 1.442695
    %v2747 = vpow.pop %v2746
    %v2748 = vadd.f32 %v2747, 1.0
    %v2749 = vrcp.pop %v2748
    %v2750 = vmul.f32 %v2748, %v2749
    %v2751 = vsub.f32 1.0, %v2750
    %v2752 = vmul.f32 %v2749, %v2751
    %v2753 = vadd.f32 %v2749, %v2752
    %vm2754 = vweird.f32 %v2748
    %vm2755 = vweird.f32 %v2749
    %vm2756 = vmor %vm2754, %vm2755
    %v2757 = vsel %vm2756, %v2749, %v2753
    %v2758 = vand.u32 2147483647, %v2748
    %vm2759 = vcmp.eq.f32.partialorder %v2758, 8.507059e+37
    %v2760 = vand.u32 %v2748, 2147483648
    %v2761 = vor.u32 1.1754944e-38, %v2760
    %v2762 = vsel %vm2759, %v2761, %v2757
    %v2763 = vmul.f32 1.0, %v2762
    %v2764 = vxor.u32 %v2742, 2147483648
    %v2765 = vmul.f32 %v2764, 1.442695
    %v2766 = vpow.pop %v2765
    %v2767 = vadd.f32 %v2766, 1.0
    %v2768 = vrcp.pop %v2767
    %v2769 = vmul.f32 %v2767, %v2768
    %v2770 = vsub.f32 1.0, %v2769
    %v2771 = vmul.f32 %v2768, %v2770
    %v2772 = vadd.f32 %v2768, %v2771
    %vm2773 = vweird.f32 %v2767
    %vm2774 = vweird.f32 %v2768
    %vm2775 = vmor %vm2773, %vm2774
    %v2776 = vsel %vm2775, %v2768, %v2772
    %v2777 = vand.u32 2147483647, %v2767
    %vm2778 = vcmp.eq.f32.partialorder %v2777, 8.507059e+37
    %v2779 = vand.u32 %v2767, 2147483648
    %v2780 = vor.u32 1.1754944e-38, %v2779
    %v2781 = vsel %vm2778, %v2780, %v2776
    %v2782 = vmul.f32 1.0, %v2781
    %v2783 = vtanh.pop %v2743
    %v2784 = vxor.u32 %v2744, 2147483648
    %v2785 = vmul.f32 %v2784, 1.442695
    %v2786 = vpow.pop %v2785
    %v2787 = vadd.f32 %v2786, 1.0
    %v2788 = vrcp.pop %v2787
    %v2789 = vmul.f32 %v2787, %v2788
    %v2790 = vsub.f32 1.0, %v2789
    %v2791 = vmul.f32 %v2788, %v2790
    %v2792 = vadd.f32 %v2788, %v2791
    %vm2793 = vweird.f32 %v2787
    %vm2794 = vweird.f32 %v2788
    %vm2795 = vmor %vm2793, %vm2794
    %v2796 = vsel %vm2795, %v2788, %v2792
    %v2797 = vand.u32 2147483647, %v2787
    %vm2798 = vcmp.eq.f32.partialorder %v2797, 8.507059e+37
    %v2799 = vand.u32 %v2787, 2147483648
    %v2800 = vor.u32 1.1754944e-38, %v2799
    %v2801 = vsel %vm2798, %v2800, %v2796
    %v2802 = vmul.f32 1.0, %v2801
    %v2803 = vmul.f32 %v2782, %v2431
    %v2804 = vmul.f32 %v2763, %v2783
    %v2805 = vadd.f32 %v2803, %v2804
    %v2806 = vtanh.pop %v2805
    %v2807 = vmul.f32 %v2802, %v2806
    %2808 = vmatpush.msra.mxu0 %v870
    %2809 = vmatpush.msra.mxu0 %v866
    %2810 = vmatpush.msra.mxu0 %v862
    %2811 = vmatpush.msra.mxu0 %v858
    %2812 = vmatpush.msra.mxu0 %v854
    %2813 = vmatpush.msra.mxu0 %v850
    %2814 = vmatpush.msra.mxu0 %v846
    %2815 = vmatpush.msra.mxu0 %v842
    %2816 = vmatpush.msra.mxu0 %v838
    %2817 = vmatpush.msra.mxu0 %v834
    %2818 = vmatpush.msra.mxu0 %v830
    %2819 = vmatpush.msra.mxu0 %v826
    %2820 = vmatpush.msra.mxu0 %v822
    %2821 = vmatpush.msra.mxu0 %v818
    %2822 = vmatpush.msra.mxu0 %v814
    %2823 = vmatpush.msra.mxu0 %v810
    %2824 = vmatmul.f32.gmra.mxu0 %v2807
    %v2825 = vpop.f32.mrf.mxu0
    %v2826 = vadd.f32 %v565, %v2825
    %2827 = vdwg.mxu0
    %2828 = vmatpush.msra.mxu0 %v934
    %2829 = vmatpush.msra.mxu0 %v930
    %2830 = vmatpush.msra.mxu0 %v926
    %2831 = vmatpush.msra.mxu0 %v922
    %2832 = vmatpush.msra.mxu0 %v918
    %2833 = vmatpush.msra.mxu0 %v914
    %2834 = vmatpush.msra.mxu0 %v910
    %2835 = vmatpush.msra.mxu0 %v906
    %2836 = vmatpush.msra.mxu0 %v902
    %2837 = vmatpush.msra.mxu0 %v898
    %2838 = vmatpush.msra.mxu0 %v894
    %2839 = vmatpush.msra.mxu0 %v890
    %2840 = vmatpush.msra.mxu0 %v886
    %2841 = vmatpush.msra.mxu0 %v882
    %2842 = vmatpush.msra.mxu0 %v878
    %2843 = vmatpush.msra.mxu0 %v874
    %2844 = vmatmul.f32.gmra.mxu0 %v2656
    %v2845 = vpop.f32.mrf.mxu0
    %v2846 = vadd.f32 %v2826, %v2845
    %2847 = vdwg.mxu0
    %2848 = vmatpush.msra.mxu0 %v871
    %2849 = vmatpush.msra.mxu0 %v867
    %2850 = vmatpush.msra.mxu0 %v863
    %2851 = vmatpush.msra.mxu0 %v859
    %2852 = vmatpush.msra.mxu0 %v855
    %2853 = vmatpush.msra.mxu0 %v851
    %2854 = vmatpush.msra.mxu0 %v847
    %2855 = vmatpush.msra.mxu0 %v843
    %2856 = vmatpush.msra.mxu0 %v839
    %2857 = vmatpush.msra.mxu0 %v835
    %2858 = vmatpush.msra.mxu0 %v831
    %2859 = vmatpush.msra.mxu0 %v827
    %2860 = vmatpush.msra.mxu0 %v823
    %2861 = vmatpush.msra.mxu0 %v819
    %2862 = vmatpush.msra.mxu0 %v815
    %2863 = vmatpush.msra.mxu0 %v811
    %2864 = vmatmul.f32.gmra.mxu0 %v2807
    %v2865 = vpop.f32.mrf.mxu0
    %v2866 = vadd.f32 %v566, %v2865
    %2867 = vdwg.mxu0
    %2868 = vmatpush.msra.mxu0 %v935
    %2869 = vmatpush.msra.mxu0 %v931
    %2870 = vmatpush.msra.mxu0 %v927
    %2871 = vmatpush.msra.mxu0 %v923
    %2872 = vmatpush.msra.mxu0 %v919
    %2873 = vmatpush.msra.mxu0 %v915
    %2874 = vmatpush.msra.mxu0 %v911
    %2875 = vmatpush.msra.mxu0 %v907
    %2876 = vmatpush.msra.mxu0 %v903
    %2877 = vmatpush.msra.mxu0 %v899
    %2878 = vmatpush.msra.mxu0 %v895
    %2879 = vmatpush.msra.mxu0 %v891
    %2880 = vmatpush.msra.mxu0 %v887
    %2881 = vmatpush.msra.mxu0 %v883
    %2882 = vmatpush.msra.mxu0 %v879
    %2883 = vmatpush.msra.mxu0 %v875
    %2884 = vmatmul.f32.gmra.mxu0 %v2656
    %v2885 = vpop.f32.mrf.mxu0
    %v2886 = vadd.f32 %v2866, %v2885
    %2887 = vdwg.mxu0
    %2888 = vmatpush.msra.mxu0 %v872
    %2889 = vmatpush.msra.mxu0 %v868
    %2890 = vmatpush.msra.mxu0 %v864
    %2891 = vmatpush.msra.mxu0 %v860
    %2892 = vmatpush.msra.mxu0 %v856
    %2893 = vmatpush.msra.mxu0 %v852
    %2894 = vmatpush.msra.mxu0 %v848
    %2895 = vmatpush.msra.mxu0 %v844
    %2896 = vmatpush.msra.mxu0 %v840
    %2897 = vmatpush.msra.mxu0 %v836
    %2898 = vmatpush.msra.mxu0 %v832
    %2899 = vmatpush.msra.mxu0 %v828
    %2900 = vmatpush.msra.mxu0 %v824
    %2901 = vmatpush.msra.mxu0 %v820
    %2902 = vmatpush.msra.mxu0 %v816
    %2903 = vmatpush.msra.mxu0 %v812
    %2904 = vmatmul.f32.gmra.mxu0 %v2807
    %v2905 = vpop.f32.mrf.mxu0
    %v2906 = vadd.f32 %v567, %v2905
    %2907 = vdwg.mxu0
    %2908 = vmatpush.msra.mxu0 %v936
    %2909 = vmatpush.msra.mxu0 %v932
    %2910 = vmatpush.msra.mxu0 %v928
    %2911 = vmatpush.msra.mxu0 %v924
    %2912 = vmatpush.msra.mxu0 %v920
    %2913 = vmatpush.msra.mxu0 %v916
    %2914 = vmatpush.msra.mxu0 %v912
    %2915 = vmatpush.msra.mxu0 %v908
    %2916 = vmatpush.msra.mxu0 %v904
    %2917 = vmatpush.msra.mxu0 %v900
    %2918 = vmatpush.msra.mxu0 %v896
    %2919 = vmatpush.msra.mxu0 %v892
    %2920 = vmatpush.msra.mxu0 %v888
    %2921 = vmatpush.msra.mxu0 %v884
    %2922 = vmatpush.msra.mxu0 %v880
    %2923 = vmatpush.msra.mxu0 %v876
    %2924 = vmatmul.f32.gmra.mxu0 %v2656
    %v2925 = vpop.f32.mrf.mxu0
    %v2926 = vadd.f32 %v2906, %v2925
    %2927 = vdwg.mxu0
    %2928 = vmatpush.msra.mxu0 %v873
    %2929 = vmatpush.msra.mxu0 %v869
    %2930 = vmatpush.msra.mxu0 %v865
    %2931 = vmatpush.msra.mxu0 %v861
    %2932 = vmatpush.msra.mxu0 %v857
    %2933 = vmatpush.msra.mxu0 %v853
    %2934 = vmatpush.msra.mxu0 %v849
    %2935 = vmatpush.msra.mxu0 %v845
    %2936 = vmatpush.msra.mxu0 %v841
    %2937 = vmatpush.msra.mxu0 %v837
    %2938 = vmatpush.msra.mxu0 %v833
    %2939 = vmatpush.msra.mxu0 %v829
    %2940 = vmatpush.msra.mxu0 %v825
    %2941 = vmatpush.msra.mxu0 %v821
    %2942 = vmatpush.msra.mxu0 %v817
    %2943 = vmatpush.msra.mxu0 %v813
    %2944 = vmatmul.f32.gmra.mxu0 %v2807
    %v2945 = vpop.f32.mrf.mxu0
    %v2946 = vadd.f32 %v568, %v2945
    %2947 = vdwg.mxu0
    %2948 = vmatpush.msra.mxu0 %v937
    %2949 = vmatpush.msra.mxu0 %v933
    %2950 = vmatpush.msra.mxu0 %v929
    %2951 = vmatpush.msra.mxu0 %v925
    %2952 = vmatpush.msra.mxu0 %v921
    %2953 = vmatpush.msra.mxu0 %v917
    %2954 = vmatpush.msra.mxu0 %v913
    %2955 = vmatpush.msra.mxu0 %v909
    %2956 = vmatpush.msra.mxu0 %v905
    %2957 = vmatpush.msra.mxu0 %v901
    %2958 = vmatpush.msra.mxu0 %v897
    %2959 = vmatpush.msra.mxu0 %v893
    %2960 = vmatpush.msra.mxu0 %v889
    %2961 = vmatpush.msra.mxu0 %v885
    %2962 = vmatpush.msra.mxu0 %v881
    %2963 = vmatpush.msra.mxu0 %v877
    %2964 = vmatmul.f32.gmra.mxu0 %v2656
    %v2965 = vpop.f32.mrf.mxu0
    %v2966 = vadd.f32 %v2946, %v2965
    %2967 = vdwg.mxu0
    %v2968 = vxor.u32 %v2846, 2147483648
    %v2969 = vmul.f32 %v2968, 1.442695
    %v2970 = vpow.pop %v2969
    %v2971 = vadd.f32 %v2970, 1.0
    %v2972 = vrcp.pop %v2971
    %v2973 = vmul.f32 %v2971, %v2972
    %v2974 = vsub.f32 1.0, %v2973
    %v2975 = vmul.f32 %v2972, %v2974
    %v2976 = vadd.f32 %v2972, %v2975
    %vm2977 = vweird.f32 %v2971
    %vm2978 = vweird.f32 %v2972
    %vm2979 = vmor %vm2977, %vm2978
    %v2980 = vsel %vm2979, %v2972, %v2976
    %v2981 = vand.u32 2147483647, %v2971
    %vm2982 = vcmp.eq.f32.partialorder %v2981, 8.507059e+37
    %v2983 = vand.u32 %v2971, 2147483648
    %v2984 = vor.u32 1.1754944e-38, %v2983
    %v2985 = vsel %vm2982, %v2984, %v2980
    %v2986 = vmul.f32 1.0, %v2985
    %v2987 = vxor.u32 %v2886, 2147483648
    %v2988 = vmul.f32 %v2987, 1.442695
    %v2989 = vpow.pop %v2988
    %v2990 = vadd.f32 %v2989, 1.0
    %v2991 = vrcp.pop %v2990
    %v2992 = vmul.f32 %v2990, %v2991
    %v2993 = vsub.f32 1.0, %v2992
    %v2994 = vmul.f32 %v2991, %v2993
    %v2995 = vadd.f32 %v2991, %v2994
    %vm2996 = vweird.f32 %v2990
    %vm2997 = vweird.f32 %v2991
    %vm2998 = vmor %vm2996, %vm2997
    %v2999 = vsel %vm2998, %v2991, %v2995
    %v3000 = vand.u32 2147483647, %v2990
    %vm3001 = vcmp.eq.f32.partialorder %v3000, 8.507059e+37
    %v3002 = vand.u32 %v2990, 2147483648
    %v3003 = vor.u32 1.1754944e-38, %v3002
    %v3004 = vsel %vm3001, %v3003, %v2999
    %v3005 = vmul.f32 1.0, %v3004
    %v3006 = vtanh.pop %v2926
    %v3007 = vxor.u32 %v2966, 2147483648
    %v3008 = vmul.f32 %v3007, 1.442695
    %v3009 = vpow.pop %v3008
    %v3010 = vadd.f32 %v3009, 1.0
    %v3011 = vrcp.pop %v3010
    %v3012 = vmul.f32 %v3010, %v3011
    %v3013 = vsub.f32 1.0, %v3012
    %v3014 = vmul.f32 %v3011, %v3013
    %v3015 = vadd.f32 %v3011, %v3014
    %vm3016 = vweird.f32 %v3010
    %vm3017 = vweird.f32 %v3011
    %vm3018 = vmor %vm3016, %vm3017
    %v3019 = vsel %vm3018, %v3011, %v3015
    %v3020 = vand.u32 2147483647, %v3010
    %vm3021 = vcmp.eq.f32.partialorder %v3020, 8.507059e+37
    %v3022 = vand.u32 %v3010, 2147483648
    %v3023 = vor.u32 1.1754944e-38, %v3022
    %v3024 = vsel %vm3021, %v3023, %v3019
    %v3025 = vmul.f32 1.0, %v3024
    %v3026 = vmul.f32 %v3005, %v2654
    %v3027 = vmul.f32 %v2986, %v3006
    %v3028 = vadd.f32 %v3026, %v3027
    %v3029 = vtanh.pop %v3028
    %v3030 = vmul.f32 %v3025, %v3029
    %v3031 = vld [vmem:[#allocation2 + $0xc0] sm:$0xff]
    %v3032 = vld [vmem:[#allocation2 + $0xc8] sm:$0xff]
    %v3033 = vld [vmem:[#allocation2 + $0xd0] sm:$0xff]
    %v3034 = vld [vmem:[#allocation2 + $0xd8] sm:$0xff]
    %3035 = vmatpush.msra.mxu0 %v659
    %3036 = vmatpush.msra.mxu0 %v655
    %3037 = vmatpush.msra.mxu0 %v651
    %3038 = vmatpush.msra.mxu0 %v647
    %3039 = vmatpush.msra.mxu0 %v643
    %3040 = vmatpush.msra.mxu0 %v639
    %3041 = vmatpush.msra.mxu0 %v635
    %3042 = vmatpush.msra.mxu0 %v631
    %3043 = vmatpush.msra.mxu0 %v627
    %3044 = vmatpush.msra.mxu0 %v623
    %3045 = vmatpush.msra.mxu0 %v619
    %3046 = vmatpush.msra.mxu0 %v615
    %3047 = vmatpush.msra.mxu0 %v611
    %3048 = vmatpush.msra.mxu0 %v607
    %3049 = vmatpush.msra.mxu0 %v603
    %3050 = vmatpush.msra.mxu0 %v599
    %3051 = vmatmul.f32.gmra.mxu0 %v2807
    %v3052 = vpop.f32.mrf.mxu0
    %v3053 = vadd.f32 0.0, %v3052
    %3054 = vdwg.mxu0
    %3055 = vmatpush.msra.mxu0 %v660
    %3056 = vmatpush.msra.mxu0 %v656
    %3057 = vmatpush.msra.mxu0 %v652
    %3058 = vmatpush.msra.mxu0 %v648
    %3059 = vmatpush.msra.mxu0 %v644
    %3060 = vmatpush.msra.mxu0 %v640
    %3061 = vmatpush.msra.mxu0 %v636
    %3062 = vmatpush.msra.mxu0 %v632
    %3063 = vmatpush.msra.mxu0 %v628
    %3064 = vmatpush.msra.mxu0 %v624
    %3065 = vmatpush.msra.mxu0 %v620
    %3066 = vmatpush.msra.mxu0 %v616
    %3067 = vmatpush.msra.mxu0 %v612
    %3068 = vmatpush.msra.mxu0 %v608
    %3069 = vmatpush.msra.mxu0 %v604
    %3070 = vmatpush.msra.mxu0 %v600
    %3071 = vmatmul.f32.gmra.mxu0 %v2807
    %v3072 = vpop.f32.mrf.mxu0
    %v3073 = vadd.f32 0.0, %v3072
    %3074 = vdwg.mxu0
    %3075 = vmatpush.msra.mxu0 %v661
    %3076 = vmatpush.msra.mxu0 %v657
    %3077 = vmatpush.msra.mxu0 %v653
    %3078 = vmatpush.msra.mxu0 %v649
    %3079 = vmatpush.msra.mxu0 %v645
    %3080 = vmatpush.msra.mxu0 %v641
    %3081 = vmatpush.msra.mxu0 %v637
    %3082 = vmatpush.msra.mxu0 %v633
    %3083 = vmatpush.msra.mxu0 %v629
    %3084 = vmatpush.msra.mxu0 %v625
    %3085 = vmatpush.msra.mxu0 %v621
    %3086 = vmatpush.msra.mxu0 %v617
    %3087 = vmatpush.msra.mxu0 %v613
    %3088 = vmatpush.msra.mxu0 %v609
    %3089 = vmatpush.msra.mxu0 %v605
    %3090 = vmatpush.msra.mxu0 %v601
    %3091 = vmatmul.f32.gmra.mxu0 %v2807
    %v3092 = vpop.f32.mrf.mxu0
    %v3093 = vadd.f32 0.0, %v3092
    %3094 = vdwg.mxu0
    %3095 = vmatpush.msra.mxu0 %v662
    %3096 = vmatpush.msra.mxu0 %v658
    %3097 = vmatpush.msra.mxu0 %v654
    %3098 = vmatpush.msra.mxu0 %v650
    %3099 = vmatpush.msra.mxu0 %v646
    %3100 = vmatpush.msra.mxu0 %v642
    %3101 = vmatpush.msra.mxu0 %v638
    %3102 = vmatpush.msra.mxu0 %v634
    %3103 = vmatpush.msra.mxu0 %v630
    %3104 = vmatpush.msra.mxu0 %v626
    %3105 = vmatpush.msra.mxu0 %v622
    %3106 = vmatpush.msra.mxu0 %v618
    %3107 = vmatpush.msra.mxu0 %v614
    %3108 = vmatpush.msra.mxu0 %v610
    %3109 = vmatpush.msra.mxu0 %v606
    %3110 = vmatpush.msra.mxu0 %v602
    %3111 = vmatmul.f32.gmra.mxu0 %v2807
    %v3112 = vpop.f32.mrf.mxu0
    %v3113 = vadd.f32 0.0, %v3112
    %3114 = vdwg.mxu0
    %v3115 = vadd.f32 %v3031, %v3053
    %v3116 = vadd.f32 %v3032, %v3073
    %v3117 = vadd.f32 %v3033, %v3093
    %v3118 = vadd.f32 %v3034, %v3113
    %v3119 = vxor.u32 %v3115, 2147483648
    %v3120 = vmul.f32 %v3119, 1.442695
    %v3121 = vpow.pop %v3120
    %v3122 = vadd.f32 %v3121, 1.0
    %v3123 = vrcp.pop %v3122
    %v3124 = vmul.f32 %v3122, %v3123
    %v3125 = vsub.f32 1.0, %v3124
    %v3126 = vmul.f32 %v3123, %v3125
    %v3127 = vadd.f32 %v3123, %v3126
    %vm3128 = vweird.f32 %v3122
    %vm3129 = vweird.f32 %v3123
    %vm3130 = vmor %vm3128, %vm3129
    %v3131 = vsel %vm3130, %v3123, %v3127
    %v3132 = vand.u32 2147483647, %v3122
    %vm3133 = vcmp.eq.f32.partialorder %v3132, 8.507059e+37
    %v3134 = vand.u32 %v3122, 2147483648
    %v3135 = vor.u32 1.1754944e-38, %v3134
    %v3136 = vsel %vm3133, %v3135, %v3131
    %v3137 = vmul.f32 1.0, %v3136
    %v3138 = vxor.u32 %v3116, 2147483648
    %v3139 = vmul.f32 %v3138, 1.442695
    %v3140 = vpow.pop %v3139
    %v3141 = vadd.f32 %v3140, 1.0
    %v3142 = vrcp.pop %v3141
    %v3143 = vmul.f32 %v3141, %v3142
    %v3144 = vsub.f32 1.0, %v3143
    %v3145 = vmul.f32 %v3142, %v3144
    %v3146 = vadd.f32 %v3142, %v3145
    %vm3147 = vweird.f32 %v3141
    %vm3148 = vweird.f32 %v3142
    %vm3149 = vmor %vm3147, %vm3148
    %v3150 = vsel %vm3149, %v3142, %v3146
    %v3151 = vand.u32 2147483647, %v3141
    %vm3152 = vcmp.eq.f32.partialorder %v3151, 8.507059e+37
    %v3153 = vand.u32 %v3141, 2147483648
    %v3154 = vor.u32 1.1754944e-38, %v3153
    %v3155 = vsel %vm3152, %v3154, %v3150
    %v3156 = vmul.f32 1.0, %v3155
    %v3157 = vtanh.pop %v3117
    %v3158 = vxor.u32 %v3118, 2147483648
    %v3159 = vmul.f32 %v3158, 1.442695
    %v3160 = vpow.pop %v3159
    %v3161 = vadd.f32 %v3160, 1.0
    %v3162 = vrcp.pop %v3161
    %v3163 = vmul.f32 %v3161, %v3162
    %v3164 = vsub.f32 1.0, %v3163
    %v3165 = vmul.f32 %v3162, %v3164
    %v3166 = vadd.f32 %v3162, %v3165
    %vm3167 = vweird.f32 %v3161
    %vm3168 = vweird.f32 %v3162
    %vm3169 = vmor %vm3167, %vm3168
    %v3170 = vsel %vm3169, %v3162, %v3166
    %v3171 = vand.u32 2147483647, %v3161
    %vm3172 = vcmp.eq.f32.partialorder %v3171, 8.507059e+37
    %v3173 = vand.u32 %v3161, 2147483648
    %v3174 = vor.u32 1.1754944e-38, %v3173
    %v3175 = vsel %vm3172, %v3174, %v3170
    %v3176 = vmul.f32 1.0, %v3175
    %v3177 = vmul.f32 %v3156, %v2805
    %v3178 = vmul.f32 %v3137, %v3157
    %v3179 = vadd.f32 %v3177, %v3178
    %v3180 = vtanh.pop %v3179
    %v3181 = vmul.f32 %v3176, %v3180
    %3182 = vmatpush.msra.mxu0 %v870
    %3183 = vmatpush.msra.mxu0 %v866
    %3184 = vmatpush.msra.mxu0 %v862
    %3185 = vmatpush.msra.mxu0 %v858
    %3186 = vmatpush.msra.mxu0 %v854
    %3187 = vmatpush.msra.mxu0 %v850
    %3188 = vmatpush.msra.mxu0 %v846
    %3189 = vmatpush.msra.mxu0 %v842
    %3190 = vmatpush.msra.mxu0 %v838
    %3191 = vmatpush.msra.mxu0 %v834
    %3192 = vmatpush.msra.mxu0 %v830
    %3193 = vmatpush.msra.mxu0 %v826
    %3194 = vmatpush.msra.mxu0 %v822
    %3195 = vmatpush.msra.mxu0 %v818
    %3196 = vmatpush.msra.mxu0 %v814
    %3197 = vmatpush.msra.mxu0 %v810
    %3198 = vmatmul.f32.gmra.mxu0 %v3181
    %v3199 = vpop.f32.mrf.mxu0
    %v3200 = vadd.f32 %v565, %v3199
    %3201 = vdwg.mxu0
    %3202 = vmatpush.msra.mxu0 %v934
    %3203 = vmatpush.msra.mxu0 %v930
    %3204 = vmatpush.msra.mxu0 %v926
    %3205 = vmatpush.msra.mxu0 %v922
    %3206 = vmatpush.msra.mxu0 %v918
    %3207 = vmatpush.msra.mxu0 %v914
    %3208 = vmatpush.msra.mxu0 %v910
    %3209 = vmatpush.msra.mxu0 %v906
    %3210 = vmatpush.msra.mxu0 %v902
    %3211 = vmatpush.msra.mxu0 %v898
    %3212 = vmatpush.msra.mxu0 %v894
    %3213 = vmatpush.msra.mxu0 %v890
    %3214 = vmatpush.msra.mxu0 %v886
    %3215 = vmatpush.msra.mxu0 %v882
    %3216 = vmatpush.msra.mxu0 %v878
    %3217 = vmatpush.msra.mxu0 %v874
    %3218 = vmatmul.f32.gmra.mxu0 %v3030
    %v3219 = vpop.f32.mrf.mxu0
    %v3220 = vadd.f32 %v3200, %v3219
    %3221 = vdwg.mxu0
    %3222 = vmatpush.msra.mxu0 %v871
    %3223 = vmatpush.msra.mxu0 %v867
    %3224 = vmatpush.msra.mxu0 %v863
    %3225 = vmatpush.msra.mxu0 %v859
    %3226 = vmatpush.msra.mxu0 %v855
    %3227 = vmatpush.msra.mxu0 %v851
    %3228 = vmatpush.msra.mxu0 %v847
    %3229 = vmatpush.msra.mxu0 %v843
    %3230 = vmatpush.msra.mxu0 %v839
    %3231 = vmatpush.msra.mxu0 %v835
    %3232 = vmatpush.msra.mxu0 %v831
    %3233 = vmatpush.msra.mxu0 %v827
    %3234 = vmatpush.msra.mxu0 %v823
    %3235 = vmatpush.msra.mxu0 %v819
    %3236 = vmatpush.msra.mxu0 %v815
    %3237 = vmatpush.msra.mxu0 %v811
    %3238 = vmatmul.f32.gmra.mxu0 %v3181
    %v3239 = vpop.f32.mrf.mxu0
    %v3240 = vadd.f32 %v566, %v3239
    %3241 = vdwg.mxu0
    %3242 = vmatpush.msra.mxu0 %v935
    %3243 = vmatpush.msra.mxu0 %v931
    %3244 = vmatpush.msra.mxu0 %v927
    %3245 = vmatpush.msra.mxu0 %v923
    %3246 = vmatpush.msra.mxu0 %v919
    %3247 = vmatpush.msra.mxu0 %v915
    %3248 = vmatpush.msra.mxu0 %v911
    %3249 = vmatpush.msra.mxu0 %v907
    %3250 = vmatpush.msra.mxu0 %v903
    %3251 = vmatpush.msra.mxu0 %v899
    %3252 = vmatpush.msra.mxu0 %v895
    %3253 = vmatpush.msra.mxu0 %v891
    %3254 = vmatpush.msra.mxu0 %v887
    %3255 = vmatpush.msra.mxu0 %v883
    %3256 = vmatpush.msra.mxu0 %v879
    %3257 = vmatpush.msra.mxu0 %v875
    %3258 = vmatmul.f32.gmra.mxu0 %v3030
    %v3259 = vpop.f32.mrf.mxu0
    %v3260 = vadd.f32 %v3240, %v3259
    %3261 = vdwg.mxu0
    %3262 = vmatpush.msra.mxu0 %v872
    %3263 = vmatpush.msra.mxu0 %v868
    %3264 = vmatpush.msra.mxu0 %v864
    %3265 = vmatpush.msra.mxu0 %v860
    %3266 = vmatpush.msra.mxu0 %v856
    %3267 = vmatpush.msra.mxu0 %v852
    %3268 = vmatpush.msra.mxu0 %v848
    %3269 = vmatpush.msra.mxu0 %v844
    %3270 = vmatpush.msra.mxu0 %v840
    %3271 = vmatpush.msra.mxu0 %v836
    %3272 = vmatpush.msra.mxu0 %v832
    %3273 = vmatpush.msra.mxu0 %v828
    %3274 = vmatpush.msra.mxu0 %v824
    %3275 = vmatpush.msra.mxu0 %v820
    %3276 = vmatpush.msra.mxu0 %v816
    %3277 = vmatpush.msra.mxu0 %v812
    %3278 = vmatmul.f32.gmra.mxu0 %v3181
    %v3279 = vpop.f32.mrf.mxu0
    %v3280 = vadd.f32 %v567, %v3279
    %3281 = vdwg.mxu0
    %3282 = vmatpush.msra.mxu0 %v936
    %3283 = vmatpush.msra.mxu0 %v932
    %3284 = vmatpush.msra.mxu0 %v928
    %3285 = vmatpush.msra.mxu0 %v924
    %3286 = vmatpush.msra.mxu0 %v920
    %3287 = vmatpush.msra.mxu0 %v916
    %3288 = vmatpush.msra.mxu0 %v912
    %3289 = vmatpush.msra.mxu0 %v908
    %3290 = vmatpush.msra.mxu0 %v904
    %3291 = vmatpush.msra.mxu0 %v900
    %3292 = vmatpush.msra.mxu0 %v896
    %3293 = vmatpush.msra.mxu0 %v892
    %3294 = vmatpush.msra.mxu0 %v888
    %3295 = vmatpush.msra.mxu0 %v884
    %3296 = vmatpush.msra.mxu0 %v880
    %3297 = vmatpush.msra.mxu0 %v876
    %3298 = vmatmul.f32.gmra.mxu0 %v3030
    %v3299 = vpop.f32.mrf.mxu0
    %v3300 = vadd.f32 %v3280, %v3299
    %3301 = vdwg.mxu0
    %3302 = vmatpush.msra.mxu0 %v873
    %3303 = vmatpush.msra.mxu0 %v869
    %3304 = vmatpush.msra.mxu0 %v865
    %3305 = vmatpush.msra.mxu0 %v861
    %3306 = vmatpush.msra.mxu0 %v857
    %3307 = vmatpush.msra.mxu0 %v853
    %3308 = vmatpush.msra.mxu0 %v849
    %3309 = vmatpush.msra.mxu0 %v845
    %3310 = vmatpush.msra.mxu0 %v841
    %3311 = vmatpush.msra.mxu0 %v837
    %3312 = vmatpush.msra.mxu0 %v833
    %3313 = vmatpush.msra.mxu0 %v829
    %3314 = vmatpush.msra.mxu0 %v825
    %3315 = vmatpush.msra.mxu0 %v821
    %3316 = vmatpush.msra.mxu0 %v817
    %3317 = vmatpush.msra.mxu0 %v813
    %3318 = vmatmul.f32.gmra.mxu0 %v3181
    %v3319 = vpop.f32.mrf.mxu0
    %v3320 = vadd.f32 %v568, %v3319
    %3321 = vdwg.mxu0
    %3322 = vmatpush.msra.mxu0 %v937
    %3323 = vmatpush.msra.mxu0 %v933
    %3324 = vmatpush.msra.mxu0 %v929
    %3325 = vmatpush.msra.mxu0 %v925
    %3326 = vmatpush.msra.mxu0 %v921
    %3327 = vmatpush.msra.mxu0 %v917
    %3328 = vmatpush.msra.mxu0 %v913
    %3329 = vmatpush.msra.mxu0 %v909
    %3330 = vmatpush.msra.mxu0 %v905
    %3331 = vmatpush.msra.mxu0 %v901
    %3332 = vmatpush.msra.mxu0 %v897
    %3333 = vmatpush.msra.mxu0 %v893
    %3334 = vmatpush.msra.mxu0 %v889
    %3335 = vmatpush.msra.mxu0 %v885
    %3336 = vmatpush.msra.mxu0 %v881
    %3337 = vmatpush.msra.mxu0 %v877
    %3338 = vmatmul.f32.gmra.mxu0 %v3030
    %v3339 = vpop.f32.mrf.mxu0
    %v3340 = vadd.f32 %v3320, %v3339
    %3341 = vdwg.mxu0
    %v3342 = vxor.u32 %v3220, 2147483648
    %v3343 = vmul.f32 %v3342, 1.442695
    %v3344 = vpow.pop %v3343
    %v3345 = vadd.f32 %v3344, 1.0
    %v3346 = vrcp.pop %v3345
    %v3347 = vmul.f32 %v3345, %v3346
    %v3348 = vsub.f32 1.0, %v3347
    %v3349 = vmul.f32 %v3346, %v3348
    %v3350 = vadd.f32 %v3346, %v3349
    %vm3351 = vweird.f32 %v3345
    %vm3352 = vweird.f32 %v3346
    %vm3353 = vmor %vm3351, %vm3352
    %v3354 = vsel %vm3353, %v3346, %v3350
    %v3355 = vand.u32 2147483647, %v3345
    %vm3356 = vcmp.eq.f32.partialorder %v3355, 8.507059e+37
    %v3357 = vand.u32 %v3345, 2147483648
    %v3358 = vor.u32 1.1754944e-38, %v3357
    %v3359 = vsel %vm3356, %v3358, %v3354
    %v3360 = vmul.f32 1.0, %v3359
    %v3361 = vxor.u32 %v3260, 2147483648
    %v3362 = vmul.f32 %v3361, 1.442695
    %v3363 = vpow.pop %v3362
    %v3364 = vadd.f32 %v3363, 1.0
    %v3365 = vrcp.pop %v3364
    %v3366 = vmul.f32 %v3364, %v3365
    %v3367 = vsub.f32 1.0, %v3366
    %v3368 = vmul.f32 %v3365, %v3367
    %v3369 = vadd.f32 %v3365, %v3368
    %vm3370 = vweird.f32 %v3364
    %vm3371 = vweird.f32 %v3365
    %vm3372 = vmor %vm3370, %vm3371
    %v3373 = vsel %vm3372, %v3365, %v3369
    %v3374 = vand.u32 2147483647, %v3364
    %vm3375 = vcmp.eq.f32.partialorder %v3374, 8.507059e+37
    %v3376 = vand.u32 %v3364, 2147483648
    %v3377 = vor.u32 1.1754944e-38, %v3376
    %v3378 = vsel %vm3375, %v3377, %v3373
    %v3379 = vmul.f32 1.0, %v3378
    %v3380 = vtanh.pop %v3300
    %v3381 = vxor.u32 %v3340, 2147483648
    %v3382 = vmul.f32 %v3381, 1.442695
    %v3383 = vpow.pop %v3382
    %v3384 = vadd.f32 %v3383, 1.0
    %v3385 = vrcp.pop %v3384
    %v3386 = vmul.f32 %v3384, %v3385
    %v3387 = vsub.f32 1.0, %v3386
    %v3388 = vmul.f32 %v3385, %v3387
    %v3389 = vadd.f32 %v3385, %v3388
    %vm3390 = vweird.f32 %v3384
    %vm3391 = vweird.f32 %v3385
    %vm3392 = vmor %vm3390, %vm3391
    %v3393 = vsel %vm3392, %v3385, %v3389
    %v3394 = vand.u32 2147483647, %v3384
    %vm3395 = vcmp.eq.f32.partialorder %v3394, 8.507059e+37
    %v3396 = vand.u32 %v3384, 2147483648
    %v3397 = vor.u32 1.1754944e-38, %v3396
    %v3398 = vsel %vm3395, %v3397, %v3393
    %v3399 = vmul.f32 1.0, %v3398
    %v3400 = vmul.f32 %v3379, %v3028
    %v3401 = vmul.f32 %v3360, %v3380
    %v3402 = vadd.f32 %v3400, %v3401
    %v3403 = vtanh.pop %v3402
    %v3404 = vmul.f32 %v3399, %v3403
    %v3405 = vld [vmem:[#allocation2 + $0xe0] sm:$0xff]
    %v3406 = vld [vmem:[#allocation2 + $0xe8] sm:$0xff]
    %v3407 = vld [vmem:[#allocation2 + $0xf0] sm:$0xff]
    %v3408 = vld [vmem:[#allocation2 + $0xf8] sm:$0xff]
    %3409 = vmatpush.msra.mxu0 %v659
    %3410 = vmatpush.msra.mxu0 %v655
    %3411 = vmatpush.msra.mxu0 %v651
    %3412 = vmatpush.msra.mxu0 %v647
    %3413 = vmatpush.msra.mxu0 %v643
    %3414 = vmatpush.msra.mxu0 %v639
    %3415 = vmatpush.msra.mxu0 %v635
    %3416 = vmatpush.msra.mxu0 %v631
    %3417 = vmatpush.msra.mxu0 %v627
    %3418 = vmatpush.msra.mxu0 %v623
    %3419 = vmatpush.msra.mxu0 %v619
    %3420 = vmatpush.msra.mxu0 %v615
    %3421 = vmatpush.msra.mxu0 %v611
    %3422 = vmatpush.msra.mxu0 %v607
    %3423 = vmatpush.msra.mxu0 %v603
    %3424 = vmatpush.msra.mxu0 %v599
    %3425 = vmatmul.f32.gmra.mxu0 %v3181
    %v3426 = vpop.f32.mrf.mxu0
    %v3427 = vadd.f32 0.0, %v3426
    %3428 = vdwg.mxu0
    %3429 = vmatpush.msra.mxu0 %v660
    %3430 = vmatpush.msra.mxu0 %v656
    %3431 = vmatpush.msra.mxu0 %v652
    %3432 = vmatpush.msra.mxu0 %v648
    %3433 = vmatpush.msra.mxu0 %v644
    %3434 = vmatpush.msra.mxu0 %v640
    %3435 = vmatpush.msra.mxu0 %v636
    %3436 = vmatpush.msra.mxu0 %v632
    %3437 = vmatpush.msra.mxu0 %v628
    %3438 = vmatpush.msra.mxu0 %v624
    %3439 = vmatpush.msra.mxu0 %v620
    %3440 = vmatpush.msra.mxu0 %v616
    %3441 = vmatpush.msra.mxu0 %v612
    %3442 = vmatpush.msra.mxu0 %v608
    %3443 = vmatpush.msra.mxu0 %v604
    %3444 = vmatpush.msra.mxu0 %v600
    %3445 = vmatmul.f32.gmra.mxu0 %v3181
    %v3446 = vpop.f32.mrf.mxu0
    %v3447 = vadd.f32 0.0, %v3446
    %3448 = vdwg.mxu0
    %3449 = vmatpush.msra.mxu0 %v661
    %3450 = vmatpush.msra.mxu0 %v657
    %3451 = vmatpush.msra.mxu0 %v653
    %3452 = vmatpush.msra.mxu0 %v649
    %3453 = vmatpush.msra.mxu0 %v645
    %3454 = vmatpush.msra.mxu0 %v641
    %3455 = vmatpush.msra.mxu0 %v637
    %3456 = vmatpush.msra.mxu0 %v633
    %3457 = vmatpush.msra.mxu0 %v629
    %3458 = vmatpush.msra.mxu0 %v625
    %3459 = vmatpush.msra.mxu0 %v621
    %3460 = vmatpush.msra.mxu0 %v617
    %3461 = vmatpush.msra.mxu0 %v613
    %3462 = vmatpush.msra.mxu0 %v609
    %3463 = vmatpush.msra.mxu0 %v605
    %3464 = vmatpush.msra.mxu0 %v601
    %3465 = vmatmul.f32.gmra.mxu0 %v3181
    %v3466 = vpop.f32.mrf.mxu0
    %v3467 = vadd.f32 0.0, %v3466
    %3468 = vdwg.mxu0
    %3469 = vmatpush.msra.mxu0 %v662
    %3470 = vmatpush.msra.mxu0 %v658
    %3471 = vmatpush.msra.mxu0 %v654
    %3472 = vmatpush.msra.mxu0 %v650
    %3473 = vmatpush.msra.mxu0 %v646
    %3474 = vmatpush.msra.mxu0 %v642
    %3475 = vmatpush.msra.mxu0 %v638
    %3476 = vmatpush.msra.mxu0 %v634
    %3477 = vmatpush.msra.mxu0 %v630
    %3478 = vmatpush.msra.mxu0 %v626
    %3479 = vmatpush.msra.mxu0 %v622
    %3480 = vmatpush.msra.mxu0 %v618
    %3481 = vmatpush.msra.mxu0 %v614
    %3482 = vmatpush.msra.mxu0 %v610
    %3483 = vmatpush.msra.mxu0 %v606
    %3484 = vmatpush.msra.mxu0 %v602
    %3485 = vmatmul.f32.gmra.mxu0 %v3181
    %v3486 = vpop.f32.mrf.mxu0
    %v3487 = vadd.f32 0.0, %v3486
    %3488 = vdwg.mxu0
    %v3489 = vadd.f32 %v3405, %v3427
    %v3490 = vadd.f32 %v3406, %v3447
    %v3491 = vadd.f32 %v3407, %v3467
    %v3492 = vadd.f32 %v3408, %v3487
    %v3493 = vxor.u32 %v3489, 2147483648
    %v3494 = vmul.f32 %v3493, 1.442695
    %v3495 = vpow.pop %v3494
    %v3496 = vadd.f32 %v3495, 1.0
    %v3497 = vrcp.pop %v3496
    %v3498 = vmul.f32 %v3496, %v3497
    %v3499 = vsub.f32 1.0, %v3498
    %v3500 = vmul.f32 %v3497, %v3499
    %v3501 = vadd.f32 %v3497, %v3500
    %vm3502 = vweird.f32 %v3496
    %vm3503 = vweird.f32 %v3497
    %vm3504 = vmor %vm3502, %vm3503
    %v3505 = vsel %vm3504, %v3497, %v3501
    %v3506 = vand.u32 2147483647, %v3496
    %vm3507 = vcmp.eq.f32.partialorder %v3506, 8.507059e+37
    %v3508 = vand.u32 %v3496, 2147483648
    %v3509 = vor.u32 1.1754944e-38, %v3508
    %v3510 = vsel %vm3507, %v3509, %v3505
    %v3511 = vmul.f32 1.0, %v3510
    %v3512 = vxor.u32 %v3490, 2147483648
    %v3513 = vmul.f32 %v3512, 1.442695
    %v3514 = vpow.pop %v3513
    %v3515 = vadd.f32 %v3514, 1.0
    %v3516 = vrcp.pop %v3515
    %v3517 = vmul.f32 %v3515, %v3516
    %v3518 = vsub.f32 1.0, %v3517
    %v3519 = vmul.f32 %v3516, %v3518
    %v3520 = vadd.f32 %v3516, %v3519
    %vm3521 = vweird.f32 %v3515
    %vm3522 = vweird.f32 %v3516
    %vm3523 = vmor %vm3521, %vm3522
    %v3524 = vsel %vm3523, %v3516, %v3520
    %v3525 = vand.u32 2147483647, %v3515
    %vm3526 = vcmp.eq.f32.partialorder %v3525, 8.507059e+37
    %v3527 = vand.u32 %v3515, 2147483648
    %v3528 = vor.u32 1.1754944e-38, %v3527
    %v3529 = vsel %vm3526, %v3528, %v3524
    %v3530 = vmul.f32 1.0, %v3529
    %v3531 = vtanh.pop %v3491
    %v3532 = vxor.u32 %v3492, 2147483648
    %v3533 = vmul.f32 %v3532, 1.442695
    %v3534 = vpow.pop %v3533
    %v3535 = vadd.f32 %v3534, 1.0
    %v3536 = vrcp.pop %v3535
    %v3537 = vmul.f32 %v3535, %v3536
    %v3538 = vsub.f32 1.0, %v3537
    %v3539 = vmul.f32 %v3536, %v3538
    %v3540 = vadd.f32 %v3536, %v3539
    %vm3541 = vweird.f32 %v3535
    %vm3542 = vweird.f32 %v3536
    %vm3543 = vmor %vm3541, %vm3542
    %v3544 = vsel %vm3543, %v3536, %v3540
    %v3545 = vand.u32 2147483647, %v3535
    %vm3546 = vcmp.eq.f32.partialorder %v3545, 8.507059e+37
    %v3547 = vand.u32 %v3535, 2147483648
    %v3548 = vor.u32 1.1754944e-38, %v3547
    %v3549 = vsel %vm3546, %v3548, %v3544
    %v3550 = vmul.f32 1.0, %v3549
    %v3551 = vmul.f32 %v3530, %v3179
    %v3552 = vmul.f32 %v3511, %v3531
    %v3553 = vadd.f32 %v3551, %v3552
    %v3554 = vtanh.pop %v3553
    %v3555 = vmul.f32 %v3550, %v3554
    %3556 = vmatpush.msra.mxu0 %v870
    %3557 = vmatpush.msra.mxu0 %v866
    %3558 = vmatpush.msra.mxu0 %v862
    %3559 = vmatpush.msra.mxu0 %v858
    %3560 = vmatpush.msra.mxu0 %v854
    %3561 = vmatpush.msra.mxu0 %v850
    %3562 = vmatpush.msra.mxu0 %v846
    %3563 = vmatpush.msra.mxu0 %v842
    %3564 = vmatpush.msra.mxu0 %v838
    %3565 = vmatpush.msra.mxu0 %v834
    %3566 = vmatpush.msra.mxu0 %v830
    %3567 = vmatpush.msra.mxu0 %v826
    %3568 = vmatpush.msra.mxu0 %v822
    %3569 = vmatpush.msra.mxu0 %v818
    %3570 = vmatpush.msra.mxu0 %v814
    %3571 = vmatpush.msra.mxu0 %v810
    %3572 = vmatmul.f32.gmra.mxu0 %v3555
    %v3573 = vpop.f32.mrf.mxu0
    %v3574 = vadd.f32 %v565, %v3573
    %3575 = vdwg.mxu0
    %3576 = vmatpush.msra.mxu0 %v934
    %3577 = vmatpush.msra.mxu0 %v930
    %3578 = vmatpush.msra.mxu0 %v926
    %3579 = vmatpush.msra.mxu0 %v922
    %3580 = vmatpush.msra.mxu0 %v918
    %3581 = vmatpush.msra.mxu0 %v914
    %3582 = vmatpush.msra.mxu0 %v910
    %3583 = vmatpush.msra.mxu0 %v906
    %3584 = vmatpush.msra.mxu0 %v902
    %3585 = vmatpush.msra.mxu0 %v898
    %3586 = vmatpush.msra.mxu0 %v894
    %3587 = vmatpush.msra.mxu0 %v890
    %3588 = vmatpush.msra.mxu0 %v886
    %3589 = vmatpush.msra.mxu0 %v882
    %3590 = vmatpush.msra.mxu0 %v878
    %3591 = vmatpush.msra.mxu0 %v874
    %3592 = vmatmul.f32.gmra.mxu0 %v3404
    %v3593 = vpop.f32.mrf.mxu0
    %v3594 = vadd.f32 %v3574, %v3593
    %3595 = vdwg.mxu0
    %3596 = vmatpush.msra.mxu0 %v871
    %3597 = vmatpush.msra.mxu0 %v867
    %3598 = vmatpush.msra.mxu0 %v863
    %3599 = vmatpush.msra.mxu0 %v859
    %3600 = vmatpush.msra.mxu0 %v855
    %3601 = vmatpush.msra.mxu0 %v851
    %3602 = vmatpush.msra.mxu0 %v847
    %3603 = vmatpush.msra.mxu0 %v843
    %3604 = vmatpush.msra.mxu0 %v839
    %3605 = vmatpush.msra.mxu0 %v835
    %3606 = vmatpush.msra.mxu0 %v831
    %3607 = vmatpush.msra.mxu0 %v827
    %3608 = vmatpush.msra.mxu0 %v823
    %3609 = vmatpush.msra.mxu0 %v819
    %3610 = vmatpush.msra.mxu0 %v815
    %3611 = vmatpush.msra.mxu0 %v811
    %3612 = vmatmul.f32.gmra.mxu0 %v3555
    %v3613 = vpop.f32.mrf.mxu0
    %v3614 = vadd.f32 %v566, %v3613
    %3615 = vdwg.mxu0
    %3616 = vmatpush.msra.mxu0 %v935
    %3617 = vmatpush.msra.mxu0 %v931
    %3618 = vmatpush.msra.mxu0 %v927
    %3619 = vmatpush.msra.mxu0 %v923
    %3620 = vmatpush.msra.mxu0 %v919
    %3621 = vmatpush.msra.mxu0 %v915
    %3622 = vmatpush.msra.mxu0 %v911
    %3623 = vmatpush.msra.mxu0 %v907
    %3624 = vmatpush.msra.mxu0 %v903
    %3625 = vmatpush.msra.mxu0 %v899
    %3626 = vmatpush.msra.mxu0 %v895
    %3627 = vmatpush.msra.mxu0 %v891
    %3628 = vmatpush.msra.mxu0 %v887
    %3629 = vmatpush.msra.mxu0 %v883
    %3630 = vmatpush.msra.mxu0 %v879
    %3631 = vmatpush.msra.mxu0 %v875
    %3632 = vmatmul.f32.gmra.mxu0 %v3404
    %v3633 = vpop.f32.mrf.mxu0
    %v3634 = vadd.f32 %v3614, %v3633
    %3635 = vdwg.mxu0
    %3636 = vmatpush.msra.mxu0 %v872
    %3637 = vmatpush.msra.mxu0 %v868
    %3638 = vmatpush.msra.mxu0 %v864
    %3639 = vmatpush.msra.mxu0 %v860
    %3640 = vmatpush.msra.mxu0 %v856
    %3641 = vmatpush.msra.mxu0 %v852
    %3642 = vmatpush.msra.mxu0 %v848
    %3643 = vmatpush.msra.mxu0 %v844
    %3644 = vmatpush.msra.mxu0 %v840
    %3645 = vmatpush.msra.mxu0 %v836
    %3646 = vmatpush.msra.mxu0 %v832
    %3647 = vmatpush.msra.mxu0 %v828
    %3648 = vmatpush.msra.mxu0 %v824
    %3649 = vmatpush.msra.mxu0 %v820
    %3650 = vmatpush.msra.mxu0 %v816
    %3651 = vmatpush.msra.mxu0 %v812
    %3652 = vmatmul.f32.gmra.mxu0 %v3555
    %v3653 = vpop.f32.mrf.mxu0
    %v3654 = vadd.f32 %v567, %v3653
    %3655 = vdwg.mxu0
    %3656 = vmatpush.msra.mxu0 %v936
    %3657 = vmatpush.msra.mxu0 %v932
    %3658 = vmatpush.msra.mxu0 %v928
    %3659 = vmatpush.msra.mxu0 %v924
    %3660 = vmatpush.msra.mxu0 %v920
    %3661 = vmatpush.msra.mxu0 %v916
    %3662 = vmatpush.msra.mxu0 %v912
    %3663 = vmatpush.msra.mxu0 %v908
    %3664 = vmatpush.msra.mxu0 %v904
    %3665 = vmatpush.msra.mxu0 %v900
    %3666 = vmatpush.msra.mxu0 %v896
    %3667 = vmatpush.msra.mxu0 %v892
    %3668 = vmatpush.msra.mxu0 %v888
    %3669 = vmatpush.msra.mxu0 %v884
    %3670 = vmatpush.msra.mxu0 %v880
    %3671 = vmatpush.msra.mxu0 %v876
    %3672 = vmatmul.f32.gmra.mxu0 %v3404
    %v3673 = vpop.f32.mrf.mxu0
    %v3674 = vadd.f32 %v3654, %v3673
    %3675 = vdwg.mxu0
    %3676 = vmatpush.msra.mxu0 %v873
    %3677 = vmatpush.msra.mxu0 %v869
    %3678 = vmatpush.msra.mxu0 %v865
    %3679 = vmatpush.msra.mxu0 %v861
    %3680 = vmatpush.msra.mxu0 %v857
    %3681 = vmatpush.msra.mxu0 %v853
    %3682 = vmatpush.msra.mxu0 %v849
    %3683 = vmatpush.msra.mxu0 %v845
    %3684 = vmatpush.msra.mxu0 %v841
    %3685 = vmatpush.msra.mxu0 %v837
    %3686 = vmatpush.msra.mxu0 %v833
    %3687 = vmatpush.msra.mxu0 %v829
    %3688 = vmatpush.msra.mxu0 %v825
    %3689 = vmatpush.msra.mxu0 %v821
    %3690 = vmatpush.msra.mxu0 %v817
    %3691 = vmatpush.msra.mxu0 %v813
    %3692 = vmatmul.f32.gmra.mxu0 %v3555
    %v3693 = vpop.f32.mrf.mxu0
    %v3694 = vadd.f32 %v568, %v3693
    %3695 = vdwg.mxu0
    %3696 = vmatpush.msra.mxu0 %v937
    %3697 = vmatpush.msra.mxu0 %v933
    %3698 = vmatpush.msra.mxu0 %v929
    %3699 = vmatpush.msra.mxu0 %v925
    %3700 = vmatpush.msra.mxu0 %v921
    %3701 = vmatpush.msra.mxu0 %v917
    %3702 = vmatpush.msra.mxu0 %v913
    %3703 = vmatpush.msra.mxu0 %v909
    %3704 = vmatpush.msra.mxu0 %v905
    %3705 = vmatpush.msra.mxu0 %v901
    %3706 = vmatpush.msra.mxu0 %v897
    %3707 = vmatpush.msra.mxu0 %v893
    %3708 = vmatpush.msra.mxu0 %v889
    %3709 = vmatpush.msra.mxu0 %v885
    %3710 = vmatpush.msra.mxu0 %v881
    %3711 = vmatpush.msra.mxu0 %v877
    %3712 = vmatmul.f32.gmra.mxu0 %v3404
    %v3713 = vpop.f32.mrf.mxu0
    %v3714 = vadd.f32 %v3694, %v3713
    %3715 = vdwg.mxu0
    %v3716 = vxor.u32 %v3594, 2147483648
    %v3717 = vmul.f32 %v3716, 1.442695
    %v3718 = vpow.pop %v3717
    %v3719 = vadd.f32 %v3718, 1.0
    %v3720 = vrcp.pop %v3719
    %v3721 = vmul.f32 %v3719, %v3720
    %v3722 = vsub.f32 1.0, %v3721
    %v3723 = vmul.f32 %v3720, %v3722
    %v3724 = vadd.f32 %v3720, %v3723
    %vm3725 = vweird.f32 %v3719
    %vm3726 = vweird.f32 %v3720
    %vm3727 = vmor %vm3725, %vm3726
    %v3728 = vsel %vm3727, %v3720, %v3724
    %v3729 = vand.u32 2147483647, %v3719
    %vm3730 = vcmp.eq.f32.partialorder %v3729, 8.507059e+37
    %v3731 = vand.u32 %v3719, 2147483648
    %v3732 = vor.u32 1.1754944e-38, %v3731
    %v3733 = vsel %vm3730, %v3732, %v3728
    %v3734 = vmul.f32 1.0, %v3733
    %v3735 = vxor.u32 %v3634, 2147483648
    %v3736 = vmul.f32 %v3735, 1.442695
    %v3737 = vpow.pop %v3736
    %v3738 = vadd.f32 %v3737, 1.0
    %v3739 = vrcp.pop %v3738
    %v3740 = vmul.f32 %v3738, %v3739
    %v3741 = vsub.f32 1.0, %v3740
    %v3742 = vmul.f32 %v3739, %v3741
    %v3743 = vadd.f32 %v3739, %v3742
    %vm3744 = vweird.f32 %v3738
    %vm3745 = vweird.f32 %v3739
    %vm3746 = vmor %vm3744, %vm3745
    %v3747 = vsel %vm3746, %v3739, %v3743
    %v3748 = vand.u32 2147483647, %v3738
    %vm3749 = vcmp.eq.f32.partialorder %v3748, 8.507059e+37
    %v3750 = vand.u32 %v3738, 2147483648
    %v3751 = vor.u32 1.1754944e-38, %v3750
    %v3752 = vsel %vm3749, %v3751, %v3747
    %v3753 = vmul.f32 1.0, %v3752
    %v3754 = vtanh.pop %v3674
    %v3755 = vxor.u32 %v3714, 2147483648
    %v3756 = vmul.f32 %v3755, 1.442695
    %v3757 = vpow.pop %v3756
    %v3758 = vadd.f32 %v3757, 1.0
    %v3759 = vrcp.pop %v3758
    %v3760 = vmul.f32 %v3758, %v3759
    %v3761 = vsub.f32 1.0, %v3760
    %v3762 = vmul.f32 %v3759, %v3761
    %v3763 = vadd.f32 %v3759, %v3762
    %vm3764 = vweird.f32 %v3758
    %vm3765 = vweird.f32 %v3759
    %vm3766 = vmor %vm3764, %vm3765
    %v3767 = vsel %vm3766, %v3759, %v3763
    %v3768 = vand.u32 2147483647, %v3758
    %vm3769 = vcmp.eq.f32.partialorder %v3768, 8.507059e+37
    %v3770 = vand.u32 %v3758, 2147483648
    %v3771 = vor.u32 1.1754944e-38, %v3770
    %v3772 = vsel %vm3769, %v3771, %v3767
    %v3773 = vmul.f32 1.0, %v3772
    %v3774 = vmul.f32 %v3753, %v3402
    %v3775 = vmul.f32 %v3734, %v3754
    %v3776 = vadd.f32 %v3774, %v3775
    %v3777 = vtanh.pop %v3776
    %v3778 = vmul.f32 %v3773, %v3777
    %v3779 = vld [vmem:[#allocation3] sm:$0xff]
    %v3780 = vld [vmem:[#allocation3 + $0x8] sm:$0xff]
    %v3781 = vld [vmem:[#allocation3 + $0x10] sm:$0xff]
    %v3782 = vld [vmem:[#allocation3 + $0x18] sm:$0xff]
    %v3783 = vld [vmem:[#allocation10] sm:$0xff]
    %v3784 = vld [vmem:[#allocation10 + $0x8] sm:$0xff]
    %v3785 = vld [vmem:[#allocation10 + $0x10] sm:$0xff]
    %v3786 = vld [vmem:[#allocation10 + $0x18] sm:$0xff]
    %v3787 = vld [vmem:[#allocation10 + $0x20] sm:$0xff]
    %v3788 = vld [vmem:[#allocation10 + $0x28] sm:$0xff]
    %v3789 = vld [vmem:[#allocation10 + $0x30] sm:$0xff]
    %v3790 = vld [vmem:[#allocation10 + $0x38] sm:$0xff]
    %v3791 = vld [vmem:[#allocation10 + $0x40] sm:$0xff]
    %v3792 = vld [vmem:[#allocation10 + $0x48] sm:$0xff]
    %v3793 = vld [vmem:[#allocation10 + $0x50] sm:$0xff]
    %v3794 = vld [vmem:[#allocation10 + $0x58] sm:$0xff]
    %v3795 = vld [vmem:[#allocation10 + $0x60] sm:$0xff]
    %v3796 = vld [vmem:[#allocation10 + $0x68] sm:$0xff]
    %v3797 = vld [vmem:[#allocation10 + $0x70] sm:$0xff]
    %v3798 = vld [vmem:[#allocation10 + $0x78] sm:$0xff]
    %v3799 = vld [vmem:[#allocation10 + $0x80] sm:$0xff]
    %v3800 = vld [vmem:[#allocation10 + $0x88] sm:$0xff]
    %v3801 = vld [vmem:[#allocation10 + $0x90] sm:$0xff]
    %v3802 = vld [vmem:[#allocation10 + $0x98] sm:$0xff]
    %v3803 = vld [vmem:[#allocation10 + $0xa0] sm:$0xff]
    %v3804 = vld [vmem:[#allocation10 + $0xa8] sm:$0xff]
    %v3805 = vld [vmem:[#allocation10 + $0xb0] sm:$0xff]
    %v3806 = vld [vmem:[#allocation10 + $0xb8] sm:$0xff]
    %v3807 = vld [vmem:[#allocation10 + $0xc0] sm:$0xff]
    %v3808 = vld [vmem:[#allocation10 + $0xc8] sm:$0xff]
    %v3809 = vld [vmem:[#allocation10 + $0xd0] sm:$0xff]
    %v3810 = vld [vmem:[#allocation10 + $0xd8] sm:$0xff]
    %v3811 = vld [vmem:[#allocation10 + $0xe0] sm:$0xff]
    %v3812 = vld [vmem:[#allocation10 + $0xe8] sm:$0xff]
    %v3813 = vld [vmem:[#allocation10 + $0xf0] sm:$0xff]
    %v3814 = vld [vmem:[#allocation10 + $0xf8] sm:$0xff]
    %v3815 = vld [vmem:[#allocation10 + $0x100] sm:$0xff]
    %v3816 = vld [vmem:[#allocation10 + $0x108] sm:$0xff]
    %v3817 = vld [vmem:[#allocation10 + $0x110] sm:$0xff]
    %v3818 = vld [vmem:[#allocation10 + $0x118] sm:$0xff]
    %v3819 = vld [vmem:[#allocation10 + $0x120] sm:$0xff]
    %v3820 = vld [vmem:[#allocation10 + $0x128] sm:$0xff]
    %v3821 = vld [vmem:[#allocation10 + $0x130] sm:$0xff]
    %v3822 = vld [vmem:[#allocation10 + $0x138] sm:$0xff]
    %v3823 = vld [vmem:[#allocation10 + $0x140] sm:$0xff]
    %v3824 = vld [vmem:[#allocation10 + $0x148] sm:$0xff]
    %v3825 = vld [vmem:[#allocation10 + $0x150] sm:$0xff]
    %v3826 = vld [vmem:[#allocation10 + $0x158] sm:$0xff]
    %v3827 = vld [vmem:[#allocation10 + $0x160] sm:$0xff]
    %v3828 = vld [vmem:[#allocation10 + $0x168] sm:$0xff]
    %v3829 = vld [vmem:[#allocation10 + $0x170] sm:$0xff]
    %v3830 = vld [vmem:[#allocation10 + $0x178] sm:$0xff]
    %v3831 = vld [vmem:[#allocation10 + $0x180] sm:$0xff]
    %v3832 = vld [vmem:[#allocation10 + $0x188] sm:$0xff]
    %v3833 = vld [vmem:[#allocation10 + $0x190] sm:$0xff]
    %v3834 = vld [vmem:[#allocation10 + $0x198] sm:$0xff]
    %v3835 = vld [vmem:[#allocation10 + $0x1a0] sm:$0xff]
    %v3836 = vld [vmem:[#allocation10 + $0x1a8] sm:$0xff]
    %v3837 = vld [vmem:[#allocation10 + $0x1b0] sm:$0xff]
    %v3838 = vld [vmem:[#allocation10 + $0x1b8] sm:$0xff]
    %v3839 = vld [vmem:[#allocation10 + $0x1c0] sm:$0xff]
    %v3840 = vld [vmem:[#allocation10 + $0x1c8] sm:$0xff]
    %v3841 = vld [vmem:[#allocation10 + $0x1d0] sm:$0xff]
    %v3842 = vld [vmem:[#allocation10 + $0x1d8] sm:$0xff]
    %v3843 = vld [vmem:[#allocation10 + $0x1e0] sm:$0xff]
    %v3844 = vld [vmem:[#allocation10 + $0x1e8] sm:$0xff]
    %v3845 = vld [vmem:[#allocation10 + $0x1f0] sm:$0xff]
    %v3846 = vld [vmem:[#allocation10 + $0x1f8] sm:$0xff]
    %3847 = vmatpush.msra.mxu0 %v3843
    %3848 = vmatpush.msra.mxu0 %v3839
    %3849 = vmatpush.msra.mxu0 %v3835
    %3850 = vmatpush.msra.mxu0 %v3831
    %3851 = vmatpush.msra.mxu0 %v3827
    %3852 = vmatpush.msra.mxu0 %v3823
    %3853 = vmatpush.msra.mxu0 %v3819
    %3854 = vmatpush.msra.mxu0 %v3815
    %3855 = vmatpush.msra.mxu0 %v3811
    %3856 = vmatpush.msra.mxu0 %v3807
    %3857 = vmatpush.msra.mxu0 %v3803
    %3858 = vmatpush.msra.mxu0 %v3799
    %3859 = vmatpush.msra.mxu0 %v3795
    %3860 = vmatpush.msra.mxu0 %v3791
    %3861 = vmatpush.msra.mxu0 %v3787
    %3862 = vmatpush.msra.mxu0 %v3783
    %3863 = vmatmul.f32.gmra.mxu0 %v3555
    %v3864 = vpop.f32.mrf.mxu0
    %v3865 = vadd.f32 0.0, %v3864
    %3866 = vdwg.mxu0
    %3867 = vmatpush.msra.mxu0 %v3844
    %3868 = vmatpush.msra.mxu0 %v3840
    %3869 = vmatpush.msra.mxu0 %v3836
    %3870 = vmatpush.msra.mxu0 %v3832
    %3871 = vmatpush.msra.mxu0 %v3828
    %3872 = vmatpush.msra.mxu0 %v3824
    %3873 = vmatpush.msra.mxu0 %v3820
    %3874 = vmatpush.msra.mxu0 %v3816
    %3875 = vmatpush.msra.mxu0 %v3812
    %3876 = vmatpush.msra.mxu0 %v3808
    %3877 = vmatpush.msra.mxu0 %v3804
    %3878 = vmatpush.msra.mxu0 %v3800
    %3879 = vmatpush.msra.mxu0 %v3796
    %3880 = vmatpush.msra.mxu0 %v3792
    %3881 = vmatpush.msra.mxu0 %v3788
    %3882 = vmatpush.msra.mxu0 %v3784
    %3883 = vmatmul.f32.gmra.mxu0 %v3555
    %v3884 = vpop.f32.mrf.mxu0
    %v3885 = vadd.f32 0.0, %v3884
    %3886 = vdwg.mxu0
    %3887 = vmatpush.msra.mxu0 %v3845
    %3888 = vmatpush.msra.mxu0 %v3841
    %3889 = vmatpush.msra.mxu0 %v3837
    %3890 = vmatpush.msra.mxu0 %v3833
    %3891 = vmatpush.msra.mxu0 %v3829
    %3892 = vmatpush.msra.mxu0 %v3825
    %3893 = vmatpush.msra.mxu0 %v3821
    %3894 = vmatpush.msra.mxu0 %v3817
    %3895 = vmatpush.msra.mxu0 %v3813
    %3896 = vmatpush.msra.mxu0 %v3809
    %3897 = vmatpush.msra.mxu0 %v3805
    %3898 = vmatpush.msra.mxu0 %v3801
    %3899 = vmatpush.msra.mxu0 %v3797
    %3900 = vmatpush.msra.mxu0 %v3793
    %3901 = vmatpush.msra.mxu0 %v3789
    %3902 = vmatpush.msra.mxu0 %v3785
    %3903 = vmatmul.f32.gmra.mxu0 %v3555
    %v3904 = vpop.f32.mrf.mxu0
    %v3905 = vadd.f32 0.0, %v3904
    %3906 = vdwg.mxu0
    %3907 = vmatpush.msra.mxu0 %v3846
    %3908 = vmatpush.msra.mxu0 %v3842
    %3909 = vmatpush.msra.mxu0 %v3838
    %3910 = vmatpush.msra.mxu0 %v3834
    %3911 = vmatpush.msra.mxu0 %v3830
    %3912 = vmatpush.msra.mxu0 %v3826
    %3913 = vmatpush.msra.mxu0 %v3822
    %3914 = vmatpush.msra.mxu0 %v3818
    %3915 = vmatpush.msra.mxu0 %v3814
    %3916 = vmatpush.msra.mxu0 %v3810
    %3917 = vmatpush.msra.mxu0 %v3806
    %3918 = vmatpush.msra.mxu0 %v3802
    %3919 = vmatpush.msra.mxu0 %v3798
    %3920 = vmatpush.msra.mxu0 %v3794
    %3921 = vmatpush.msra.mxu0 %v3790
    %3922 = vmatpush.msra.mxu0 %v3786
    %3923 = vmatmul.f32.gmra.mxu0 %v3555
    %v3924 = vpop.f32.mrf.mxu0
    %v3925 = vadd.f32 0.0, %v3924
    %3926 = vdwg.mxu0
    %v3927 = vadd.f32 %v3779, %v3865
    %v3928 = vadd.f32 %v3780, %v3885
    %v3929 = vadd.f32 %v3781, %v3905
    %v3930 = vadd.f32 %v3782, %v3925
    %v3931 = vxor.u32 %v3927, 2147483648
    %v3932 = vmul.f32 %v3931, 1.442695
    %v3933 = vpow.pop %v3932
    %v3934 = vadd.f32 %v3933, 1.0
    %v3935 = vrcp.pop %v3934
    %v3936 = vmul.f32 %v3934, %v3935
    %v3937 = vsub.f32 1.0, %v3936
    %v3938 = vmul.f32 %v3935, %v3937
    %v3939 = vadd.f32 %v3935, %v3938
    %vm3940 = vweird.f32 %v3934
    %vm3941 = vweird.f32 %v3935
    %vm3942 = vmor %vm3940, %vm3941
    %v3943 = vsel %vm3942, %v3935, %v3939
    %v3944 = vand.u32 2147483647, %v3934
    %vm3945 = vcmp.eq.f32.partialorder %v3944, 8.507059e+37
    %v3946 = vand.u32 %v3934, 2147483648
    %v3947 = vor.u32 1.1754944e-38, %v3946
    %v3948 = vsel %vm3945, %v3947, %v3943
    %v3949 = vmul.f32 1.0, %v3948
    %v3950 = vxor.u32 %v3928, 2147483648
    %v3951 = vmul.f32 %v3950, 1.442695
    %v3952 = vpow.pop %v3951
    %v3953 = vadd.f32 %v3952, 1.0
    %v3954 = vrcp.pop %v3953
    %v3955 = vmul.f32 %v3953, %v3954
    %v3956 = vsub.f32 1.0, %v3955
    %v3957 = vmul.f32 %v3954, %v3956
    %v3958 = vadd.f32 %v3954, %v3957
    %vm3959 = vweird.f32 %v3953
    %vm3960 = vweird.f32 %v3954
    %vm3961 = vmor %vm3959, %vm3960
    %v3962 = vsel %vm3961, %v3954, %v3958
    %v3963 = vand.u32 2147483647, %v3953
    %vm3964 = vcmp.eq.f32.partialorder %v3963, 8.507059e+37
    %v3965 = vand.u32 %v3953, 2147483648
    %v3966 = vor.u32 1.1754944e-38, %v3965
    %v3967 = vsel %vm3964, %v3966, %v3962
    %v3968 = vmul.f32 1.0, %v3967
    %v3969 = vtanh.pop %v3929
    %v3970 = vxor.u32 %v3930, 2147483648
    %v3971 = vmul.f32 %v3970, 1.442695
    %v3972 = vpow.pop %v3971
    %v3973 = vadd.f32 %v3972, 1.0
    %v3974 = vrcp.pop %v3973
    %v3975 = vmul.f32 %v3973, %v3974
    %v3976 = vsub.f32 1.0, %v3975
    %v3977 = vmul.f32 %v3974, %v3976
    %v3978 = vadd.f32 %v3974, %v3977
    %vm3979 = vweird.f32 %v3973
    %vm3980 = vweird.f32 %v3974
    %vm3981 = vmor %vm3979, %vm3980
    %v3982 = vsel %vm3981, %v3974, %v3978
    %v3983 = vand.u32 2147483647, %v3973
    %vm3984 = vcmp.eq.f32.partialorder %v3983, 8.507059e+37
    %v3985 = vand.u32 %v3973, 2147483648
    %v3986 = vor.u32 1.1754944e-38, %v3985
    %v3987 = vsel %vm3984, %v3986, %v3982
    %v3988 = vmul.f32 1.0, %v3987
    %v3989 = vmul.f32 %v3968, %v3553
    %v3990 = vmul.f32 %v3949, %v3969
    %v3991 = vadd.f32 %v3989, %v3990
    %v3992 = vtanh.pop %v3991
    %v3993 = vmul.f32 %v3988, %v3992
    %v3994 = vld [vmem:[#allocation11] sm:$0xff]
    %v3995 = vld [vmem:[#allocation11 + $0x8] sm:$0xff]
    %v3996 = vld [vmem:[#allocation11 + $0x10] sm:$0xff]
    %v3997 = vld [vmem:[#allocation11 + $0x18] sm:$0xff]
    %v3998 = vld [vmem:[#allocation11 + $0x20] sm:$0xff]
    %v3999 = vld [vmem:[#allocation11 + $0x28] sm:$0xff]
    %v4000 = vld [vmem:[#allocation11 + $0x30] sm:$0xff]
    %v4001 = vld [vmem:[#allocation11 + $0x38] sm:$0xff]
    %v4002 = vld [vmem:[#allocation11 + $0x40] sm:$0xff]
    %v4003 = vld [vmem:[#allocation11 + $0x48] sm:$0xff]
    %v4004 = vld [vmem:[#allocation11 + $0x50] sm:$0xff]
    %v4005 = vld [vmem:[#allocation11 + $0x58] sm:$0xff]
    %v4006 = vld [vmem:[#allocation11 + $0x60] sm:$0xff]
    %v4007 = vld [vmem:[#allocation11 + $0x68] sm:$0xff]
    %v4008 = vld [vmem:[#allocation11 + $0x70] sm:$0xff]
    %v4009 = vld [vmem:[#allocation11 + $0x78] sm:$0xff]
    %v4010 = vld [vmem:[#allocation11 + $0x80] sm:$0xff]
    %v4011 = vld [vmem:[#allocation11 + $0x88] sm:$0xff]
    %v4012 = vld [vmem:[#allocation11 + $0x90] sm:$0xff]
    %v4013 = vld [vmem:[#allocation11 + $0x98] sm:$0xff]
    %v4014 = vld [vmem:[#allocation11 + $0xa0] sm:$0xff]
    %v4015 = vld [vmem:[#allocation11 + $0xa8] sm:$0xff]
    %v4016 = vld [vmem:[#allocation11 + $0xb0] sm:$0xff]
    %v4017 = vld [vmem:[#allocation11 + $0xb8] sm:$0xff]
    %v4018 = vld [vmem:[#allocation11 + $0xc0] sm:$0xff]
    %v4019 = vld [vmem:[#allocation11 + $0xc8] sm:$0xff]
    %v4020 = vld [vmem:[#allocation11 + $0xd0] sm:$0xff]
    %v4021 = vld [vmem:[#allocation11 + $0xd8] sm:$0xff]
    %v4022 = vld [vmem:[#allocation11 + $0xe0] sm:$0xff]
    %v4023 = vld [vmem:[#allocation11 + $0xe8] sm:$0xff]
    %v4024 = vld [vmem:[#allocation11 + $0xf0] sm:$0xff]
    %v4025 = vld [vmem:[#allocation11 + $0xf8] sm:$0xff]
    %v4026 = vld [vmem:[#allocation11 + $0x100] sm:$0xff]
    %v4027 = vld [vmem:[#allocation11 + $0x108] sm:$0xff]
    %v4028 = vld [vmem:[#allocation11 + $0x110] sm:$0xff]
    %v4029 = vld [vmem:[#allocation11 + $0x118] sm:$0xff]
    %v4030 = vld [vmem:[#allocation11 + $0x120] sm:$0xff]
    %v4031 = vld [vmem:[#allocation11 + $0x128] sm:$0xff]
    %v4032 = vld [vmem:[#allocation11 + $0x130] sm:$0xff]
    %v4033 = vld [vmem:[#allocation11 + $0x138] sm:$0xff]
    %v4034 = vld [vmem:[#allocation11 + $0x140] sm:$0xff]
    %v4035 = vld [vmem:[#allocation11 + $0x148] sm:$0xff]
    %v4036 = vld [vmem:[#allocation11 + $0x150] sm:$0xff]
    %v4037 = vld [vmem:[#allocation11 + $0x158] sm:$0xff]
    %v4038 = vld [vmem:[#allocation11 + $0x160] sm:$0xff]
    %v4039 = vld [vmem:[#allocation11 + $0x168] sm:$0xff]
    %v4040 = vld [vmem:[#allocation11 + $0x170] sm:$0xff]
    %v4041 = vld [vmem:[#allocation11 + $0x178] sm:$0xff]
    %v4042 = vld [vmem:[#allocation11 + $0x180] sm:$0xff]
    %v4043 = vld [vmem:[#allocation11 + $0x188] sm:$0xff]
    %v4044 = vld [vmem:[#allocation11 + $0x190] sm:$0xff]
    %v4045 = vld [vmem:[#allocation11 + $0x198] sm:$0xff]
    %v4046 = vld [vmem:[#allocation11 + $0x1a0] sm:$0xff]
    %v4047 = vld [vmem:[#allocation11 + $0x1a8] sm:$0xff]
    %v4048 = vld [vmem:[#allocation11 + $0x1b0] sm:$0xff]
    %v4049 = vld [vmem:[#allocation11 + $0x1b8] sm:$0xff]
    %v4050 = vld [vmem:[#allocation11 + $0x1c0] sm:$0xff]
    %v4051 = vld [vmem:[#allocation11 + $0x1c8] sm:$0xff]
    %v4052 = vld [vmem:[#allocation11 + $0x1d0] sm:$0xff]
    %v4053 = vld [vmem:[#allocation11 + $0x1d8] sm:$0xff]
    %v4054 = vld [vmem:[#allocation11 + $0x1e0] sm:$0xff]
    %v4055 = vld [vmem:[#allocation11 + $0x1e8] sm:$0xff]
    %v4056 = vld [vmem:[#allocation11 + $0x1f0] sm:$0xff]
    %v4057 = vld [vmem:[#allocation11 + $0x1f8] sm:$0xff]
    %v4058 = vld [vmem:[#allocation11 + $0x200] sm:$0xff]
    %v4059 = vld [vmem:[#allocation11 + $0x208] sm:$0xff]
    %v4060 = vld [vmem:[#allocation11 + $0x210] sm:$0xff]
    %v4061 = vld [vmem:[#allocation11 + $0x218] sm:$0xff]
    %v4062 = vld [vmem:[#allocation11 + $0x220] sm:$0xff]
    %v4063 = vld [vmem:[#allocation11 + $0x228] sm:$0xff]
    %v4064 = vld [vmem:[#allocation11 + $0x230] sm:$0xff]
    %v4065 = vld [vmem:[#allocation11 + $0x238] sm:$0xff]
    %v4066 = vld [vmem:[#allocation11 + $0x240] sm:$0xff]
    %v4067 = vld [vmem:[#allocation11 + $0x248] sm:$0xff]
    %v4068 = vld [vmem:[#allocation11 + $0x250] sm:$0xff]
    %v4069 = vld [vmem:[#allocation11 + $0x258] sm:$0xff]
    %v4070 = vld [vmem:[#allocation11 + $0x260] sm:$0xff]
    %v4071 = vld [vmem:[#allocation11 + $0x268] sm:$0xff]
    %v4072 = vld [vmem:[#allocation11 + $0x270] sm:$0xff]
    %v4073 = vld [vmem:[#allocation11 + $0x278] sm:$0xff]
    %v4074 = vld [vmem:[#allocation11 + $0x280] sm:$0xff]
    %v4075 = vld [vmem:[#allocation11 + $0x288] sm:$0xff]
    %v4076 = vld [vmem:[#allocation11 + $0x290] sm:$0xff]
    %v4077 = vld [vmem:[#allocation11 + $0x298] sm:$0xff]
    %v4078 = vld [vmem:[#allocation11 + $0x2a0] sm:$0xff]
    %v4079 = vld [vmem:[#allocation11 + $0x2a8] sm:$0xff]
    %v4080 = vld [vmem:[#allocation11 + $0x2b0] sm:$0xff]
    %v4081 = vld [vmem:[#allocation11 + $0x2b8] sm:$0xff]
    %v4082 = vld [vmem:[#allocation11 + $0x2c0] sm:$0xff]
    %v4083 = vld [vmem:[#allocation11 + $0x2c8] sm:$0xff]
    %v4084 = vld [vmem:[#allocation11 + $0x2d0] sm:$0xff]
    %v4085 = vld [vmem:[#allocation11 + $0x2d8] sm:$0xff]
    %v4086 = vld [vmem:[#allocation11 + $0x2e0] sm:$0xff]
    %v4087 = vld [vmem:[#allocation11 + $0x2e8] sm:$0xff]
    %v4088 = vld [vmem:[#allocation11 + $0x2f0] sm:$0xff]
    %v4089 = vld [vmem:[#allocation11 + $0x2f8] sm:$0xff]
    %v4090 = vld [vmem:[#allocation11 + $0x300] sm:$0xff]
    %v4091 = vld [vmem:[#allocation11 + $0x308] sm:$0xff]
    %v4092 = vld [vmem:[#allocation11 + $0x310] sm:$0xff]
    %v4093 = vld [vmem:[#allocation11 + $0x318] sm:$0xff]
    %v4094 = vld [vmem:[#allocation11 + $0x320] sm:$0xff]
    %v4095 = vld [vmem:[#allocation11 + $0x328] sm:$0xff]
    %v4096 = vld [vmem:[#allocation11 + $0x330] sm:$0xff]
    %v4097 = vld [vmem:[#allocation11 + $0x338] sm:$0xff]
    %v4098 = vld [vmem:[#allocation11 + $0x340] sm:$0xff]
    %v4099 = vld [vmem:[#allocation11 + $0x348] sm:$0xff]
    %v4100 = vld [vmem:[#allocation11 + $0x350] sm:$0xff]
    %v4101 = vld [vmem:[#allocation11 + $0x358] sm:$0xff]
    %v4102 = vld [vmem:[#allocation11 + $0x360] sm:$0xff]
    %v4103 = vld [vmem:[#allocation11 + $0x368] sm:$0xff]
    %v4104 = vld [vmem:[#allocation11 + $0x370] sm:$0xff]
    %v4105 = vld [vmem:[#allocation11 + $0x378] sm:$0xff]
    %v4106 = vld [vmem:[#allocation11 + $0x380] sm:$0xff]
    %v4107 = vld [vmem:[#allocation11 + $0x388] sm:$0xff]
    %v4108 = vld [vmem:[#allocation11 + $0x390] sm:$0xff]
    %v4109 = vld [vmem:[#allocation11 + $0x398] sm:$0xff]
    %v4110 = vld [vmem:[#allocation11 + $0x3a0] sm:$0xff]
    %v4111 = vld [vmem:[#allocation11 + $0x3a8] sm:$0xff]
    %v4112 = vld [vmem:[#allocation11 + $0x3b0] sm:$0xff]
    %v4113 = vld [vmem:[#allocation11 + $0x3b8] sm:$0xff]
    %v4114 = vld [vmem:[#allocation11 + $0x3c0] sm:$0xff]
    %v4115 = vld [vmem:[#allocation11 + $0x3c8] sm:$0xff]
    %v4116 = vld [vmem:[#allocation11 + $0x3d0] sm:$0xff]
    %v4117 = vld [vmem:[#allocation11 + $0x3d8] sm:$0xff]
    %v4118 = vld [vmem:[#allocation11 + $0x3e0] sm:$0xff]
    %v4119 = vld [vmem:[#allocation11 + $0x3e8] sm:$0xff]
    %v4120 = vld [vmem:[#allocation11 + $0x3f0] sm:$0xff]
    %v4121 = vld [vmem:[#allocation11 + $0x3f8] sm:$0xff]
    %4122 = vmatpush.msra.mxu0 %v4054
    %4123 = vmatpush.msra.mxu0 %v4050
    %4124 = vmatpush.msra.mxu0 %v4046
    %4125 = vmatpush.msra.mxu0 %v4042
    %4126 = vmatpush.msra.mxu0 %v4038
    %4127 = vmatpush.msra.mxu0 %v4034
    %4128 = vmatpush.msra.mxu0 %v4030
    %4129 = vmatpush.msra.mxu0 %v4026
    %4130 = vmatpush.msra.mxu0 %v4022
    %4131 = vmatpush.msra.mxu0 %v4018
    %4132 = vmatpush.msra.mxu0 %v4014
    %4133 = vmatpush.msra.mxu0 %v4010
    %4134 = vmatpush.msra.mxu0 %v4006
    %4135 = vmatpush.msra.mxu0 %v4002
    %4136 = vmatpush.msra.mxu0 %v3998
    %4137 = vmatpush.msra.mxu0 %v3994
    %4138 = vmatmul.f32.gmra.mxu0 %v3993
    %v4139 = vpop.f32.mrf.mxu0
    %v4140 = vadd.f32 %v587, %v4139
    %4141 = vdwg.mxu0
    %4142 = vmatpush.msra.mxu0 %v4118
    %4143 = vmatpush.msra.mxu0 %v4114
    %4144 = vmatpush.msra.mxu0 %v4110
    %4145 = vmatpush.msra.mxu0 %v4106
    %4146 = vmatpush.msra.mxu0 %v4102
    %4147 = vmatpush.msra.mxu0 %v4098
    %4148 = vmatpush.msra.mxu0 %v4094
    %4149 = vmatpush.msra.mxu0 %v4090
    %4150 = vmatpush.msra.mxu0 %v4086
    %4151 = vmatpush.msra.mxu0 %v4082
    %4152 = vmatpush.msra.mxu0 %v4078
    %4153 = vmatpush.msra.mxu0 %v4074
    %4154 = vmatpush.msra.mxu0 %v4070
    %4155 = vmatpush.msra.mxu0 %v4066
    %4156 = vmatpush.msra.mxu0 %v4062
    %4157 = vmatpush.msra.mxu0 %v4058
    %4158 = vmatmul.f32.gmra.mxu0 %v3778
    %v4159 = vpop.f32.mrf.mxu0
    %v4160 = vadd.f32 %v4140, %v4159
    %4161 = vdwg.mxu0
    %4162 = vmatpush.msra.mxu0 %v4055
    %4163 = vmatpush.msra.mxu0 %v4051
    %4164 = vmatpush.msra.mxu0 %v4047
    %4165 = vmatpush.msra.mxu0 %v4043
    %4166 = vmatpush.msra.mxu0 %v4039
    %4167 = vmatpush.msra.mxu0 %v4035
    %4168 = vmatpush.msra.mxu0 %v4031
    %4169 = vmatpush.msra.mxu0 %v4027
    %4170 = vmatpush.msra.mxu0 %v4023
    %4171 = vmatpush.msra.mxu0 %v4019
    %4172 = vmatpush.msra.mxu0 %v4015
    %4173 = vmatpush.msra.mxu0 %v4011
    %4174 = vmatpush.msra.mxu0 %v4007
    %4175 = vmatpush.msra.mxu0 %v4003
    %4176 = vmatpush.msra.mxu0 %v3999
    %4177 = vmatpush.msra.mxu0 %v3995
    %4178 = vmatmul.f32.gmra.mxu0 %v3993
    %v4179 = vpop.f32.mrf.mxu0
    %v4180 = vadd.f32 %v588, %v4179
    %4181 = vdwg.mxu0
    %4182 = vmatpush.msra.mxu0 %v4119
    %4183 = vmatpush.msra.mxu0 %v4115
    %4184 = vmatpush.msra.mxu0 %v4111
    %4185 = vmatpush.msra.mxu0 %v4107
    %4186 = vmatpush.msra.mxu0 %v4103
    %4187 = vmatpush.msra.mxu0 %v4099
    %4188 = vmatpush.msra.mxu0 %v4095
    %4189 = vmatpush.msra.mxu0 %v4091
    %4190 = vmatpush.msra.mxu0 %v4087
    %4191 = vmatpush.msra.mxu0 %v4083
    %4192 = vmatpush.msra.mxu0 %v4079
    %4193 = vmatpush.msra.mxu0 %v4075
    %4194 = vmatpush.msra.mxu0 %v4071
    %4195 = vmatpush.msra.mxu0 %v4067
    %4196 = vmatpush.msra.mxu0 %v4063
    %4197 = vmatpush.msra.mxu0 %v4059
    %4198 = vmatmul.f32.gmra.mxu0 %v3778
    %v4199 = vpop.f32.mrf.mxu0
    %v4200 = vadd.f32 %v4180, %v4199
    %4201 = vdwg.mxu0
    %4202 = vmatpush.msra.mxu0 %v4056
    %4203 = vmatpush.msra.mxu0 %v4052
    %4204 = vmatpush.msra.mxu0 %v4048
    %4205 = vmatpush.msra.mxu0 %v4044
    %4206 = vmatpush.msra.mxu0 %v4040
    %4207 = vmatpush.msra.mxu0 %v4036
    %4208 = vmatpush.msra.mxu0 %v4032
    %4209 = vmatpush.msra.mxu0 %v4028
    %4210 = vmatpush.msra.mxu0 %v4024
    %4211 = vmatpush.msra.mxu0 %v4020
    %4212 = vmatpush.msra.mxu0 %v4016
    %4213 = vmatpush.msra.mxu0 %v4012
    %4214 = vmatpush.msra.mxu0 %v4008
    %4215 = vmatpush.msra.mxu0 %v4004
    %4216 = vmatpush.msra.mxu0 %v4000
    %4217 = vmatpush.msra.mxu0 %v3996
    %4218 = vmatmul.f32.gmra.mxu0 %v3993
    %v4219 = vpop.f32.mrf.mxu0
    %v4220 = vadd.f32 %v589, %v4219
    %4221 = vdwg.mxu0
    %4222 = vmatpush.msra.mxu0 %v4120
    %4223 = vmatpush.msra.mxu0 %v4116
    %4224 = vmatpush.msra.mxu0 %v4112
    %4225 = vmatpush.msra.mxu0 %v4108
    %4226 = vmatpush.msra.mxu0 %v4104
    %4227 = vmatpush.msra.mxu0 %v4100
    %4228 = vmatpush.msra.mxu0 %v4096
    %4229 = vmatpush.msra.mxu0 %v4092
    %4230 = vmatpush.msra.mxu0 %v4088
    %4231 = vmatpush.msra.mxu0 %v4084
    %4232 = vmatpush.msra.mxu0 %v4080
    %4233 = vmatpush.msra.mxu0 %v4076
    %4234 = vmatpush.msra.mxu0 %v4072
    %4235 = vmatpush.msra.mxu0 %v4068
    %4236 = vmatpush.msra.mxu0 %v4064
    %4237 = vmatpush.msra.mxu0 %v4060
    %4238 = vmatmul.f32.gmra.mxu0 %v3778
    %v4239 = vpop.f32.mrf.mxu0
    %v4240 = vadd.f32 %v4220, %v4239
    %4241 = vdwg.mxu0
    %4242 = vmatpush.msra.mxu0 %v4057
    %4243 = vmatpush.msra.mxu0 %v4053
    %4244 = vmatpush.msra.mxu0 %v4049
    %4245 = vmatpush.msra.mxu0 %v4045
    %4246 = vmatpush.msra.mxu0 %v4041
    %4247 = vmatpush.msra.mxu0 %v4037
    %4248 = vmatpush.msra.mxu0 %v4033
    %4249 = vmatpush.msra.mxu0 %v4029
    %4250 = vmatpush.msra.mxu0 %v4025
    %4251 = vmatpush.msra.mxu0 %v4021
    %4252 = vmatpush.msra.mxu0 %v4017
    %4253 = vmatpush.msra.mxu0 %v4013
    %4254 = vmatpush.msra.mxu0 %v4009
    %4255 = vmatpush.msra.mxu0 %v4005
    %4256 = vmatpush.msra.mxu0 %v4001
    %4257 = vmatpush.msra.mxu0 %v3997
    %4258 = vmatmul.f32.gmra.mxu0 %v3993
    %v4259 = vpop.f32.mrf.mxu0
    %v4260 = vadd.f32 %v590, %v4259
    %4261 = vdwg.mxu0
    %4262 = vmatpush.msra.mxu0 %v4121
    %4263 = vmatpush.msra.mxu0 %v4117
    %4264 = vmatpush.msra.mxu0 %v4113
    %4265 = vmatpush.msra.mxu0 %v4109
    %4266 = vmatpush.msra.mxu0 %v4105
    %4267 = vmatpush.msra.mxu0 %v4101
    %4268 = vmatpush.msra.mxu0 %v4097
    %4269 = vmatpush.msra.mxu0 %v4093
    %4270 = vmatpush.msra.mxu0 %v4089
    %4271 = vmatpush.msra.mxu0 %v4085
    %4272 = vmatpush.msra.mxu0 %v4081
    %4273 = vmatpush.msra.mxu0 %v4077
    %4274 = vmatpush.msra.mxu0 %v4073
    %4275 = vmatpush.msra.mxu0 %v4069
    %4276 = vmatpush.msra.mxu0 %v4065
    %4277 = vmatpush.msra.mxu0 %v4061
    %4278 = vmatmul.f32.gmra.mxu0 %v3778
    %v4279 = vpop.f32.mrf.mxu0
    %v4280 = vadd.f32 %v4260, %v4279
    %4281 = vdwg.mxu0
    %v4282 = vxor.u32 %v4160, 2147483648
    %v4283 = vmul.f32 %v4282, 1.442695
    %v4284 = vpow.pop %v4283
    %v4285 = vadd.f32 %v4284, 1.0
    %v4286 = vrcp.pop %v4285
    %v4287 = vmul.f32 %v4285, %v4286
    %v4288 = vsub.f32 1.0, %v4287
    %v4289 = vmul.f32 %v4286, %v4288
    %v4290 = vadd.f32 %v4286, %v4289
    %vm4291 = vweird.f32 %v4285
    %vm4292 = vweird.f32 %v4286
    %vm4293 = vmor %vm4291, %vm4292
    %v4294 = vsel %vm4293, %v4286, %v4290
    %v4295 = vand.u32 2147483647, %v4285
    %vm4296 = vcmp.eq.f32.partialorder %v4295, 8.507059e+37
    %v4297 = vand.u32 %v4285, 2147483648
    %v4298 = vor.u32 1.1754944e-38, %v4297
    %v4299 = vsel %vm4296, %v4298, %v4294
    %v4300 = vmul.f32 1.0, %v4299
    %v4301 = vxor.u32 %v4200, 2147483648
    %v4302 = vmul.f32 %v4301, 1.442695
    %v4303 = vpow.pop %v4302
    %v4304 = vadd.f32 %v4303, 1.0
    %v4305 = vrcp.pop %v4304
    %v4306 = vmul.f32 %v4304, %v4305
    %v4307 = vsub.f32 1.0, %v4306
    %v4308 = vmul.f32 %v4305, %v4307
    %v4309 = vadd.f32 %v4305, %v4308
    %vm4310 = vweird.f32 %v4304
    %vm4311 = vweird.f32 %v4305
    %vm4312 = vmor %vm4310, %vm4311
    %v4313 = vsel %vm4312, %v4305, %v4309
    %v4314 = vand.u32 2147483647, %v4304
    %vm4315 = vcmp.eq.f32.partialorder %v4314, 8.507059e+37
    %v4316 = vand.u32 %v4304, 2147483648
    %v4317 = vor.u32 1.1754944e-38, %v4316
    %v4318 = vsel %vm4315, %v4317, %v4313
    %v4319 = vmul.f32 1.0, %v4318
    %v4320 = vtanh.pop %v4240
    %v4321 = vxor.u32 %v4280, 2147483648
    %v4322 = vmul.f32 %v4321, 1.442695
    %v4323 = vpow.pop %v4322
    %v4324 = vadd.f32 %v4323, 1.0
    %v4325 = vrcp.pop %v4324
    %v4326 = vmul.f32 %v4324, %v4325
    %v4327 = vsub.f32 1.0, %v4326
    %v4328 = vmul.f32 %v4325, %v4327
    %v4329 = vadd.f32 %v4325, %v4328
    %vm4330 = vweird.f32 %v4324
    %vm4331 = vweird.f32 %v4325
    %vm4332 = vmor %vm4330, %vm4331
    %v4333 = vsel %vm4332, %v4325, %v4329
    %v4334 = vand.u32 2147483647, %v4324
    %vm4335 = vcmp.eq.f32.partialorder %v4334, 8.507059e+37
    %v4336 = vand.u32 %v4324, 2147483648
    %v4337 = vor.u32 1.1754944e-38, %v4336
    %v4338 = vsel %vm4335, %v4337, %v4333
    %v4339 = vmul.f32 1.0, %v4338
    %v4340 = vmul.f32 %v4319, %v3776
    %v4341 = vmul.f32 %v4300, %v4320
    %v4342 = vadd.f32 %v4340, %v4341
    %v4343 = vtanh.pop %v4342
    %v4344 = vmul.f32 %v4339, %v4343
    %4345 = vst [vmem:[#allocation4] sm:$0xff] %v4344
    %v4346 = vld [vmem:[#allocation3 + $0x20] sm:$0xff]
    %v4347 = vld [vmem:[#allocation3 + $0x28] sm:$0xff]
    %v4348 = vld [vmem:[#allocation3 + $0x30] sm:$0xff]
    %v4349 = vld [vmem:[#allocation3 + $0x38] sm:$0xff]
    %v4350 = vadd.f32 %v4346, %v576
    %v4351 = vadd.f32 %v4347, %v577
    %v4352 = vadd.f32 %v4348, %v578
    %v4353 = vadd.f32 %v4349, %v579
    %v4354 = vld [vmem:[#allocation10] sm:$0xff]
    %v4355 = vld [vmem:[#allocation10 + $0x8] sm:$0xff]
    %v4356 = vld [vmem:[#allocation10 + $0x10] sm:$0xff]
    %v4357 = vld [vmem:[#allocation10 + $0x18] sm:$0xff]
    %v4358 = vld [vmem:[#allocation10 + $0x20] sm:$0xff]
    %v4359 = vld [vmem:[#allocation10 + $0x28] sm:$0xff]
    %v4360 = vld [vmem:[#allocation10 + $0x30] sm:$0xff]
    %v4361 = vld [vmem:[#allocation10 + $0x38] sm:$0xff]
    %v4362 = vld [vmem:[#allocation10 + $0x40] sm:$0xff]
    %v4363 = vld [vmem:[#allocation10 + $0x48] sm:$0xff]
    %v4364 = vld [vmem:[#allocation10 + $0x50] sm:$0xff]
    %v4365 = vld [vmem:[#allocation10 + $0x58] sm:$0xff]
    %v4366 = vld [vmem:[#allocation10 + $0x60] sm:$0xff]
    %v4367 = vld [vmem:[#allocation10 + $0x68] sm:$0xff]
    %v4368 = vld [vmem:[#allocation10 + $0x70] sm:$0xff]
    %v4369 = vld [vmem:[#allocation10 + $0x78] sm:$0xff]
    %v4370 = vld [vmem:[#allocation10 + $0x80] sm:$0xff]
    %v4371 = vld [vmem:[#allocation10 + $0x88] sm:$0xff]
    %v4372 = vld [vmem:[#allocation10 + $0x90] sm:$0xff]
    %v4373 = vld [vmem:[#allocation10 + $0x98] sm:$0xff]
    %v4374 = vld [vmem:[#allocation10 + $0xa0] sm:$0xff]
    %v4375 = vld [vmem:[#allocation10 + $0xa8] sm:$0xff]
    %v4376 = vld [vmem:[#allocation10 + $0xb0] sm:$0xff]
    %v4377 = vld [vmem:[#allocation10 + $0xb8] sm:$0xff]
    %v4378 = vld [vmem:[#allocation10 + $0xc0] sm:$0xff]
    %v4379 = vld [vmem:[#allocation10 + $0xc8] sm:$0xff]
    %v4380 = vld [vmem:[#allocation10 + $0xd0] sm:$0xff]
    %v4381 = vld [vmem:[#allocation10 + $0xd8] sm:$0xff]
    %v4382 = vld [vmem:[#allocation10 + $0xe0] sm:$0xff]
    %v4383 = vld [vmem:[#allocation10 + $0xe8] sm:$0xff]
    %v4384 = vld [vmem:[#allocation10 + $0xf0] sm:$0xff]
    %v4385 = vld [vmem:[#allocation10 + $0xf8] sm:$0xff]
    %v4386 = vld [vmem:[#allocation10 + $0x100] sm:$0xff]
    %v4387 = vld [vmem:[#allocation10 + $0x108] sm:$0xff]
    %v4388 = vld [vmem:[#allocation10 + $0x110] sm:$0xff]
    %v4389 = vld [vmem:[#allocation10 + $0x118] sm:$0xff]
    %v4390 = vld [vmem:[#allocation10 + $0x120] sm:$0xff]
    %v4391 = vld [vmem:[#allocation10 + $0x128] sm:$0xff]
    %v4392 = vld [vmem:[#allocation10 + $0x130] sm:$0xff]
    %v4393 = vld [vmem:[#allocation10 + $0x138] sm:$0xff]
    %v4394 = vld [vmem:[#allocation10 + $0x140] sm:$0xff]
    %v4395 = vld [vmem:[#allocation10 + $0x148] sm:$0xff]
    %v4396 = vld [vmem:[#allocation10 + $0x150] sm:$0xff]
    %v4397 = vld [vmem:[#allocation10 + $0x158] sm:$0xff]
    %v4398 = vld [vmem:[#allocation10 + $0x160] sm:$0xff]
    %v4399 = vld [vmem:[#allocation10 + $0x168] sm:$0xff]
    %v4400 = vld [vmem:[#allocation10 + $0x170] sm:$0xff]
    %v4401 = vld [vmem:[#allocation10 + $0x178] sm:$0xff]
    %v4402 = vld [vmem:[#allocation10 + $0x180] sm:$0xff]
    %v4403 = vld [vmem:[#allocation10 + $0x188] sm:$0xff]
    %v4404 = vld [vmem:[#allocation10 + $0x190] sm:$0xff]
    %v4405 = vld [vmem:[#allocation10 + $0x198] sm:$0xff]
    %v4406 = vld [vmem:[#allocation10 + $0x1a0] sm:$0xff]
    %v4407 = vld [vmem:[#allocation10 + $0x1a8] sm:$0xff]
    %v4408 = vld [vmem:[#allocation10 + $0x1b0] sm:$0xff]
    %v4409 = vld [vmem:[#allocation10 + $0x1b8] sm:$0xff]
    %v4410 = vld [vmem:[#allocation10 + $0x1c0] sm:$0xff]
    %v4411 = vld [vmem:[#allocation10 + $0x1c8] sm:$0xff]
    %v4412 = vld [vmem:[#allocation10 + $0x1d0] sm:$0xff]
    %v4413 = vld [vmem:[#allocation10 + $0x1d8] sm:$0xff]
    %v4414 = vld [vmem:[#allocation10 + $0x1e0] sm:$0xff]
    %v4415 = vld [vmem:[#allocation10 + $0x1e8] sm:$0xff]
    %v4416 = vld [vmem:[#allocation10 + $0x1f0] sm:$0xff]
    %v4417 = vld [vmem:[#allocation10 + $0x1f8] sm:$0xff]
    %v4418 = vld [vmem:[#allocation10 + $0x200] sm:$0xff]
    %v4419 = vld [vmem:[#allocation10 + $0x208] sm:$0xff]
    %v4420 = vld [vmem:[#allocation10 + $0x210] sm:$0xff]
    %v4421 = vld [vmem:[#allocation10 + $0x218] sm:$0xff]
    %v4422 = vld [vmem:[#allocation10 + $0x220] sm:$0xff]
    %v4423 = vld [vmem:[#allocation10 + $0x228] sm:$0xff]
    %v4424 = vld [vmem:[#allocation10 + $0x230] sm:$0xff]
    %v4425 = vld [vmem:[#allocation10 + $0x238] sm:$0xff]
    %v4426 = vld [vmem:[#allocation10 + $0x240] sm:$0xff]
    %v4427 = vld [vmem:[#allocation10 + $0x248] sm:$0xff]
    %v4428 = vld [vmem:[#allocation10 + $0x250] sm:$0xff]
    %v4429 = vld [vmem:[#allocation10 + $0x258] sm:$0xff]
    %v4430 = vld [vmem:[#allocation10 + $0x260] sm:$0xff]
    %v4431 = vld [vmem:[#allocation10 + $0x268] sm:$0xff]
    %v4432 = vld [vmem:[#allocation10 + $0x270] sm:$0xff]
    %v4433 = vld [vmem:[#allocation10 + $0x278] sm:$0xff]
    %v4434 = vld [vmem:[#allocation10 + $0x280] sm:$0xff]
    %v4435 = vld [vmem:[#allocation10 + $0x288] sm:$0xff]
    %v4436 = vld [vmem:[#allocation10 + $0x290] sm:$0xff]
    %v4437 = vld [vmem:[#allocation10 + $0x298] sm:$0xff]
    %v4438 = vld [vmem:[#allocation10 + $0x2a0] sm:$0xff]
    %v4439 = vld [vmem:[#allocation10 + $0x2a8] sm:$0xff]
    %v4440 = vld [vmem:[#allocation10 + $0x2b0] sm:$0xff]
    %v4441 = vld [vmem:[#allocation10 + $0x2b8] sm:$0xff]
    %v4442 = vld [vmem:[#allocation10 + $0x2c0] sm:$0xff]
    %v4443 = vld [vmem:[#allocation10 + $0x2c8] sm:$0xff]
    %v4444 = vld [vmem:[#allocation10 + $0x2d0] sm:$0xff]
    %v4445 = vld [vmem:[#allocation10 + $0x2d8] sm:$0xff]
    %v4446 = vld [vmem:[#allocation10 + $0x2e0] sm:$0xff]
    %v4447 = vld [vmem:[#allocation10 + $0x2e8] sm:$0xff]
    %v4448 = vld [vmem:[#allocation10 + $0x2f0] sm:$0xff]
    %v4449 = vld [vmem:[#allocation10 + $0x2f8] sm:$0xff]
    %v4450 = vld [vmem:[#allocation10 + $0x300] sm:$0xff]
    %v4451 = vld [vmem:[#allocation10 + $0x308] sm:$0xff]
    %v4452 = vld [vmem:[#allocation10 + $0x310] sm:$0xff]
    %v4453 = vld [vmem:[#allocation10 + $0x318] sm:$0xff]
    %v4454 = vld [vmem:[#allocation10 + $0x320] sm:$0xff]
    %v4455 = vld [vmem:[#allocation10 + $0x328] sm:$0xff]
    %v4456 = vld [vmem:[#allocation10 + $0x330] sm:$0xff]
    %v4457 = vld [vmem:[#allocation10 + $0x338] sm:$0xff]
    %v4458 = vld [vmem:[#allocation10 + $0x340] sm:$0xff]
    %v4459 = vld [vmem:[#allocation10 + $0x348] sm:$0xff]
    %v4460 = vld [vmem:[#allocation10 + $0x350] sm:$0xff]
    %v4461 = vld [vmem:[#allocation10 + $0x358] sm:$0xff]
    %v4462 = vld [vmem:[#allocation10 + $0x360] sm:$0xff]
    %v4463 = vld [vmem:[#allocation10 + $0x368] sm:$0xff]
    %v4464 = vld [vmem:[#allocation10 + $0x370] sm:$0xff]
    %v4465 = vld [vmem:[#allocation10 + $0x378] sm:$0xff]
    %v4466 = vld [vmem:[#allocation10 + $0x380] sm:$0xff]
    %v4467 = vld [vmem:[#allocation10 + $0x388] sm:$0xff]
    %v4468 = vld [vmem:[#allocation10 + $0x390] sm:$0xff]
    %v4469 = vld [vmem:[#allocation10 + $0x398] sm:$0xff]
    %v4470 = vld [vmem:[#allocation10 + $0x3a0] sm:$0xff]
    %v4471 = vld [vmem:[#allocation10 + $0x3a8] sm:$0xff]
    %v4472 = vld [vmem:[#allocation10 + $0x3b0] sm:$0xff]
    %v4473 = vld [vmem:[#allocation10 + $0x3b8] sm:$0xff]
    %v4474 = vld [vmem:[#allocation10 + $0x3c0] sm:$0xff]
    %v4475 = vld [vmem:[#allocation10 + $0x3c8] sm:$0xff]
    %v4476 = vld [vmem:[#allocation10 + $0x3d0] sm:$0xff]
    %v4477 = vld [vmem:[#allocation10 + $0x3d8] sm:$0xff]
    %v4478 = vld [vmem:[#allocation10 + $0x3e0] sm:$0xff]
    %v4479 = vld [vmem:[#allocation10 + $0x3e8] sm:$0xff]
    %v4480 = vld [vmem:[#allocation10 + $0x3f0] sm:$0xff]
    %v4481 = vld [vmem:[#allocation10 + $0x3f8] sm:$0xff]
    %4482 = vmatpush.msra.mxu0 %v4414
    %4483 = vmatpush.msra.mxu0 %v4410
    %4484 = vmatpush.msra.mxu0 %v4406
    %4485 = vmatpush.msra.mxu0 %v4402
    %4486 = vmatpush.msra.mxu0 %v4398
    %4487 = vmatpush.msra.mxu0 %v4394
    %4488 = vmatpush.msra.mxu0 %v4390
    %4489 = vmatpush.msra.mxu0 %v4386
    %4490 = vmatpush.msra.mxu0 %v4382
    %4491 = vmatpush.msra.mxu0 %v4378
    %4492 = vmatpush.msra.mxu0 %v4374
    %4493 = vmatpush.msra.mxu0 %v4370
    %4494 = vmatpush.msra.mxu0 %v4366
    %4495 = vmatpush.msra.mxu0 %v4362
    %4496 = vmatpush.msra.mxu0 %v4358
    %4497 = vmatpush.msra.mxu0 %v4354
    %4498 = vmatmul.f32.gmra.mxu0 %v3993
    %v4499 = vpop.f32.mrf.mxu0
    %v4500 = vadd.f32 0.0, %v4499
    %4501 = vdwg.mxu0
    %4502 = vmatpush.msra.mxu0 %v4478
    %4503 = vmatpush.msra.mxu0 %v4474
    %4504 = vmatpush.msra.mxu0 %v4470
    %4505 = vmatpush.msra.mxu0 %v4466
    %4506 = vmatpush.msra.mxu0 %v4462
    %4507 = vmatpush.msra.mxu0 %v4458
    %4508 = vmatpush.msra.mxu0 %v4454
    %4509 = vmatpush.msra.mxu0 %v4450
    %4510 = vmatpush.msra.mxu0 %v4446
    %4511 = vmatpush.msra.mxu0 %v4442
    %4512 = vmatpush.msra.mxu0 %v4438
    %4513 = vmatpush.msra.mxu0 %v4434
    %4514 = vmatpush.msra.mxu0 %v4430
    %4515 = vmatpush.msra.mxu0 %v4426
    %4516 = vmatpush.msra.mxu0 %v4422
    %4517 = vmatpush.msra.mxu0 %v4418
    %4518 = vmatmul.f32.gmra.mxu0 %v4344
    %v4519 = vpop.f32.mrf.mxu0
    %v4520 = vadd.f32 %v4500, %v4519
    %4521 = vdwg.mxu0
    %4522 = vmatpush.msra.mxu0 %v4415
    %4523 = vmatpush.msra.mxu0 %v4411
    %4524 = vmatpush.msra.mxu0 %v4407
    %4525 = vmatpush.msra.mxu0 %v4403
    %4526 = vmatpush.msra.mxu0 %v4399
    %4527 = vmatpush.msra.mxu0 %v4395
    %4528 = vmatpush.msra.mxu0 %v4391
    %4529 = vmatpush.msra.mxu0 %v4387
    %4530 = vmatpush.msra.mxu0 %v4383
    %4531 = vmatpush.msra.mxu0 %v4379
    %4532 = vmatpush.msra.mxu0 %v4375
    %4533 = vmatpush.msra.mxu0 %v4371
    %4534 = vmatpush.msra.mxu0 %v4367
    %4535 = vmatpush.msra.mxu0 %v4363
    %4536 = vmatpush.msra.mxu0 %v4359
    %4537 = vmatpush.msra.mxu0 %v4355
    %4538 = vmatmul.f32.gmra.mxu0 %v3993
    %v4539 = vpop.f32.mrf.mxu0
    %v4540 = vadd.f32 0.0, %v4539
    %4541 = vdwg.mxu0
    %4542 = vmatpush.msra.mxu0 %v4479
    %4543 = vmatpush.msra.mxu0 %v4475
    %4544 = vmatpush.msra.mxu0 %v4471
    %4545 = vmatpush.msra.mxu0 %v4467
    %4546 = vmatpush.msra.mxu0 %v4463
    %4547 = vmatpush.msra.mxu0 %v4459
    %4548 = vmatpush.msra.mxu0 %v4455
    %4549 = vmatpush.msra.mxu0 %v4451
    %4550 = vmatpush.msra.mxu0 %v4447
    %4551 = vmatpush.msra.mxu0 %v4443
    %4552 = vmatpush.msra.mxu0 %v4439
    %4553 = vmatpush.msra.mxu0 %v4435
    %4554 = vmatpush.msra.mxu0 %v4431
    %4555 = vmatpush.msra.mxu0 %v4427
    %4556 = vmatpush.msra.mxu0 %v4423
    %4557 = vmatpush.msra.mxu0 %v4419
    %4558 = vmatmul.f32.gmra.mxu0 %v4344
    %v4559 = vpop.f32.mrf.mxu0
    %v4560 = vadd.f32 %v4540, %v4559
    %4561 = vdwg.mxu0
    %4562 = vmatpush.msra.mxu0 %v4416
    %4563 = vmatpush.msra.mxu0 %v4412
    %4564 = vmatpush.msra.mxu0 %v4408
    %4565 = vmatpush.msra.mxu0 %v4404
    %4566 = vmatpush.msra.mxu0 %v4400
    %4567 = vmatpush.msra.mxu0 %v4396
    %4568 = vmatpush.msra.mxu0 %v4392
    %4569 = vmatpush.msra.mxu0 %v4388
    %4570 = vmatpush.msra.mxu0 %v4384
    %4571 = vmatpush.msra.mxu0 %v4380
    %4572 = vmatpush.msra.mxu0 %v4376
    %4573 = vmatpush.msra.mxu0 %v4372
    %4574 = vmatpush.msra.mxu0 %v4368
    %4575 = vmatpush.msra.mxu0 %v4364
    %4576 = vmatpush.msra.mxu0 %v4360
    %4577 = vmatpush.msra.mxu0 %v4356
    %4578 = vmatmul.f32.gmra.mxu0 %v3993
    %v4579 = vpop.f32.mrf.mxu0
    %v4580 = vadd.f32 0.0, %v4579
    %4581 = vdwg.mxu0
    %4582 = vmatpush.msra.mxu0 %v4480
    %4583 = vmatpush.msra.mxu0 %v4476
    %4584 = vmatpush.msra.mxu0 %v4472
    %4585 = vmatpush.msra.mxu0 %v4468
    %4586 = vmatpush.msra.mxu0 %v4464
    %4587 = vmatpush.msra.mxu0 %v4460
    %4588 = vmatpush.msra.mxu0 %v4456
    %4589 = vmatpush.msra.mxu0 %v4452
    %4590 = vmatpush.msra.mxu0 %v4448
    %4591 = vmatpush.msra.mxu0 %v4444
    %4592 = vmatpush.msra.mxu0 %v4440
    %4593 = vmatpush.msra.mxu0 %v4436
    %4594 = vmatpush.msra.mxu0 %v4432
    %4595 = vmatpush.msra.mxu0 %v4428
    %4596 = vmatpush.msra.mxu0 %v4424
    %4597 = vmatpush.msra.mxu0 %v4420
    %4598 = vmatmul.f32.gmra.mxu0 %v4344
    %v4599 = vpop.f32.mrf.mxu0
    %v4600 = vadd.f32 %v4580, %v4599
    %4601 = vdwg.mxu0
    %4602 = vmatpush.msra.mxu0 %v4417
    %4603 = vmatpush.msra.mxu0 %v4413
    %4604 = vmatpush.msra.mxu0 %v4409
    %4605 = vmatpush.msra.mxu0 %v4405
    %4606 = vmatpush.msra.mxu0 %v4401
    %4607 = vmatpush.msra.mxu0 %v4397
    %4608 = vmatpush.msra.mxu0 %v4393
    %4609 = vmatpush.msra.mxu0 %v4389
    %4610 = vmatpush.msra.mxu0 %v4385
    %4611 = vmatpush.msra.mxu0 %v4381
    %4612 = vmatpush.msra.mxu0 %v4377
    %4613 = vmatpush.msra.mxu0 %v4373
    %4614 = vmatpush.msra.mxu0 %v4369
    %4615 = vmatpush.msra.mxu0 %v4365
    %4616 = vmatpush.msra.mxu0 %v4361
    %4617 = vmatpush.msra.mxu0 %v4357
    %4618 = vmatmul.f32.gmra.mxu0 %v3993
    %v4619 = vpop.f32.mrf.mxu0
    %v4620 = vadd.f32 0.0, %v4619
    %4621 = vdwg.mxu0
    %4622 = vmatpush.msra.mxu0 %v4481
    %4623 = vmatpush.msra.mxu0 %v4477
    %4624 = vmatpush.msra.mxu0 %v4473
    %4625 = vmatpush.msra.mxu0 %v4469
    %4626 = vmatpush.msra.mxu0 %v4465
    %4627 = vmatpush.msra.mxu0 %v4461
    %4628 = vmatpush.msra.mxu0 %v4457
    %4629 = vmatpush.msra.mxu0 %v4453
    %4630 = vmatpush.msra.mxu0 %v4449
    %4631 = vmatpush.msra.mxu0 %v4445
    %4632 = vmatpush.msra.mxu0 %v4441
    %4633 = vmatpush.msra.mxu0 %v4437
    %4634 = vmatpush.msra.mxu0 %v4433
    %4635 = vmatpush.msra.mxu0 %v4429
    %4636 = vmatpush.msra.mxu0 %v4425
    %4637 = vmatpush.msra.mxu0 %v4421
    %4638 = vmatmul.f32.gmra.mxu0 %v4344
    %v4639 = vpop.f32.mrf.mxu0
    %v4640 = vadd.f32 %v4620, %v4639
    %4641 = vdwg.mxu0
    %v4642 = vadd.f32 %v4350, %v4520
    %v4643 = vadd.f32 %v4351, %v4560
    %v4644 = vadd.f32 %v4352, %v4600
    %v4645 = vadd.f32 %v4353, %v4640
    %v4646 = vxor.u32 %v4642, 2147483648
    %v4647 = vmul.f32 %v4646, 1.442695
    %v4648 = vpow.pop %v4647
    %v4649 = vadd.f32 %v4648, 1.0
    %v4650 = vrcp.pop %v4649
    %v4651 = vmul.f32 %v4649, %v4650
    %v4652 = vsub.f32 1.0, %v4651
    %v4653 = vmul.f32 %v4650, %v4652
    %v4654 = vadd.f32 %v4650, %v4653
    %vm4655 = vweird.f32 %v4649
    %vm4656 = vweird.f32 %v4650
    %vm4657 = vmor %vm4655, %vm4656
    %v4658 = vsel %vm4657, %v4650, %v4654
    %v4659 = vand.u32 2147483647, %v4649
    %vm4660 = vcmp.eq.f32.partialorder %v4659, 8.507059e+37
    %v4661 = vand.u32 %v4649, 2147483648
    %v4662 = vor.u32 1.1754944e-38, %v4661
    %v4663 = vsel %vm4660, %v4662, %v4658
    %v4664 = vmul.f32 1.0, %v4663
    %v4665 = vxor.u32 %v4643, 2147483648
    %v4666 = vmul.f32 %v4665, 1.442695
    %v4667 = vpow.pop %v4666
    %v4668 = vadd.f32 %v4667, 1.0
    %v4669 = vrcp.pop %v4668
    %v4670 = vmul.f32 %v4668, %v4669
    %v4671 = vsub.f32 1.0, %v4670
    %v4672 = vmul.f32 %v4669, %v4671
    %v4673 = vadd.f32 %v4669, %v4672
    %vm4674 = vweird.f32 %v4668
    %vm4675 = vweird.f32 %v4669
    %vm4676 = vmor %vm4674, %vm4675
    %v4677 = vsel %vm4676, %v4669, %v4673
    %v4678 = vand.u32 2147483647, %v4668
    %vm4679 = vcmp.eq.f32.partialorder %v4678, 8.507059e+37
    %v4680 = vand.u32 %v4668, 2147483648
    %v4681 = vor.u32 1.1754944e-38, %v4680
    %v4682 = vsel %vm4679, %v4681, %v4677
    %v4683 = vmul.f32 1.0, %v4682
    %v4684 = vtanh.pop %v4644
    %v4685 = vxor.u32 %v4645, 2147483648
    %v4686 = vmul.f32 %v4685, 1.442695
    %v4687 = vpow.pop %v4686
    %v4688 = vadd.f32 %v4687, 1.0
    %v4689 = vrcp.pop %v4688
    %v4690 = vmul.f32 %v4688, %v4689
    %v4691 = vsub.f32 1.0, %v4690
    %v4692 = vmul.f32 %v4689, %v4691
    %v4693 = vadd.f32 %v4689, %v4692
    %vm4694 = vweird.f32 %v4688
    %vm4695 = vweird.f32 %v4689
    %vm4696 = vmor %vm4694, %vm4695
    %v4697 = vsel %vm4696, %v4689, %v4693
    %v4698 = vand.u32 2147483647, %v4688
    %vm4699 = vcmp.eq.f32.partialorder %v4698, 8.507059e+37
    %v4700 = vand.u32 %v4688, 2147483648
    %v4701 = vor.u32 1.1754944e-38, %v4700
    %v4702 = vsel %vm4699, %v4701, %v4697
    %v4703 = vmul.f32 1.0, %v4702
    %v4704 = vmul.f32 %v4683, %v3991
    %v4705 = vmul.f32 %v4664, %v4684
    %v4706 = vadd.f32 %v4704, %v4705
    %v4707 = vtanh.pop %v4706
    %v4708 = vmul.f32 %v4703, %v4707
    %v4709 = vld [vmem:[#allocation11] sm:$0xff]
    %v4710 = vld [vmem:[#allocation11 + $0x8] sm:$0xff]
    %v4711 = vld [vmem:[#allocation11 + $0x10] sm:$0xff]
    %v4712 = vld [vmem:[#allocation11 + $0x18] sm:$0xff]
    %v4713 = vld [vmem:[#allocation11 + $0x20] sm:$0xff]
    %v4714 = vld [vmem:[#allocation11 + $0x28] sm:$0xff]
    %v4715 = vld [vmem:[#allocation11 + $0x30] sm:$0xff]
    %v4716 = vld [vmem:[#allocation11 + $0x38] sm:$0xff]
    %v4717 = vld [vmem:[#allocation11 + $0x40] sm:$0xff]
    %v4718 = vld [vmem:[#allocation11 + $0x48] sm:$0xff]
    %v4719 = vld [vmem:[#allocation11 + $0x50] sm:$0xff]
    %v4720 = vld [vmem:[#allocation11 + $0x58] sm:$0xff]
    %v4721 = vld [vmem:[#allocation11 + $0x60] sm:$0xff]
    %v4722 = vld [vmem:[#allocation11 + $0x68] sm:$0xff]
    %v4723 = vld [vmem:[#allocation11 + $0x70] sm:$0xff]
    %v4724 = vld [vmem:[#allocation11 + $0x78] sm:$0xff]
    %v4725 = vld [vmem:[#allocation11 + $0x80] sm:$0xff]
    %v4726 = vld [vmem:[#allocation11 + $0x88] sm:$0xff]
    %v4727 = vld [vmem:[#allocation11 + $0x90] sm:$0xff]
    %v4728 = vld [vmem:[#allocation11 + $0x98] sm:$0xff]
    %v4729 = vld [vmem:[#allocation11 + $0xa0] sm:$0xff]
    %v4730 = vld [vmem:[#allocation11 + $0xa8] sm:$0xff]
    %v4731 = vld [vmem:[#allocation11 + $0xb0] sm:$0xff]
    %v4732 = vld [vmem:[#allocation11 + $0xb8] sm:$0xff]
    %v4733 = vld [vmem:[#allocation11 + $0xc0] sm:$0xff]
    %v4734 = vld [vmem:[#allocation11 + $0xc8] sm:$0xff]
    %v4735 = vld [vmem:[#allocation11 + $0xd0] sm:$0xff]
    %v4736 = vld [vmem:[#allocation11 + $0xd8] sm:$0xff]
    %v4737 = vld [vmem:[#allocation11 + $0xe0] sm:$0xff]
    %v4738 = vld [vmem:[#allocation11 + $0xe8] sm:$0xff]
    %v4739 = vld [vmem:[#allocation11 + $0xf0] sm:$0xff]
    %v4740 = vld [vmem:[#allocation11 + $0xf8] sm:$0xff]
    %v4741 = vld [vmem:[#allocation11 + $0x100] sm:$0xff]
    %v4742 = vld [vmem:[#allocation11 + $0x108] sm:$0xff]
    %v4743 = vld [vmem:[#allocation11 + $0x110] sm:$0xff]
    %v4744 = vld [vmem:[#allocation11 + $0x118] sm:$0xff]
    %v4745 = vld [vmem:[#allocation11 + $0x120] sm:$0xff]
    %v4746 = vld [vmem:[#allocation11 + $0x128] sm:$0xff]
    %v4747 = vld [vmem:[#allocation11 + $0x130] sm:$0xff]
    %v4748 = vld [vmem:[#allocation11 + $0x138] sm:$0xff]
    %v4749 = vld [vmem:[#allocation11 + $0x140] sm:$0xff]
    %v4750 = vld [vmem:[#allocation11 + $0x148] sm:$0xff]
    %v4751 = vld [vmem:[#allocation11 + $0x150] sm:$0xff]
    %v4752 = vld [vmem:[#allocation11 + $0x158] sm:$0xff]
    %v4753 = vld [vmem:[#allocation11 + $0x160] sm:$0xff]
    %v4754 = vld [vmem:[#allocation11 + $0x168] sm:$0xff]
    %v4755 = vld [vmem:[#allocation11 + $0x170] sm:$0xff]
    %v4756 = vld [vmem:[#allocation11 + $0x178] sm:$0xff]
    %v4757 = vld [vmem:[#allocation11 + $0x180] sm:$0xff]
    %v4758 = vld [vmem:[#allocation11 + $0x188] sm:$0xff]
    %v4759 = vld [vmem:[#allocation11 + $0x190] sm:$0xff]
    %v4760 = vld [vmem:[#allocation11 + $0x198] sm:$0xff]
    %v4761 = vld [vmem:[#allocation11 + $0x1a0] sm:$0xff]
    %v4762 = vld [vmem:[#allocation11 + $0x1a8] sm:$0xff]
    %v4763 = vld [vmem:[#allocation11 + $0x1b0] sm:$0xff]
    %v4764 = vld [vmem:[#allocation11 + $0x1b8] sm:$0xff]
    %v4765 = vld [vmem:[#allocation11 + $0x1c0] sm:$0xff]
    %v4766 = vld [vmem:[#allocation11 + $0x1c8] sm:$0xff]
    %v4767 = vld [vmem:[#allocation11 + $0x1d0] sm:$0xff]
    %v4768 = vld [vmem:[#allocation11 + $0x1d8] sm:$0xff]
    %v4769 = vld [vmem:[#allocation11 + $0x1e0] sm:$0xff]
    %v4770 = vld [vmem:[#allocation11 + $0x1e8] sm:$0xff]
    %v4771 = vld [vmem:[#allocation11 + $0x1f0] sm:$0xff]
    %v4772 = vld [vmem:[#allocation11 + $0x1f8] sm:$0xff]
    %v4773 = vld [vmem:[#allocation11 + $0x200] sm:$0xff]
    %v4774 = vld [vmem:[#allocation11 + $0x208] sm:$0xff]
    %v4775 = vld [vmem:[#allocation11 + $0x210] sm:$0xff]
    %v4776 = vld [vmem:[#allocation11 + $0x218] sm:$0xff]
    %v4777 = vld [vmem:[#allocation11 + $0x220] sm:$0xff]
    %v4778 = vld [vmem:[#allocation11 + $0x228] sm:$0xff]
    %v4779 = vld [vmem:[#allocation11 + $0x230] sm:$0xff]
    %v4780 = vld [vmem:[#allocation11 + $0x238] sm:$0xff]
    %v4781 = vld [vmem:[#allocation11 + $0x240] sm:$0xff]
    %v4782 = vld [vmem:[#allocation11 + $0x248] sm:$0xff]
    %v4783 = vld [vmem:[#allocation11 + $0x250] sm:$0xff]
    %v4784 = vld [vmem:[#allocation11 + $0x258] sm:$0xff]
    %v4785 = vld [vmem:[#allocation11 + $0x260] sm:$0xff]
    %v4786 = vld [vmem:[#allocation11 + $0x268] sm:$0xff]
    %v4787 = vld [vmem:[#allocation11 + $0x270] sm:$0xff]
    %v4788 = vld [vmem:[#allocation11 + $0x278] sm:$0xff]
    %v4789 = vld [vmem:[#allocation11 + $0x280] sm:$0xff]
    %v4790 = vld [vmem:[#allocation11 + $0x288] sm:$0xff]
    %v4791 = vld [vmem:[#allocation11 + $0x290] sm:$0xff]
    %v4792 = vld [vmem:[#allocation11 + $0x298] sm:$0xff]
    %v4793 = vld [vmem:[#allocation11 + $0x2a0] sm:$0xff]
    %v4794 = vld [vmem:[#allocation11 + $0x2a8] sm:$0xff]
    %v4795 = vld [vmem:[#allocation11 + $0x2b0] sm:$0xff]
    %v4796 = vld [vmem:[#allocation11 + $0x2b8] sm:$0xff]
    %v4797 = vld [vmem:[#allocation11 + $0x2c0] sm:$0xff]
    %v4798 = vld [vmem:[#allocation11 + $0x2c8] sm:$0xff]
    %v4799 = vld [vmem:[#allocation11 + $0x2d0] sm:$0xff]
    %v4800 = vld [vmem:[#allocation11 + $0x2d8] sm:$0xff]
    %v4801 = vld [vmem:[#allocation11 + $0x2e0] sm:$0xff]
    %v4802 = vld [vmem:[#allocation11 + $0x2e8] sm:$0xff]
    %v4803 = vld [vmem:[#allocation11 + $0x2f0] sm:$0xff]
    %v4804 = vld [vmem:[#allocation11 + $0x2f8] sm:$0xff]
    %v4805 = vld [vmem:[#allocation11 + $0x300] sm:$0xff]
    %v4806 = vld [vmem:[#allocation11 + $0x308] sm:$0xff]
    %v4807 = vld [vmem:[#allocation11 + $0x310] sm:$0xff]
    %v4808 = vld [vmem:[#allocation11 + $0x318] sm:$0xff]
    %v4809 = vld [vmem:[#allocation11 + $0x320] sm:$0xff]
    %v4810 = vld [vmem:[#allocation11 + $0x328] sm:$0xff]
    %v4811 = vld [vmem:[#allocation11 + $0x330] sm:$0xff]
    %v4812 = vld [vmem:[#allocation11 + $0x338] sm:$0xff]
    %v4813 = vld [vmem:[#allocation11 + $0x340] sm:$0xff]
    %v4814 = vld [vmem:[#allocation11 + $0x348] sm:$0xff]
    %v4815 = vld [vmem:[#allocation11 + $0x350] sm:$0xff]
    %v4816 = vld [vmem:[#allocation11 + $0x358] sm:$0xff]
    %v4817 = vld [vmem:[#allocation11 + $0x360] sm:$0xff]
    %v4818 = vld [vmem:[#allocation11 + $0x368] sm:$0xff]
    %v4819 = vld [vmem:[#allocation11 + $0x370] sm:$0xff]
    %v4820 = vld [vmem:[#allocation11 + $0x378] sm:$0xff]
    %v4821 = vld [vmem:[#allocation11 + $0x380] sm:$0xff]
    %v4822 = vld [vmem:[#allocation11 + $0x388] sm:$0xff]
    %v4823 = vld [vmem:[#allocation11 + $0x390] sm:$0xff]
    %v4824 = vld [vmem:[#allocation11 + $0x398] sm:$0xff]
    %v4825 = vld [vmem:[#allocation11 + $0x3a0] sm:$0xff]
    %v4826 = vld [vmem:[#allocation11 + $0x3a8] sm:$0xff]
    %v4827 = vld [vmem:[#allocation11 + $0x3b0] sm:$0xff]
    %v4828 = vld [vmem:[#allocation11 + $0x3b8] sm:$0xff]
    %v4829 = vld [vmem:[#allocation11 + $0x3c0] sm:$0xff]
    %v4830 = vld [vmem:[#allocation11 + $0x3c8] sm:$0xff]
    %v4831 = vld [vmem:[#allocation11 + $0x3d0] sm:$0xff]
    %v4832 = vld [vmem:[#allocation11 + $0x3d8] sm:$0xff]
    %v4833 = vld [vmem:[#allocation11 + $0x3e0] sm:$0xff]
    %v4834 = vld [vmem:[#allocation11 + $0x3e8] sm:$0xff]
    %v4835 = vld [vmem:[#allocation11 + $0x3f0] sm:$0xff]
    %v4836 = vld [vmem:[#allocation11 + $0x3f8] sm:$0xff]
    %4837 = vmatpush.msra.mxu0 %v4769
    %4838 = vmatpush.msra.mxu0 %v4765
    %4839 = vmatpush.msra.mxu0 %v4761
    %4840 = vmatpush.msra.mxu0 %v4757
    %4841 = vmatpush.msra.mxu0 %v4753
    %4842 = vmatpush.msra.mxu0 %v4749
    %4843 = vmatpush.msra.mxu0 %v4745
    %4844 = vmatpush.msra.mxu0 %v4741
    %4845 = vmatpush.msra.mxu0 %v4737
    %4846 = vmatpush.msra.mxu0 %v4733
    %4847 = vmatpush.msra.mxu0 %v4729
    %4848 = vmatpush.msra.mxu0 %v4725
    %4849 = vmatpush.msra.mxu0 %v4721
    %4850 = vmatpush.msra.mxu0 %v4717
    %4851 = vmatpush.msra.mxu0 %v4713
    %4852 = vmatpush.msra.mxu0 %v4709
    %4853 = vmatmul.f32.gmra.mxu0 %v4708
    %v4854 = vpop.f32.mrf.mxu0
    %v4855 = vadd.f32 %v587, %v4854
    %4856 = vdwg.mxu0
    %4857 = vmatpush.msra.mxu0 %v4833
    %4858 = vmatpush.msra.mxu0 %v4829
    %4859 = vmatpush.msra.mxu0 %v4825
    %4860 = vmatpush.msra.mxu0 %v4821
    %4861 = vmatpush.msra.mxu0 %v4817
    %4862 = vmatpush.msra.mxu0 %v4813
    %4863 = vmatpush.msra.mxu0 %v4809
    %4864 = vmatpush.msra.mxu0 %v4805
    %4865 = vmatpush.msra.mxu0 %v4801
    %4866 = vmatpush.msra.mxu0 %v4797
    %4867 = vmatpush.msra.mxu0 %v4793
    %4868 = vmatpush.msra.mxu0 %v4789
    %4869 = vmatpush.msra.mxu0 %v4785
    %4870 = vmatpush.msra.mxu0 %v4781
    %4871 = vmatpush.msra.mxu0 %v4777
    %4872 = vmatpush.msra.mxu0 %v4773
    %4873 = vmatmul.f32.gmra.mxu0 %v4344
    %v4874 = vpop.f32.mrf.mxu0
    %v4875 = vadd.f32 %v4855, %v4874
    %4876 = vdwg.mxu0
    %4877 = vmatpush.msra.mxu0 %v4770
    %4878 = vmatpush.msra.mxu0 %v4766
    %4879 = vmatpush.msra.mxu0 %v4762
    %4880 = vmatpush.msra.mxu0 %v4758
    %4881 = vmatpush.msra.mxu0 %v4754
    %4882 = vmatpush.msra.mxu0 %v4750
    %4883 = vmatpush.msra.mxu0 %v4746
    %4884 = vmatpush.msra.mxu0 %v4742
    %4885 = vmatpush.msra.mxu0 %v4738
    %4886 = vmatpush.msra.mxu0 %v4734
    %4887 = vmatpush.msra.mxu0 %v4730
    %4888 = vmatpush.msra.mxu0 %v4726
    %4889 = vmatpush.msra.mxu0 %v4722
    %4890 = vmatpush.msra.mxu0 %v4718
    %4891 = vmatpush.msra.mxu0 %v4714
    %4892 = vmatpush.msra.mxu0 %v4710
    %4893 = vmatmul.f32.gmra.mxu0 %v4708
    %v4894 = vpop.f32.mrf.mxu0
    %v4895 = vadd.f32 %v588, %v4894
    %4896 = vdwg.mxu0
    %4897 = vmatpush.msra.mxu0 %v4834
    %4898 = vmatpush.msra.mxu0 %v4830
    %4899 = vmatpush.msra.mxu0 %v4826
    %4900 = vmatpush.msra.mxu0 %v4822
    %4901 = vmatpush.msra.mxu0 %v4818
    %4902 = vmatpush.msra.mxu0 %v4814
    %4903 = vmatpush.msra.mxu0 %v4810
    %4904 = vmatpush.msra.mxu0 %v4806
    %4905 = vmatpush.msra.mxu0 %v4802
    %4906 = vmatpush.msra.mxu0 %v4798
    %4907 = vmatpush.msra.mxu0 %v4794
    %4908 = vmatpush.msra.mxu0 %v4790
    %4909 = vmatpush.msra.mxu0 %v4786
    %4910 = vmatpush.msra.mxu0 %v4782
    %4911 = vmatpush.msra.mxu0 %v4778
    %4912 = vmatpush.msra.mxu0 %v4774
    %4913 = vmatmul.f32.gmra.mxu0 %v4344
    %v4914 = vpop.f32.mrf.mxu0
    %v4915 = vadd.f32 %v4895, %v4914
    %4916 = vdwg.mxu0
    %4917 = vmatpush.msra.mxu0 %v4771
    %4918 = vmatpush.msra.mxu0 %v4767
    %4919 = vmatpush.msra.mxu0 %v4763
    %4920 = vmatpush.msra.mxu0 %v4759
    %4921 = vmatpush.msra.mxu0 %v4755
    %4922 = vmatpush.msra.mxu0 %v4751
    %4923 = vmatpush.msra.mxu0 %v4747
    %4924 = vmatpush.msra.mxu0 %v4743
    %4925 = vmatpush.msra.mxu0 %v4739
    %4926 = vmatpush.msra.mxu0 %v4735
    %4927 = vmatpush.msra.mxu0 %v4731
    %4928 = vmatpush.msra.mxu0 %v4727
    %4929 = vmatpush.msra.mxu0 %v4723
    %4930 = vmatpush.msra.mxu0 %v4719
    %4931 = vmatpush.msra.mxu0 %v4715
    %4932 = vmatpush.msra.mxu0 %v4711
    %4933 = vmatmul.f32.gmra.mxu0 %v4708
    %v4934 = vpop.f32.mrf.mxu0
    %v4935 = vadd.f32 %v589, %v4934
    %4936 = vdwg.mxu0
    %4937 = vmatpush.msra.mxu0 %v4835
    %4938 = vmatpush.msra.mxu0 %v4831
    %4939 = vmatpush.msra.mxu0 %v4827
    %4940 = vmatpush.msra.mxu0 %v4823
    %4941 = vmatpush.msra.mxu0 %v4819
    %4942 = vmatpush.msra.mxu0 %v4815
    %4943 = vmatpush.msra.mxu0 %v4811
    %4944 = vmatpush.msra.mxu0 %v4807
    %4945 = vmatpush.msra.mxu0 %v4803
    %4946 = vmatpush.msra.mxu0 %v4799
    %4947 = vmatpush.msra.mxu0 %v4795
    %4948 = vmatpush.msra.mxu0 %v4791
    %4949 = vmatpush.msra.mxu0 %v4787
    %4950 = vmatpush.msra.mxu0 %v4783
    %4951 = vmatpush.msra.mxu0 %v4779
    %4952 = vmatpush.msra.mxu0 %v4775
    %4953 = vmatmul.f32.gmra.mxu0 %v4344
    %v4954 = vpop.f32.mrf.mxu0
    %v4955 = vadd.f32 %v4935, %v4954
    %4956 = vdwg.mxu0
    %4957 = vmatpush.msra.mxu0 %v4772
    %4958 = vmatpush.msra.mxu0 %v4768
    %4959 = vmatpush.msra.mxu0 %v4764
    %4960 = vmatpush.msra.mxu0 %v4760
    %4961 = vmatpush.msra.mxu0 %v4756
    %4962 = vmatpush.msra.mxu0 %v4752
    %4963 = vmatpush.msra.mxu0 %v4748
    %4964 = vmatpush.msra.mxu0 %v4744
    %4965 = vmatpush.msra.mxu0 %v4740
    %4966 = vmatpush.msra.mxu0 %v4736
    %4967 = vmatpush.msra.mxu0 %v4732
    %4968 = vmatpush.msra.mxu0 %v4728
    %4969 = vmatpush.msra.mxu0 %v4724
    %4970 = vmatpush.msra.mxu0 %v4720
    %4971 = vmatpush.msra.mxu0 %v4716
    %4972 = vmatpush.msra.mxu0 %v4712
    %4973 = vmatmul.f32.gmra.mxu0 %v4708
    %v4974 = vpop.f32.mrf.mxu0
    %v4975 = vadd.f32 %v590, %v4974
    %4976 = vdwg.mxu0
    %4977 = vmatpush.msra.mxu0 %v4836
    %4978 = vmatpush.msra.mxu0 %v4832
    %4979 = vmatpush.msra.mxu0 %v4828
    %4980 = vmatpush.msra.mxu0 %v4824
    %4981 = vmatpush.msra.mxu0 %v4820
    %4982 = vmatpush.msra.mxu0 %v4816
    %4983 = vmatpush.msra.mxu0 %v4812
    %4984 = vmatpush.msra.mxu0 %v4808
    %4985 = vmatpush.msra.mxu0 %v4804
    %4986 = vmatpush.msra.mxu0 %v4800
    %4987 = vmatpush.msra.mxu0 %v4796
    %4988 = vmatpush.msra.mxu0 %v4792
    %4989 = vmatpush.msra.mxu0 %v4788
    %4990 = vmatpush.msra.mxu0 %v4784
    %4991 = vmatpush.msra.mxu0 %v4780
    %4992 = vmatpush.msra.mxu0 %v4776
    %4993 = vmatmul.f32.gmra.mxu0 %v4344
    %v4994 = vpop.f32.mrf.mxu0
    %v4995 = vadd.f32 %v4975, %v4994
    %4996 = vdwg.mxu0
    %v4997 = vxor.u32 %v4875, 2147483648
    %v4998 = vmul.f32 %v4997, 1.442695
    %v4999 = vpow.pop %v4998
    %v5000 = vadd.f32 %v4999, 1.0
    %v5001 = vrcp.pop %v5000
    %v5002 = vmul.f32 %v5000, %v5001
    %v5003 = vsub.f32 1.0, %v5002
    %v5004 = vmul.f32 %v5001, %v5003
    %v5005 = vadd.f32 %v5001, %v5004
    %vm5006 = vweird.f32 %v5000
    %vm5007 = vweird.f32 %v5001
    %vm5008 = vmor %vm5006, %vm5007
    %v5009 = vsel %vm5008, %v5001, %v5005
    %v5010 = vand.u32 2147483647, %v5000
    %vm5011 = vcmp.eq.f32.partialorder %v5010, 8.507059e+37
    %v5012 = vand.u32 %v5000, 2147483648
    %v5013 = vor.u32 1.1754944e-38, %v5012
    %v5014 = vsel %vm5011, %v5013, %v5009
    %v5015 = vmul.f32 1.0, %v5014
    %v5016 = vxor.u32 %v4915, 2147483648
    %v5017 = vmul.f32 %v5016, 1.442695
    %v5018 = vpow.pop %v5017
    %v5019 = vadd.f32 %v5018, 1.0
    %v5020 = vrcp.pop %v5019
    %v5021 = vmul.f32 %v5019, %v5020
    %v5022 = vsub.f32 1.0, %v5021
    %v5023 = vmul.f32 %v5020, %v5022
    %v5024 = vadd.f32 %v5020, %v5023
    %vm5025 = vweird.f32 %v5019
    %vm5026 = vweird.f32 %v5020
    %vm5027 = vmor %vm5025, %vm5026
    %v5028 = vsel %vm5027, %v5020, %v5024
    %v5029 = vand.u32 2147483647, %v5019
    %vm5030 = vcmp.eq.f32.partialorder %v5029, 8.507059e+37
    %v5031 = vand.u32 %v5019, 2147483648
    %v5032 = vor.u32 1.1754944e-38, %v5031
    %v5033 = vsel %vm5030, %v5032, %v5028
    %v5034 = vmul.f32 1.0, %v5033
    %v5035 = vtanh.pop %v4955
    %v5036 = vxor.u32 %v4995, 2147483648
    %v5037 = vmul.f32 %v5036, 1.442695
    %v5038 = vpow.pop %v5037
    %v5039 = vadd.f32 %v5038, 1.0
    %v5040 = vrcp.pop %v5039
    %v5041 = vmul.f32 %v5039, %v5040
    %v5042 = vsub.f32 1.0, %v5041
    %v5043 = vmul.f32 %v5040, %v5042
    %v5044 = vadd.f32 %v5040, %v5043
    %vm5045 = vweird.f32 %v5039
    %vm5046 = vweird.f32 %v5040
    %vm5047 = vmor %vm5045, %vm5046
    %v5048 = vsel %vm5047, %v5040, %v5044
    %v5049 = vand.u32 2147483647, %v5039
    %vm5050 = vcmp.eq.f32.partialorder %v5049, 8.507059e+37
    %v5051 = vand.u32 %v5039, 2147483648
    %v5052 = vor.u32 1.1754944e-38, %v5051
    %v5053 = vsel %vm5050, %v5052, %v5048
    %v5054 = vmul.f32 1.0, %v5053
    %v5055 = vmul.f32 %v5034, %v4342
    %v5056 = vmul.f32 %v5015, %v5035
    %v5057 = vadd.f32 %v5055, %v5056
    %v5058 = vtanh.pop %v5057
    %v5059 = vmul.f32 %v5054, %v5058
    %5060 = vst [vmem:[#allocation4 + $0x8] sm:$0xff] %v5059
    %v5061 = vld [vmem:[#allocation3 + $0x40] sm:$0xff]
    %v5062 = vld [vmem:[#allocation3 + $0x48] sm:$0xff]
    %v5063 = vld [vmem:[#allocation3 + $0x50] sm:$0xff]
    %v5064 = vld [vmem:[#allocation3 + $0x58] sm:$0xff]
    %v5065 = vadd.f32 %v5061, %v576
    %v5066 = vadd.f32 %v5062, %v577
    %v5067 = vadd.f32 %v5063, %v578
    %v5068 = vadd.f32 %v5064, %v579
    %v5069 = vld [vmem:[#allocation10] sm:$0xff]
    %v5070 = vld [vmem:[#allocation10 + $0x8] sm:$0xff]
    %v5071 = vld [vmem:[#allocation10 + $0x10] sm:$0xff]
    %v5072 = vld [vmem:[#allocation10 + $0x18] sm:$0xff]
    %v5073 = vld [vmem:[#allocation10 + $0x20] sm:$0xff]
    %v5074 = vld [vmem:[#allocation10 + $0x28] sm:$0xff]
    %v5075 = vld [vmem:[#allocation10 + $0x30] sm:$0xff]
    %v5076 = vld [vmem:[#allocation10 + $0x38] sm:$0xff]
    %v5077 = vld [vmem:[#allocation10 + $0x40] sm:$0xff]
    %v5078 = vld [vmem:[#allocation10 + $0x48] sm:$0xff]
    %v5079 = vld [vmem:[#allocation10 + $0x50] sm:$0xff]
    %v5080 = vld [vmem:[#allocation10 + $0x58] sm:$0xff]
    %v5081 = vld [vmem:[#allocation10 + $0x60] sm:$0xff]
    %v5082 = vld [vmem:[#allocation10 + $0x68] sm:$0xff]
    %v5083 = vld [vmem:[#allocation10 + $0x70] sm:$0xff]
    %v5084 = vld [vmem:[#allocation10 + $0x78] sm:$0xff]
    %v5085 = vld [vmem:[#allocation10 + $0x80] sm:$0xff]
    %v5086 = vld [vmem:[#allocation10 + $0x88] sm:$0xff]
    %v5087 = vld [vmem:[#allocation10 + $0x90] sm:$0xff]
    %v5088 = vld [vmem:[#allocation10 + $0x98] sm:$0xff]
    %v5089 = vld [vmem:[#allocation10 + $0xa0] sm:$0xff]
    %v5090 = vld [vmem:[#allocation10 + $0xa8] sm:$0xff]
    %v5091 = vld [vmem:[#allocation10 + $0xb0] sm:$0xff]
    %v5092 = vld [vmem:[#allocation10 + $0xb8] sm:$0xff]
    %v5093 = vld [vmem:[#allocation10 + $0xc0] sm:$0xff]
    %v5094 = vld [vmem:[#allocation10 + $0xc8] sm:$0xff]
    %v5095 = vld [vmem:[#allocation10 + $0xd0] sm:$0xff]
    %v5096 = vld [vmem:[#allocation10 + $0xd8] sm:$0xff]
    %v5097 = vld [vmem:[#allocation10 + $0xe0] sm:$0xff]
    %v5098 = vld [vmem:[#allocation10 + $0xe8] sm:$0xff]
    %v5099 = vld [vmem:[#allocation10 + $0xf0] sm:$0xff]
    %v5100 = vld [vmem:[#allocation10 + $0xf8] sm:$0xff]
    %v5101 = vld [vmem:[#allocation10 + $0x100] sm:$0xff]
    %v5102 = vld [vmem:[#allocation10 + $0x108] sm:$0xff]
    %v5103 = vld [vmem:[#allocation10 + $0x110] sm:$0xff]
    %v5104 = vld [vmem:[#allocation10 + $0x118] sm:$0xff]
    %v5105 = vld [vmem:[#allocation10 + $0x120] sm:$0xff]
    %v5106 = vld [vmem:[#allocation10 + $0x128] sm:$0xff]
    %v5107 = vld [vmem:[#allocation10 + $0x130] sm:$0xff]
    %v5108 = vld [vmem:[#allocation10 + $0x138] sm:$0xff]
    %v5109 = vld [vmem:[#allocation10 + $0x140] sm:$0xff]
    %v5110 = vld [vmem:[#allocation10 + $0x148] sm:$0xff]
    %v5111 = vld [vmem:[#allocation10 + $0x150] sm:$0xff]
    %v5112 = vld [vmem:[#allocation10 + $0x158] sm:$0xff]
    %v5113 = vld [vmem:[#allocation10 + $0x160] sm:$0xff]
    %v5114 = vld [vmem:[#allocation10 + $0x168] sm:$0xff]
    %v5115 = vld [vmem:[#allocation10 + $0x170] sm:$0xff]
    %v5116 = vld [vmem:[#allocation10 + $0x178] sm:$0xff]
    %v5117 = vld [vmem:[#allocation10 + $0x180] sm:$0xff]
    %v5118 = vld [vmem:[#allocation10 + $0x188] sm:$0xff]
    %v5119 = vld [vmem:[#allocation10 + $0x190] sm:$0xff]
    %v5120 = vld [vmem:[#allocation10 + $0x198] sm:$0xff]
    %v5121 = vld [vmem:[#allocation10 + $0x1a0] sm:$0xff]
    %v5122 = vld [vmem:[#allocation10 + $0x1a8] sm:$0xff]
    %v5123 = vld [vmem:[#allocation10 + $0x1b0] sm:$0xff]
    %v5124 = vld [vmem:[#allocation10 + $0x1b8] sm:$0xff]
    %v5125 = vld [vmem:[#allocation10 + $0x1c0] sm:$0xff]
    %v5126 = vld [vmem:[#allocation10 + $0x1c8] sm:$0xff]
    %v5127 = vld [vmem:[#allocation10 + $0x1d0] sm:$0xff]
    %v5128 = vld [vmem:[#allocation10 + $0x1d8] sm:$0xff]
    %v5129 = vld [vmem:[#allocation10 + $0x1e0] sm:$0xff]
    %v5130 = vld [vmem:[#allocation10 + $0x1e8] sm:$0xff]
    %v5131 = vld [vmem:[#allocation10 + $0x1f0] sm:$0xff]
    %v5132 = vld [vmem:[#allocation10 + $0x1f8] sm:$0xff]
    %v5133 = vld [vmem:[#allocation10 + $0x200] sm:$0xff]
    %v5134 = vld [vmem:[#allocation10 + $0x208] sm:$0xff]
    %v5135 = vld [vmem:[#allocation10 + $0x210] sm:$0xff]
    %v5136 = vld [vmem:[#allocation10 + $0x218] sm:$0xff]
    %v5137 = vld [vmem:[#allocation10 + $0x220] sm:$0xff]
    %v5138 = vld [vmem:[#allocation10 + $0x228] sm:$0xff]
    %v5139 = vld [vmem:[#allocation10 + $0x230] sm:$0xff]
    %v5140 = vld [vmem:[#allocation10 + $0x238] sm:$0xff]
    %v5141 = vld [vmem:[#allocation10 + $0x240] sm:$0xff]
    %v5142 = vld [vmem:[#allocation10 + $0x248] sm:$0xff]
    %v5143 = vld [vmem:[#allocation10 + $0x250] sm:$0xff]
    %v5144 = vld [vmem:[#allocation10 + $0x258] sm:$0xff]
    %v5145 = vld [vmem:[#allocation10 + $0x260] sm:$0xff]
    %v5146 = vld [vmem:[#allocation10 + $0x268] sm:$0xff]
    %v5147 = vld [vmem:[#allocation10 + $0x270] sm:$0xff]
    %v5148 = vld [vmem:[#allocation10 + $0x278] sm:$0xff]
    %v5149 = vld [vmem:[#allocation10 + $0x280] sm:$0xff]
    %v5150 = vld [vmem:[#allocation10 + $0x288] sm:$0xff]
    %v5151 = vld [vmem:[#allocation10 + $0x290] sm:$0xff]
    %v5152 = vld [vmem:[#allocation10 + $0x298] sm:$0xff]
    %v5153 = vld [vmem:[#allocation10 + $0x2a0] sm:$0xff]
    %v5154 = vld [vmem:[#allocation10 + $0x2a8] sm:$0xff]
    %v5155 = vld [vmem:[#allocation10 + $0x2b0] sm:$0xff]
    %v5156 = vld [vmem:[#allocation10 + $0x2b8] sm:$0xff]
    %v5157 = vld [vmem:[#allocation10 + $0x2c0] sm:$0xff]
    %v5158 = vld [vmem:[#allocation10 + $0x2c8] sm:$0xff]
    %v5159 = vld [vmem:[#allocation10 + $0x2d0] sm:$0xff]
    %v5160 = vld [vmem:[#allocation10 + $0x2d8] sm:$0xff]
    %v5161 = vld [vmem:[#allocation10 + $0x2e0] sm:$0xff]
    %v5162 = vld [vmem:[#allocation10 + $0x2e8] sm:$0xff]
    %v5163 = vld [vmem:[#allocation10 + $0x2f0] sm:$0xff]
    %v5164 = vld [vmem:[#allocation10 + $0x2f8] sm:$0xff]
    %v5165 = vld [vmem:[#allocation10 + $0x300] sm:$0xff]
    %v5166 = vld [vmem:[#allocation10 + $0x308] sm:$0xff]
    %v5167 = vld [vmem:[#allocation10 + $0x310] sm:$0xff]
    %v5168 = vld [vmem:[#allocation10 + $0x318] sm:$0xff]
    %v5169 = vld [vmem:[#allocation10 + $0x320] sm:$0xff]
    %v5170 = vld [vmem:[#allocation10 + $0x328] sm:$0xff]
    %v5171 = vld [vmem:[#allocation10 + $0x330] sm:$0xff]
    %v5172 = vld [vmem:[#allocation10 + $0x338] sm:$0xff]
    %v5173 = vld [vmem:[#allocation10 + $0x340] sm:$0xff]
    %v5174 = vld [vmem:[#allocation10 + $0x348] sm:$0xff]
    %v5175 = vld [vmem:[#allocation10 + $0x350] sm:$0xff]
    %v5176 = vld [vmem:[#allocation10 + $0x358] sm:$0xff]
    %v5177 = vld [vmem:[#allocation10 + $0x360] sm:$0xff]
    %v5178 = vld [vmem:[#allocation10 + $0x368] sm:$0xff]
    %v5179 = vld [vmem:[#allocation10 + $0x370] sm:$0xff]
    %v5180 = vld [vmem:[#allocation10 + $0x378] sm:$0xff]
    %v5181 = vld [vmem:[#allocation10 + $0x380] sm:$0xff]
    %v5182 = vld [vmem:[#allocation10 + $0x388] sm:$0xff]
    %v5183 = vld [vmem:[#allocation10 + $0x390] sm:$0xff]
    %v5184 = vld [vmem:[#allocation10 + $0x398] sm:$0xff]
    %v5185 = vld [vmem:[#allocation10 + $0x3a0] sm:$0xff]
    %v5186 = vld [vmem:[#allocation10 + $0x3a8] sm:$0xff]
    %v5187 = vld [vmem:[#allocation10 + $0x3b0] sm:$0xff]
    %v5188 = vld [vmem:[#allocation10 + $0x3b8] sm:$0xff]
    %v5189 = vld [vmem:[#allocation10 + $0x3c0] sm:$0xff]
    %v5190 = vld [vmem:[#allocation10 + $0x3c8] sm:$0xff]
    %v5191 = vld [vmem:[#allocation10 + $0x3d0] sm:$0xff]
    %v5192 = vld [vmem:[#allocation10 + $0x3d8] sm:$0xff]
    %v5193 = vld [vmem:[#allocation10 + $0x3e0] sm:$0xff]
    %v5194 = vld [vmem:[#allocation10 + $0x3e8] sm:$0xff]
    %v5195 = vld [vmem:[#allocation10 + $0x3f0] sm:$0xff]
    %v5196 = vld [vmem:[#allocation10 + $0x3f8] sm:$0xff]
    %5197 = vmatpush.msra.mxu0 %v5129
    %5198 = vmatpush.msra.mxu0 %v5125
    %5199 = vmatpush.msra.mxu0 %v5121
    %5200 = vmatpush.msra.mxu0 %v5117
    %5201 = vmatpush.msra.mxu0 %v5113
    %5202 = vmatpush.msra.mxu0 %v5109
    %5203 = vmatpush.msra.mxu0 %v5105
    %5204 = vmatpush.msra.mxu0 %v5101
    %5205 = vmatpush.msra.mxu0 %v5097
    %5206 = vmatpush.msra.mxu0 %v5093
    %5207 = vmatpush.msra.mxu0 %v5089
    %5208 = vmatpush.msra.mxu0 %v5085
    %5209 = vmatpush.msra.mxu0 %v5081
    %5210 = vmatpush.msra.mxu0 %v5077
    %5211 = vmatpush.msra.mxu0 %v5073
    %5212 = vmatpush.msra.mxu0 %v5069
    %5213 = vmatmul.f32.gmra.mxu0 %v4708
    %v5214 = vpop.f32.mrf.mxu0
    %v5215 = vadd.f32 0.0, %v5214
    %5216 = vdwg.mxu0
    %5217 = vmatpush.msra.mxu0 %v5193
    %5218 = vmatpush.msra.mxu0 %v5189
    %5219 = vmatpush.msra.mxu0 %v5185
    %5220 = vmatpush.msra.mxu0 %v5181
    %5221 = vmatpush.msra.mxu0 %v5177
    %5222 = vmatpush.msra.mxu0 %v5173
    %5223 = vmatpush.msra.mxu0 %v5169
    %5224 = vmatpush.msra.mxu0 %v5165
    %5225 = vmatpush.msra.mxu0 %v5161
    %5226 = vmatpush.msra.mxu0 %v5157
    %5227 = vmatpush.msra.mxu0 %v5153
    %5228 = vmatpush.msra.mxu0 %v5149
    %5229 = vmatpush.msra.mxu0 %v5145
    %5230 = vmatpush.msra.mxu0 %v5141
    %5231 = vmatpush.msra.mxu0 %v5137
    %5232 = vmatpush.msra.mxu0 %v5133
    %5233 = vmatmul.f32.gmra.mxu0 %v5059
    %v5234 = vpop.f32.mrf.mxu0
    %v5235 = vadd.f32 %v5215, %v5234
    %5236 = vdwg.mxu0
    %5237 = vmatpush.msra.mxu0 %v5130
    %5238 = vmatpush.msra.mxu0 %v5126
    %5239 = vmatpush.msra.mxu0 %v5122
    %5240 = vmatpush.msra.mxu0 %v5118
    %5241 = vmatpush.msra.mxu0 %v5114
    %5242 = vmatpush.msra.mxu0 %v5110
    %5243 = vmatpush.msra.mxu0 %v5106
    %5244 = vmatpush.msra.mxu0 %v5102
    %5245 = vmatpush.msra.mxu0 %v5098
    %5246 = vmatpush.msra.mxu0 %v5094
    %5247 = vmatpush.msra.mxu0 %v5090
    %5248 = vmatpush.msra.mxu0 %v5086
    %5249 = vmatpush.msra.mxu0 %v5082
    %5250 = vmatpush.msra.mxu0 %v5078
    %5251 = vmatpush.msra.mxu0 %v5074
    %5252 = vmatpush.msra.mxu0 %v5070
    %5253 = vmatmul.f32.gmra.mxu0 %v4708
    %v5254 = vpop.f32.mrf.mxu0
    %v5255 = vadd.f32 0.0, %v5254
    %5256 = vdwg.mxu0
    %5257 = vmatpush.msra.mxu0 %v5194
    %5258 = vmatpush.msra.mxu0 %v5190
    %5259 = vmatpush.msra.mxu0 %v5186
    %5260 = vmatpush.msra.mxu0 %v5182
    %5261 = vmatpush.msra.mxu0 %v5178
    %5262 = vmatpush.msra.mxu0 %v5174
    %5263 = vmatpush.msra.mxu0 %v5170
    %5264 = vmatpush.msra.mxu0 %v5166
    %5265 = vmatpush.msra.mxu0 %v5162
    %5266 = vmatpush.msra.mxu0 %v5158
    %5267 = vmatpush.msra.mxu0 %v5154
    %5268 = vmatpush.msra.mxu0 %v5150
    %5269 = vmatpush.msra.mxu0 %v5146
    %5270 = vmatpush.msra.mxu0 %v5142
    %5271 = vmatpush.msra.mxu0 %v5138
    %5272 = vmatpush.msra.mxu0 %v5134
    %5273 = vmatmul.f32.gmra.mxu0 %v5059
    %v5274 = vpop.f32.mrf.mxu0
    %v5275 = vadd.f32 %v5255, %v5274
    %5276 = vdwg.mxu0
    %5277 = vmatpush.msra.mxu0 %v5131
    %5278 = vmatpush.msra.mxu0 %v5127
    %5279 = vmatpush.msra.mxu0 %v5123
    %5280 = vmatpush.msra.mxu0 %v5119
    %5281 = vmatpush.msra.mxu0 %v5115
    %5282 = vmatpush.msra.mxu0 %v5111
    %5283 = vmatpush.msra.mxu0 %v5107
    %5284 = vmatpush.msra.mxu0 %v5103
    %5285 = vmatpush.msra.mxu0 %v5099
    %5286 = vmatpush.msra.mxu0 %v5095
    %5287 = vmatpush.msra.mxu0 %v5091
    %5288 = vmatpush.msra.mxu0 %v5087
    %5289 = vmatpush.msra.mxu0 %v5083
    %5290 = vmatpush.msra.mxu0 %v5079
    %5291 = vmatpush.msra.mxu0 %v5075
    %5292 = vmatpush.msra.mxu0 %v5071
    %5293 = vmatmul.f32.gmra.mxu0 %v4708
    %v5294 = vpop.f32.mrf.mxu0
    %v5295 = vadd.f32 0.0, %v5294
    %5296 = vdwg.mxu0
    %5297 = vmatpush.msra.mxu0 %v5195
    %5298 = vmatpush.msra.mxu0 %v5191
    %5299 = vmatpush.msra.mxu0 %v5187
    %5300 = vmatpush.msra.mxu0 %v5183
    %5301 = vmatpush.msra.mxu0 %v5179
    %5302 = vmatpush.msra.mxu0 %v5175
    %5303 = vmatpush.msra.mxu0 %v5171
    %5304 = vmatpush.msra.mxu0 %v5167
    %5305 = vmatpush.msra.mxu0 %v5163
    %5306 = vmatpush.msra.mxu0 %v5159
    %5307 = vmatpush.msra.mxu0 %v5155
    %5308 = vmatpush.msra.mxu0 %v5151
    %5309 = vmatpush.msra.mxu0 %v5147
    %5310 = vmatpush.msra.mxu0 %v5143
    %5311 = vmatpush.msra.mxu0 %v5139
    %5312 = vmatpush.msra.mxu0 %v5135
    %5313 = vmatmul.f32.gmra.mxu0 %v5059
    %v5314 = vpop.f32.mrf.mxu0
    %v5315 = vadd.f32 %v5295, %v5314
    %5316 = vdwg.mxu0
    %5317 = vmatpush.msra.mxu0 %v5132
    %5318 = vmatpush.msra.mxu0 %v5128
    %5319 = vmatpush.msra.mxu0 %v5124
    %5320 = vmatpush.msra.mxu0 %v5120
    %5321 = vmatpush.msra.mxu0 %v5116
    %5322 = vmatpush.msra.mxu0 %v5112
    %5323 = vmatpush.msra.mxu0 %v5108
    %5324 = vmatpush.msra.mxu0 %v5104
    %5325 = vmatpush.msra.mxu0 %v5100
    %5326 = vmatpush.msra.mxu0 %v5096
    %5327 = vmatpush.msra.mxu0 %v5092
    %5328 = vmatpush.msra.mxu0 %v5088
    %5329 = vmatpush.msra.mxu0 %v5084
    %5330 = vmatpush.msra.mxu0 %v5080
    %5331 = vmatpush.msra.mxu0 %v5076
    %5332 = vmatpush.msra.mxu0 %v5072
    %5333 = vmatmul.f32.gmra.mxu0 %v4708
    %v5334 = vpop.f32.mrf.mxu0
    %v5335 = vadd.f32 0.0, %v5334
    %5336 = vdwg.mxu0
    %5337 = vmatpush.msra.mxu0 %v5196
    %5338 = vmatpush.msra.mxu0 %v5192
    %5339 = vmatpush.msra.mxu0 %v5188
    %5340 = vmatpush.msra.mxu0 %v5184
    %5341 = vmatpush.msra.mxu0 %v5180
    %5342 = vmatpush.msra.mxu0 %v5176
    %5343 = vmatpush.msra.mxu0 %v5172
    %5344 = vmatpush.msra.mxu0 %v5168
    %5345 = vmatpush.msra.mxu0 %v5164
    %5346 = vmatpush.msra.mxu0 %v5160
    %5347 = vmatpush.msra.mxu0 %v5156
    %5348 = vmatpush.msra.mxu0 %v5152
    %5349 = vmatpush.msra.mxu0 %v5148
    %5350 = vmatpush.msra.mxu0 %v5144
    %5351 = vmatpush.msra.mxu0 %v5140
    %5352 = vmatpush.msra.mxu0 %v5136
    %5353 = vmatmul.f32.gmra.mxu0 %v5059
    %v5354 = vpop.f32.mrf.mxu0
    %v5355 = vadd.f32 %v5335, %v5354
    %5356 = vdwg.mxu0
    %v5357 = vadd.f32 %v5065, %v5235
    %v5358 = vadd.f32 %v5066, %v5275
    %v5359 = vadd.f32 %v5067, %v5315
    %v5360 = vadd.f32 %v5068, %v5355
    %v5361 = vxor.u32 %v5357, 2147483648
    %v5362 = vmul.f32 %v5361, 1.442695
    %v5363 = vpow.pop %v5362
    %v5364 = vadd.f32 %v5363, 1.0
    %v5365 = vrcp.pop %v5364
    %v5366 = vmul.f32 %v5364, %v5365
    %v5367 = vsub.f32 1.0, %v5366
    %v5368 = vmul.f32 %v5365, %v5367
    %v5369 = vadd.f32 %v5365, %v5368
    %vm5370 = vweird.f32 %v5364
    %vm5371 = vweird.f32 %v5365
    %vm5372 = vmor %vm5370, %vm5371
    %v5373 = vsel %vm5372, %v5365, %v5369
    %v5374 = vand.u32 2147483647, %v5364
    %vm5375 = vcmp.eq.f32.partialorder %v5374, 8.507059e+37
    %v5376 = vand.u32 %v5364, 2147483648
    %v5377 = vor.u32 1.1754944e-38, %v5376
    %v5378 = vsel %vm5375, %v5377, %v5373
    %v5379 = vmul.f32 1.0, %v5378
    %v5380 = vxor.u32 %v5358, 2147483648
    %v5381 = vmul.f32 %v5380, 1.442695
    %v5382 = vpow.pop %v5381
    %v5383 = vadd.f32 %v5382, 1.0
    %v5384 = vrcp.pop %v5383
    %v5385 = vmul.f32 %v5383, %v5384
    %v5386 = vsub.f32 1.0, %v5385
    %v5387 = vmul.f32 %v5384, %v5386
    %v5388 = vadd.f32 %v5384, %v5387
    %vm5389 = vweird.f32 %v5383
    %vm5390 = vweird.f32 %v5384
    %vm5391 = vmor %vm5389, %vm5390
    %v5392 = vsel %vm5391, %v5384, %v5388
    %v5393 = vand.u32 2147483647, %v5383
    %vm5394 = vcmp.eq.f32.partialorder %v5393, 8.507059e+37
    %v5395 = vand.u32 %v5383, 2147483648
    %v5396 = vor.u32 1.1754944e-38, %v5395
    %v5397 = vsel %vm5394, %v5396, %v5392
    %v5398 = vmul.f32 1.0, %v5397
    %v5399 = vtanh.pop %v5359
    %v5400 = vxor.u32 %v5360, 2147483648
    %v5401 = vmul.f32 %v5400, 1.442695
    %v5402 = vpow.pop %v5401
    %v5403 = vadd.f32 %v5402, 1.0
    %v5404 = vrcp.pop %v5403
    %v5405 = vmul.f32 %v5403, %v5404
    %v5406 = vsub.f32 1.0, %v5405
    %v5407 = vmul.f32 %v5404, %v5406
    %v5408 = vadd.f32 %v5404, %v5407
    %vm5409 = vweird.f32 %v5403
    %vm5410 = vweird.f32 %v5404
    %vm5411 = vmor %vm5409, %vm5410
    %v5412 = vsel %vm5411, %v5404, %v5408
    %v5413 = vand.u32 2147483647, %v5403
    %vm5414 = vcmp.eq.f32.partialorder %v5413, 8.507059e+37
    %v5415 = vand.u32 %v5403, 2147483648
    %v5416 = vor.u32 1.1754944e-38, %v5415
    %v5417 = vsel %vm5414, %v5416, %v5412
    %v5418 = vmul.f32 1.0, %v5417
    %v5419 = vmul.f32 %v5398, %v4706
    %v5420 = vmul.f32 %v5379, %v5399
    %v5421 = vadd.f32 %v5419, %v5420
    %v5422 = vtanh.pop %v5421
    %v5423 = vmul.f32 %v5418, %v5422
    %v5424 = vld [vmem:[#allocation11] sm:$0xff]
    %v5425 = vld [vmem:[#allocation11 + $0x8] sm:$0xff]
    %v5426 = vld [vmem:[#allocation11 + $0x10] sm:$0xff]
    %v5427 = vld [vmem:[#allocation11 + $0x18] sm:$0xff]
    %v5428 = vld [vmem:[#allocation11 + $0x20] sm:$0xff]
    %v5429 = vld [vmem:[#allocation11 + $0x28] sm:$0xff]
    %v5430 = vld [vmem:[#allocation11 + $0x30] sm:$0xff]
    %v5431 = vld [vmem:[#allocation11 + $0x38] sm:$0xff]
    %v5432 = vld [vmem:[#allocation11 + $0x40] sm:$0xff]
    %v5433 = vld [vmem:[#allocation11 + $0x48] sm:$0xff]
    %v5434 = vld [vmem:[#allocation11 + $0x50] sm:$0xff]
    %v5435 = vld [vmem:[#allocation11 + $0x58] sm:$0xff]
    %v5436 = vld [vmem:[#allocation11 + $0x60] sm:$0xff]
    %v5437 = vld [vmem:[#allocation11 + $0x68] sm:$0xff]
    %v5438 = vld [vmem:[#allocation11 + $0x70] sm:$0xff]
    %v5439 = vld [vmem:[#allocation11 + $0x78] sm:$0xff]
    %v5440 = vld [vmem:[#allocation11 + $0x80] sm:$0xff]
    %v5441 = vld [vmem:[#allocation11 + $0x88] sm:$0xff]
    %v5442 = vld [vmem:[#allocation11 + $0x90] sm:$0xff]
    %v5443 = vld [vmem:[#allocation11 + $0x98] sm:$0xff]
    %v5444 = vld [vmem:[#allocation11 + $0xa0] sm:$0xff]
    %v5445 = vld [vmem:[#allocation11 + $0xa8] sm:$0xff]
    %v5446 = vld [vmem:[#allocation11 + $0xb0] sm:$0xff]
    %v5447 = vld [vmem:[#allocation11 + $0xb8] sm:$0xff]
    %v5448 = vld [vmem:[#allocation11 + $0xc0] sm:$0xff]
    %v5449 = vld [vmem:[#allocation11 + $0xc8] sm:$0xff]
    %v5450 = vld [vmem:[#allocation11 + $0xd0] sm:$0xff]
    %v5451 = vld [vmem:[#allocation11 + $0xd8] sm:$0xff]
    %v5452 = vld [vmem:[#allocation11 + $0xe0] sm:$0xff]
    %v5453 = vld [vmem:[#allocation11 + $0xe8] sm:$0xff]
    %v5454 = vld [vmem:[#allocation11 + $0xf0] sm:$0xff]
    %v5455 = vld [vmem:[#allocation11 + $0xf8] sm:$0xff]
    %v5456 = vld [vmem:[#allocation11 + $0x100] sm:$0xff]
    %v5457 = vld [vmem:[#allocation11 + $0x108] sm:$0xff]
    %v5458 = vld [vmem:[#allocation11 + $0x110] sm:$0xff]
    %v5459 = vld [vmem:[#allocation11 + $0x118] sm:$0xff]
    %v5460 = vld [vmem:[#allocation11 + $0x120] sm:$0xff]
    %v5461 = vld [vmem:[#allocation11 + $0x128] sm:$0xff]
    %v5462 = vld [vmem:[#allocation11 + $0x130] sm:$0xff]
    %v5463 = vld [vmem:[#allocation11 + $0x138] sm:$0xff]
    %v5464 = vld [vmem:[#allocation11 + $0x140] sm:$0xff]
    %v5465 = vld [vmem:[#allocation11 + $0x148] sm:$0xff]
    %v5466 = vld [vmem:[#allocation11 + $0x150] sm:$0xff]
    %v5467 = vld [vmem:[#allocation11 + $0x158] sm:$0xff]
    %v5468 = vld [vmem:[#allocation11 + $0x160] sm:$0xff]
    %v5469 = vld [vmem:[#allocation11 + $0x168] sm:$0xff]
    %v5470 = vld [vmem:[#allocation11 + $0x170] sm:$0xff]
    %v5471 = vld [vmem:[#allocation11 + $0x178] sm:$0xff]
    %v5472 = vld [vmem:[#allocation11 + $0x180] sm:$0xff]
    %v5473 = vld [vmem:[#allocation11 + $0x188] sm:$0xff]
    %v5474 = vld [vmem:[#allocation11 + $0x190] sm:$0xff]
    %v5475 = vld [vmem:[#allocation11 + $0x198] sm:$0xff]
    %v5476 = vld [vmem:[#allocation11 + $0x1a0] sm:$0xff]
    %v5477 = vld [vmem:[#allocation11 + $0x1a8] sm:$0xff]
    %v5478 = vld [vmem:[#allocation11 + $0x1b0] sm:$0xff]
    %v5479 = vld [vmem:[#allocation11 + $0x1b8] sm:$0xff]
    %v5480 = vld [vmem:[#allocation11 + $0x1c0] sm:$0xff]
    %v5481 = vld [vmem:[#allocation11 + $0x1c8] sm:$0xff]
    %v5482 = vld [vmem:[#allocation11 + $0x1d0] sm:$0xff]
    %v5483 = vld [vmem:[#allocation11 + $0x1d8] sm:$0xff]
    %v5484 = vld [vmem:[#allocation11 + $0x1e0] sm:$0xff]
    %v5485 = vld [vmem:[#allocation11 + $0x1e8] sm:$0xff]
    %v5486 = vld [vmem:[#allocation11 + $0x1f0] sm:$0xff]
    %v5487 = vld [vmem:[#allocation11 + $0x1f8] sm:$0xff]
    %v5488 = vld [vmem:[#allocation11 + $0x200] sm:$0xff]
    %v5489 = vld [vmem:[#allocation11 + $0x208] sm:$0xff]
    %v5490 = vld [vmem:[#allocation11 + $0x210] sm:$0xff]
    %v5491 = vld [vmem:[#allocation11 + $0x218] sm:$0xff]
    %v5492 = vld [vmem:[#allocation11 + $0x220] sm:$0xff]
    %v5493 = vld [vmem:[#allocation11 + $0x228] sm:$0xff]
    %v5494 = vld [vmem:[#allocation11 + $0x230] sm:$0xff]
    %v5495 = vld [vmem:[#allocation11 + $0x238] sm:$0xff]
    %v5496 = vld [vmem:[#allocation11 + $0x240] sm:$0xff]
    %v5497 = vld [vmem:[#allocation11 + $0x248] sm:$0xff]
    %v5498 = vld [vmem:[#allocation11 + $0x250] sm:$0xff]
    %v5499 = vld [vmem:[#allocation11 + $0x258] sm:$0xff]
    %v5500 = vld [vmem:[#allocation11 + $0x260] sm:$0xff]
    %v5501 = vld [vmem:[#allocation11 + $0x268] sm:$0xff]
    %v5502 = vld [vmem:[#allocation11 + $0x270] sm:$0xff]
    %v5503 = vld [vmem:[#allocation11 + $0x278] sm:$0xff]
    %v5504 = vld [vmem:[#allocation11 + $0x280] sm:$0xff]
    %v5505 = vld [vmem:[#allocation11 + $0x288] sm:$0xff]
    %v5506 = vld [vmem:[#allocation11 + $0x290] sm:$0xff]
    %v5507 = vld [vmem:[#allocation11 + $0x298] sm:$0xff]
    %v5508 = vld [vmem:[#allocation11 + $0x2a0] sm:$0xff]
    %v5509 = vld [vmem:[#allocation11 + $0x2a8] sm:$0xff]
    %v5510 = vld [vmem:[#allocation11 + $0x2b0] sm:$0xff]
    %v5511 = vld [vmem:[#allocation11 + $0x2b8] sm:$0xff]
    %v5512 = vld [vmem:[#allocation11 + $0x2c0] sm:$0xff]
    %v5513 = vld [vmem:[#allocation11 + $0x2c8] sm:$0xff]
    %v5514 = vld [vmem:[#allocation11 + $0x2d0] sm:$0xff]
    %v5515 = vld [vmem:[#allocation11 + $0x2d8] sm:$0xff]
    %v5516 = vld [vmem:[#allocation11 + $0x2e0] sm:$0xff]
    %v5517 = vld [vmem:[#allocation11 + $0x2e8] sm:$0xff]
    %v5518 = vld [vmem:[#allocation11 + $0x2f0] sm:$0xff]
    %v5519 = vld [vmem:[#allocation11 + $0x2f8] sm:$0xff]
    %v5520 = vld [vmem:[#allocation11 + $0x300] sm:$0xff]
    %v5521 = vld [vmem:[#allocation11 + $0x308] sm:$0xff]
    %v5522 = vld [vmem:[#allocation11 + $0x310] sm:$0xff]
    %v5523 = vld [vmem:[#allocation11 + $0x318] sm:$0xff]
    %v5524 = vld [vmem:[#allocation11 + $0x320] sm:$0xff]
    %v5525 = vld [vmem:[#allocation11 + $0x328] sm:$0xff]
    %v5526 = vld [vmem:[#allocation11 + $0x330] sm:$0xff]
    %v5527 = vld [vmem:[#allocation11 + $0x338] sm:$0xff]
    %v5528 = vld [vmem:[#allocation11 + $0x340] sm:$0xff]
    %v5529 = vld [vmem:[#allocation11 + $0x348] sm:$0xff]
    %v5530 = vld [vmem:[#allocation11 + $0x350] sm:$0xff]
    %v5531 = vld [vmem:[#allocation11 + $0x358] sm:$0xff]
    %v5532 = vld [vmem:[#allocation11 + $0x360] sm:$0xff]
    %v5533 = vld [vmem:[#allocation11 + $0x368] sm:$0xff]
    %v5534 = vld [vmem:[#allocation11 + $0x370] sm:$0xff]
    %v5535 = vld [vmem:[#allocation11 + $0x378] sm:$0xff]
    %v5536 = vld [vmem:[#allocation11 + $0x380] sm:$0xff]
    %v5537 = vld [vmem:[#allocation11 + $0x388] sm:$0xff]
    %v5538 = vld [vmem:[#allocation11 + $0x390] sm:$0xff]
    %v5539 = vld [vmem:[#allocation11 + $0x398] sm:$0xff]
    %v5540 = vld [vmem:[#allocation11 + $0x3a0] sm:$0xff]
    %v5541 = vld [vmem:[#allocation11 + $0x3a8] sm:$0xff]
    %v5542 = vld [vmem:[#allocation11 + $0x3b0] sm:$0xff]
    %v5543 = vld [vmem:[#allocation11 + $0x3b8] sm:$0xff]
    %v5544 = vld [vmem:[#allocation11 + $0x3c0] sm:$0xff]
    %v5545 = vld [vmem:[#allocation11 + $0x3c8] sm:$0xff]
    %v5546 = vld [vmem:[#allocation11 + $0x3d0] sm:$0xff]
    %v5547 = vld [vmem:[#allocation11 + $0x3d8] sm:$0xff]
    %v5548 = vld [vmem:[#allocation11 + $0x3e0] sm:$0xff]
    %v5549 = vld [vmem:[#allocation11 + $0x3e8] sm:$0xff]
    %v5550 = vld [vmem:[#allocation11 + $0x3f0] sm:$0xff]
    %v5551 = vld [vmem:[#allocation11 + $0x3f8] sm:$0xff]
    %5552 = vmatpush.msra.mxu0 %v5484
    %5553 = vmatpush.msra.mxu0 %v5480
    %5554 = vmatpush.msra.mxu0 %v5476
    %5555 = vmatpush.msra.mxu0 %v5472
    %5556 = vmatpush.msra.mxu0 %v5468
    %5557 = vmatpush.msra.mxu0 %v5464
    %5558 = vmatpush.msra.mxu0 %v5460
    %5559 = vmatpush.msra.mxu0 %v5456
    %5560 = vmatpush.msra.mxu0 %v5452
    %5561 = vmatpush.msra.mxu0 %v5448
    %5562 = vmatpush.msra.mxu0 %v5444
    %5563 = vmatpush.msra.mxu0 %v5440
    %5564 = vmatpush.msra.mxu0 %v5436
    %5565 = vmatpush.msra.mxu0 %v5432
    %5566 = vmatpush.msra.mxu0 %v5428
    %5567 = vmatpush.msra.mxu0 %v5424
    %5568 = vmatmul.f32.gmra.mxu0 %v5423
    %v5569 = vpop.f32.mrf.mxu0
    %v5570 = vadd.f32 %v587, %v5569
    %5571 = vdwg.mxu0
    %5572 = vmatpush.msra.mxu0 %v5548
    %5573 = vmatpush.msra.mxu0 %v5544
    %5574 = vmatpush.msra.mxu0 %v5540
    %5575 = vmatpush.msra.mxu0 %v5536
    %5576 = vmatpush.msra.mxu0 %v5532
    %5577 = vmatpush.msra.mxu0 %v5528
    %5578 = vmatpush.msra.mxu0 %v5524
    %5579 = vmatpush.msra.mxu0 %v5520
    %5580 = vmatpush.msra.mxu0 %v5516
    %5581 = vmatpush.msra.mxu0 %v5512
    %5582 = vmatpush.msra.mxu0 %v5508
    %5583 = vmatpush.msra.mxu0 %v5504
    %5584 = vmatpush.msra.mxu0 %v5500
    %5585 = vmatpush.msra.mxu0 %v5496
    %5586 = vmatpush.msra.mxu0 %v5492
    %5587 = vmatpush.msra.mxu0 %v5488
    %5588 = vmatmul.f32.gmra.mxu0 %v5059
    %v5589 = vpop.f32.mrf.mxu0
    %v5590 = vadd.f32 %v5570, %v5589
    %5591 = vdwg.mxu0
    %5592 = vmatpush.msra.mxu0 %v5485
    %5593 = vmatpush.msra.mxu0 %v5481
    %5594 = vmatpush.msra.mxu0 %v5477
    %5595 = vmatpush.msra.mxu0 %v5473
    %5596 = vmatpush.msra.mxu0 %v5469
    %5597 = vmatpush.msra.mxu0 %v5465
    %5598 = vmatpush.msra.mxu0 %v5461
    %5599 = vmatpush.msra.mxu0 %v5457
    %5600 = vmatpush.msra.mxu0 %v5453
    %5601 = vmatpush.msra.mxu0 %v5449
    %5602 = vmatpush.msra.mxu0 %v5445
    %5603 = vmatpush.msra.mxu0 %v5441
    %5604 = vmatpush.msra.mxu0 %v5437
    %5605 = vmatpush.msra.mxu0 %v5433
    %5606 = vmatpush.msra.mxu0 %v5429
    %5607 = vmatpush.msra.mxu0 %v5425
    %5608 = vmatmul.f32.gmra.mxu0 %v5423
    %v5609 = vpop.f32.mrf.mxu0
    %v5610 = vadd.f32 %v588, %v5609
    %5611 = vdwg.mxu0
    %5612 = vmatpush.msra.mxu0 %v5549
    %5613 = vmatpush.msra.mxu0 %v5545
    %5614 = vmatpush.msra.mxu0 %v5541
    %5615 = vmatpush.msra.mxu0 %v5537
    %5616 = vmatpush.msra.mxu0 %v5533
    %5617 = vmatpush.msra.mxu0 %v5529
    %5618 = vmatpush.msra.mxu0 %v5525
    %5619 = vmatpush.msra.mxu0 %v5521
    %5620 = vmatpush.msra.mxu0 %v5517
    %5621 = vmatpush.msra.mxu0 %v5513
    %5622 = vmatpush.msra.mxu0 %v5509
    %5623 = vmatpush.msra.mxu0 %v5505
    %5624 = vmatpush.msra.mxu0 %v5501
    %5625 = vmatpush.msra.mxu0 %v5497
    %5626 = vmatpush.msra.mxu0 %v5493
    %5627 = vmatpush.msra.mxu0 %v5489
    %5628 = vmatmul.f32.gmra.mxu0 %v5059
    %v5629 = vpop.f32.mrf.mxu0
    %v5630 = vadd.f32 %v5610, %v5629
    %5631 = vdwg.mxu0
    %5632 = vmatpush.msra.mxu0 %v5486
    %5633 = vmatpush.msra.mxu0 %v5482
    %5634 = vmatpush.msra.mxu0 %v5478
    %5635 = vmatpush.msra.mxu0 %v5474
    %5636 = vmatpush.msra.mxu0 %v5470
    %5637 = vmatpush.msra.mxu0 %v5466
    %5638 = vmatpush.msra.mxu0 %v5462
    %5639 = vmatpush.msra.mxu0 %v5458
    %5640 = vmatpush.msra.mxu0 %v5454
    %5641 = vmatpush.msra.mxu0 %v5450
    %5642 = vmatpush.msra.mxu0 %v5446
    %5643 = vmatpush.msra.mxu0 %v5442
    %5644 = vmatpush.msra.mxu0 %v5438
    %5645 = vmatpush.msra.mxu0 %v5434
    %5646 = vmatpush.msra.mxu0 %v5430
    %5647 = vmatpush.msra.mxu0 %v5426
    %5648 = vmatmul.f32.gmra.mxu0 %v5423
    %v5649 = vpop.f32.mrf.mxu0
    %v5650 = vadd.f32 %v589, %v5649
    %5651 = vdwg.mxu0
    %5652 = vmatpush.msra.mxu0 %v5550
    %5653 = vmatpush.msra.mxu0 %v5546
    %5654 = vmatpush.msra.mxu0 %v5542
    %5655 = vmatpush.msra.mxu0 %v5538
    %5656 = vmatpush.msra.mxu0 %v5534
    %5657 = vmatpush.msra.mxu0 %v5530
    %5658 = vmatpush.msra.mxu0 %v5526
    %5659 = vmatpush.msra.mxu0 %v5522
    %5660 = vmatpush.msra.mxu0 %v5518
    %5661 = vmatpush.msra.mxu0 %v5514
    %5662 = vmatpush.msra.mxu0 %v5510
    %5663 = vmatpush.msra.mxu0 %v5506
    %5664 = vmatpush.msra.mxu0 %v5502
    %5665 = vmatpush.msra.mxu0 %v5498
    %5666 = vmatpush.msra.mxu0 %v5494
    %5667 = vmatpush.msra.mxu0 %v5490
    %5668 = vmatmul.f32.gmra.mxu0 %v5059
    %v5669 = vpop.f32.mrf.mxu0
    %v5670 = vadd.f32 %v5650, %v5669
    %5671 = vdwg.mxu0
    %5672 = vmatpush.msra.mxu0 %v5487
    %5673 = vmatpush.msra.mxu0 %v5483
    %5674 = vmatpush.msra.mxu0 %v5479
    %5675 = vmatpush.msra.mxu0 %v5475
    %5676 = vmatpush.msra.mxu0 %v5471
    %5677 = vmatpush.msra.mxu0 %v5467
    %5678 = vmatpush.msra.mxu0 %v5463
    %5679 = vmatpush.msra.mxu0 %v5459
    %5680 = vmatpush.msra.mxu0 %v5455
    %5681 = vmatpush.msra.mxu0 %v5451
    %5682 = vmatpush.msra.mxu0 %v5447
    %5683 = vmatpush.msra.mxu0 %v5443
    %5684 = vmatpush.msra.mxu0 %v5439
    %5685 = vmatpush.msra.mxu0 %v5435
    %5686 = vmatpush.msra.mxu0 %v5431
    %5687 = vmatpush.msra.mxu0 %v5427
    %5688 = vmatmul.f32.gmra.mxu0 %v5423
    %v5689 = vpop.f32.mrf.mxu0
    %v5690 = vadd.f32 %v590, %v5689
    %5691 = vdwg.mxu0
    %5692 = vmatpush.msra.mxu0 %v5551
    %5693 = vmatpush.msra.mxu0 %v5547
    %5694 = vmatpush.msra.mxu0 %v5543
    %5695 = vmatpush.msra.mxu0 %v5539
    %5696 = vmatpush.msra.mxu0 %v5535
    %5697 = vmatpush.msra.mxu0 %v5531
    %5698 = vmatpush.msra.mxu0 %v5527
    %5699 = vmatpush.msra.mxu0 %v5523
    %5700 = vmatpush.msra.mxu0 %v5519
    %5701 = vmatpush.msra.mxu0 %v5515
    %5702 = vmatpush.msra.mxu0 %v5511
    %5703 = vmatpush.msra.mxu0 %v5507
    %5704 = vmatpush.msra.mxu0 %v5503
    %5705 = vmatpush.msra.mxu0 %v5499
    %5706 = vmatpush.msra.mxu0 %v5495
    %5707 = vmatpush.msra.mxu0 %v5491
    %5708 = vmatmul.f32.gmra.mxu0 %v5059
    %v5709 = vpop.f32.mrf.mxu0
    %v5710 = vadd.f32 %v5690, %v5709
    %5711 = vdwg.mxu0
    %v5712 = vxor.u32 %v5590, 2147483648
    %v5713 = vmul.f32 %v5712, 1.442695
    %v5714 = vpow.pop %v5713
    %v5715 = vadd.f32 %v5714, 1.0
    %v5716 = vrcp.pop %v5715
    %v5717 = vmul.f32 %v5715, %v5716
    %v5718 = vsub.f32 1.0, %v5717
    %v5719 = vmul.f32 %v5716, %v5718
    %v5720 = vadd.f32 %v5716, %v5719
    %vm5721 = vweird.f32 %v5715
    %vm5722 = vweird.f32 %v5716
    %vm5723 = vmor %vm5721, %vm5722
    %v5724 = vsel %vm5723, %v5716, %v5720
    %v5725 = vand.u32 2147483647, %v5715
    %vm5726 = vcmp.eq.f32.partialorder %v5725, 8.507059e+37
    %v5727 = vand.u32 %v5715, 2147483648
    %v5728 = vor.u32 1.1754944e-38, %v5727
    %v5729 = vsel %vm5726, %v5728, %v5724
    %v5730 = vmul.f32 1.0, %v5729
    %v5731 = vxor.u32 %v5630, 2147483648
    %v5732 = vmul.f32 %v5731, 1.442695
    %v5733 = vpow.pop %v5732
    %v5734 = vadd.f32 %v5733, 1.0
    %v5735 = vrcp.pop %v5734
    %v5736 = vmul.f32 %v5734, %v5735
    %v5737 = vsub.f32 1.0, %v5736
    %v5738 = vmul.f32 %v5735, %v5737
    %v5739 = vadd.f32 %v5735, %v5738
    %vm5740 = vweird.f32 %v5734
    %vm5741 = vweird.f32 %v5735
    %vm5742 = vmor %vm5740, %vm5741
    %v5743 = vsel %vm5742, %v5735, %v5739
    %v5744 = vand.u32 2147483647, %v5734
    %vm5745 = vcmp.eq.f32.partialorder %v5744, 8.507059e+37
    %v5746 = vand.u32 %v5734, 2147483648
    %v5747 = vor.u32 1.1754944e-38, %v5746
    %v5748 = vsel %vm5745, %v5747, %v5743
    %v5749 = vmul.f32 1.0, %v5748
    %v5750 = vtanh.pop %v5670
    %v5751 = vxor.u32 %v5710, 2147483648
    %v5752 = vmul.f32 %v5751, 1.442695
    %v5753 = vpow.pop %v5752
    %v5754 = vadd.f32 %v5753, 1.0
    %v5755 = vrcp.pop %v5754
    %v5756 = vmul.f32 %v5754, %v5755
    %v5757 = vsub.f32 1.0, %v5756
    %v5758 = vmul.f32 %v5755, %v5757
    %v5759 = vadd.f32 %v5755, %v5758
    %vm5760 = vweird.f32 %v5754
    %vm5761 = vweird.f32 %v5755
    %vm5762 = vmor %vm5760, %vm5761
    %v5763 = vsel %vm5762, %v5755, %v5759
    %v5764 = vand.u32 2147483647, %v5754
    %vm5765 = vcmp.eq.f32.partialorder %v5764, 8.507059e+37
    %v5766 = vand.u32 %v5754, 2147483648
    %v5767 = vor.u32 1.1754944e-38, %v5766
    %v5768 = vsel %vm5765, %v5767, %v5763
    %v5769 = vmul.f32 1.0, %v5768
    %v5770 = vmul.f32 %v5749, %v5057
    %v5771 = vmul.f32 %v5730, %v5750
    %v5772 = vadd.f32 %v5770, %v5771
    %v5773 = vtanh.pop %v5772
    %v5774 = vmul.f32 %v5769, %v5773
    %5775 = vst [vmem:[#allocation4 + $0x10] sm:$0xff] %v5774
    %v5776 = vld [vmem:[#allocation3 + $0x60] sm:$0xff]
    %v5777 = vld [vmem:[#allocation3 + $0x68] sm:$0xff]
    %v5778 = vld [vmem:[#allocation3 + $0x70] sm:$0xff]
    %v5779 = vld [vmem:[#allocation3 + $0x78] sm:$0xff]
    %v5780 = vadd.f32 %v5776, %v576
    %v5781 = vadd.f32 %v5777, %v577
    %v5782 = vadd.f32 %v5778, %v578
    %v5783 = vadd.f32 %v5779, %v579
    %v5784 = vld [vmem:[#allocation10] sm:$0xff]
    %v5785 = vld [vmem:[#allocation10 + $0x8] sm:$0xff]
    %v5786 = vld [vmem:[#allocation10 + $0x10] sm:$0xff]
    %v5787 = vld [vmem:[#allocation10 + $0x18] sm:$0xff]
    %v5788 = vld [vmem:[#allocation10 + $0x20] sm:$0xff]
    %v5789 = vld [vmem:[#allocation10 + $0x28] sm:$0xff]
    %v5790 = vld [vmem:[#allocation10 + $0x30] sm:$0xff]
    %v5791 = vld [vmem:[#allocation10 + $0x38] sm:$0xff]
    %v5792 = vld [vmem:[#allocation10 + $0x40] sm:$0xff]
    %v5793 = vld [vmem:[#allocation10 + $0x48] sm:$0xff]
    %v5794 = vld [vmem:[#allocation10 + $0x50] sm:$0xff]
    %v5795 = vld [vmem:[#allocation10 + $0x58] sm:$0xff]
    %v5796 = vld [vmem:[#allocation10 + $0x60] sm:$0xff]
    %v5797 = vld [vmem:[#allocation10 + $0x68] sm:$0xff]
    %v5798 = vld [vmem:[#allocation10 + $0x70] sm:$0xff]
    %v5799 = vld [vmem:[#allocation10 + $0x78] sm:$0xff]
    %v5800 = vld [vmem:[#allocation10 + $0x80] sm:$0xff]
    %v5801 = vld [vmem:[#allocation10 + $0x88] sm:$0xff]
    %v5802 = vld [vmem:[#allocation10 + $0x90] sm:$0xff]
    %v5803 = vld [vmem:[#allocation10 + $0x98] sm:$0xff]
    %v5804 = vld [vmem:[#allocation10 + $0xa0] sm:$0xff]
    %v5805 = vld [vmem:[#allocation10 + $0xa8] sm:$0xff]
    %v5806 = vld [vmem:[#allocation10 + $0xb0] sm:$0xff]
    %v5807 = vld [vmem:[#allocation10 + $0xb8] sm:$0xff]
    %v5808 = vld [vmem:[#allocation10 + $0xc0] sm:$0xff]
    %v5809 = vld [vmem:[#allocation10 + $0xc8] sm:$0xff]
    %v5810 = vld [vmem:[#allocation10 + $0xd0] sm:$0xff]
    %v5811 = vld [vmem:[#allocation10 + $0xd8] sm:$0xff]
    %v5812 = vld [vmem:[#allocation10 + $0xe0] sm:$0xff]
    %v5813 = vld [vmem:[#allocation10 + $0xe8] sm:$0xff]
    %v5814 = vld [vmem:[#allocation10 + $0xf0] sm:$0xff]
    %v5815 = vld [vmem:[#allocation10 + $0xf8] sm:$0xff]
    %v5816 = vld [vmem:[#allocation10 + $0x100] sm:$0xff]
    %v5817 = vld [vmem:[#allocation10 + $0x108] sm:$0xff]
    %v5818 = vld [vmem:[#allocation10 + $0x110] sm:$0xff]
    %v5819 = vld [vmem:[#allocation10 + $0x118] sm:$0xff]
    %v5820 = vld [vmem:[#allocation10 + $0x120] sm:$0xff]
    %v5821 = vld [vmem:[#allocation10 + $0x128] sm:$0xff]
    %v5822 = vld [vmem:[#allocation10 + $0x130] sm:$0xff]
    %v5823 = vld [vmem:[#allocation10 + $0x138] sm:$0xff]
    %v5824 = vld [vmem:[#allocation10 + $0x140] sm:$0xff]
    %v5825 = vld [vmem:[#allocation10 + $0x148] sm:$0xff]
    %v5826 = vld [vmem:[#allocation10 + $0x150] sm:$0xff]
    %v5827 = vld [vmem:[#allocation10 + $0x158] sm:$0xff]
    %v5828 = vld [vmem:[#allocation10 + $0x160] sm:$0xff]
    %v5829 = vld [vmem:[#allocation10 + $0x168] sm:$0xff]
    %v5830 = vld [vmem:[#allocation10 + $0x170] sm:$0xff]
    %v5831 = vld [vmem:[#allocation10 + $0x178] sm:$0xff]
    %v5832 = vld [vmem:[#allocation10 + $0x180] sm:$0xff]
    %v5833 = vld [vmem:[#allocation10 + $0x188] sm:$0xff]
    %v5834 = vld [vmem:[#allocation10 + $0x190] sm:$0xff]
    %v5835 = vld [vmem:[#allocation10 + $0x198] sm:$0xff]
    %v5836 = vld [vmem:[#allocation10 + $0x1a0] sm:$0xff]
    %v5837 = vld [vmem:[#allocation10 + $0x1a8] sm:$0xff]
    %v5838 = vld [vmem:[#allocation10 + $0x1b0] sm:$0xff]
    %v5839 = vld [vmem:[#allocation10 + $0x1b8] sm:$0xff]
    %v5840 = vld [vmem:[#allocation10 + $0x1c0] sm:$0xff]
    %v5841 = vld [vmem:[#allocation10 + $0x1c8] sm:$0xff]
    %v5842 = vld [vmem:[#allocation10 + $0x1d0] sm:$0xff]
    %v5843 = vld [vmem:[#allocation10 + $0x1d8] sm:$0xff]
    %v5844 = vld [vmem:[#allocation10 + $0x1e0] sm:$0xff]
    %v5845 = vld [vmem:[#allocation10 + $0x1e8] sm:$0xff]
    %v5846 = vld [vmem:[#allocation10 + $0x1f0] sm:$0xff]
    %v5847 = vld [vmem:[#allocation10 + $0x1f8] sm:$0xff]
    %v5848 = vld [vmem:[#allocation10 + $0x200] sm:$0xff]
    %v5849 = vld [vmem:[#allocation10 + $0x208] sm:$0xff]
    %v5850 = vld [vmem:[#allocation10 + $0x210] sm:$0xff]
    %v5851 = vld [vmem:[#allocation10 + $0x218] sm:$0xff]
    %v5852 = vld [vmem:[#allocation10 + $0x220] sm:$0xff]
    %v5853 = vld [vmem:[#allocation10 + $0x228] sm:$0xff]
    %v5854 = vld [vmem:[#allocation10 + $0x230] sm:$0xff]
    %v5855 = vld [vmem:[#allocation10 + $0x238] sm:$0xff]
    %v5856 = vld [vmem:[#allocation10 + $0x240] sm:$0xff]
    %v5857 = vld [vmem:[#allocation10 + $0x248] sm:$0xff]
    %v5858 = vld [vmem:[#allocation10 + $0x250] sm:$0xff]
    %v5859 = vld [vmem:[#allocation10 + $0x258] sm:$0xff]
    %v5860 = vld [vmem:[#allocation10 + $0x260] sm:$0xff]
    %v5861 = vld [vmem:[#allocation10 + $0x268] sm:$0xff]
    %v5862 = vld [vmem:[#allocation10 + $0x270] sm:$0xff]
    %v5863 = vld [vmem:[#allocation10 + $0x278] sm:$0xff]
    %v5864 = vld [vmem:[#allocation10 + $0x280] sm:$0xff]
    %v5865 = vld [vmem:[#allocation10 + $0x288] sm:$0xff]
    %v5866 = vld [vmem:[#allocation10 + $0x290] sm:$0xff]
    %v5867 = vld [vmem:[#allocation10 + $0x298] sm:$0xff]
    %v5868 = vld [vmem:[#allocation10 + $0x2a0] sm:$0xff]
    %v5869 = vld [vmem:[#allocation10 + $0x2a8] sm:$0xff]
    %v5870 = vld [vmem:[#allocation10 + $0x2b0] sm:$0xff]
    %v5871 = vld [vmem:[#allocation10 + $0x2b8] sm:$0xff]
    %v5872 = vld [vmem:[#allocation10 + $0x2c0] sm:$0xff]
    %v5873 = vld [vmem:[#allocation10 + $0x2c8] sm:$0xff]
    %v5874 = vld [vmem:[#allocation10 + $0x2d0] sm:$0xff]
    %v5875 = vld [vmem:[#allocation10 + $0x2d8] sm:$0xff]
    %v5876 = vld [vmem:[#allocation10 + $0x2e0] sm:$0xff]
    %v5877 = vld [vmem:[#allocation10 + $0x2e8] sm:$0xff]
    %v5878 = vld [vmem:[#allocation10 + $0x2f0] sm:$0xff]
    %v5879 = vld [vmem:[#allocation10 + $0x2f8] sm:$0xff]
    %v5880 = vld [vmem:[#allocation10 + $0x300] sm:$0xff]
    %v5881 = vld [vmem:[#allocation10 + $0x308] sm:$0xff]
    %v5882 = vld [vmem:[#allocation10 + $0x310] sm:$0xff]
    %v5883 = vld [vmem:[#allocation10 + $0x318] sm:$0xff]
    %v5884 = vld [vmem:[#allocation10 + $0x320] sm:$0xff]
    %v5885 = vld [vmem:[#allocation10 + $0x328] sm:$0xff]
    %v5886 = vld [vmem:[#allocation10 + $0x330] sm:$0xff]
    %v5887 = vld [vmem:[#allocation10 + $0x338] sm:$0xff]
    %v5888 = vld [vmem:[#allocation10 + $0x340] sm:$0xff]
    %v5889 = vld [vmem:[#allocation10 + $0x348] sm:$0xff]
    %v5890 = vld [vmem:[#allocation10 + $0x350] sm:$0xff]
    %v5891 = vld [vmem:[#allocation10 + $0x358] sm:$0xff]
    %v5892 = vld [vmem:[#allocation10 + $0x360] sm:$0xff]
    %v5893 = vld [vmem:[#allocation10 + $0x368] sm:$0xff]
    %v5894 = vld [vmem:[#allocation10 + $0x370] sm:$0xff]
    %v5895 = vld [vmem:[#allocation10 + $0x378] sm:$0xff]
    %v5896 = vld [vmem:[#allocation10 + $0x380] sm:$0xff]
    %v5897 = vld [vmem:[#allocation10 + $0x388] sm:$0xff]
    %v5898 = vld [vmem:[#allocation10 + $0x390] sm:$0xff]
    %v5899 = vld [vmem:[#allocation10 + $0x398] sm:$0xff]
    %v5900 = vld [vmem:[#allocation10 + $0x3a0] sm:$0xff]
    %v5901 = vld [vmem:[#allocation10 + $0x3a8] sm:$0xff]
    %v5902 = vld [vmem:[#allocation10 + $0x3b0] sm:$0xff]
    %v5903 = vld [vmem:[#allocation10 + $0x3b8] sm:$0xff]
    %v5904 = vld [vmem:[#allocation10 + $0x3c0] sm:$0xff]
    %v5905 = vld [vmem:[#allocation10 + $0x3c8] sm:$0xff]
    %v5906 = vld [vmem:[#allocation10 + $0x3d0] sm:$0xff]
    %v5907 = vld [vmem:[#allocation10 + $0x3d8] sm:$0xff]
    %v5908 = vld [vmem:[#allocation10 + $0x3e0] sm:$0xff]
    %v5909 = vld [vmem:[#allocation10 + $0x3e8] sm:$0xff]
    %v5910 = vld [vmem:[#allocation10 + $0x3f0] sm:$0xff]
    %v5911 = vld [vmem:[#allocation10 + $0x3f8] sm:$0xff]
    %5912 = vmatpush.msra.mxu0 %v5844
    %5913 = vmatpush.msra.mxu0 %v5840
    %5914 = vmatpush.msra.mxu0 %v5836
    %5915 = vmatpush.msra.mxu0 %v5832
    %5916 = vmatpush.msra.mxu0 %v5828
    %5917 = vmatpush.msra.mxu0 %v5824
    %5918 = vmatpush.msra.mxu0 %v5820
    %5919 = vmatpush.msra.mxu0 %v5816
    %5920 = vmatpush.msra.mxu0 %v5812
    %5921 = vmatpush.msra.mxu0 %v5808
    %5922 = vmatpush.msra.mxu0 %v5804
    %5923 = vmatpush.msra.mxu0 %v5800
    %5924 = vmatpush.msra.mxu0 %v5796
    %5925 = vmatpush.msra.mxu0 %v5792
    %5926 = vmatpush.msra.mxu0 %v5788
    %5927 = vmatpush.msra.mxu0 %v5784
    %5928 = vmatmul.f32.gmra.mxu0 %v5423
    %v5929 = vpop.f32.mrf.mxu0
    %v5930 = vadd.f32 0.0, %v5929
    %5931 = vdwg.mxu0
    %5932 = vmatpush.msra.mxu0 %v5908
    %5933 = vmatpush.msra.mxu0 %v5904
    %5934 = vmatpush.msra.mxu0 %v5900
    %5935 = vmatpush.msra.mxu0 %v5896
    %5936 = vmatpush.msra.mxu0 %v5892
    %5937 = vmatpush.msra.mxu0 %v5888
    %5938 = vmatpush.msra.mxu0 %v5884
    %5939 = vmatpush.msra.mxu0 %v5880
    %5940 = vmatpush.msra.mxu0 %v5876
    %5941 = vmatpush.msra.mxu0 %v5872
    %5942 = vmatpush.msra.mxu0 %v5868
    %5943 = vmatpush.msra.mxu0 %v5864
    %5944 = vmatpush.msra.mxu0 %v5860
    %5945 = vmatpush.msra.mxu0 %v5856
    %5946 = vmatpush.msra.mxu0 %v5852
    %5947 = vmatpush.msra.mxu0 %v5848
    %5948 = vmatmul.f32.gmra.mxu0 %v5774
    %v5949 = vpop.f32.mrf.mxu0
    %v5950 = vadd.f32 %v5930, %v5949
    %5951 = vdwg.mxu0
    %5952 = vmatpush.msra.mxu0 %v5845
    %5953 = vmatpush.msra.mxu0 %v5841
    %5954 = vmatpush.msra.mxu0 %v5837
    %5955 = vmatpush.msra.mxu0 %v5833
    %5956 = vmatpush.msra.mxu0 %v5829
    %5957 = vmatpush.msra.mxu0 %v5825
    %5958 = vmatpush.msra.mxu0 %v5821
    %5959 = vmatpush.msra.mxu0 %v5817
    %5960 = vmatpush.msra.mxu0 %v5813
    %5961 = vmatpush.msra.mxu0 %v5809
    %5962 = vmatpush.msra.mxu0 %v5805
    %5963 = vmatpush.msra.mxu0 %v5801
    %5964 = vmatpush.msra.mxu0 %v5797
    %5965 = vmatpush.msra.mxu0 %v5793
    %5966 = vmatpush.msra.mxu0 %v5789
    %5967 = vmatpush.msra.mxu0 %v5785
    %5968 = vmatmul.f32.gmra.mxu0 %v5423
    %v5969 = vpop.f32.mrf.mxu0
    %v5970 = vadd.f32 0.0, %v5969
    %5971 = vdwg.mxu0
    %5972 = vmatpush.msra.mxu0 %v5909
    %5973 = vmatpush.msra.mxu0 %v5905
    %5974 = vmatpush.msra.mxu0 %v5901
    %5975 = vmatpush.msra.mxu0 %v5897
    %5976 = vmatpush.msra.mxu0 %v5893
    %5977 = vmatpush.msra.mxu0 %v5889
    %5978 = vmatpush.msra.mxu0 %v5885
    %5979 = vmatpush.msra.mxu0 %v5881
    %5980 = vmatpush.msra.mxu0 %v5877
    %5981 = vmatpush.msra.mxu0 %v5873
    %5982 = vmatpush.msra.mxu0 %v5869
    %5983 = vmatpush.msra.mxu0 %v5865
    %5984 = vmatpush.msra.mxu0 %v5861
    %5985 = vmatpush.msra.mxu0 %v5857
    %5986 = vmatpush.msra.mxu0 %v5853
    %5987 = vmatpush.msra.mxu0 %v5849
    %5988 = vmatmul.f32.gmra.mxu0 %v5774
    %v5989 = vpop.f32.mrf.mxu0
    %v5990 = vadd.f32 %v5970, %v5989
    %5991 = vdwg.mxu0
    %5992 = vmatpush.msra.mxu0 %v5846
    %5993 = vmatpush.msra.mxu0 %v5842
    %5994 = vmatpush.msra.mxu0 %v5838
    %5995 = vmatpush.msra.mxu0 %v5834
    %5996 = vmatpush.msra.mxu0 %v5830
    %5997 = vmatpush.msra.mxu0 %v5826
    %5998 = vmatpush.msra.mxu0 %v5822
    %5999 = vmatpush.msra.mxu0 %v5818
    %6000 = vmatpush.msra.mxu0 %v5814
    %6001 = vmatpush.msra.mxu0 %v5810
    %6002 = vmatpush.msra.mxu0 %v5806
    %6003 = vmatpush.msra.mxu0 %v5802
    %6004 = vmatpush.msra.mxu0 %v5798
    %6005 = vmatpush.msra.mxu0 %v5794
    %6006 = vmatpush.msra.mxu0 %v5790
    %6007 = vmatpush.msra.mxu0 %v5786
    %6008 = vmatmul.f32.gmra.mxu0 %v5423
    %v6009 = vpop.f32.mrf.mxu0
    %v6010 = vadd.f32 0.0, %v6009
    %6011 = vdwg.mxu0
    %6012 = vmatpush.msra.mxu0 %v5910
    %6013 = vmatpush.msra.mxu0 %v5906
    %6014 = vmatpush.msra.mxu0 %v5902
    %6015 = vmatpush.msra.mxu0 %v5898
    %6016 = vmatpush.msra.mxu0 %v5894
    %6017 = vmatpush.msra.mxu0 %v5890
    %6018 = vmatpush.msra.mxu0 %v5886
    %6019 = vmatpush.msra.mxu0 %v5882
    %6020 = vmatpush.msra.mxu0 %v5878
    %6021 = vmatpush.msra.mxu0 %v5874
    %6022 = vmatpush.msra.mxu0 %v5870
    %6023 = vmatpush.msra.mxu0 %v5866
    %6024 = vmatpush.msra.mxu0 %v5862
    %6025 = vmatpush.msra.mxu0 %v5858
    %6026 = vmatpush.msra.mxu0 %v5854
    %6027 = vmatpush.msra.mxu0 %v5850
    %6028 = vmatmul.f32.gmra.mxu0 %v5774
    %v6029 = vpop.f32.mrf.mxu0
    %v6030 = vadd.f32 %v6010, %v6029
    %6031 = vdwg.mxu0
    %6032 = vmatpush.msra.mxu0 %v5847
    %6033 = vmatpush.msra.mxu0 %v5843
    %6034 = vmatpush.msra.mxu0 %v5839
    %6035 = vmatpush.msra.mxu0 %v5835
    %6036 = vmatpush.msra.mxu0 %v5831
    %6037 = vmatpush.msra.mxu0 %v5827
    %6038 = vmatpush.msra.mxu0 %v5823
    %6039 = vmatpush.msra.mxu0 %v5819
    %6040 = vmatpush.msra.mxu0 %v5815
    %6041 = vmatpush.msra.mxu0 %v5811
    %6042 = vmatpush.msra.mxu0 %v5807
    %6043 = vmatpush.msra.mxu0 %v5803
    %6044 = vmatpush.msra.mxu0 %v5799
    %6045 = vmatpush.msra.mxu0 %v5795
    %6046 = vmatpush.msra.mxu0 %v5791
    %6047 = vmatpush.msra.mxu0 %v5787
    %6048 = vmatmul.f32.gmra.mxu0 %v5423
    %v6049 = vpop.f32.mrf.mxu0
    %v6050 = vadd.f32 0.0, %v6049
    %6051 = vdwg.mxu0
    %6052 = vmatpush.msra.mxu0 %v5911
    %6053 = vmatpush.msra.mxu0 %v5907
    %6054 = vmatpush.msra.mxu0 %v5903
    %6055 = vmatpush.msra.mxu0 %v5899
    %6056 = vmatpush.msra.mxu0 %v5895
    %6057 = vmatpush.msra.mxu0 %v5891
    %6058 = vmatpush.msra.mxu0 %v5887
    %6059 = vmatpush.msra.mxu0 %v5883
    %6060 = vmatpush.msra.mxu0 %v5879
    %6061 = vmatpush.msra.mxu0 %v5875
    %6062 = vmatpush.msra.mxu0 %v5871
    %6063 = vmatpush.msra.mxu0 %v5867
    %6064 = vmatpush.msra.mxu0 %v5863
    %6065 = vmatpush.msra.mxu0 %v5859
    %6066 = vmatpush.msra.mxu0 %v5855
    %6067 = vmatpush.msra.mxu0 %v5851
    %6068 = vmatmul.f32.gmra.mxu0 %v5774
    %v6069 = vpop.f32.mrf.mxu0
    %v6070 = vadd.f32 %v6050, %v6069
    %6071 = vdwg.mxu0
    %v6072 = vadd.f32 %v5780, %v5950
    %v6073 = vadd.f32 %v5781, %v5990
    %v6074 = vadd.f32 %v5782, %v6030
    %v6075 = vadd.f32 %v5783, %v6070
    %v6076 = vxor.u32 %v6072, 2147483648
    %v6077 = vmul.f32 %v6076, 1.442695
    %v6078 = vpow.pop %v6077
    %v6079 = vadd.f32 %v6078, 1.0
    %v6080 = vrcp.pop %v6079
    %v6081 = vmul.f32 %v6079, %v6080
    %v6082 = vsub.f32 1.0, %v6081
    %v6083 = vmul.f32 %v6080, %v6082
    %v6084 = vadd.f32 %v6080, %v6083
    %vm6085 = vweird.f32 %v6079
    %vm6086 = vweird.f32 %v6080
    %vm6087 = vmor %vm6085, %vm6086
    %v6088 = vsel %vm6087, %v6080, %v6084
    %v6089 = vand.u32 2147483647, %v6079
    %vm6090 = vcmp.eq.f32.partialorder %v6089, 8.507059e+37
    %v6091 = vand.u32 %v6079, 2147483648
    %v6092 = vor.u32 1.1754944e-38, %v6091
    %v6093 = vsel %vm6090, %v6092, %v6088
    %v6094 = vmul.f32 1.0, %v6093
    %v6095 = vxor.u32 %v6073, 2147483648
    %v6096 = vmul.f32 %v6095, 1.442695
    %v6097 = vpow.pop %v6096
    %v6098 = vadd.f32 %v6097, 1.0
    %v6099 = vrcp.pop %v6098
    %v6100 = vmul.f32 %v6098, %v6099
    %v6101 = vsub.f32 1.0, %v6100
    %v6102 = vmul.f32 %v6099, %v6101
    %v6103 = vadd.f32 %v6099, %v6102
    %vm6104 = vweird.f32 %v6098
    %vm6105 = vweird.f32 %v6099
    %vm6106 = vmor %vm6104, %vm6105
    %v6107 = vsel %vm6106, %v6099, %v6103
    %v6108 = vand.u32 2147483647, %v6098
    %vm6109 = vcmp.eq.f32.partialorder %v6108, 8.507059e+37
    %v6110 = vand.u32 %v6098, 2147483648
    %v6111 = vor.u32 1.1754944e-38, %v6110
    %v6112 = vsel %vm6109, %v6111, %v6107
    %v6113 = vmul.f32 1.0, %v6112
    %v6114 = vtanh.pop %v6074
    %v6115 = vxor.u32 %v6075, 2147483648
    %v6116 = vmul.f32 %v6115, 1.442695
    %v6117 = vpow.pop %v6116
    %v6118 = vadd.f32 %v6117, 1.0
    %v6119 = vrcp.pop %v6118
    %v6120 = vmul.f32 %v6118, %v6119
    %v6121 = vsub.f32 1.0, %v6120
    %v6122 = vmul.f32 %v6119, %v6121
    %v6123 = vadd.f32 %v6119, %v6122
    %vm6124 = vweird.f32 %v6118
    %vm6125 = vweird.f32 %v6119
    %vm6126 = vmor %vm6124, %vm6125
    %v6127 = vsel %vm6126, %v6119, %v6123
    %v6128 = vand.u32 2147483647, %v6118
    %vm6129 = vcmp.eq.f32.partialorder %v6128, 8.507059e+37
    %v6130 = vand.u32 %v6118, 2147483648
    %v6131 = vor.u32 1.1754944e-38, %v6130
    %v6132 = vsel %vm6129, %v6131, %v6127
    %v6133 = vmul.f32 1.0, %v6132
    %v6134 = vmul.f32 %v6113, %v5421
    %v6135 = vmul.f32 %v6094, %v6114
    %v6136 = vadd.f32 %v6134, %v6135
    %v6137 = vtanh.pop %v6136
    %v6138 = vmul.f32 %v6133, %v6137
    %v6139 = vld [vmem:[#allocation11] sm:$0xff]
    %v6140 = vld [vmem:[#allocation11 + $0x8] sm:$0xff]
    %v6141 = vld [vmem:[#allocation11 + $0x10] sm:$0xff]
    %v6142 = vld [vmem:[#allocation11 + $0x18] sm:$0xff]
    %v6143 = vld [vmem:[#allocation11 + $0x20] sm:$0xff]
    %v6144 = vld [vmem:[#allocation11 + $0x28] sm:$0xff]
    %v6145 = vld [vmem:[#allocation11 + $0x30] sm:$0xff]
    %v6146 = vld [vmem:[#allocation11 + $0x38] sm:$0xff]
    %v6147 = vld [vmem:[#allocation11 + $0x40] sm:$0xff]
    %v6148 = vld [vmem:[#allocation11 + $0x48] sm:$0xff]
    %v6149 = vld [vmem:[#allocation11 + $0x50] sm:$0xff]
    %v6150 = vld [vmem:[#allocation11 + $0x58] sm:$0xff]
    %v6151 = vld [vmem:[#allocation11 + $0x60] sm:$0xff]
    %v6152 = vld [vmem:[#allocation11 + $0x68] sm:$0xff]
    %v6153 = vld [vmem:[#allocation11 + $0x70] sm:$0xff]
    %v6154 = vld [vmem:[#allocation11 + $0x78] sm:$0xff]
    %v6155 = vld [vmem:[#allocation11 + $0x80] sm:$0xff]
    %v6156 = vld [vmem:[#allocation11 + $0x88] sm:$0xff]
    %v6157 = vld [vmem:[#allocation11 + $0x90] sm:$0xff]
    %v6158 = vld [vmem:[#allocation11 + $0x98] sm:$0xff]
    %v6159 = vld [vmem:[#allocation11 + $0xa0] sm:$0xff]
    %v6160 = vld [vmem:[#allocation11 + $0xa8] sm:$0xff]
    %v6161 = vld [vmem:[#allocation11 + $0xb0] sm:$0xff]
    %v6162 = vld [vmem:[#allocation11 + $0xb8] sm:$0xff]
    %v6163 = vld [vmem:[#allocation11 + $0xc0] sm:$0xff]
    %v6164 = vld [vmem:[#allocation11 + $0xc8] sm:$0xff]
    %v6165 = vld [vmem:[#allocation11 + $0xd0] sm:$0xff]
    %v6166 = vld [vmem:[#allocation11 + $0xd8] sm:$0xff]
    %v6167 = vld [vmem:[#allocation11 + $0xe0] sm:$0xff]
    %v6168 = vld [vmem:[#allocation11 + $0xe8] sm:$0xff]
    %v6169 = vld [vmem:[#allocation11 + $0xf0] sm:$0xff]
    %v6170 = vld [vmem:[#allocation11 + $0xf8] sm:$0xff]
    %v6171 = vld [vmem:[#allocation11 + $0x100] sm:$0xff]
    %v6172 = vld [vmem:[#allocation11 + $0x108] sm:$0xff]
    %v6173 = vld [vmem:[#allocation11 + $0x110] sm:$0xff]
    %v6174 = vld [vmem:[#allocation11 + $0x118] sm:$0xff]
    %v6175 = vld [vmem:[#allocation11 + $0x120] sm:$0xff]
    %v6176 = vld [vmem:[#allocation11 + $0x128] sm:$0xff]
    %v6177 = vld [vmem:[#allocation11 + $0x130] sm:$0xff]
    %v6178 = vld [vmem:[#allocation11 + $0x138] sm:$0xff]
    %v6179 = vld [vmem:[#allocation11 + $0x140] sm:$0xff]
    %v6180 = vld [vmem:[#allocation11 + $0x148] sm:$0xff]
    %v6181 = vld [vmem:[#allocation11 + $0x150] sm:$0xff]
    %v6182 = vld [vmem:[#allocation11 + $0x158] sm:$0xff]
    %v6183 = vld [vmem:[#allocation11 + $0x160] sm:$0xff]
    %v6184 = vld [vmem:[#allocation11 + $0x168] sm:$0xff]
    %v6185 = vld [vmem:[#allocation11 + $0x170] sm:$0xff]
    %v6186 = vld [vmem:[#allocation11 + $0x178] sm:$0xff]
    %v6187 = vld [vmem:[#allocation11 + $0x180] sm:$0xff]
    %v6188 = vld [vmem:[#allocation11 + $0x188] sm:$0xff]
    %v6189 = vld [vmem:[#allocation11 + $0x190] sm:$0xff]
    %v6190 = vld [vmem:[#allocation11 + $0x198] sm:$0xff]
    %v6191 = vld [vmem:[#allocation11 + $0x1a0] sm:$0xff]
    %v6192 = vld [vmem:[#allocation11 + $0x1a8] sm:$0xff]
    %v6193 = vld [vmem:[#allocation11 + $0x1b0] sm:$0xff]
    %v6194 = vld [vmem:[#allocation11 + $0x1b8] sm:$0xff]
    %v6195 = vld [vmem:[#allocation11 + $0x1c0] sm:$0xff]
    %v6196 = vld [vmem:[#allocation11 + $0x1c8] sm:$0xff]
    %v6197 = vld [vmem:[#allocation11 + $0x1d0] sm:$0xff]
    %v6198 = vld [vmem:[#allocation11 + $0x1d8] sm:$0xff]
    %v6199 = vld [vmem:[#allocation11 + $0x1e0] sm:$0xff]
    %v6200 = vld [vmem:[#allocation11 + $0x1e8] sm:$0xff]
    %v6201 = vld [vmem:[#allocation11 + $0x1f0] sm:$0xff]
    %v6202 = vld [vmem:[#allocation11 + $0x1f8] sm:$0xff]
    %v6203 = vld [vmem:[#allocation11 + $0x200] sm:$0xff]
    %v6204 = vld [vmem:[#allocation11 + $0x208] sm:$0xff]
    %v6205 = vld [vmem:[#allocation11 + $0x210] sm:$0xff]
    %v6206 = vld [vmem:[#allocation11 + $0x218] sm:$0xff]
    %v6207 = vld [vmem:[#allocation11 + $0x220] sm:$0xff]
    %v6208 = vld [vmem:[#allocation11 + $0x228] sm:$0xff]
    %v6209 = vld [vmem:[#allocation11 + $0x230] sm:$0xff]
    %v6210 = vld [vmem:[#allocation11 + $0x238] sm:$0xff]
    %v6211 = vld [vmem:[#allocation11 + $0x240] sm:$0xff]
    %v6212 = vld [vmem:[#allocation11 + $0x248] sm:$0xff]
    %v6213 = vld [vmem:[#allocation11 + $0x250] sm:$0xff]
    %v6214 = vld [vmem:[#allocation11 + $0x258] sm:$0xff]
    %v6215 = vld [vmem:[#allocation11 + $0x260] sm:$0xff]
    %v6216 = vld [vmem:[#allocation11 + $0x268] sm:$0xff]
    %v6217 = vld [vmem:[#allocation11 + $0x270] sm:$0xff]
    %v6218 = vld [vmem:[#allocation11 + $0x278] sm:$0xff]
    %v6219 = vld [vmem:[#allocation11 + $0x280] sm:$0xff]
    %v6220 = vld [vmem:[#allocation11 + $0x288] sm:$0xff]
    %v6221 = vld [vmem:[#allocation11 + $0x290] sm:$0xff]
    %v6222 = vld [vmem:[#allocation11 + $0x298] sm:$0xff]
    %v6223 = vld [vmem:[#allocation11 + $0x2a0] sm:$0xff]
    %v6224 = vld [vmem:[#allocation11 + $0x2a8] sm:$0xff]
    %v6225 = vld [vmem:[#allocation11 + $0x2b0] sm:$0xff]
    %v6226 = vld [vmem:[#allocation11 + $0x2b8] sm:$0xff]
    %v6227 = vld [vmem:[#allocation11 + $0x2c0] sm:$0xff]
    %v6228 = vld [vmem:[#allocation11 + $0x2c8] sm:$0xff]
    %v6229 = vld [vmem:[#allocation11 + $0x2d0] sm:$0xff]
    %v6230 = vld [vmem:[#allocation11 + $0x2d8] sm:$0xff]
    %v6231 = vld [vmem:[#allocation11 + $0x2e0] sm:$0xff]
    %v6232 = vld [vmem:[#allocation11 + $0x2e8] sm:$0xff]
    %v6233 = vld [vmem:[#allocation11 + $0x2f0] sm:$0xff]
    %v6234 = vld [vmem:[#allocation11 + $0x2f8] sm:$0xff]
    %v6235 = vld [vmem:[#allocation11 + $0x300] sm:$0xff]
    %v6236 = vld [vmem:[#allocation11 + $0x308] sm:$0xff]
    %v6237 = vld [vmem:[#allocation11 + $0x310] sm:$0xff]
    %v6238 = vld [vmem:[#allocation11 + $0x318] sm:$0xff]
    %v6239 = vld [vmem:[#allocation11 + $0x320] sm:$0xff]
    %v6240 = vld [vmem:[#allocation11 + $0x328] sm:$0xff]
    %v6241 = vld [vmem:[#allocation11 + $0x330] sm:$0xff]
    %v6242 = vld [vmem:[#allocation11 + $0x338] sm:$0xff]
    %v6243 = vld [vmem:[#allocation11 + $0x340] sm:$0xff]
    %v6244 = vld [vmem:[#allocation11 + $0x348] sm:$0xff]
    %v6245 = vld [vmem:[#allocation11 + $0x350] sm:$0xff]
    %v6246 = vld [vmem:[#allocation11 + $0x358] sm:$0xff]
    %v6247 = vld [vmem:[#allocation11 + $0x360] sm:$0xff]
    %v6248 = vld [vmem:[#allocation11 + $0x368] sm:$0xff]
    %v6249 = vld [vmem:[#allocation11 + $0x370] sm:$0xff]
    %v6250 = vld [vmem:[#allocation11 + $0x378] sm:$0xff]
    %v6251 = vld [vmem:[#allocation11 + $0x380] sm:$0xff]
    %v6252 = vld [vmem:[#allocation11 + $0x388] sm:$0xff]
    %v6253 = vld [vmem:[#allocation11 + $0x390] sm:$0xff]
    %v6254 = vld [vmem:[#allocation11 + $0x398] sm:$0xff]
    %v6255 = vld [vmem:[#allocation11 + $0x3a0] sm:$0xff]
    %v6256 = vld [vmem:[#allocation11 + $0x3a8] sm:$0xff]
    %v6257 = vld [vmem:[#allocation11 + $0x3b0] sm:$0xff]
    %v6258 = vld [vmem:[#allocation11 + $0x3b8] sm:$0xff]
    %v6259 = vld [vmem:[#allocation11 + $0x3c0] sm:$0xff]
    %v6260 = vld [vmem:[#allocation11 + $0x3c8] sm:$0xff]
    %v6261 = vld [vmem:[#allocation11 + $0x3d0] sm:$0xff]
    %v6262 = vld [vmem:[#allocation11 + $0x3d8] sm:$0xff]
    %v6263 = vld [vmem:[#allocation11 + $0x3e0] sm:$0xff]
    %v6264 = vld [vmem:[#allocation11 + $0x3e8] sm:$0xff]
    %v6265 = vld [vmem:[#allocation11 + $0x3f0] sm:$0xff]
    %v6266 = vld [vmem:[#allocation11 + $0x3f8] sm:$0xff]
    %6267 = vmatpush.msra.mxu0 %v6199
    %6268 = vmatpush.msra.mxu0 %v6195
    %6269 = vmatpush.msra.mxu0 %v6191
    %6270 = vmatpush.msra.mxu0 %v6187
    %6271 = vmatpush.msra.mxu0 %v6183
    %6272 = vmatpush.msra.mxu0 %v6179
    %6273 = vmatpush.msra.mxu0 %v6175
    %6274 = vmatpush.msra.mxu0 %v6171
    %6275 = vmatpush.msra.mxu0 %v6167
    %6276 = vmatpush.msra.mxu0 %v6163
    %6277 = vmatpush.msra.mxu0 %v6159
    %6278 = vmatpush.msra.mxu0 %v6155
    %6279 = vmatpush.msra.mxu0 %v6151
    %6280 = vmatpush.msra.mxu0 %v6147
    %6281 = vmatpush.msra.mxu0 %v6143
    %6282 = vmatpush.msra.mxu0 %v6139
    %6283 = vmatmul.f32.gmra.mxu0 %v6138
    %v6284 = vpop.f32.mrf.mxu0
    %v6285 = vadd.f32 %v587, %v6284
    %6286 = vdwg.mxu0
    %6287 = vmatpush.msra.mxu0 %v6263
    %6288 = vmatpush.msra.mxu0 %v6259
    %6289 = vmatpush.msra.mxu0 %v6255
    %6290 = vmatpush.msra.mxu0 %v6251
    %6291 = vmatpush.msra.mxu0 %v6247
    %6292 = vmatpush.msra.mxu0 %v6243
    %6293 = vmatpush.msra.mxu0 %v6239
    %6294 = vmatpush.msra.mxu0 %v6235
    %6295 = vmatpush.msra.mxu0 %v6231
    %6296 = vmatpush.msra.mxu0 %v6227
    %6297 = vmatpush.msra.mxu0 %v6223
    %6298 = vmatpush.msra.mxu0 %v6219
    %6299 = vmatpush.msra.mxu0 %v6215
    %6300 = vmatpush.msra.mxu0 %v6211
    %6301 = vmatpush.msra.mxu0 %v6207
    %6302 = vmatpush.msra.mxu0 %v6203
    %6303 = vmatmul.f32.gmra.mxu0 %v5774
    %v6304 = vpop.f32.mrf.mxu0
    %v6305 = vadd.f32 %v6285, %v6304
    %6306 = vdwg.mxu0
    %6307 = vmatpush.msra.mxu0 %v6200
    %6308 = vmatpush.msra.mxu0 %v6196
    %6309 = vmatpush.msra.mxu0 %v6192
    %6310 = vmatpush.msra.mxu0 %v6188
    %6311 = vmatpush.msra.mxu0 %v6184
    %6312 = vmatpush.msra.mxu0 %v6180
    %6313 = vmatpush.msra.mxu0 %v6176
    %6314 = vmatpush.msra.mxu0 %v6172
    %6315 = vmatpush.msra.mxu0 %v6168
    %6316 = vmatpush.msra.mxu0 %v6164
    %6317 = vmatpush.msra.mxu0 %v6160
    %6318 = vmatpush.msra.mxu0 %v6156
    %6319 = vmatpush.msra.mxu0 %v6152
    %6320 = vmatpush.msra.mxu0 %v6148
    %6321 = vmatpush.msra.mxu0 %v6144
    %6322 = vmatpush.msra.mxu0 %v6140
    %6323 = vmatmul.f32.gmra.mxu0 %v6138
    %v6324 = vpop.f32.mrf.mxu0
    %v6325 = vadd.f32 %v588, %v6324
    %6326 = vdwg.mxu0
    %6327 = vmatpush.msra.mxu0 %v6264
    %6328 = vmatpush.msra.mxu0 %v6260
    %6329 = vmatpush.msra.mxu0 %v6256
    %6330 = vmatpush.msra.mxu0 %v6252
    %6331 = vmatpush.msra.mxu0 %v6248
    %6332 = vmatpush.msra.mxu0 %v6244
    %6333 = vmatpush.msra.mxu0 %v6240
    %6334 = vmatpush.msra.mxu0 %v6236
    %6335 = vmatpush.msra.mxu0 %v6232
    %6336 = vmatpush.msra.mxu0 %v6228
    %6337 = vmatpush.msra.mxu0 %v6224
    %6338 = vmatpush.msra.mxu0 %v6220
    %6339 = vmatpush.msra.mxu0 %v6216
    %6340 = vmatpush.msra.mxu0 %v6212
    %6341 = vmatpush.msra.mxu0 %v6208
    %6342 = vmatpush.msra.mxu0 %v6204
    %6343 = vmatmul.f32.gmra.mxu0 %v5774
    %v6344 = vpop.f32.mrf.mxu0
    %v6345 = vadd.f32 %v6325, %v6344
    %6346 = vdwg.mxu0
    %6347 = vmatpush.msra.mxu0 %v6201
    %6348 = vmatpush.msra.mxu0 %v6197
    %6349 = vmatpush.msra.mxu0 %v6193
    %6350 = vmatpush.msra.mxu0 %v6189
    %6351 = vmatpush.msra.mxu0 %v6185
    %6352 = vmatpush.msra.mxu0 %v6181
    %6353 = vmatpush.msra.mxu0 %v6177
    %6354 = vmatpush.msra.mxu0 %v6173
    %6355 = vmatpush.msra.mxu0 %v6169
    %6356 = vmatpush.msra.mxu0 %v6165
    %6357 = vmatpush.msra.mxu0 %v6161
    %6358 = vmatpush.msra.mxu0 %v6157
    %6359 = vmatpush.msra.mxu0 %v6153
    %6360 = vmatpush.msra.mxu0 %v6149
    %6361 = vmatpush.msra.mxu0 %v6145
    %6362 = vmatpush.msra.mxu0 %v6141
    %6363 = vmatmul.f32.gmra.mxu0 %v6138
    %v6364 = vpop.f32.mrf.mxu0
    %v6365 = vadd.f32 %v589, %v6364
    %6366 = vdwg.mxu0
    %6367 = vmatpush.msra.mxu0 %v6265
    %6368 = vmatpush.msra.mxu0 %v6261
    %6369 = vmatpush.msra.mxu0 %v6257
    %6370 = vmatpush.msra.mxu0 %v6253
    %6371 = vmatpush.msra.mxu0 %v6249
    %6372 = vmatpush.msra.mxu0 %v6245
    %6373 = vmatpush.msra.mxu0 %v6241
    %6374 = vmatpush.msra.mxu0 %v6237
    %6375 = vmatpush.msra.mxu0 %v6233
    %6376 = vmatpush.msra.mxu0 %v6229
    %6377 = vmatpush.msra.mxu0 %v6225
    %6378 = vmatpush.msra.mxu0 %v6221
    %6379 = vmatpush.msra.mxu0 %v6217
    %6380 = vmatpush.msra.mxu0 %v6213
    %6381 = vmatpush.msra.mxu0 %v6209
    %6382 = vmatpush.msra.mxu0 %v6205
    %6383 = vmatmul.f32.gmra.mxu0 %v5774
    %v6384 = vpop.f32.mrf.mxu0
    %v6385 = vadd.f32 %v6365, %v6384
    %6386 = vdwg.mxu0
    %6387 = vmatpush.msra.mxu0 %v6202
    %6388 = vmatpush.msra.mxu0 %v6198
    %6389 = vmatpush.msra.mxu0 %v6194
    %6390 = vmatpush.msra.mxu0 %v6190
    %6391 = vmatpush.msra.mxu0 %v6186
    %6392 = vmatpush.msra.mxu0 %v6182
    %6393 = vmatpush.msra.mxu0 %v6178
    %6394 = vmatpush.msra.mxu0 %v6174
    %6395 = vmatpush.msra.mxu0 %v6170
    %6396 = vmatpush.msra.mxu0 %v6166
    %6397 = vmatpush.msra.mxu0 %v6162
    %6398 = vmatpush.msra.mxu0 %v6158
    %6399 = vmatpush.msra.mxu0 %v6154
    %6400 = vmatpush.msra.mxu0 %v6150
    %6401 = vmatpush.msra.mxu0 %v6146
    %6402 = vmatpush.msra.mxu0 %v6142
    %6403 = vmatmul.f32.gmra.mxu0 %v6138
    %v6404 = vpop.f32.mrf.mxu0
    %v6405 = vadd.f32 %v590, %v6404
    %6406 = vdwg.mxu0
    %6407 = vmatpush.msra.mxu0 %v6266
    %6408 = vmatpush.msra.mxu0 %v6262
    %6409 = vmatpush.msra.mxu0 %v6258
    %6410 = vmatpush.msra.mxu0 %v6254
    %6411 = vmatpush.msra.mxu0 %v6250
    %6412 = vmatpush.msra.mxu0 %v6246
    %6413 = vmatpush.msra.mxu0 %v6242
    %6414 = vmatpush.msra.mxu0 %v6238
    %6415 = vmatpush.msra.mxu0 %v6234
    %6416 = vmatpush.msra.mxu0 %v6230
    %6417 = vmatpush.msra.mxu0 %v6226
    %6418 = vmatpush.msra.mxu0 %v6222
    %6419 = vmatpush.msra.mxu0 %v6218
    %6420 = vmatpush.msra.mxu0 %v6214
    %6421 = vmatpush.msra.mxu0 %v6210
    %6422 = vmatpush.msra.mxu0 %v6206
    %6423 = vmatmul.f32.gmra.mxu0 %v5774
    %v6424 = vpop.f32.mrf.mxu0
    %v6425 = vadd.f32 %v6405, %v6424
    %6426 = vdwg.mxu0
    %v6427 = vxor.u32 %v6305, 2147483648
    %v6428 = vmul.f32 %v6427, 1.442695
    %v6429 = vpow.pop %v6428
    %v6430 = vadd.f32 %v6429, 1.0
    %v6431 = vrcp.pop %v6430
    %v6432 = vmul.f32 %v6430, %v6431
    %v6433 = vsub.f32 1.0, %v6432
    %v6434 = vmul.f32 %v6431, %v6433
    %v6435 = vadd.f32 %v6431, %v6434
    %vm6436 = vweird.f32 %v6430
    %vm6437 = vweird.f32 %v6431
    %vm6438 = vmor %vm6436, %vm6437
    %v6439 = vsel %vm6438, %v6431, %v6435
    %v6440 = vand.u32 2147483647, %v6430
    %vm6441 = vcmp.eq.f32.partialorder %v6440, 8.507059e+37
    %v6442 = vand.u32 %v6430, 2147483648
    %v6443 = vor.u32 1.1754944e-38, %v6442
    %v6444 = vsel %vm6441, %v6443, %v6439
    %v6445 = vmul.f32 1.0, %v6444
    %v6446 = vxor.u32 %v6345, 2147483648
    %v6447 = vmul.f32 %v6446, 1.442695
    %v6448 = vpow.pop %v6447
    %v6449 = vadd.f32 %v6448, 1.0
    %v6450 = vrcp.pop %v6449
    %v6451 = vmul.f32 %v6449, %v6450
    %v6452 = vsub.f32 1.0, %v6451
    %v6453 = vmul.f32 %v6450, %v6452
    %v6454 = vadd.f32 %v6450, %v6453
    %vm6455 = vweird.f32 %v6449
    %vm6456 = vweird.f32 %v6450
    %vm6457 = vmor %vm6455, %vm6456
    %v6458 = vsel %vm6457, %v6450, %v6454
    %v6459 = vand.u32 2147483647, %v6449
    %vm6460 = vcmp.eq.f32.partialorder %v6459, 8.507059e+37
    %v6461 = vand.u32 %v6449, 2147483648
    %v6462 = vor.u32 1.1754944e-38, %v6461
    %v6463 = vsel %vm6460, %v6462, %v6458
    %v6464 = vmul.f32 1.0, %v6463
    %v6465 = vtanh.pop %v6385
    %v6466 = vxor.u32 %v6425, 2147483648
    %v6467 = vmul.f32 %v6466, 1.442695
    %v6468 = vpow.pop %v6467
    %v6469 = vadd.f32 %v6468, 1.0
    %v6470 = vrcp.pop %v6469
    %v6471 = vmul.f32 %v6469, %v6470
    %v6472 = vsub.f32 1.0, %v6471
    %v6473 = vmul.f32 %v6470, %v6472
    %v6474 = vadd.f32 %v6470, %v6473
    %vm6475 = vweird.f32 %v6469
    %vm6476 = vweird.f32 %v6470
    %vm6477 = vmor %vm6475, %vm6476
    %v6478 = vsel %vm6477, %v6470, %v6474
    %v6479 = vand.u32 2147483647, %v6469
    %vm6480 = vcmp.eq.f32.partialorder %v6479, 8.507059e+37
    %v6481 = vand.u32 %v6469, 2147483648
    %v6482 = vor.u32 1.1754944e-38, %v6481
    %v6483 = vsel %vm6480, %v6482, %v6478
    %v6484 = vmul.f32 1.0, %v6483
    %v6485 = vmul.f32 %v6464, %v5772
    %v6486 = vmul.f32 %v6445, %v6465
    %v6487 = vadd.f32 %v6485, %v6486
    %v6488 = vtanh.pop %v6487
    %v6489 = vmul.f32 %v6484, %v6488
    %6490 = vst [vmem:[#allocation4 + $0x18] sm:$0xff] %v6489
    %v6491 = vld [vmem:[#allocation3 + $0x80] sm:$0xff]
    %v6492 = vld [vmem:[#allocation3 + $0x88] sm:$0xff]
    %v6493 = vld [vmem:[#allocation3 + $0x90] sm:$0xff]
    %v6494 = vld [vmem:[#allocation3 + $0x98] sm:$0xff]
    %v6495 = vadd.f32 %v6491, %v576
    %v6496 = vadd.f32 %v6492, %v577
    %v6497 = vadd.f32 %v6493, %v578
    %v6498 = vadd.f32 %v6494, %v579
    %v6499 = vld [vmem:[#allocation10] sm:$0xff]
    %v6500 = vld [vmem:[#allocation10 + $0x8] sm:$0xff]
    %v6501 = vld [vmem:[#allocation10 + $0x10] sm:$0xff]
    %v6502 = vld [vmem:[#allocation10 + $0x18] sm:$0xff]
    %v6503 = vld [vmem:[#allocation10 + $0x20] sm:$0xff]
    %v6504 = vld [vmem:[#allocation10 + $0x28] sm:$0xff]
    %v6505 = vld [vmem:[#allocation10 + $0x30] sm:$0xff]
    %v6506 = vld [vmem:[#allocation10 + $0x38] sm:$0xff]
    %v6507 = vld [vmem:[#allocation10 + $0x40] sm:$0xff]
    %v6508 = vld [vmem:[#allocation10 + $0x48] sm:$0xff]
    %v6509 = vld [vmem:[#allocation10 + $0x50] sm:$0xff]
    %v6510 = vld [vmem:[#allocation10 + $0x58] sm:$0xff]
    %v6511 = vld [vmem:[#allocation10 + $0x60] sm:$0xff]
    %v6512 = vld [vmem:[#allocation10 + $0x68] sm:$0xff]
    %v6513 = vld [vmem:[#allocation10 + $0x70] sm:$0xff]
    %v6514 = vld [vmem:[#allocation10 + $0x78] sm:$0xff]
    %v6515 = vld [vmem:[#allocation10 + $0x80] sm:$0xff]
    %v6516 = vld [vmem:[#allocation10 + $0x88] sm:$0xff]
    %v6517 = vld [vmem:[#allocation10 + $0x90] sm:$0xff]
    %v6518 = vld [vmem:[#allocation10 + $0x98] sm:$0xff]
    %v6519 = vld [vmem:[#allocation10 + $0xa0] sm:$0xff]
    %v6520 = vld [vmem:[#allocation10 + $0xa8] sm:$0xff]
    %v6521 = vld [vmem:[#allocation10 + $0xb0] sm:$0xff]
    %v6522 = vld [vmem:[#allocation10 + $0xb8] sm:$0xff]
    %v6523 = vld [vmem:[#allocation10 + $0xc0] sm:$0xff]
    %v6524 = vld [vmem:[#allocation10 + $0xc8] sm:$0xff]
    %v6525 = vld [vmem:[#allocation10 + $0xd0] sm:$0xff]
    %v6526 = vld [vmem:[#allocation10 + $0xd8] sm:$0xff]
    %v6527 = vld [vmem:[#allocation10 + $0xe0] sm:$0xff]
    %v6528 = vld [vmem:[#allocation10 + $0xe8] sm:$0xff]
    %v6529 = vld [vmem:[#allocation10 + $0xf0] sm:$0xff]
    %v6530 = vld [vmem:[#allocation10 + $0xf8] sm:$0xff]
    %v6531 = vld [vmem:[#allocation10 + $0x100] sm:$0xff]
    %v6532 = vld [vmem:[#allocation10 + $0x108] sm:$0xff]
    %v6533 = vld [vmem:[#allocation10 + $0x110] sm:$0xff]
    %v6534 = vld [vmem:[#allocation10 + $0x118] sm:$0xff]
    %v6535 = vld [vmem:[#allocation10 + $0x120] sm:$0xff]
    %v6536 = vld [vmem:[#allocation10 + $0x128] sm:$0xff]
    %v6537 = vld [vmem:[#allocation10 + $0x130] sm:$0xff]
    %v6538 = vld [vmem:[#allocation10 + $0x138] sm:$0xff]
    %v6539 = vld [vmem:[#allocation10 + $0x140] sm:$0xff]
    %v6540 = vld [vmem:[#allocation10 + $0x148] sm:$0xff]
    %v6541 = vld [vmem:[#allocation10 + $0x150] sm:$0xff]
    %v6542 = vld [vmem:[#allocation10 + $0x158] sm:$0xff]
    %v6543 = vld [vmem:[#allocation10 + $0x160] sm:$0xff]
    %v6544 = vld [vmem:[#allocation10 + $0x168] sm:$0xff]
    %v6545 = vld [vmem:[#allocation10 + $0x170] sm:$0xff]
    %v6546 = vld [vmem:[#allocation10 + $0x178] sm:$0xff]
    %v6547 = vld [vmem:[#allocation10 + $0x180] sm:$0xff]
    %v6548 = vld [vmem:[#allocation10 + $0x188] sm:$0xff]
    %v6549 = vld [vmem:[#allocation10 + $0x190] sm:$0xff]
    %v6550 = vld [vmem:[#allocation10 + $0x198] sm:$0xff]
    %v6551 = vld [vmem:[#allocation10 + $0x1a0] sm:$0xff]
    %v6552 = vld [vmem:[#allocation10 + $0x1a8] sm:$0xff]
    %v6553 = vld [vmem:[#allocation10 + $0x1b0] sm:$0xff]
    %v6554 = vld [vmem:[#allocation10 + $0x1b8] sm:$0xff]
    %v6555 = vld [vmem:[#allocation10 + $0x1c0] sm:$0xff]
    %v6556 = vld [vmem:[#allocation10 + $0x1c8] sm:$0xff]
    %v6557 = vld [vmem:[#allocation10 + $0x1d0] sm:$0xff]
    %v6558 = vld [vmem:[#allocation10 + $0x1d8] sm:$0xff]
    %v6559 = vld [vmem:[#allocation10 + $0x1e0] sm:$0xff]
    %v6560 = vld [vmem:[#allocation10 + $0x1e8] sm:$0xff]
    %v6561 = vld [vmem:[#allocation10 + $0x1f0] sm:$0xff]
    %v6562 = vld [vmem:[#allocation10 + $0x1f8] sm:$0xff]
    %v6563 = vld [vmem:[#allocation10 + $0x200] sm:$0xff]
    %v6564 = vld [vmem:[#allocation10 + $0x208] sm:$0xff]
    %v6565 = vld [vmem:[#allocation10 + $0x210] sm:$0xff]
    %v6566 = vld [vmem:[#allocation10 + $0x218] sm:$0xff]
    %v6567 = vld [vmem:[#allocation10 + $0x220] sm:$0xff]
    %v6568 = vld [vmem:[#allocation10 + $0x228] sm:$0xff]
    %v6569 = vld [vmem:[#allocation10 + $0x230] sm:$0xff]
    %v6570 = vld [vmem:[#allocation10 + $0x238] sm:$0xff]
    %v6571 = vld [vmem:[#allocation10 + $0x240] sm:$0xff]
    %v6572 = vld [vmem:[#allocation10 + $0x248] sm:$0xff]
    %v6573 = vld [vmem:[#allocation10 + $0x250] sm:$0xff]
    %v6574 = vld [vmem:[#allocation10 + $0x258] sm:$0xff]
    %v6575 = vld [vmem:[#allocation10 + $0x260] sm:$0xff]
    %v6576 = vld [vmem:[#allocation10 + $0x268] sm:$0xff]
    %v6577 = vld [vmem:[#allocation10 + $0x270] sm:$0xff]
    %v6578 = vld [vmem:[#allocation10 + $0x278] sm:$0xff]
    %v6579 = vld [vmem:[#allocation10 + $0x280] sm:$0xff]
    %v6580 = vld [vmem:[#allocation10 + $0x288] sm:$0xff]
    %v6581 = vld [vmem:[#allocation10 + $0x290] sm:$0xff]
    %v6582 = vld [vmem:[#allocation10 + $0x298] sm:$0xff]
    %v6583 = vld [vmem:[#allocation10 + $0x2a0] sm:$0xff]
    %v6584 = vld [vmem:[#allocation10 + $0x2a8] sm:$0xff]
    %v6585 = vld [vmem:[#allocation10 + $0x2b0] sm:$0xff]
    %v6586 = vld [vmem:[#allocation10 + $0x2b8] sm:$0xff]
    %v6587 = vld [vmem:[#allocation10 + $0x2c0] sm:$0xff]
    %v6588 = vld [vmem:[#allocation10 + $0x2c8] sm:$0xff]
    %v6589 = vld [vmem:[#allocation10 + $0x2d0] sm:$0xff]
    %v6590 = vld [vmem:[#allocation10 + $0x2d8] sm:$0xff]
    %v6591 = vld [vmem:[#allocation10 + $0x2e0] sm:$0xff]
    %v6592 = vld [vmem:[#allocation10 + $0x2e8] sm:$0xff]
    %v6593 = vld [vmem:[#allocation10 + $0x2f0] sm:$0xff]
    %v6594 = vld [vmem:[#allocation10 + $0x2f8] sm:$0xff]
    %v6595 = vld [vmem:[#allocation10 + $0x300] sm:$0xff]
    %v6596 = vld [vmem:[#allocation10 + $0x308] sm:$0xff]
    %v6597 = vld [vmem:[#allocation10 + $0x310] sm:$0xff]
    %v6598 = vld [vmem:[#allocation10 + $0x318] sm:$0xff]
    %v6599 = vld [vmem:[#allocation10 + $0x320] sm:$0xff]
    %v6600 = vld [vmem:[#allocation10 + $0x328] sm:$0xff]
    %v6601 = vld [vmem:[#allocation10 + $0x330] sm:$0xff]
    %v6602 = vld [vmem:[#allocation10 + $0x338] sm:$0xff]
    %v6603 = vld [vmem:[#allocation10 + $0x340] sm:$0xff]
    %v6604 = vld [vmem:[#allocation10 + $0x348] sm:$0xff]
    %v6605 = vld [vmem:[#allocation10 + $0x350] sm:$0xff]
    %v6606 = vld [vmem:[#allocation10 + $0x358] sm:$0xff]
    %v6607 = vld [vmem:[#allocation10 + $0x360] sm:$0xff]
    %v6608 = vld [vmem:[#allocation10 + $0x368] sm:$0xff]
    %v6609 = vld [vmem:[#allocation10 + $0x370] sm:$0xff]
    %v6610 = vld [vmem:[#allocation10 + $0x378] sm:$0xff]
    %v6611 = vld [vmem:[#allocation10 + $0x380] sm:$0xff]
    %v6612 = vld [vmem:[#allocation10 + $0x388] sm:$0xff]
    %v6613 = vld [vmem:[#allocation10 + $0x390] sm:$0xff]
    %v6614 = vld [vmem:[#allocation10 + $0x398] sm:$0xff]
    %v6615 = vld [vmem:[#allocation10 + $0x3a0] sm:$0xff]
    %v6616 = vld [vmem:[#allocation10 + $0x3a8] sm:$0xff]
    %v6617 = vld [vmem:[#allocation10 + $0x3b0] sm:$0xff]
    %v6618 = vld [vmem:[#allocation10 + $0x3b8] sm:$0xff]
    %v6619 = vld [vmem:[#allocation10 + $0x3c0] sm:$0xff]
    %v6620 = vld [vmem:[#allocation10 + $0x3c8] sm:$0xff]
    %v6621 = vld [vmem:[#allocation10 + $0x3d0] sm:$0xff]
    %v6622 = vld [vmem:[#allocation10 + $0x3d8] sm:$0xff]
    %v6623 = vld [vmem:[#allocation10 + $0x3e0] sm:$0xff]
    %v6624 = vld [vmem:[#allocation10 + $0x3e8] sm:$0xff]
    %v6625 = vld [vmem:[#allocation10 + $0x3f0] sm:$0xff]
    %v6626 = vld [vmem:[#allocation10 + $0x3f8] sm:$0xff]
    %6627 = vmatpush.msra.mxu0 %v6559
    %6628 = vmatpush.msra.mxu0 %v6555
    %6629 = vmatpush.msra.mxu0 %v6551
    %6630 = vmatpush.msra.mxu0 %v6547
    %6631 = vmatpush.msra.mxu0 %v6543
    %6632 = vmatpush.msra.mxu0 %v6539
    %6633 = vmatpush.msra.mxu0 %v6535
    %6634 = vmatpush.msra.mxu0 %v6531
    %6635 = vmatpush.msra.mxu0 %v6527
    %6636 = vmatpush.msra.mxu0 %v6523
    %6637 = vmatpush.msra.mxu0 %v6519
    %6638 = vmatpush.msra.mxu0 %v6515
    %6639 = vmatpush.msra.mxu0 %v6511
    %6640 = vmatpush.msra.mxu0 %v6507
    %6641 = vmatpush.msra.mxu0 %v6503
    %6642 = vmatpush.msra.mxu0 %v6499
    %6643 = vmatmul.f32.gmra.mxu0 %v6138
    %v6644 = vpop.f32.mrf.mxu0
    %v6645 = vadd.f32 0.0, %v6644
    %6646 = vdwg.mxu0
    %6647 = vmatpush.msra.mxu0 %v6623
    %6648 = vmatpush.msra.mxu0 %v6619
    %6649 = vmatpush.msra.mxu0 %v6615
    %6650 = vmatpush.msra.mxu0 %v6611
    %6651 = vmatpush.msra.mxu0 %v6607
    %6652 = vmatpush.msra.mxu0 %v6603
    %6653 = vmatpush.msra.mxu0 %v6599
    %6654 = vmatpush.msra.mxu0 %v6595
    %6655 = vmatpush.msra.mxu0 %v6591
    %6656 = vmatpush.msra.mxu0 %v6587
    %6657 = vmatpush.msra.mxu0 %v6583
    %6658 = vmatpush.msra.mxu0 %v6579
    %6659 = vmatpush.msra.mxu0 %v6575
    %6660 = vmatpush.msra.mxu0 %v6571
    %6661 = vmatpush.msra.mxu0 %v6567
    %6662 = vmatpush.msra.mxu0 %v6563
    %6663 = vmatmul.f32.gmra.mxu0 %v6489
    %v6664 = vpop.f32.mrf.mxu0
    %v6665 = vadd.f32 %v6645, %v6664
    %6666 = vdwg.mxu0
    %6667 = vmatpush.msra.mxu0 %v6560
    %6668 = vmatpush.msra.mxu0 %v6556
    %6669 = vmatpush.msra.mxu0 %v6552
    %6670 = vmatpush.msra.mxu0 %v6548
    %6671 = vmatpush.msra.mxu0 %v6544
    %6672 = vmatpush.msra.mxu0 %v6540
    %6673 = vmatpush.msra.mxu0 %v6536
    %6674 = vmatpush.msra.mxu0 %v6532
    %6675 = vmatpush.msra.mxu0 %v6528
    %6676 = vmatpush.msra.mxu0 %v6524
    %6677 = vmatpush.msra.mxu0 %v6520
    %6678 = vmatpush.msra.mxu0 %v6516
    %6679 = vmatpush.msra.mxu0 %v6512
    %6680 = vmatpush.msra.mxu0 %v6508
    %6681 = vmatpush.msra.mxu0 %v6504
    %6682 = vmatpush.msra.mxu0 %v6500
    %6683 = vmatmul.f32.gmra.mxu0 %v6138
    %v6684 = vpop.f32.mrf.mxu0
    %v6685 = vadd.f32 0.0, %v6684
    %6686 = vdwg.mxu0
    %6687 = vmatpush.msra.mxu0 %v6624
    %6688 = vmatpush.msra.mxu0 %v6620
    %6689 = vmatpush.msra.mxu0 %v6616
    %6690 = vmatpush.msra.mxu0 %v6612
    %6691 = vmatpush.msra.mxu0 %v6608
    %6692 = vmatpush.msra.mxu0 %v6604
    %6693 = vmatpush.msra.mxu0 %v6600
    %6694 = vmatpush.msra.mxu0 %v6596
    %6695 = vmatpush.msra.mxu0 %v6592
    %6696 = vmatpush.msra.mxu0 %v6588
    %6697 = vmatpush.msra.mxu0 %v6584
    %6698 = vmatpush.msra.mxu0 %v6580
    %6699 = vmatpush.msra.mxu0 %v6576
    %6700 = vmatpush.msra.mxu0 %v6572
    %6701 = vmatpush.msra.mxu0 %v6568
    %6702 = vmatpush.msra.mxu0 %v6564
    %6703 = vmatmul.f32.gmra.mxu0 %v6489
    %v6704 = vpop.f32.mrf.mxu0
    %v6705 = vadd.f32 %v6685, %v6704
    %6706 = vdwg.mxu0
    %6707 = vmatpush.msra.mxu0 %v6561
    %6708 = vmatpush.msra.mxu0 %v6557
    %6709 = vmatpush.msra.mxu0 %v6553
    %6710 = vmatpush.msra.mxu0 %v6549
    %6711 = vmatpush.msra.mxu0 %v6545
    %6712 = vmatpush.msra.mxu0 %v6541
    %6713 = vmatpush.msra.mxu0 %v6537
    %6714 = vmatpush.msra.mxu0 %v6533
    %6715 = vmatpush.msra.mxu0 %v6529
    %6716 = vmatpush.msra.mxu0 %v6525
    %6717 = vmatpush.msra.mxu0 %v6521
    %6718 = vmatpush.msra.mxu0 %v6517
    %6719 = vmatpush.msra.mxu0 %v6513
    %6720 = vmatpush.msra.mxu0 %v6509
    %6721 = vmatpush.msra.mxu0 %v6505
    %6722 = vmatpush.msra.mxu0 %v6501
    %6723 = vmatmul.f32.gmra.mxu0 %v6138
    %v6724 = vpop.f32.mrf.mxu0
    %v6725 = vadd.f32 0.0, %v6724
    %6726 = vdwg.mxu0
    %6727 = vmatpush.msra.mxu0 %v6625
    %6728 = vmatpush.msra.mxu0 %v6621
    %6729 = vmatpush.msra.mxu0 %v6617
    %6730 = vmatpush.msra.mxu0 %v6613
    %6731 = vmatpush.msra.mxu0 %v6609
    %6732 = vmatpush.msra.mxu0 %v6605
    %6733 = vmatpush.msra.mxu0 %v6601
    %6734 = vmatpush.msra.mxu0 %v6597
    %6735 = vmatpush.msra.mxu0 %v6593
    %6736 = vmatpush.msra.mxu0 %v6589
    %6737 = vmatpush.msra.mxu0 %v6585
    %6738 = vmatpush.msra.mxu0 %v6581
    %6739 = vmatpush.msra.mxu0 %v6577
    %6740 = vmatpush.msra.mxu0 %v6573
    %6741 = vmatpush.msra.mxu0 %v6569
    %6742 = vmatpush.msra.mxu0 %v6565
    %6743 = vmatmul.f32.gmra.mxu0 %v6489
    %v6744 = vpop.f32.mrf.mxu0
    %v6745 = vadd.f32 %v6725, %v6744
    %6746 = vdwg.mxu0
    %6747 = vmatpush.msra.mxu0 %v6562
    %6748 = vmatpush.msra.mxu0 %v6558
    %6749 = vmatpush.msra.mxu0 %v6554
    %6750 = vmatpush.msra.mxu0 %v6550
    %6751 = vmatpush.msra.mxu0 %v6546
    %6752 = vmatpush.msra.mxu0 %v6542
    %6753 = vmatpush.msra.mxu0 %v6538
    %6754 = vmatpush.msra.mxu0 %v6534
    %6755 = vmatpush.msra.mxu0 %v6530
    %6756 = vmatpush.msra.mxu0 %v6526
    %6757 = vmatpush.msra.mxu0 %v6522
    %6758 = vmatpush.msra.mxu0 %v6518
    %6759 = vmatpush.msra.mxu0 %v6514
    %6760 = vmatpush.msra.mxu0 %v6510
    %6761 = vmatpush.msra.mxu0 %v6506
    %6762 = vmatpush.msra.mxu0 %v6502
    %6763 = vmatmul.f32.gmra.mxu0 %v6138
    %v6764 = vpop.f32.mrf.mxu0
    %v6765 = vadd.f32 0.0, %v6764
    %6766 = vdwg.mxu0
    %6767 = vmatpush.msra.mxu0 %v6626
    %6768 = vmatpush.msra.mxu0 %v6622
    %6769 = vmatpush.msra.mxu0 %v6618
    %6770 = vmatpush.msra.mxu0 %v6614
    %6771 = vmatpush.msra.mxu0 %v6610
    %6772 = vmatpush.msra.mxu0 %v6606
    %6773 = vmatpush.msra.mxu0 %v6602
    %6774 = vmatpush.msra.mxu0 %v6598
    %6775 = vmatpush.msra.mxu0 %v6594
    %6776 = vmatpush.msra.mxu0 %v6590
    %6777 = vmatpush.msra.mxu0 %v6586
    %6778 = vmatpush.msra.mxu0 %v6582
    %6779 = vmatpush.msra.mxu0 %v6578
    %6780 = vmatpush.msra.mxu0 %v6574
    %6781 = vmatpush.msra.mxu0 %v6570
    %6782 = vmatpush.msra.mxu0 %v6566
    %6783 = vmatmul.f32.gmra.mxu0 %v6489
    %v6784 = vpop.f32.mrf.mxu0
    %v6785 = vadd.f32 %v6765, %v6784
    %6786 = vdwg.mxu0
    %v6787 = vadd.f32 %v6495, %v6665
    %v6788 = vadd.f32 %v6496, %v6705
    %v6789 = vadd.f32 %v6497, %v6745
    %v6790 = vadd.f32 %v6498, %v6785
    %v6791 = vxor.u32 %v6787, 2147483648
    %v6792 = vmul.f32 %v6791, 1.442695
    %v6793 = vpow.pop %v6792
    %v6794 = vadd.f32 %v6793, 1.0
    %v6795 = vrcp.pop %v6794
    %v6796 = vmul.f32 %v6794, %v6795
    %v6797 = vsub.f32 1.0, %v6796
    %v6798 = vmul.f32 %v6795, %v6797
    %v6799 = vadd.f32 %v6795, %v6798
    %vm6800 = vweird.f32 %v6794
    %vm6801 = vweird.f32 %v6795
    %vm6802 = vmor %vm6800, %vm6801
    %v6803 = vsel %vm6802, %v6795, %v6799
    %v6804 = vand.u32 2147483647, %v6794
    %vm6805 = vcmp.eq.f32.partialorder %v6804, 8.507059e+37
    %v6806 = vand.u32 %v6794, 2147483648
    %v6807 = vor.u32 1.1754944e-38, %v6806
    %v6808 = vsel %vm6805, %v6807, %v6803
    %v6809 = vmul.f32 1.0, %v6808
    %v6810 = vxor.u32 %v6788, 2147483648
    %v6811 = vmul.f32 %v6810, 1.442695
    %v6812 = vpow.pop %v6811
    %v6813 = vadd.f32 %v6812, 1.0
    %v6814 = vrcp.pop %v6813
    %v6815 = vmul.f32 %v6813, %v6814
    %v6816 = vsub.f32 1.0, %v6815
    %v6817 = vmul.f32 %v6814, %v6816
    %v6818 = vadd.f32 %v6814, %v6817
    %vm6819 = vweird.f32 %v6813
    %vm6820 = vweird.f32 %v6814
    %vm6821 = vmor %vm6819, %vm6820
    %v6822 = vsel %vm6821, %v6814, %v6818
    %v6823 = vand.u32 2147483647, %v6813
    %vm6824 = vcmp.eq.f32.partialorder %v6823, 8.507059e+37
    %v6825 = vand.u32 %v6813, 2147483648
    %v6826 = vor.u32 1.1754944e-38, %v6825
    %v6827 = vsel %vm6824, %v6826, %v6822
    %v6828 = vmul.f32 1.0, %v6827
    %v6829 = vtanh.pop %v6789
    %v6830 = vxor.u32 %v6790, 2147483648
    %v6831 = vmul.f32 %v6830, 1.442695
    %v6832 = vpow.pop %v6831
    %v6833 = vadd.f32 %v6832, 1.0
    %v6834 = vrcp.pop %v6833
    %v6835 = vmul.f32 %v6833, %v6834
    %v6836 = vsub.f32 1.0, %v6835
    %v6837 = vmul.f32 %v6834, %v6836
    %v6838 = vadd.f32 %v6834, %v6837
    %vm6839 = vweird.f32 %v6833
    %vm6840 = vweird.f32 %v6834
    %vm6841 = vmor %vm6839, %vm6840
    %v6842 = vsel %vm6841, %v6834, %v6838
    %v6843 = vand.u32 2147483647, %v6833
    %vm6844 = vcmp.eq.f32.partialorder %v6843, 8.507059e+37
    %v6845 = vand.u32 %v6833, 2147483648
    %v6846 = vor.u32 1.1754944e-38, %v6845
    %v6847 = vsel %vm6844, %v6846, %v6842
    %v6848 = vmul.f32 1.0, %v6847
    %v6849 = vmul.f32 %v6828, %v6136
    %v6850 = vmul.f32 %v6809, %v6829
    %v6851 = vadd.f32 %v6849, %v6850
    %v6852 = vtanh.pop %v6851
    %v6853 = vmul.f32 %v6848, %v6852
    %v6854 = vld [vmem:[#allocation11] sm:$0xff]
    %v6855 = vld [vmem:[#allocation11 + $0x8] sm:$0xff]
    %v6856 = vld [vmem:[#allocation11 + $0x10] sm:$0xff]
    %v6857 = vld [vmem:[#allocation11 + $0x18] sm:$0xff]
    %v6858 = vld [vmem:[#allocation11 + $0x20] sm:$0xff]
    %v6859 = vld [vmem:[#allocation11 + $0x28] sm:$0xff]
    %v6860 = vld [vmem:[#allocation11 + $0x30] sm:$0xff]
    %v6861 = vld [vmem:[#allocation11 + $0x38] sm:$0xff]
    %v6862 = vld [vmem:[#allocation11 + $0x40] sm:$0xff]
    %v6863 = vld [vmem:[#allocation11 + $0x48] sm:$0xff]
    %v6864 = vld [vmem:[#allocation11 + $0x50] sm:$0xff]
    %v6865 = vld [vmem:[#allocation11 + $0x58] sm:$0xff]
    %v6866 = vld [vmem:[#allocation11 + $0x60] sm:$0xff]
    %v6867 = vld [vmem:[#allocation11 + $0x68] sm:$0xff]
    %v6868 = vld [vmem:[#allocation11 + $0x70] sm:$0xff]
    %v6869 = vld [vmem:[#allocation11 + $0x78] sm:$0xff]
    %v6870 = vld [vmem:[#allocation11 + $0x80] sm:$0xff]
    %v6871 = vld [vmem:[#allocation11 + $0x88] sm:$0xff]
    %v6872 = vld [vmem:[#allocation11 + $0x90] sm:$0xff]
    %v6873 = vld [vmem:[#allocation11 + $0x98] sm:$0xff]
    %v6874 = vld [vmem:[#allocation11 + $0xa0] sm:$0xff]
    %v6875 = vld [vmem:[#allocation11 + $0xa8] sm:$0xff]
    %v6876 = vld [vmem:[#allocation11 + $0xb0] sm:$0xff]
    %v6877 = vld [vmem:[#allocation11 + $0xb8] sm:$0xff]
    %v6878 = vld [vmem:[#allocation11 + $0xc0] sm:$0xff]
    %v6879 = vld [vmem:[#allocation11 + $0xc8] sm:$0xff]
    %v6880 = vld [vmem:[#allocation11 + $0xd0] sm:$0xff]
    %v6881 = vld [vmem:[#allocation11 + $0xd8] sm:$0xff]
    %v6882 = vld [vmem:[#allocation11 + $0xe0] sm:$0xff]
    %v6883 = vld [vmem:[#allocation11 + $0xe8] sm:$0xff]
    %v6884 = vld [vmem:[#allocation11 + $0xf0] sm:$0xff]
    %v6885 = vld [vmem:[#allocation11 + $0xf8] sm:$0xff]
    %v6886 = vld [vmem:[#allocation11 + $0x100] sm:$0xff]
    %v6887 = vld [vmem:[#allocation11 + $0x108] sm:$0xff]
    %v6888 = vld [vmem:[#allocation11 + $0x110] sm:$0xff]
    %v6889 = vld [vmem:[#allocation11 + $0x118] sm:$0xff]
    %v6890 = vld [vmem:[#allocation11 + $0x120] sm:$0xff]
    %v6891 = vld [vmem:[#allocation11 + $0x128] sm:$0xff]
    %v6892 = vld [vmem:[#allocation11 + $0x130] sm:$0xff]
    %v6893 = vld [vmem:[#allocation11 + $0x138] sm:$0xff]
    %v6894 = vld [vmem:[#allocation11 + $0x140] sm:$0xff]
    %v6895 = vld [vmem:[#allocation11 + $0x148] sm:$0xff]
    %v6896 = vld [vmem:[#allocation11 + $0x150] sm:$0xff]
    %v6897 = vld [vmem:[#allocation11 + $0x158] sm:$0xff]
    %v6898 = vld [vmem:[#allocation11 + $0x160] sm:$0xff]
    %v6899 = vld [vmem:[#allocation11 + $0x168] sm:$0xff]
    %v6900 = vld [vmem:[#allocation11 + $0x170] sm:$0xff]
    %v6901 = vld [vmem:[#allocation11 + $0x178] sm:$0xff]
    %v6902 = vld [vmem:[#allocation11 + $0x180] sm:$0xff]
    %v6903 = vld [vmem:[#allocation11 + $0x188] sm:$0xff]
    %v6904 = vld [vmem:[#allocation11 + $0x190] sm:$0xff]
    %v6905 = vld [vmem:[#allocation11 + $0x198] sm:$0xff]
    %v6906 = vld [vmem:[#allocation11 + $0x1a0] sm:$0xff]
    %v6907 = vld [vmem:[#allocation11 + $0x1a8] sm:$0xff]
    %v6908 = vld [vmem:[#allocation11 + $0x1b0] sm:$0xff]
    %v6909 = vld [vmem:[#allocation11 + $0x1b8] sm:$0xff]
    %v6910 = vld [vmem:[#allocation11 + $0x1c0] sm:$0xff]
    %v6911 = vld [vmem:[#allocation11 + $0x1c8] sm:$0xff]
    %v6912 = vld [vmem:[#allocation11 + $0x1d0] sm:$0xff]
    %v6913 = vld [vmem:[#allocation11 + $0x1d8] sm:$0xff]
    %v6914 = vld [vmem:[#allocation11 + $0x1e0] sm:$0xff]
    %v6915 = vld [vmem:[#allocation11 + $0x1e8] sm:$0xff]
    %v6916 = vld [vmem:[#allocation11 + $0x1f0] sm:$0xff]
    %v6917 = vld [vmem:[#allocation11 + $0x1f8] sm:$0xff]
    %v6918 = vld [vmem:[#allocation11 + $0x200] sm:$0xff]
    %v6919 = vld [vmem:[#allocation11 + $0x208] sm:$0xff]
    %v6920 = vld [vmem:[#allocation11 + $0x210] sm:$0xff]
    %v6921 = vld [vmem:[#allocation11 + $0x218] sm:$0xff]
    %v6922 = vld [vmem:[#allocation11 + $0x220] sm:$0xff]
    %v6923 = vld [vmem:[#allocation11 + $0x228] sm:$0xff]
    %v6924 = vld [vmem:[#allocation11 + $0x230] sm:$0xff]
    %v6925 = vld [vmem:[#allocation11 + $0x238] sm:$0xff]
    %v6926 = vld [vmem:[#allocation11 + $0x240] sm:$0xff]
    %v6927 = vld [vmem:[#allocation11 + $0x248] sm:$0xff]
    %v6928 = vld [vmem:[#allocation11 + $0x250] sm:$0xff]
    %v6929 = vld [vmem:[#allocation11 + $0x258] sm:$0xff]
    %v6930 = vld [vmem:[#allocation11 + $0x260] sm:$0xff]
    %v6931 = vld [vmem:[#allocation11 + $0x268] sm:$0xff]
    %v6932 = vld [vmem:[#allocation11 + $0x270] sm:$0xff]
    %v6933 = vld [vmem:[#allocation11 + $0x278] sm:$0xff]
    %v6934 = vld [vmem:[#allocation11 + $0x280] sm:$0xff]
    %v6935 = vld [vmem:[#allocation11 + $0x288] sm:$0xff]
    %v6936 = vld [vmem:[#allocation11 + $0x290] sm:$0xff]
    %v6937 = vld [vmem:[#allocation11 + $0x298] sm:$0xff]
    %v6938 = vld [vmem:[#allocation11 + $0x2a0] sm:$0xff]
    %v6939 = vld [vmem:[#allocation11 + $0x2a8] sm:$0xff]
    %v6940 = vld [vmem:[#allocation11 + $0x2b0] sm:$0xff]
    %v6941 = vld [vmem:[#allocation11 + $0x2b8] sm:$0xff]
    %v6942 = vld [vmem:[#allocation11 + $0x2c0] sm:$0xff]
    %v6943 = vld [vmem:[#allocation11 + $0x2c8] sm:$0xff]
    %v6944 = vld [vmem:[#allocation11 + $0x2d0] sm:$0xff]
    %v6945 = vld [vmem:[#allocation11 + $0x2d8] sm:$0xff]
    %v6946 = vld [vmem:[#allocation11 + $0x2e0] sm:$0xff]
    %v6947 = vld [vmem:[#allocation11 + $0x2e8] sm:$0xff]
    %v6948 = vld [vmem:[#allocation11 + $0x2f0] sm:$0xff]
    %v6949 = vld [vmem:[#allocation11 + $0x2f8] sm:$0xff]
    %v6950 = vld [vmem:[#allocation11 + $0x300] sm:$0xff]
    %v6951 = vld [vmem:[#allocation11 + $0x308] sm:$0xff]
    %v6952 = vld [vmem:[#allocation11 + $0x310] sm:$0xff]
    %v6953 = vld [vmem:[#allocation11 + $0x318] sm:$0xff]
    %v6954 = vld [vmem:[#allocation11 + $0x320] sm:$0xff]
    %v6955 = vld [vmem:[#allocation11 + $0x328] sm:$0xff]
    %v6956 = vld [vmem:[#allocation11 + $0x330] sm:$0xff]
    %v6957 = vld [vmem:[#allocation11 + $0x338] sm:$0xff]
    %v6958 = vld [vmem:[#allocation11 + $0x340] sm:$0xff]
    %v6959 = vld [vmem:[#allocation11 + $0x348] sm:$0xff]
    %v6960 = vld [vmem:[#allocation11 + $0x350] sm:$0xff]
    %v6961 = vld [vmem:[#allocation11 + $0x358] sm:$0xff]
    %v6962 = vld [vmem:[#allocation11 + $0x360] sm:$0xff]
    %v6963 = vld [vmem:[#allocation11 + $0x368] sm:$0xff]
    %v6964 = vld [vmem:[#allocation11 + $0x370] sm:$0xff]
    %v6965 = vld [vmem:[#allocation11 + $0x378] sm:$0xff]
    %v6966 = vld [vmem:[#allocation11 + $0x380] sm:$0xff]
    %v6967 = vld [vmem:[#allocation11 + $0x388] sm:$0xff]
    %v6968 = vld [vmem:[#allocation11 + $0x390] sm:$0xff]
    %v6969 = vld [vmem:[#allocation11 + $0x398] sm:$0xff]
    %v6970 = vld [vmem:[#allocation11 + $0x3a0] sm:$0xff]
    %v6971 = vld [vmem:[#allocation11 + $0x3a8] sm:$0xff]
    %v6972 = vld [vmem:[#allocation11 + $0x3b0] sm:$0xff]
    %v6973 = vld [vmem:[#allocation11 + $0x3b8] sm:$0xff]
    %v6974 = vld [vmem:[#allocation11 + $0x3c0] sm:$0xff]
    %v6975 = vld [vmem:[#allocation11 + $0x3c8] sm:$0xff]
    %v6976 = vld [vmem:[#allocation11 + $0x3d0] sm:$0xff]
    %v6977 = vld [vmem:[#allocation11 + $0x3d8] sm:$0xff]
    %v6978 = vld [vmem:[#allocation11 + $0x3e0] sm:$0xff]
    %v6979 = vld [vmem:[#allocation11 + $0x3e8] sm:$0xff]
    %v6980 = vld [vmem:[#allocation11 + $0x3f0] sm:$0xff]
    %v6981 = vld [vmem:[#allocation11 + $0x3f8] sm:$0xff]
    %6982 = vmatpush.msra.mxu0 %v6914
    %6983 = vmatpush.msra.mxu0 %v6910
    %6984 = vmatpush.msra.mxu0 %v6906
    %6985 = vmatpush.msra.mxu0 %v6902
    %6986 = vmatpush.msra.mxu0 %v6898
    %6987 = vmatpush.msra.mxu0 %v6894
    %6988 = vmatpush.msra.mxu0 %v6890
    %6989 = vmatpush.msra.mxu0 %v6886
    %6990 = vmatpush.msra.mxu0 %v6882
    %6991 = vmatpush.msra.mxu0 %v6878
    %6992 = vmatpush.msra.mxu0 %v6874
    %6993 = vmatpush.msra.mxu0 %v6870
    %6994 = vmatpush.msra.mxu0 %v6866
    %6995 = vmatpush.msra.mxu0 %v6862
    %6996 = vmatpush.msra.mxu0 %v6858
    %6997 = vmatpush.msra.mxu0 %v6854
    %6998 = vmatmul.f32.gmra.mxu0 %v6853
    %v6999 = vpop.f32.mrf.mxu0
    %v7000 = vadd.f32 %v587, %v6999
    %7001 = vdwg.mxu0
    %7002 = vmatpush.msra.mxu0 %v6978
    %7003 = vmatpush.msra.mxu0 %v6974
    %7004 = vmatpush.msra.mxu0 %v6970
    %7005 = vmatpush.msra.mxu0 %v6966
    %7006 = vmatpush.msra.mxu0 %v6962
    %7007 = vmatpush.msra.mxu0 %v6958
    %7008 = vmatpush.msra.mxu0 %v6954
    %7009 = vmatpush.msra.mxu0 %v6950
    %7010 = vmatpush.msra.mxu0 %v6946
    %7011 = vmatpush.msra.mxu0 %v6942
    %7012 = vmatpush.msra.mxu0 %v6938
    %7013 = vmatpush.msra.mxu0 %v6934
    %7014 = vmatpush.msra.mxu0 %v6930
    %7015 = vmatpush.msra.mxu0 %v6926
    %7016 = vmatpush.msra.mxu0 %v6922
    %7017 = vmatpush.msra.mxu0 %v6918
    %7018 = vmatmul.f32.gmra.mxu0 %v6489
    %v7019 = vpop.f32.mrf.mxu0
    %v7020 = vadd.f32 %v7000, %v7019
    %7021 = vdwg.mxu0
    %7022 = vmatpush.msra.mxu0 %v6915
    %7023 = vmatpush.msra.mxu0 %v6911
    %7024 = vmatpush.msra.mxu0 %v6907
    %7025 = vmatpush.msra.mxu0 %v6903
    %7026 = vmatpush.msra.mxu0 %v6899
    %7027 = vmatpush.msra.mxu0 %v6895
    %7028 = vmatpush.msra.mxu0 %v6891
    %7029 = vmatpush.msra.mxu0 %v6887
    %7030 = vmatpush.msra.mxu0 %v6883
    %7031 = vmatpush.msra.mxu0 %v6879
    %7032 = vmatpush.msra.mxu0 %v6875
    %7033 = vmatpush.msra.mxu0 %v6871
    %7034 = vmatpush.msra.mxu0 %v6867
    %7035 = vmatpush.msra.mxu0 %v6863
    %7036 = vmatpush.msra.mxu0 %v6859
    %7037 = vmatpush.msra.mxu0 %v6855
    %7038 = vmatmul.f32.gmra.mxu0 %v6853
    %v7039 = vpop.f32.mrf.mxu0
    %v7040 = vadd.f32 %v588, %v7039
    %7041 = vdwg.mxu0
    %7042 = vmatpush.msra.mxu0 %v6979
    %7043 = vmatpush.msra.mxu0 %v6975
    %7044 = vmatpush.msra.mxu0 %v6971
    %7045 = vmatpush.msra.mxu0 %v6967
    %7046 = vmatpush.msra.mxu0 %v6963
    %7047 = vmatpush.msra.mxu0 %v6959
    %7048 = vmatpush.msra.mxu0 %v6955
    %7049 = vmatpush.msra.mxu0 %v6951
    %7050 = vmatpush.msra.mxu0 %v6947
    %7051 = vmatpush.msra.mxu0 %v6943
    %7052 = vmatpush.msra.mxu0 %v6939
    %7053 = vmatpush.msra.mxu0 %v6935
    %7054 = vmatpush.msra.mxu0 %v6931
    %7055 = vmatpush.msra.mxu0 %v6927
    %7056 = vmatpush.msra.mxu0 %v6923
    %7057 = vmatpush.msra.mxu0 %v6919
    %7058 = vmatmul.f32.gmra.mxu0 %v6489
    %v7059 = vpop.f32.mrf.mxu0
    %v7060 = vadd.f32 %v7040, %v7059
    %7061 = vdwg.mxu0
    %7062 = vmatpush.msra.mxu0 %v6916
    %7063 = vmatpush.msra.mxu0 %v6912
    %7064 = vmatpush.msra.mxu0 %v6908
    %7065 = vmatpush.msra.mxu0 %v6904
    %7066 = vmatpush.msra.mxu0 %v6900
    %7067 = vmatpush.msra.mxu0 %v6896
    %7068 = vmatpush.msra.mxu0 %v6892
    %7069 = vmatpush.msra.mxu0 %v6888
    %7070 = vmatpush.msra.mxu0 %v6884
    %7071 = vmatpush.msra.mxu0 %v6880
    %7072 = vmatpush.msra.mxu0 %v6876
    %7073 = vmatpush.msra.mxu0 %v6872
    %7074 = vmatpush.msra.mxu0 %v6868
    %7075 = vmatpush.msra.mxu0 %v6864
    %7076 = vmatpush.msra.mxu0 %v6860
    %7077 = vmatpush.msra.mxu0 %v6856
    %7078 = vmatmul.f32.gmra.mxu0 %v6853
    %v7079 = vpop.f32.mrf.mxu0
    %v7080 = vadd.f32 %v589, %v7079
    %7081 = vdwg.mxu0
    %7082 = vmatpush.msra.mxu0 %v6980
    %7083 = vmatpush.msra.mxu0 %v6976
    %7084 = vmatpush.msra.mxu0 %v6972
    %7085 = vmatpush.msra.mxu0 %v6968
    %7086 = vmatpush.msra.mxu0 %v6964
    %7087 = vmatpush.msra.mxu0 %v6960
    %7088 = vmatpush.msra.mxu0 %v6956
    %7089 = vmatpush.msra.mxu0 %v6952
    %7090 = vmatpush.msra.mxu0 %v6948
    %7091 = vmatpush.msra.mxu0 %v6944
    %7092 = vmatpush.msra.mxu0 %v6940
    %7093 = vmatpush.msra.mxu0 %v6936
    %7094 = vmatpush.msra.mxu0 %v6932
    %7095 = vmatpush.msra.mxu0 %v6928
    %7096 = vmatpush.msra.mxu0 %v6924
    %7097 = vmatpush.msra.mxu0 %v6920
    %7098 = vmatmul.f32.gmra.mxu0 %v6489
    %v7099 = vpop.f32.mrf.mxu0
    %v7100 = vadd.f32 %v7080, %v7099
    %7101 = vdwg.mxu0
    %7102 = vmatpush.msra.mxu0 %v6917
    %7103 = vmatpush.msra.mxu0 %v6913
    %7104 = vmatpush.msra.mxu0 %v6909
    %7105 = vmatpush.msra.mxu0 %v6905
    %7106 = vmatpush.msra.mxu0 %v6901
    %7107 = vmatpush.msra.mxu0 %v6897
    %7108 = vmatpush.msra.mxu0 %v6893
    %7109 = vmatpush.msra.mxu0 %v6889
    %7110 = vmatpush.msra.mxu0 %v6885
    %7111 = vmatpush.msra.mxu0 %v6881
    %7112 = vmatpush.msra.mxu0 %v6877
    %7113 = vmatpush.msra.mxu0 %v6873
    %7114 = vmatpush.msra.mxu0 %v6869
    %7115 = vmatpush.msra.mxu0 %v6865
    %7116 = vmatpush.msra.mxu0 %v6861
    %7117 = vmatpush.msra.mxu0 %v6857
    %7118 = vmatmul.f32.gmra.mxu0 %v6853
    %v7119 = vpop.f32.mrf.mxu0
    %v7120 = vadd.f32 %v590, %v7119
    %7121 = vdwg.mxu0
    %7122 = vmatpush.msra.mxu0 %v6981
    %7123 = vmatpush.msra.mxu0 %v6977
    %7124 = vmatpush.msra.mxu0 %v6973
    %7125 = vmatpush.msra.mxu0 %v6969
    %7126 = vmatpush.msra.mxu0 %v6965
    %7127 = vmatpush.msra.mxu0 %v6961
    %7128 = vmatpush.msra.mxu0 %v6957
    %7129 = vmatpush.msra.mxu0 %v6953
    %7130 = vmatpush.msra.mxu0 %v6949
    %7131 = vmatpush.msra.mxu0 %v6945
    %7132 = vmatpush.msra.mxu0 %v6941
    %7133 = vmatpush.msra.mxu0 %v6937
    %7134 = vmatpush.msra.mxu0 %v6933
    %7135 = vmatpush.msra.mxu0 %v6929
    %7136 = vmatpush.msra.mxu0 %v6925
    %7137 = vmatpush.msra.mxu0 %v6921
    %7138 = vmatmul.f32.gmra.mxu0 %v6489
    %v7139 = vpop.f32.mrf.mxu0
    %v7140 = vadd.f32 %v7120, %v7139
    %7141 = vdwg.mxu0
    %v7142 = vxor.u32 %v7020, 2147483648
    %v7143 = vmul.f32 %v7142, 1.442695
    %v7144 = vpow.pop %v7143
    %v7145 = vadd.f32 %v7144, 1.0
    %v7146 = vrcp.pop %v7145
    %v7147 = vmul.f32 %v7145, %v7146
    %v7148 = vsub.f32 1.0, %v7147
    %v7149 = vmul.f32 %v7146, %v7148
    %v7150 = vadd.f32 %v7146, %v7149
    %vm7151 = vweird.f32 %v7145
    %vm7152 = vweird.f32 %v7146
    %vm7153 = vmor %vm7151, %vm7152
    %v7154 = vsel %vm7153, %v7146, %v7150
    %v7155 = vand.u32 2147483647, %v7145
    %vm7156 = vcmp.eq.f32.partialorder %v7155, 8.507059e+37
    %v7157 = vand.u32 %v7145, 2147483648
    %v7158 = vor.u32 1.1754944e-38, %v7157
    %v7159 = vsel %vm7156, %v7158, %v7154
    %v7160 = vmul.f32 1.0, %v7159
    %v7161 = vxor.u32 %v7060, 2147483648
    %v7162 = vmul.f32 %v7161, 1.442695
    %v7163 = vpow.pop %v7162
    %v7164 = vadd.f32 %v7163, 1.0
    %v7165 = vrcp.pop %v7164
    %v7166 = vmul.f32 %v7164, %v7165
    %v7167 = vsub.f32 1.0, %v7166
    %v7168 = vmul.f32 %v7165, %v7167
    %v7169 = vadd.f32 %v7165, %v7168
    %vm7170 = vweird.f32 %v7164
    %vm7171 = vweird.f32 %v7165
    %vm7172 = vmor %vm7170, %vm7171
    %v7173 = vsel %vm7172, %v7165, %v7169
    %v7174 = vand.u32 2147483647, %v7164
    %vm7175 = vcmp.eq.f32.partialorder %v7174, 8.507059e+37
    %v7176 = vand.u32 %v7164, 2147483648
    %v7177 = vor.u32 1.1754944e-38, %v7176
    %v7178 = vsel %vm7175, %v7177, %v7173
    %v7179 = vmul.f32 1.0, %v7178
    %v7180 = vtanh.pop %v7100
    %v7181 = vxor.u32 %v7140, 2147483648
    %v7182 = vmul.f32 %v7181, 1.442695
    %v7183 = vpow.pop %v7182
    %v7184 = vadd.f32 %v7183, 1.0
    %v7185 = vrcp.pop %v7184
    %v7186 = vmul.f32 %v7184, %v7185
    %v7187 = vsub.f32 1.0, %v7186
    %v7188 = vmul.f32 %v7185, %v7187
    %v7189 = vadd.f32 %v7185, %v7188
    %vm7190 = vweird.f32 %v7184
    %vm7191 = vweird.f32 %v7185
    %vm7192 = vmor %vm7190, %vm7191
    %v7193 = vsel %vm7192, %v7185, %v7189
    %v7194 = vand.u32 2147483647, %v7184
    %vm7195 = vcmp.eq.f32.partialorder %v7194, 8.507059e+37
    %v7196 = vand.u32 %v7184, 2147483648
    %v7197 = vor.u32 1.1754944e-38, %v7196
    %v7198 = vsel %vm7195, %v7197, %v7193
    %v7199 = vmul.f32 1.0, %v7198
    %v7200 = vmul.f32 %v7179, %v6487
    %v7201 = vmul.f32 %v7160, %v7180
    %v7202 = vadd.f32 %v7200, %v7201
    %v7203 = vtanh.pop %v7202
    %v7204 = vmul.f32 %v7199, %v7203
    %7205 = vst [vmem:[#allocation4 + $0x20] sm:$0xff] %v7204
    %v7206 = vld [vmem:[#allocation4] sm:$0xff]
    %v7207 = vld [vmem:[#allocation4 + $0x8] sm:$0xff]
    %v7208 = vld [vmem:[#allocation4 + $0x10] sm:$0xff]
    %v7209 = vld [vmem:[#allocation4 + $0x18] sm:$0xff]
    %v7210 = vld [vmem:[#allocation4 + $0x20] sm:$0xff]
    %v7211 = vld [vmem:[%s8] sm:$0xff]
    %v7212 = vld [vmem:[%s8 + $0x8] sm:$0xff]
    %v7213 = vld [vmem:[%s8 + $0x10] sm:$0xff]
    %v7214 = vld [vmem:[%s8 + $0x18] sm:$0xff]
    %v7215 = vld [vmem:[%s8 + $0x20] sm:$0xff]
    %v7216 = vld [vmem:[%s8 + $0x28] sm:$0xff]
    %v7217 = vld [vmem:[%s8 + $0x30] sm:$0xff]
    %v7218 = vld [vmem:[%s8 + $0x38] sm:$0xff]
    %v7219 = vld [vmem:[%s8 + $0x40] sm:$0xff]
    %v7220 = vld [vmem:[%s8 + $0x48] sm:$0xff]
    %v7221 = vld [vmem:[%s8 + $0x50] sm:$0xff]
    %v7222 = vld [vmem:[%s8 + $0x58] sm:$0xff]
    %v7223 = vld [vmem:[%s8 + $0x60] sm:$0xff]
    %v7224 = vld [vmem:[%s8 + $0x68] sm:$0xff]
    %v7225 = vld [vmem:[%s8 + $0x70] sm:$0xff]
    %v7226 = vld [vmem:[%s8 + $0x78] sm:$0xff]
    %v7227 = vld [vmem:[%s10] sm:$0x1]
    %v7229 = vperm.slane %v7227, 0
    %7231 = vmatpush.msra.mxu0 %v7226
    %7232 = vmatpush.msra.mxu0 %v7225
    %7233 = vmatpush.msra.mxu0 %v7224
    %7234 = vmatpush.msra.mxu0 %v7223
    %7235 = vmatpush.msra.mxu0 %v7222
    %7236 = vmatpush.msra.mxu0 %v7221
    %7237 = vmatpush.msra.mxu0 %v7220
    %7238 = vmatpush.msra.mxu0 %v7219
    %7239 = vmatpush.msra.mxu0 %v7218
    %7240 = vmatpush.msra.mxu0 %v7217
    %7241 = vmatpush.msra.mxu0 %v7216
    %7242 = vmatpush.msra.mxu0 %v7215
    %7243 = vmatpush.msra.mxu0 %v7214
    %7244 = vmatpush.msra.mxu0 %v7213
    %7245 = vmatpush.msra.mxu0 %v7212
    %7246 = vmatpush.msra.mxu0 %v7211
    %7247 = vmatmul.f32.gmra.mxu0 %v7206
    %v7248 = vpop.f32.mrf.mxu0
    %v7249 = vadd.f32 %v7229, %v7248
    %7250 = vmatmul.f32.gmra.mxu0 %v7207
    %v7251 = vpop.f32.mrf.mxu0
    %v7252 = vadd.f32 %v7229, %v7251
    %7253 = vmatmul.f32.gmra.mxu0 %v7208
    %v7254 = vpop.f32.mrf.mxu0
    %v7255 = vadd.f32 %v7229, %v7254
    %7256 = vmatmul.f32.gmra.mxu0 %v7209
    %v7257 = vpop.f32.mrf.mxu0
    %v7258 = vadd.f32 %v7229, %v7257
    %7259 = vmatmul.f32.gmra.mxu0 %v7210
    %v7260 = vpop.f32.mrf.mxu0
    %v7261 = vadd.f32 %v7229, %v7260
    %7262 = vdwg.mxu0
    %vm7263 = vcmask 64512
    %7264 = vst.msk [vmem:[#allocation13] sm:$0xff] %vm7263, %v7249
    %7265 = vst.msk [vmem:[#allocation13 + $0x8] sm:$0xff] %vm7263, %v7252
    %7266 = vst.msk [vmem:[#allocation13 + $0x10] sm:$0xff] %vm7263, %v7255
    %7267 = vst.msk [vmem:[#allocation13 + $0x18] sm:$0xff] %vm7263, %v7258
    %7268 = vst.msk [vmem:[#allocation13 + $0x20] sm:$0xff] %vm7263, %v7261
    // Predicated region
    $region62: #{seq2seq_forward.1} parent=1 // pred_check
      _
    $region63: #{seq2seq_forward.1} parent=1 // pred_check_branch
      %7270 = sbr.rel (0) target = $region65
    $region64: #{seq2seq_forward.1} parent=1 // pred_region
      %7272 = vsyncadd [#allocation7], 0
      %s7273 = sshll.u32 [#allocation13], 4
      %s7274 = int_to_ptr.vmem [resolvable:$true] %s7273
      %s7275 = sshll.u32 %s11, 4
      %s7276 = int_to_ptr.hbm [resolvable:$true] %s7275
      %7281 = dma.vmem_to_hbm [thread:$0]  %s7274, 640, %s7276, [#allocation7], 128, 128, 8
    $region65: #{seq2seq_forward.1} parent=1 // pred_fallthru
      _
    // Predicated region
    $region66: #{seq2seq_forward.1} parent=1 // pred_check
      _
    $region67: #{seq2seq_forward.1} parent=1 // pred_check_branch
      %7283 = sbr.rel (0) target = $region69
    $region68: #{seq2seq_forward.1} parent=1 // pred_region
      %7285 = dma.done [#allocation7], 640
    $region69: #{seq2seq_forward.1} parent=1 // pred_fallthru
      _
    %7286 = vsyncpa [#allocation6], 1
    %7287 = vsyncpa [#allocation9], 1
    %7288 = vsyncpa [#allocation12], 1
    %7289 = vsyncpa [#allocation7], 1

</llo_original>
